<compile_context>
chip_gen: v7x
topology: tpu7x:2x2x1
jax: 0.10.0
libtpu: 0.0.40
codegen_flags: <defaults>
</compile_context>

<pallas_src>
import functools

import jax
import jax.numpy as jnp
from jax.experimental import pallas as pl
from jax.experimental.pallas import tpu as pltpu

# ------------------------- model hyper-parameters (small) -------------------
BATCH = 2
SRC_LEN = 8
TGT_LEN = 8
EMBED = 32          # hidden size
HEADS = 4
HEAD_DIM = EMBED // HEADS
INTER = 64          # intermediate (FFN) dim
VOCAB = 64
N_LANGS = 2         # type_vocab_size == number of languages
MAX_POS = 16
ENC_LAYERS = 2
DEC_LAYERS = 2
LN_EPS = 1e-12
NEG_BIAS = -10000.0


# ------------------------------ Pallas kernels ------------------------------
def _ln(x, g, b):
    """LayerNorm over the last (lane) axis; g/b are (1, H) and broadcast."""
    mu = jnp.mean(x, axis=-1, keepdims=True)
    var = jnp.mean(jnp.square(x - mu), axis=-1, keepdims=True)
    return (x - mu) * jax.lax.rsqrt(var + LN_EPS) * g + b


def _dense_kernel(x_ref, w_ref, b_ref, o_ref):
    y = jnp.dot(x_ref[...], w_ref[...], preferred_element_type=jnp.float32)
    o_ref[...] = (y + b_ref[...]).astype(o_ref.dtype)


def dense(x, w, b):
    """(M, K) @ (K, N) + b, fully VMEM-resident single-block kernel."""
    M, K = x.shape
    N = w.shape[1]
    return pl.pallas_call(
        _dense_kernel,
        out_shape=jax.ShapeDtypeStruct((M, N), jnp.float32),
        grid=(1,),
        in_specs=[
            pl.BlockSpec((M, K), lambda i: (0, 0)),
            pl.BlockSpec((K, N), lambda i: (0, 0)),
            pl.BlockSpec((1, N), lambda i: (0, 0)),
        ],
        out_specs=pl.BlockSpec((M, N), lambda i: (0, 0)),
        compiler_params=pltpu.CompilerParams(dimension_semantics=("arbitrary",)),
    )(x, w, b.reshape(1, N))


def _layernorm_kernel(x_ref, g_ref, b_ref, o_ref):
    o_ref[...] = _ln(x_ref[...].astype(jnp.float32), g_ref[...], b_ref[...]
                     ).astype(o_ref.dtype)


def layernorm(x, gamma, beta):
    M, H = x.shape
    return pl.pallas_call(
        _layernorm_kernel,
        out_shape=jax.ShapeDtypeStruct((M, H), jnp.float32),
        grid=(1,),
        in_specs=[
            pl.BlockSpec((M, H), lambda i: (0, 0)),
            pl.BlockSpec((1, H), lambda i: (0, 0)),
            pl.BlockSpec((1, H), lambda i: (0, 0)),
        ],
        out_specs=pl.BlockSpec((M, H), lambda i: (0, 0)),
        compiler_params=pltpu.CompilerParams(dimension_semantics=("arbitrary",)),
    )(x, gamma.reshape(1, H), beta.reshape(1, H))


def _proj_res_ln_kernel(x_ref, w_ref, b_ref, r_ref, g_ref, bb_ref, o_ref):
    """Fused: x @ W + b + residual, then LayerNorm."""
    y = jnp.dot(x_ref[...], w_ref[...], preferred_element_type=jnp.float32)
    y = y + b_ref[...] + r_ref[...]
    o_ref[...] = _ln(y, g_ref[...], bb_ref[...]).astype(o_ref.dtype)


def proj_residual_ln(x, w, b, residual, gamma, beta):
    M, K = x.shape
    N = w.shape[1]
    return pl.pallas_call(
        _proj_res_ln_kernel,
        out_shape=jax.ShapeDtypeStruct((M, N), jnp.float32),
        grid=(1,),
        in_specs=[
            pl.BlockSpec((M, K), lambda i: (0, 0)),
            pl.BlockSpec((K, N), lambda i: (0, 0)),
            pl.BlockSpec((1, N), lambda i: (0, 0)),
            pl.BlockSpec((M, N), lambda i: (0, 0)),
            pl.BlockSpec((1, N), lambda i: (0, 0)),
            pl.BlockSpec((1, N), lambda i: (0, 0)),
        ],
        out_specs=pl.BlockSpec((M, N), lambda i: (0, 0)),
        compiler_params=pltpu.CompilerParams(dimension_semantics=("arbitrary",)),
    )(x, w, b.reshape(1, N), residual, gamma.reshape(1, N), beta.reshape(1, N))


def _ffn_kernel(x_ref, wi_ref, bi_ref, wo_ref, bo_ref, g_ref, b_ref, o_ref):
    """Fused FFN: x@Wi+bi -> GELU -> @Wo+bo -> +x -> LayerNorm.

    The (M, INTER) intermediate stays in VMEM/vregs, never touches HBM.
    """
    x = x_ref[...]
    h = jnp.dot(x, wi_ref[...], preferred_element_type=jnp.float32) + bi_ref[...]
    # TODO(synk): BERT uses exact erf-GELU; tanh approximation used here.
    h = jax.nn.gelu(h, approximate=True)
    y = jnp.dot(h, wo_ref[...], preferred_element_type=jnp.float32) + bo_ref[...]
    y = y + x
    o_ref[...] = _ln(y, g_ref[...], b_ref[...]).astype(o_ref.dtype)


def ffn_fused(x, wi, bi, wo, bo, gamma, beta):
    M, H = x.shape
    I = wi.shape[1]
    return pl.pallas_call(
        _ffn_kernel,
        out_shape=jax.ShapeDtypeStruct((M, H), jnp.float32),
        grid=(1,),
        in_specs=[
            pl.BlockSpec((M, H), lambda i: (0, 0)),
            pl.BlockSpec((H, I), lambda i: (0, 0)),
            pl.BlockSpec((1, I), lambda i: (0, 0)),
            pl.BlockSpec((I, H), lambda i: (0, 0)),
            pl.BlockSpec((1, H), lambda i: (0, 0)),
            pl.BlockSpec((1, H), lambda i: (0, 0)),
            pl.BlockSpec((1, H), lambda i: (0, 0)),
        ],
        out_specs=pl.BlockSpec((M, H), lambda i: (0, 0)),
        compiler_params=pltpu.CompilerParams(dimension_semantics=("arbitrary",)),
    )(x, wi, bi.reshape(1, I), wo, bo.reshape(1, H),
      gamma.reshape(1, H), beta.reshape(1, H))


def _attention_kernel(q_ref, k_ref, v_ref, m_ref, o_ref, *, scale, causal):
    """Single program over all B*HEADS heads; mask built in-kernel."""
    q = q_ref[...]
    k = k_ref[...]
    v = v_ref[...]
    s = jnp.einsum("bqd,bkd->bqk", q, k,
                   preferred_element_type=jnp.float32) * scale
    BH, Tq, Tk = s.shape
    # Additive key-padding bias: m_ref is (BH, 1, Tk) with 1.0 = valid.
    s = s + (1.0 - m_ref[...]) * NEG_BIAS
    if causal:
        qi = jax.lax.broadcasted_iota(jnp.int32, (Tq, Tk), 0)
        ki = jax.lax.broadcasted_iota(jnp.int32, (Tq, Tk), 1)
        s = s + jnp.where(ki <= qi, 0.0, NEG_BIAS)[None, :, :]
    m = jnp.max(s, axis=-1, keepdims=True)
    p = jnp.exp(s - m)
    denom = jnp.sum(p, axis=-1, keepdims=True)
    p = p * pl.reciprocal(denom, approx=True)     # EUP slot, free under MXU work
    o_ref[...] = jnp.einsum("bqk,bkd->bqd", p, v,
                            preferred_element_type=jnp.float32).astype(o_ref.dtype)


def attention(q, k, v, key_mask3d, scale, causal):
    """q: (BH, Tq, Dh), k/v: (BH, Tk, Dh), key_mask3d: (BH, 1, Tk) f32."""
    BH, Tq, Dh = q.shape
    Tk = k.shape[1]
    return pl.pallas_call(
        functools.partial(_attention_kernel, scale=scale, causal=causal),
        out_shape=jax.ShapeDtypeStruct((BH, Tq, Dh), jnp.float32),
        grid=(1,),
        in_specs=[
            pl.BlockSpec((BH, Tq, Dh), lambda i: (0, 0, 0)),
            pl.BlockSpec((BH, Tk, Dh), lambda i: (0, 0, 0)),
            pl.BlockSpec((BH, Tk, Dh), lambda i: (0, 0, 0)),
            pl.BlockSpec((BH, 1, Tk), lambda i: (0, 0, 0)),
        ],
        out_specs=pl.BlockSpec((BH, Tq, Dh), lambda i: (0, 0, 0)),
        compiler_params=pltpu.CompilerParams(dimension_semantics=("arbitrary",)),
    )(q, k, v, key_mask3d)


# ------------------------------ parameter init ------------------------------
def _linear(key, fan_in, fan_out):
    w = jax.random.normal(key, (fan_in, fan_out), jnp.float32) * 0.02
    b = jnp.zeros((fan_out,), jnp.float32)
    return {"w": w, "b": b}


def _attn_params(key, H):
    k = jax.random.split(key, 4)
    return {
        "q": _linear(k[0], H, H), "k": _linear(k[1], H, H),
        "v": _linear(k[2], H, H), "o": _linear(k[3], H, H),
        "ln_g": jnp.ones((H,), jnp.float32), "ln_b": jnp.zeros((H,), jnp.float32),
    }


def _ffn_params(key, H, I):
    k = jax.random.split(key, 2)
    return {
        "i": _linear(k[0], H, I), "o": _linear(k[1], I, H),
        "ln_g": jnp.ones((H,), jnp.float32), "ln_b": jnp.zeros((H,), jnp.float32),
    }


def _emb_params(key, V, P, T, H):
    k = jax.random.split(key, 3)
    return {
        "word": jax.random.normal(k[0], (V, H), jnp.float32) * 0.02,
        "pos": jax.random.normal(k[1], (P, H), jnp.float32) * 0.02,
        "type": jax.random.normal(k[2], (T, H), jnp.float32) * 0.02,
        "ln_g": jnp.ones((H,), jnp.float32), "ln_b": jnp.zeros((H,), jnp.float32),
    }


def init_seq2seq_params(key):
    keys = jax.random.split(key, 8)
    encoder = {
        "emb": _emb_params(keys[0], VOCAB, MAX_POS, N_LANGS, EMBED),
        "layers": [
            {"attn": _attn_params(jax.random.fold_in(keys[1], i), EMBED),
             "ffn": _ffn_params(jax.random.fold_in(keys[2], i), EMBED, INTER)}
            for i in range(ENC_LAYERS)
        ],
    }
    decoders, output_layers = [], []
    for lang in range(N_LANGS):
        dk = jax.random.fold_in(keys[3], lang)
        dks = jax.random.split(dk, 4)
        dec = {
            "emb": _emb_params(dks[0], VOCAB, MAX_POS, N_LANGS, EMBED),
            "layers": [
                {"self": _attn_params(jax.random.fold_in(dks[1], i), EMBED),
                 "cross": _attn_params(jax.random.fold_in(dks[2], i), EMBED),
                 "ffn": _ffn_params(jax.random.fold_in(dks[3], i), EMBED, INTER)}
                for i in range(DEC_LAYERS)
            ],
        }
        # token_type embeddings are tied to the encoder's (per reference code).
        dec["emb"]["type"] = encoder["emb"]["type"]
        decoders.append(dec)
        # output layer weight tied to this decoder's word embeddings.
        output_layers.append({
            "w": dec["emb"]["word"].T,                      # (H, V)
            "b": jnp.zeros((VOCAB,), jnp.float32),
        })
    return {"encoder": encoder, "decoders": decoders, "output_layers": output_layers}


# ------------------------------- model glue ----------------------------------
def _split_heads(t, B, T):
    return t.reshape(B, T, HEADS, HEAD_DIM).transpose(0, 2, 1, 3).reshape(
        B * HEADS, T, HEAD_DIM)


def _merge_heads(t, B, T):
    return t.reshape(B, HEADS, T, HEAD_DIM).transpose(0, 2, 1, 3).reshape(
        B * T, EMBED)


def _expand_key_mask(mask2d):
    """bool/int (B, L) -> f32 (B*HEADS, 1, L); matches b*HEADS+h head order."""
    m = jnp.repeat(mask2d.astype(jnp.float32), HEADS, axis=0)
    return m[:, None, :]


def _embed(p, ids, type_ids):
    B, T = ids.shape
    pos = jnp.arange(T)
    e = p["word"][ids] + p["pos"][pos][None, :, :] + p["type"][type_ids]
    H = e.shape[-1]
    return layernorm(e.reshape(-1, H), p["ln_g"], p["ln_b"]).reshape(B, T, H)


def _mha(p, x_q, x_kv, key_mask3d, *, causal, self_attn):
    B, Tq, H = x_q.shape
    Tk = x_kv.shape[1]
    xqf = x_q.reshape(-1, H)
    if self_attn:
        # Fused Q/K/V projection: one (M, H) @ (H, 3H) matmul.
        w = jnp.concatenate([p["q"]["w"], p["k"]["w"], p["v"]["w"]], axis=1)
        b = jnp.concatenate([p["q"]["b"], p["k"]["b"], p["v"]["b"]], axis=0)
        qkv = dense(xqf, w, b)
        q, k, v = qkv[:, :H], qkv[:, H:2 * H], qkv[:, 2 * H:]
    else:
        q = dense(xqf, p["q"]["w"], p["q"]["b"])
        # Fused K/V projection on the encoder states.
        w_kv = jnp.concatenate([p["k"]["w"], p["v"]["w"]], axis=1)
        b_kv = jnp.concatenate([p["k"]["b"], p["v"]["b"]], axis=0)
        kv = dense(x_kv.reshape(-1, H), w_kv, b_kv)
        k, v = kv[:, :H], kv[:, H:]

    qh = _split_heads(q, B, Tq)
    kh = _split_heads(k, B, Tk)
    vh = _split_heads(v, B, Tk)
    ctx = attention(qh, kh, vh, key_mask3d, 1.0 / (HEAD_DIM ** 0.5), causal)
    ctx = _merge_heads(ctx, B, Tq)
    # Fused output projection + residual + LayerNorm.
    out = proj_residual_ln(ctx, p["o"]["w"], p["o"]["b"], xqf, p["ln_g"], p["ln_b"])
    return out.reshape(B, Tq, H)


def _ffn(p, x):
    B, T, H = x.shape
    out = ffn_fused(x.reshape(-1, H), p["i"]["w"], p["i"]["b"],
                    p["o"]["w"], p["o"]["b"], p["ln_g"], p["ln_b"])
    return out.reshape(B, T, H)


def _encoder_fwd(p, src_inputs, src_mask, src_type):
    x = _embed(p["emb"], src_inputs, src_type)
    key_mask = _expand_key_mask(src_mask)
    for layer in p["layers"]:
        x = _mha(layer["attn"], x, x, key_mask, causal=False, self_attn=True)
        x = _ffn(layer["ffn"], x)
    return x


def _decoder_fwd(p, enc_states, src_mask, tgt_ids, tgt_type, tgt_mask_shifted):
    x = _embed(p["emb"], tgt_ids, tgt_type)
    # Reference future_mask = causal AND tgt_mask along the *query* axis; the
    # query-axis term is a per-row constant bias under softmax and those rows
    # are dropped before the output layer, so causal + tgt key-mask is
    # output-equivalent for right-padded targets.
    self_mask = _expand_key_mask(tgt_mask_shifted)
    cross_mask = _expand_key_mask(src_mask)
    for layer in p["layers"]:
        x = _mha(layer["self"], x, x, self_mask, causal=True, self_attn=True)
        x = _mha(layer["cross"], x, enc_states, cross_mask,
                 causal=False, self_attn=False)
        x = _ffn(layer["ffn"], x)
    return x


@functools.partial(jax.jit, static_argnames=("log_softmax",))
def _seq2seq_core(enc_params, dec_params, out_params, src_inputs, tgt_inputs,
                  src_mask, tgt_mask, src_type, tgt_type, log_softmax=False):
    encoder_states = _encoder_fwd(enc_params, src_inputs, src_mask, src_type)
    decoder_output = _decoder_fwd(dec_params, encoder_states, src_mask,
                                  tgt_inputs[:, :-1], tgt_type[:, :-1],
                                  tgt_mask[:, :-1])
    H = decoder_output.shape[-1]
    flat = decoder_output.reshape(-1, H)
    # Project ALL B*(T-1) rows (static shape) so the vocab matmul stays inside
    # the jitted graph; non-padded row selection happens on the host afterwards.
    logits = dense(flat, out_params["w"], out_params["b"])
    if log_softmax:
        logits = jax.nn.log_softmax(logits, axis=-1)     # row-wise: commutes with selection
    return logits


def seq2seq_forward(params, src_inputs, tgt_inputs, src_mask, tgt_mask,
                    src_langs, tgt_langs, log_softmax=False):
    # Host-side decoder / output-layer selection, mirroring int(tgt_langs[0])
    # in the reference (assumes one target language per batch).
    batch_lang = int(tgt_langs[0])
    B, S = src_inputs.shape
    T = tgt_inputs.shape[-1]
    src_type = jnp.broadcast_to(src_langs[:, None], (B, S))
    tgt_type = jnp.broadcast_to(tgt_langs[:, None], (B, T))

    logits = _seq2seq_core(params["encoder"], params["decoders"][batch_lang],
                           params["output_layers"][batch_lang],
                           src_inputs, tgt_inputs, src_mask, tgt_mask,
                           src_type, tgt_type, log_softmax=log_softmax)

    # TODO(synk): dynamic-shape boolean row selection has no Pallas/jit
    # equivalent; done eagerly on the (fixed-shape) projected logits.
    tgt_non_mask_flat = tgt_mask[:, 1:].reshape(-1)
    return logits[tgt_non_mask_flat]


# ----------------------------------- main ------------------------------------
if __name__ == "__main__":
    key = jax.random.PRNGKey(0)
    kp, k1, k2 = jax.random.split(key, 3)
    params = init_seq2seq_params(kp)

    src_inputs = jax.random.randint(k1, (BATCH, SRC_LEN), 0, VOCAB, dtype=jnp.int32)
    tgt_inputs = jax.random.randint(k2, (BATCH, TGT_LEN), 0, VOCAB, dtype=jnp.int32)

    src_lens = jnp.array([8, 6], dtype=jnp.int32)
    tgt_lens = jnp.array([7, 5], dtype=jnp.int32)
    src_mask = (jnp.arange(SRC_LEN)[None, :] < src_lens[:, None])        # bool (B, S)
    tgt_mask = (jnp.arange(TGT_LEN)[None, :] < tgt_lens[:, None])        # bool (B, T)

    src_langs = jnp.array([0, 0], dtype=jnp.int32)
    tgt_langs = jnp.array([1, 1], dtype=jnp.int32)

    outputs = seq2seq_forward(params, src_inputs, tgt_inputs, src_mask, tgt_mask,
                              src_langs, tgt_langs, log_softmax=False)
    jax.block_until_ready(outputs)
    assert outputs.shape == (int(jnp.sum(tgt_mask[:, 1:])), VOCAB)
    print("KERNEL_OK")
</pallas_src>

<mosaic_0001>
module attributes {stable_mosaic.version = 11 : i64} {
  func.func @_layernorm_kernel(%arg0: i32, %arg1: memref<14x32xf32, #tpu.memory_space<vmem>>, %arg2: memref<1x32xf32, #tpu.memory_space<vmem>>, %arg3: memref<1x32xf32, #tpu.memory_space<vmem>>, %arg4: memref<14x32xf32, #tpu.memory_space<vmem>>) attributes {dimension_semantics = [#tpu.dimension_semantics<arbitrary>], iteration_bounds = array<i64: 1>, scalar_prefetch = 0 : i64, scratch_operands = 0 : i64, tpu.core_type = #tpu.core_type<tc>, window_params = [{pipeline_mode = #tpu.pipeline_mode<synchronous>, transform_indices = @transform_0, window_bounds = array<i64: 14, 32>}, {pipeline_mode = #tpu.pipeline_mode<synchronous>, transform_indices = @transform_1, window_bounds = array<i64: 1, 32>}, {pipeline_mode = #tpu.pipeline_mode<synchronous>, transform_indices = @transform_2, window_bounds = array<i64: 1, 32>}, {pipeline_mode = #tpu.pipeline_mode<synchronous>, transform_indices = @transform_3, window_bounds = array<i64: 14, 32>}]} {
    %c0 = arith.constant 0 : index
    %c0_0 = arith.constant 0 : index
    %0 = vector.load %arg1[%c0, %c0_0] : memref<14x32xf32, #tpu.memory_space<vmem>>, vector<14x32xf32>
    %c0_1 = arith.constant 0 : index
    %c0_2 = arith.constant 0 : index
    %1 = vector.load %arg2[%c0_1, %c0_2] : memref<1x32xf32, #tpu.memory_space<vmem>>, vector<1x32xf32>
    %c0_3 = arith.constant 0 : index
    %c0_4 = arith.constant 0 : index
    %2 = vector.load %arg3[%c0_3, %c0_4] : memref<1x32xf32, #tpu.memory_space<vmem>>, vector<1x32xf32>
    %cst = arith.constant dense<0.000000e+00> : vector<14xf32>
    %3 = vector.multi_reduction <add>, %0, %cst [1] : vector<14x32xf32> to vector<14xf32>
    %4 = vector.shape_cast %3 : vector<14xf32> to vector<14x1xf32>
    %cst_5 = arith.constant 3.200000e+01 : f32
    %5 = vector.broadcast %cst_5 : f32 to vector<14x1xf32>
    %6 = arith.divf %4, %5 : vector<14x1xf32>
    %7 = vector.broadcast %6 : vector<14x1xf32> to vector<14x32xf32>
    %8 = arith.subf %0, %7 : vector<14x32xf32>
    %9 = arith.mulf %8, %8 : vector<14x32xf32>
    %cst_6 = arith.constant dense<0.000000e+00> : vector<14xf32>
    %10 = vector.multi_reduction <add>, %9, %cst_6 [1] : vector<14x32xf32> to vector<14xf32>
    %11 = vector.shape_cast %10 : vector<14xf32> to vector<14x1xf32>
    %cst_7 = arith.constant 3.200000e+01 : f32
    %12 = vector.broadcast %cst_7 : f32 to vector<14x1xf32>
    %13 = arith.divf %11, %12 : vector<14x1xf32>
    %14 = vector.broadcast %6 : vector<14x1xf32> to vector<14x32xf32>
    %15 = arith.subf %0, %14 : vector<14x32xf32>
    %cst_8 = arith.constant 9.99999996E-13 : f32
    %16 = vector.broadcast %cst_8 : f32 to vector<14x1xf32>
    %17 = arith.addf %13, %16 : vector<14x1xf32>
    %18 = math.rsqrt %17 : vector<14x1xf32>
    %19 = vector.broadcast %18 : vector<14x1xf32> to vector<14x32xf32>
    %20 = arith.mulf %15, %19 : vector<14x32xf32>
    %21 = vector.broadcast %1 : vector<1x32xf32> to vector<14x32xf32>
    %22 = arith.mulf %20, %21 : vector<14x32xf32>
    %23 = vector.broadcast %2 : vector<1x32xf32> to vector<14x32xf32>
    %24 = arith.addf %22, %23 : vector<14x32xf32>
    %c0_9 = arith.constant 0 : index
    %c0_10 = arith.constant 0 : index
    %25 = vector.load %arg4[%c0_9, %c0_10] : memref<14x32xf32, #tpu.memory_space<vmem>>, vector<14x32xf32>
    tpu.vector_store %arg4[%c0_9, %c0_10], %24 {strides = array<i32>} : memref<14x32xf32, #tpu.memory_space<vmem>>, vector<14x32xf32>,
    return
  }
  func.func @transform_0(%arg0: i32) -> (i32, i32) {
    %c0_i32 = arith.constant 0 : i32
    %c0_i32_0 = arith.constant 0 : i32
    %c0_i32_1 = arith.constant 0 : i32
    return %c0_i32, %c0_i32_0 : i32, i32
  }
  func.func @transform_1(%arg0: i32) -> (i32, i32) {
    %c0_i32 = arith.constant 0 : i32
    %c0_i32_0 = arith.constant 0 : i32
    %c0_i32_1 = arith.constant 0 : i32
    return %c0_i32, %c0_i32_0 : i32, i32
  }
  func.func @transform_2(%arg0: i32) -> (i32, i32) {
    %c0_i32 = arith.constant 0 : i32
    %c0_i32_0 = arith.constant 0 : i32
    %c0_i32_1 = arith.constant 0 : i32
    return %c0_i32, %c0_i32_0 : i32, i32
  }
  func.func @transform_3(%arg0: i32) -> (i32, i32) {
    %c0_i32 = arith.constant 0 : i32
    %c0_i32_0 = arith.constant 0 : i32
    %c0_i32_1 = arith.constant 0 : i32
    return %c0_i32, %c0_i32_0 : i32, i32
  }
}

module attributes {stable_mosaic.version = 11 : i64} {
  func.func @_dense_kernel(%arg0: i32, %arg1: memref<14x32xf32, #tpu.memory_space<vmem>>, %arg2: memref<32x96xf32, #tpu.memory_space<vmem>>, %arg3: memref<1x96xf32, #tpu.memory_space<vmem>>, %arg4: memref<14x96xf32, #tpu.memory_space<vmem>>) attributes {dimension_semantics = [#tpu.dimension_semantics<arbitrary>], iteration_bounds = array<i64: 1>, scalar_prefetch = 0 : i64, scratch_operands = 0 : i64, tpu.core_type = #tpu.core_type<tc>, window_params = [{pipeline_mode = #tpu.pipeline_mode<synchronous>, transform_indices = @transform_0, window_bounds = array<i64: 14, 32>}, {pipeline_mode = #tpu.pipeline_mode<synchronous>, transform_indices = @transform_1, window_bounds = array<i64: 32, 96>}, {pipeline_mode = #tpu.pipeline_mode<synchronous>, transform_indices = @transform_2, window_bounds = array<i64: 1, 96>}, {pipeline_mode = #tpu.pipeline_mode<synchronous>, transform_indices = @transform_3, window_bounds = array<i64: 14, 96>}]} {
    %c0 = arith.constant 0 : index
    %c0_0 = arith.constant 0 : index
    %0 = vector.load %arg1[%c0, %c0_0] : memref<14x32xf32, #tpu.memory_space<vmem>>, vector<14x32xf32>
    %c0_1 = arith.constant 0 : index
    %c0_2 = arith.constant 0 : index
    %1 = vector.load %arg2[%c0_1, %c0_2] : memref<32x96xf32, #tpu.memory_space<vmem>>, vector<32x96xf32>
    %cst = arith.constant dense<0.000000e+00> : vector<14x96xf32>
    %2 = tpu.matmul %0, %1, %cst {dimension_numbers = #tpu.dot_dimension_numbers<[1], [0], [0], [1], [0, 0, 1, 1], [], []>} : vector<14x32xf32>, vector<32x96xf32>, vector<14x96xf32> -> vector<14x96xf32>
    %c0_3 = arith.constant 0 : index
    %c0_4 = arith.constant 0 : index
    %3 = vector.load %arg3[%c0_3, %c0_4] : memref<1x96xf32, #tpu.memory_space<vmem>>, vector<1x96xf32>
    %4 = vector.broadcast %3 : vector<1x96xf32> to vector<14x96xf32>
    %5 = arith.addf %2, %4 : vector<14x96xf32>
    %c0_5 = arith.constant 0 : index
    %c0_6 = arith.constant 0 : index
    %6 = vector.load %arg4[%c0_5, %c0_6] : memref<14x96xf32, #tpu.memory_space<vmem>>, vector<14x96xf32>
    tpu.vector_store %arg4[%c0_5, %c0_6], %5 {strides = array<i32>} : memref<14x96xf32, #tpu.memory_space<vmem>>, vector<14x96xf32>,
    return
  }
  func.func @transform_0(%arg0: i32) -> (i32, i32) {
    %c0_i32 = arith.constant 0 : i32
    %c0_i32_0 = arith.constant 0 : i32
    %c0_i32_1 = arith.constant 0 : i32
    return %c0_i32, %c0_i32_0 : i32, i32
  }
  func.func @transform_1(%arg0: i32) -> (i32, i32) {
    %c0_i32 = arith.constant 0 : i32
    %c0_i32_0 = arith.constant 0 : i32
    %c0_i32_1 = arith.constant 0 : i32
    return %c0_i32, %c0_i32_0 : i32, i32
  }
  func.func @transform_2(%arg0: i32) -> (i32, i32) {
    %c0_i32 = arith.constant 0 : i32
    %c0_i32_0 = arith.constant 0 : i32
    %c0_i32_1 = arith.constant 0 : i32
    return %c0_i32, %c0_i32_0 : i32, i32
  }
  func.func @transform_3(%arg0: i32) -> (i32, i32) {
    %c0_i32 = arith.constant 0 : i32
    %c0_i32_0 = arith.constant 0 : i32
    %c0_i32_1 = arith.constant 0 : i32
    return %c0_i32, %c0_i32_0 : i32, i32
  }
}

module attributes {stable_mosaic.version = 11 : i64} {
  func.func @_attention_kernel(%arg0: i32, %arg1: memref<8x7x8xf32, #tpu.memory_space<vmem>>, %arg2: memref<8x7x8xf32, #tpu.memory_space<vmem>>, %arg3: memref<8x7x8xf32, #tpu.memory_space<vmem>>, %arg4: memref<8x1x7xf32, #tpu.memory_space<vmem>>, %arg5: memref<8x7x8xf32, #tpu.memory_space<vmem>>) attributes {dimension_semantics = [#tpu.dimension_semantics<arbitrary>], iteration_bounds = array<i64: 1>, scalar_prefetch = 0 : i64, scratch_operands = 0 : i64, tpu.core_type = #tpu.core_type<tc>, window_params = [{pipeline_mode = #tpu.pipeline_mode<synchronous>, transform_indices = @transform_0, window_bounds = array<i64: 8, 7, 8>}, {pipeline_mode = #tpu.pipeline_mode<synchronous>, transform_indices = @transform_1, window_bounds = array<i64: 8, 7, 8>}, {pipeline_mode = #tpu.pipeline_mode<synchronous>, transform_indices = @transform_2, window_bounds = array<i64: 8, 7, 8>}, {pipeline_mode = #tpu.pipeline_mode<synchronous>, transform_indices = @transform_3, window_bounds = array<i64: 8, 1, 7>}, {pipeline_mode = #tpu.pipeline_mode<synchronous>, transform_indices = @transform_4, window_bounds = array<i64: 8, 7, 8>}]} {
    %c0 = arith.constant 0 : index
    %c0_0 = arith.constant 0 : index
    %c0_1 = arith.constant 0 : index
    %0 = vector.load %arg1[%c0, %c0_0, %c0_1] : memref<8x7x8xf32, #tpu.memory_space<vmem>>, vector<8x7x8xf32>
    %c0_2 = arith.constant 0 : index
    %c0_3 = arith.constant 0 : index
    %c0_4 = arith.constant 0 : index
    %1 = vector.load %arg2[%c0_2, %c0_3, %c0_4] : memref<8x7x8xf32, #tpu.memory_space<vmem>>, vector<8x7x8xf32>
    %c0_5 = arith.constant 0 : index
    %c0_6 = arith.constant 0 : index
    %c0_7 = arith.constant 0 : index
    %2 = vector.load %arg3[%c0_5, %c0_6, %c0_7] : memref<8x7x8xf32, #tpu.memory_space<vmem>>, vector<8x7x8xf32>
    "tpu.trace_start"() <{level = 10 : i32, message = "bqd,bkd->bqk"}> : () -> ()
    %cst = arith.constant dense<0.000000e+00> : vector<8x7x7xf32>
    %3 = tpu.matmul %0, %1, %cst {dimension_numbers = #tpu.dot_dimension_numbers<[2], [2], [1], [1], [0, 0, 0, 1, 1, 1], [0], [0]>} : vector<8x7x8xf32>, vector<8x7x8xf32>, vector<8x7x7xf32> -> vector<8x7x7xf32>
    "tpu.trace_stop"() : () -> ()
    %cst_8 = arith.constant 0.353553385 : f32
    %4 = vector.broadcast %cst_8 : f32 to vector<8x7x7xf32>
    %5 = arith.mulf %3, %4 : vector<8x7x7xf32>
    %c0_9 = arith.constant 0 : index
    %c0_10 = arith.constant 0 : index
    %c0_11 = arith.constant 0 : index
    %6 = vector.load %arg4[%c0_9, %c0_10, %c0_11] : memref<8x1x7xf32, #tpu.memory_space<vmem>>, vector<8x1x7xf32>
    %cst_12 = arith.constant 1.000000e+00 : f32
    %7 = vector.broadcast %cst_12 : f32 to vector<8x1x7xf32>
    %8 = arith.subf %7, %6 : vector<8x1x7xf32>
    %cst_13 = arith.constant -1.000000e+04 : f32
    %9 = vector.broadcast %cst_13 : f32 to vector<8x1x7xf32>
    %10 = arith.mulf %8, %9 : vector<8x1x7xf32>
    %11 = vector.broadcast %10 : vector<8x1x7xf32> to vector<8x7x7xf32>
    %12 = arith.addf %5, %11 : vector<8x7x7xf32>
    %13 = tpu.iota {dimensions = array<i32: 0>} : vector<7x7xi32>
    %14 = tpu.iota {dimensions = array<i32: 1>} : vector<7x7xi32>
    %15 = arith.cmpi sle, %14, %13 : vector<7x7xi32>
    %cst_14 = arith.constant 0.000000e+00 : f32
    %cst_15 = arith.constant -1.000000e+04 : f32
    %16 = vector.broadcast %cst_14 : f32 to vector<7x7xf32>
    %17 = vector.broadcast %cst_15 : f32 to vector<7x7xf32>
    %18 = arith.select %15, %16, %17 : vector<7x7xi1>, vector<7x7xf32>
    %19 = vector.shape_cast %18 : vector<7x7xf32> to vector<1x7x7xf32>
    %20 = vector.broadcast %19 : vector<1x7x7xf32> to vector<8x7x7xf32>
    %21 = arith.addf %12, %20 : vector<8x7x7xf32>
    %cst_16 = arith.constant dense<0xFF800000> : vector<8x7xf32>
    %22 = vector.multi_reduction <maximumf>, %21, %cst_16 [2] : vector<8x7x7xf32> to vector<8x7xf32>
    %23 = vector.shape_cast %22 : vector<8x7xf32> to vector<8x7x1xf32>
    %24 = vector.broadcast %23 : vector<8x7x1xf32> to vector<8x7x7xf32>
    %25 = arith.subf %21, %24 : vector<8x7x7xf32>
    %26 = math.exp %25 : vector<8x7x7xf32>
    %cst_17 = arith.constant dense<0.000000e+00> : vector<8x7xf32>
    %27 = vector.multi_reduction <add>, %26, %cst_17 [2] : vector<8x7x7xf32> to vector<8x7xf32>
    %28 = vector.shape_cast %27 : vector<8x7xf32> to vector<8x7x1xf32>
    %29 = tpu.reciprocal %28 {approx = true} : vector<8x7x1xf32> -> vector<8x7x1xf32>
    %30 = vector.broadcast %29 : vector<8x7x1xf32> to vector<8x7x7xf32>
    %31 = arith.mulf %26, %30 : vector<8x7x7xf32>
    "tpu.trace_start"() <{level = 10 : i32, message = "bqk,bkd->bqd"}> : () -> ()
    %cst_18 = arith.constant dense<0.000000e+00> : vector<8x7x8xf32>
    %32 = tpu.matmul %31, %2, %cst_18 {dimension_numbers = #tpu.dot_dimension_numbers<[2], [1], [1], [2], [0, 0, 0, 1, 1, 2], [0], [0]>} : vector<8x7x7xf32>, vector<8x7x8xf32>, vector<8x7x8xf32> -> vector<8x7x8xf32>
    "tpu.trace_stop"() : () -> ()
    %c0_19 = arith.constant 0 : index
    %c0_20 = arith.constant 0 : index
    %c0_21 = arith.constant 0 : index
    %33 = vector.load %arg5[%c0_19, %c0_20, %c0_21] : memref<8x7x8xf32, #tpu.memory_space<vmem>>, vector<8x7x8xf32>
    tpu.vector_store %arg5[%c0_19, %c0_20, %c0_21], %32 {strides = array<i32>} : memref<8x7x8xf32, #tpu.memory_space<vmem>>, vector<8x7x8xf32>,
    return
  }
  func.func @transform_0(%arg0: i32) -> (i32, i32, i32) {
    %c0_i32 = arith.constant 0 : i32
    %c0_i32_0 = arith.constant 0 : i32
    %c0_i32_1 = arith.constant 0 : i32
    %c0_i32_2 = arith.constant 0 : i32
    return %c0_i32, %c0_i32_0, %c0_i32_1 : i32, i32, i32
  }
  func.func @transform_1(%arg0: i32) -> (i32, i32, i32) {
    %c0_i32 = arith.constant 0 : i32
    %c0_i32_0 = arith.constant 0 : i32
    %c0_i32_1 = arith.constant 0 : i32
    %c0_i32_2 = arith.constant 0 : i32
    return %c0_i32, %c0_i32_0, %c0_i32_1 : i32, i32, i32
  }
  func.func @transform_2(%arg0: i32) -> (i32, i32, i32) {
    %c0_i32 = arith.constant 0 : i32
    %c0_i32_0 = arith.constant 0 : i32
    %c0_i32_1 = arith.constant 0 : i32
    %c0_i32_2 = arith.constant 0 : i32
    return %c0_i32, %c0_i32_0, %c0_i32_1 : i32, i32, i32
  }
  func.func @transform_3(%arg0: i32) -> (i32, i32, i32) {
    %c0_i32 = arith.constant 0 : i32
    %c0_i32_0 = arith.constant 0 : i32
    %c0_i32_1 = arith.constant 0 : i32
    %c0_i32_2 = arith.constant 0 : i32
    return %c0_i32, %c0_i32_0, %c0_i32_1 : i32, i32, i32
  }
  func.func @transform_4(%arg0: i32) -> (i32, i32, i32) {
    %c0_i32 = arith.constant 0 : i32
    %c0_i32_0 = arith.constant 0 : i32
    %c0_i32_1 = arith.constant 0 : i32
    %c0_i32_2 = arith.constant 0 : i32
    return %c0_i32, %c0_i32_0, %c0_i32_1 : i32, i32, i32
  }
}

module attributes {stable_mosaic.version = 11 : i64} {
  func.func @_proj_res_ln_kernel(%arg0: i32, %arg1: memref<14x32xf32, #tpu.memory_space<vmem>>, %arg2: memref<32x32xf32, #tpu.memory_space<vmem>>, %arg3: memref<1x32xf32, #tpu.memory_space<vmem>>, %arg4: memref<14x32xf32, #tpu.memory_space<vmem>>, %arg5: memref<1x32xf32, #tpu.memory_space<vmem>>, %arg6: memref<1x32xf32, #tpu.memory_space<vmem>>, %arg7: memref<14x32xf32, #tpu.memory_space<vmem>>) attributes {dimension_semantics = [#tpu.dimension_semantics<arbitrary>], iteration_bounds = array<i64: 1>, scalar_prefetch = 0 : i64, scratch_operands = 0 : i64, tpu.core_type = #tpu.core_type<tc>, window_params = [{pipeline_mode = #tpu.pipeline_mode<synchronous>, transform_indices = @transform_0, window_bounds = array<i64: 14, 32>}, {pipeline_mode = #tpu.pipeline_mode<synchronous>, transform_indices = @transform_1, window_bounds = array<i64: 32, 32>}, {pipeline_mode = #tpu.pipeline_mode<synchronous>, transform_indices = @transform_2, window_bounds = array<i64: 1, 32>}, {pipeline_mode = #tpu.pipeline_mode<synchronous>, transform_indices = @transform_3, window_bounds = array<i64: 14, 32>}, {pipeline_mode = #tpu.pipeline_mode<synchronous>, transform_indices = @transform_4, window_bounds = array<i64: 1, 32>}, {pipeline_mode = #tpu.pipeline_mode<synchronous>, transform_indices = @transform_5, window_bounds = array<i64: 1, 32>}, {pipeline_mode = #tpu.pipeline_mode<synchronous>, transform_indices = @transform_6, window_bounds = array<i64: 14, 32>}]} {
    %c0 = arith.constant 0 : index
    %c0_0 = arith.constant 0 : index
    %0 = vector.load %arg1[%c0, %c0_0] : memref<14x32xf32, #tpu.memory_space<vmem>>, vector<14x32xf32>
    %c0_1 = arith.constant 0 : index
    %c0_2 = arith.constant 0 : index
    %1 = vector.load %arg2[%c0_1, %c0_2] : memref<32x32xf32, #tpu.memory_space<vmem>>, vector<32x32xf32>
    %cst = arith.constant dense<0.000000e+00> : vector<14x32xf32>
    %2 = tpu.matmul %0, %1, %cst {dimension_numbers = #tpu.dot_dimension_numbers<[1], [0], [0], [1], [0, 0, 1, 1], [], []>} : vector<14x32xf32>, vector<32x32xf32>, vector<14x32xf32> -> vector<14x32xf32>
    %c0_3 = arith.constant 0 : index
    %c0_4 = arith.constant 0 : index
    %3 = vector.load %arg3[%c0_3, %c0_4] : memref<1x32xf32, #tpu.memory_space<vmem>>, vector<1x32xf32>
    %4 = vector.broadcast %3 : vector<1x32xf32> to vector<14x32xf32>
    %5 = arith.addf %2, %4 : vector<14x32xf32>
    %c0_5 = arith.constant 0 : index
    %c0_6 = arith.constant 0 : index
    %6 = vector.load %arg4[%c0_5, %c0_6] : memref<14x32xf32, #tpu.memory_space<vmem>>, vector<14x32xf32>
    %7 = arith.addf %5, %6 : vector<14x32xf32>
    %c0_7 = arith.constant 0 : index
    %c0_8 = arith.constant 0 : index
    %8 = vector.load %arg5[%c0_7, %c0_8] : memref<1x32xf32, #tpu.memory_space<vmem>>, vector<1x32xf32>
    %c0_9 = arith.constant 0 : index
    %c0_10 = arith.constant 0 : index
    %9 = vector.load %arg6[%c0_9, %c0_10] : memref<1x32xf32, #tpu.memory_space<vmem>>, vector<1x32xf32>
    %cst_11 = arith.constant dense<0.000000e+00> : vector<14xf32>
    %10 = vector.multi_reduction <add>, %7, %cst_11 [1] : vector<14x32xf32> to vector<14xf32>
    %11 = vector.shape_cast %10 : vector<14xf32> to vector<14x1xf32>
    %cst_12 = arith.constant 3.200000e+01 : f32
    %12 = vector.broadcast %cst_12 : f32 to vector<14x1xf32>
    %13 = arith.divf %11, %12 : vector<14x1xf32>
    %14 = vector.broadcast %13 : vector<14x1xf32> to vector<14x32xf32>
    %15 = arith.subf %7, %14 : vector<14x32xf32>
    %16 = arith.mulf %15, %15 : vector<14x32xf32>
    %cst_13 = arith.constant dense<0.000000e+00> : vector<14xf32>
    %17 = vector.multi_reduction <add>, %16, %cst_13 [1] : vector<14x32xf32> to vector<14xf32>
    %18 = vector.shape_cast %17 : vector<14xf32> to vector<14x1xf32>
    %cst_14 = arith.constant 3.200000e+01 : f32
    %19 = vector.broadcast %cst_14 : f32 to vector<14x1xf32>
    %20 = arith.divf %18, %19 : vector<14x1xf32>
    %21 = vector.broadcast %13 : vector<14x1xf32> to vector<14x32xf32>
    %22 = arith.subf %7, %21 : vector<14x32xf32>
    %cst_15 = arith.constant 9.99999996E-13 : f32
    %23 = vector.broadcast %cst_15 : f32 to vector<14x1xf32>
    %24 = arith.addf %20, %23 : vector<14x1xf32>
    %25 = math.rsqrt %24 : vector<14x1xf32>
    %26 = vector.broadcast %25 : vector<14x1xf32> to vector<14x32xf32>
    %27 = arith.mulf %22, %26 : vector<14x32xf32>
    %28 = vector.broadcast %8 : vector<1x32xf32> to vector<14x32xf32>
    %29 = arith.mulf %27, %28 : vector<14x32xf32>
    %30 = vector.broadcast %9 : vector<1x32xf32> to vector<14x32xf32>
    %31 = arith.addf %29, %30 : vector<14x32xf32>
    %c0_16 = arith.constant 0 : index
    %c0_17 = arith.constant 0 : index
    %32 = vector.load %arg7[%c0_16, %c0_17] : memref<14x32xf32, #tpu.memory_space<vmem>>, vector<14x32xf32>
    tpu.vector_store %arg7[%c0_16, %c0_17], %31 {strides = array<i32>} : memref<14x32xf32, #tpu.memory_space<vmem>>, vector<14x32xf32>,
    return
  }
  func.func @transform_0(%arg0: i32) -> (i32, i32) {
    %c0_i32 = arith.constant 0 : i32
    %c0_i32_0 = arith.constant 0 : i32
    %c0_i32_1 = arith.constant 0 : i32
    return %c0_i32, %c0_i32_0 : i32, i32
  }
  func.func @transform_1(%arg0: i32) -> (i32, i32) {
    %c0_i32 = arith.constant 0 : i32
    %c0_i32_0 = arith.constant 0 : i32
    %c0_i32_1 = arith.constant 0 : i32
    return %c0_i32, %c0_i32_0 : i32, i32
  }
  func.func @transform_2(%arg0: i32) -> (i32, i32) {
    %c0_i32 = arith.constant 0 : i32
    %c0_i32_0 = arith.constant 0 : i32
    %c0_i32_1 = arith.constant 0 : i32
    return %c0_i32, %c0_i32_0 : i32, i32
  }
  func.func @transform_3(%arg0: i32) -> (i32, i32) {
    %c0_i32 = arith.constant 0 : i32
    %c0_i32_0 = arith.constant 0 : i32
    %c0_i32_1 = arith.constant 0 : i32
    return %c0_i32, %c0_i32_0 : i32, i32
  }
  func.func @transform_4(%arg0: i32) -> (i32, i32) {
    %c0_i32 = arith.constant 0 : i32
    %c0_i32_0 = arith.constant 0 : i32
    %c0_i32_1 = arith.constant 0 : i32
    return %c0_i32, %c0_i32_0 : i32, i32
  }
  func.func @transform_5(%arg0: i32) -> (i32, i32) {
    %c0_i32 = arith.constant 0 : i32
    %c0_i32_0 = arith.constant 0 : i32
    %c0_i32_1 = arith.constant 0 : i32
    return %c0_i32, %c0_i32_0 : i32, i32
  }
  func.func @transform_6(%arg0: i32) -> (i32, i32) {
    %c0_i32 = arith.constant 0 : i32
    %c0_i32_0 = arith.constant 0 : i32
    %c0_i32_1 = arith.constant 0 : i32
    return %c0_i32, %c0_i32_0 : i32, i32
  }
}

module attributes {stable_mosaic.version = 11 : i64} {
  func.func @_dense_kernel(%arg0: i32, %arg1: memref<14x32xf32, #tpu.memory_space<vmem>>, %arg2: memref<32x32xf32, #tpu.memory_space<vmem>>, %arg3: memref<1x32xf32, #tpu.memory_space<vmem>>, %arg4: memref<14x32xf32, #tpu.memory_space<vmem>>) attributes {dimension_semantics = [#tpu.dimension_semantics<arbitrary>], iteration_bounds = array<i64: 1>, scalar_prefetch = 0 : i64, scratch_operands = 0 : i64, tpu.core_type = #tpu.core_type<tc>, window_params = [{pipeline_mode = #tpu.pipeline_mode<synchronous>, transform_indices = @transform_0, window_bounds = array<i64: 14, 32>}, {pipeline_mode = #tpu.pipeline_mode<synchronous>, transform_indices = @transform_1, window_bounds = array<i64: 32, 32>}, {pipeline_mode = #tpu.pipeline_mode<synchronous>, transform_indices = @transform_2, window_bounds = array<i64: 1, 32>}, {pipeline_mode = #tpu.pipeline_mode<synchronous>, transform_indices = @transform_3, window_bounds = array<i64: 14, 32>}]} {
    %c0 = arith.constant 0 : index
    %c0_0 = arith.constant 0 : index
    %0 = vector.load %arg1[%c0, %c0_0] : memref<14x32xf32, #tpu.memory_space<vmem>>, vector<14x32xf32>
    %c0_1 = arith.constant 0 : index
    %c0_2 = arith.constant 0 : index
    %1 = vector.load %arg2[%c0_1, %c0_2] : memref<32x32xf32, #tpu.memory_space<vmem>>, vector<32x32xf32>
    %cst = arith.constant dense<0.000000e+00> : vector<14x32xf32>
    %2 = tpu.matmul %0, %1, %cst {dimension_numbers = #tpu.dot_dimension_numbers<[1], [0], [0], [1], [0, 0, 1, 1], [], []>} : vector<14x32xf32>, vector<32x32xf32>, vector<14x32xf32> -> vector<14x32xf32>
    %c0_3 = arith.constant 0 : index
    %c0_4 = arith.constant 0 : index
    %3 = vector.load %arg3[%c0_3, %c0_4] : memref<1x32xf32, #tpu.memory_space<vmem>>, vector<1x32xf32>
    %4 = vector.broadcast %3 : vector<1x32xf32> to vector<14x32xf32>
    %5 = arith.addf %2, %4 : vector<14x32xf32>
    %c0_5 = arith.constant 0 : index
    %c0_6 = arith.constant 0 : index
    %6 = vector.load %arg4[%c0_5, %c0_6] : memref<14x32xf32, #tpu.memory_space<vmem>>, vector<14x32xf32>
    tpu.vector_store %arg4[%c0_5, %c0_6], %5 {strides = array<i32>} : memref<14x32xf32, #tpu.memory_space<vmem>>, vector<14x32xf32>,
    return
  }
  func.func @transform_0(%arg0: i32) -> (i32, i32) {
    %c0_i32 = arith.constant 0 : i32
    %c0_i32_0 = arith.constant 0 : i32
    %c0_i32_1 = arith.constant 0 : i32
    return %c0_i32, %c0_i32_0 : i32, i32
  }
  func.func @transform_1(%arg0: i32) -> (i32, i32) {
    %c0_i32 = arith.constant 0 : i32
    %c0_i32_0 = arith.constant 0 : i32
    %c0_i32_1 = arith.constant 0 : i32
    return %c0_i32, %c0_i32_0 : i32, i32
  }
  func.func @transform_2(%arg0: i32) -> (i32, i32) {
    %c0_i32 = arith.constant 0 : i32
    %c0_i32_0 = arith.constant 0 : i32
    %c0_i32_1 = arith.constant 0 : i32
    return %c0_i32, %c0_i32_0 : i32, i32
  }
  func.func @transform_3(%arg0: i32) -> (i32, i32) {
    %c0_i32 = arith.constant 0 : i32
    %c0_i32_0 = arith.constant 0 : i32
    %c0_i32_1 = arith.constant 0 : i32
    return %c0_i32, %c0_i32_0 : i32, i32
  }
}

module attributes {stable_mosaic.version = 11 : i64} {
  func.func @_layernorm_kernel(%arg0: i32, %arg1: memref<16x32xf32, #tpu.memory_space<vmem>>, %arg2: memref<1x32xf32, #tpu.memory_space<vmem>>, %arg3: memref<1x32xf32, #tpu.memory_space<vmem>>, %arg4: memref<16x32xf32, #tpu.memory_space<vmem>>) attributes {dimension_semantics = [#tpu.dimension_semantics<arbitrary>], iteration_bounds = array<i64: 1>, scalar_prefetch = 0 : i64, scratch_operands = 0 : i64, tpu.core_type = #tpu.core_type<tc>, window_params = [{pipeline_mode = #tpu.pipeline_mode<synchronous>, transform_indices = @transform_0, window_bounds = array<i64: 16, 32>}, {pipeline_mode = #tpu.pipeline_mode<synchronous>, transform_indices = @transform_1, window_bounds = array<i64: 1, 32>}, {pipeline_mode = #tpu.pipeline_mode<synchronous>, transform_indices = @transform_2, window_bounds = array<i64: 1, 32>}, {pipeline_mode = #tpu.pipeline_mode<synchronous>, transform_indices = @transform_3, window_bounds = array<i64: 16, 32>}]} {
    %c0 = arith.constant 0 : index
    %c0_0 = arith.constant 0 : index
    %0 = vector.load %arg1[%c0, %c0_0] : memref<16x32xf32, #tpu.memory_space<vmem>>, vector<16x32xf32>
    %c0_1 = arith.constant 0 : index
    %c0_2 = arith.constant 0 : index
    %1 = vector.load %arg2[%c0_1, %c0_2] : memref<1x32xf32, #tpu.memory_space<vmem>>, vector<1x32xf32>
    %c0_3 = arith.constant 0 : index
    %c0_4 = arith.constant 0 : index
    %2 = vector.load %arg3[%c0_3, %c0_4] : memref<1x32xf32, #tpu.memory_space<vmem>>, vector<1x32xf32>
    %cst = arith.constant dense<0.000000e+00> : vector<16xf32>
    %3 = vector.multi_reduction <add>, %0, %cst [1] : vector<16x32xf32> to vector<16xf32>
    %4 = vector.shape_cast %3 : vector<16xf32> to vector<16x1xf32>
    %cst_5 = arith.constant 3.200000e+01 : f32
    %5 = vector.broadcast %cst_5 : f32 to vector<16x1xf32>
    %6 = arith.divf %4, %5 : vector<16x1xf32>
    %7 = vector.broadcast %6 : vector<16x1xf32> to vector<16x32xf32>
    %8 = arith.subf %0, %7 : vector<16x32xf32>
    %9 = arith.mulf %8, %8 : vector<16x32xf32>
    %cst_6 = arith.constant dense<0.000000e+00> : vector<16xf32>
    %10 = vector.multi_reduction <add>, %9, %cst_6 [1] : vector<16x32xf32> to vector<16xf32>
    %11 = vector.shape_cast %10 : vector<16xf32> to vector<16x1xf32>
    %cst_7 = arith.constant 3.200000e+01 : f32
    %12 = vector.broadcast %cst_7 : f32 to vector<16x1xf32>
    %13 = arith.divf %11, %12 : vector<16x1xf32>
    %14 = vector.broadcast %6 : vector<16x1xf32> to vector<16x32xf32>
    %15 = arith.subf %0, %14 : vector<16x32xf32>
    %cst_8 = arith.constant 9.99999996E-13 : f32
    %16 = vector.broadcast %cst_8 : f32 to vector<16x1xf32>
    %17 = arith.addf %13, %16 : vector<16x1xf32>
    %18 = math.rsqrt %17 : vector<16x1xf32>
    %19 = vector.broadcast %18 : vector<16x1xf32> to vector<16x32xf32>
    %20 = arith.mulf %15, %19 : vector<16x32xf32>
    %21 = vector.broadcast %1 : vector<1x32xf32> to vector<16x32xf32>
    %22 = arith.mulf %20, %21 : vector<16x32xf32>
    %23 = vector.broadcast %2 : vector<1x32xf32> to vector<16x32xf32>
    %24 = arith.addf %22, %23 : vector<16x32xf32>
    %c0_9 = arith.constant 0 : index
    %c0_10 = arith.constant 0 : index
    %25 = vector.load %arg4[%c0_9, %c0_10] : memref<16x32xf32, #tpu.memory_space<vmem>>, vector<16x32xf32>
    tpu.vector_store %arg4[%c0_9, %c0_10], %24 {strides = array<i32>} : memref<16x32xf32, #tpu.memory_space<vmem>>, vector<16x32xf32>,
    return
  }
  func.func @transform_0(%arg0: i32) -> (i32, i32) {
    %c0_i32 = arith.constant 0 : i32
    %c0_i32_0 = arith.constant 0 : i32
    %c0_i32_1 = arith.constant 0 : i32
    return %c0_i32, %c0_i32_0 : i32, i32
  }
  func.func @transform_1(%arg0: i32) -> (i32, i32) {
    %c0_i32 = arith.constant 0 : i32
    %c0_i32_0 = arith.constant 0 : i32
    %c0_i32_1 = arith.constant 0 : i32
    return %c0_i32, %c0_i32_0 : i32, i32
  }
  func.func @transform_2(%arg0: i32) -> (i32, i32) {
    %c0_i32 = arith.constant 0 : i32
    %c0_i32_0 = arith.constant 0 : i32
    %c0_i32_1 = arith.constant 0 : i32
    return %c0_i32, %c0_i32_0 : i32, i32
  }
  func.func @transform_3(%arg0: i32) -> (i32, i32) {
    %c0_i32 = arith.constant 0 : i32
    %c0_i32_0 = arith.constant 0 : i32
    %c0_i32_1 = arith.constant 0 : i32
    return %c0_i32, %c0_i32_0 : i32, i32
  }
}

module attributes {stable_mosaic.version = 11 : i64} {
  func.func @_dense_kernel(%arg0: i32, %arg1: memref<16x32xf32, #tpu.memory_space<vmem>>, %arg2: memref<32x96xf32, #tpu.memory_space<vmem>>, %arg3: memref<1x96xf32, #tpu.memory_space<vmem>>, %arg4: memref<16x96xf32, #tpu.memory_space<vmem>>) attributes {dimension_semantics = [#tpu.dimension_semantics<arbitrary>], iteration_bounds = array<i64: 1>, scalar_prefetch = 0 : i64, scratch_operands = 0 : i64, tpu.core_type = #tpu.core_type<tc>, window_params = [{pipeline_mode = #tpu.pipeline_mode<synchronous>, transform_indices = @transform_0, window_bounds = array<i64: 16, 32>}, {pipeline_mode = #tpu.pipeline_mode<synchronous>, transform_indices = @transform_1, window_bounds = array<i64: 32, 96>}, {pipeline_mode = #tpu.pipeline_mode<synchronous>, transform_indices = @transform_2, window_bounds = array<i64: 1, 96>}, {pipeline_mode = #tpu.pipeline_mode<synchronous>, transform_indices = @transform_3, window_bounds = array<i64: 16, 96>}]} {
    %c0 = arith.constant 0 : index
    %c0_0 = arith.constant 0 : index
    %0 = vector.load %arg1[%c0, %c0_0] : memref<16x32xf32, #tpu.memory_space<vmem>>, vector<16x32xf32>
    %c0_1 = arith.constant 0 : index
    %c0_2 = arith.constant 0 : index
    %1 = vector.load %arg2[%c0_1, %c0_2] : memref<32x96xf32, #tpu.memory_space<vmem>>, vector<32x96xf32>
    %cst = arith.constant dense<0.000000e+00> : vector<16x96xf32>
    %2 = tpu.matmul %0, %1, %cst {dimension_numbers = #tpu.dot_dimension_numbers<[1], [0], [0], [1], [0, 0, 1, 1], [], []>} : vector<16x32xf32>, vector<32x96xf32>, vector<16x96xf32> -> vector<16x96xf32>
    %c0_3 = arith.constant 0 : index
    %c0_4 = arith.constant 0 : index
    %3 = vector.load %arg3[%c0_3, %c0_4] : memref<1x96xf32, #tpu.memory_space<vmem>>, vector<1x96xf32>
    %4 = vector.broadcast %3 : vector<1x96xf32> to vector<16x96xf32>
    %5 = arith.addf %2, %4 : vector<16x96xf32>
    %c0_5 = arith.constant 0 : index
    %c0_6 = arith.constant 0 : index
    %6 = vector.load %arg4[%c0_5, %c0_6] : memref<16x96xf32, #tpu.memory_space<vmem>>, vector<16x96xf32>
    tpu.vector_store %arg4[%c0_5, %c0_6], %5 {strides = array<i32>} : memref<16x96xf32, #tpu.memory_space<vmem>>, vector<16x96xf32>,
    return
  }
  func.func @transform_0(%arg0: i32) -> (i32, i32) {
    %c0_i32 = arith.constant 0 : i32
    %c0_i32_0 = arith.constant 0 : i32
    %c0_i32_1 = arith.constant 0 : i32
    return %c0_i32, %c0_i32_0 : i32, i32
  }
  func.func @transform_1(%arg0: i32) -> (i32, i32) {
    %c0_i32 = arith.constant 0 : i32
    %c0_i32_0 = arith.constant 0 : i32
    %c0_i32_1 = arith.constant 0 : i32
    return %c0_i32, %c0_i32_0 : i32, i32
  }
  func.func @transform_2(%arg0: i32) -> (i32, i32) {
    %c0_i32 = arith.constant 0 : i32
    %c0_i32_0 = arith.constant 0 : i32
    %c0_i32_1 = arith.constant 0 : i32
    return %c0_i32, %c0_i32_0 : i32, i32
  }
  func.func @transform_3(%arg0: i32) -> (i32, i32) {
    %c0_i32 = arith.constant 0 : i32
    %c0_i32_0 = arith.constant 0 : i32
    %c0_i32_1 = arith.constant 0 : i32
    return %c0_i32, %c0_i32_0 : i32, i32
  }
}

module attributes {stable_mosaic.version = 11 : i64} {
  func.func @_attention_kernel(%arg0: i32, %arg1: memref<8x8x8xf32, #tpu.memory_space<vmem>>, %arg2: memref<8x8x8xf32, #tpu.memory_space<vmem>>, %arg3: memref<8x8x8xf32, #tpu.memory_space<vmem>>, %arg4: memref<8x1x8xf32, #tpu.memory_space<vmem>>, %arg5: memref<8x8x8xf32, #tpu.memory_space<vmem>>) attributes {dimension_semantics = [#tpu.dimension_semantics<arbitrary>], iteration_bounds = array<i64: 1>, scalar_prefetch = 0 : i64, scratch_operands = 0 : i64, tpu.core_type = #tpu.core_type<tc>, window_params = [{pipeline_mode = #tpu.pipeline_mode<synchronous>, transform_indices = @transform_0, window_bounds = array<i64: 8, 8, 8>}, {pipeline_mode = #tpu.pipeline_mode<synchronous>, transform_indices = @transform_1, window_bounds = array<i64: 8, 8, 8>}, {pipeline_mode = #tpu.pipeline_mode<synchronous>, transform_indices = @transform_2, window_bounds = array<i64: 8, 8, 8>}, {pipeline_mode = #tpu.pipeline_mode<synchronous>, transform_indices = @transform_3, window_bounds = array<i64: 8, 1, 8>}, {pipeline_mode = #tpu.pipeline_mode<synchronous>, transform_indices = @transform_4, window_bounds = array<i64: 8, 8, 8>}]} {
    %c0 = arith.constant 0 : index
    %c0_0 = arith.constant 0 : index
    %c0_1 = arith.constant 0 : index
    %0 = vector.load %arg1[%c0, %c0_0, %c0_1] : memref<8x8x8xf32, #tpu.memory_space<vmem>>, vector<8x8x8xf32>
    %c0_2 = arith.constant 0 : index
    %c0_3 = arith.constant 0 : index
    %c0_4 = arith.constant 0 : index
    %1 = vector.load %arg2[%c0_2, %c0_3, %c0_4] : memref<8x8x8xf32, #tpu.memory_space<vmem>>, vector<8x8x8xf32>
    %c0_5 = arith.constant 0 : index
    %c0_6 = arith.constant 0 : index
    %c0_7 = arith.constant 0 : index
    %2 = vector.load %arg3[%c0_5, %c0_6, %c0_7] : memref<8x8x8xf32, #tpu.memory_space<vmem>>, vector<8x8x8xf32>
    "tpu.trace_start"() <{level = 10 : i32, message = "bqd,bkd->bqk"}> : () -> ()
    %cst = arith.constant dense<0.000000e+00> : vector<8x8x8xf32>
    %3 = tpu.matmul %0, %1, %cst {dimension_numbers = #tpu.dot_dimension_numbers<[2], [2], [1], [1], [0, 0, 0, 1, 1, 1], [0], [0]>} : vector<8x8x8xf32>, vector<8x8x8xf32>, vector<8x8x8xf32> -> vector<8x8x8xf32>
    "tpu.trace_stop"() : () -> ()
    %cst_8 = arith.constant 0.353553385 : f32
    %4 = vector.broadcast %cst_8 : f32 to vector<8x8x8xf32>
    %5 = arith.mulf %3, %4 : vector<8x8x8xf32>
    %c0_9 = arith.constant 0 : index
    %c0_10 = arith.constant 0 : index
    %c0_11 = arith.constant 0 : index
    %6 = vector.load %arg4[%c0_9, %c0_10, %c0_11] : memref<8x1x8xf32, #tpu.memory_space<vmem>>, vector<8x1x8xf32>
    %cst_12 = arith.constant 1.000000e+00 : f32
    %7 = vector.broadcast %cst_12 : f32 to vector<8x1x8xf32>
    %8 = arith.subf %7, %6 : vector<8x1x8xf32>
    %cst_13 = arith.constant -1.000000e+04 : f32
    %9 = vector.broadcast %cst_13 : f32 to vector<8x1x8xf32>
    %10 = arith.mulf %8, %9 : vector<8x1x8xf32>
    %11 = vector.broadcast %10 : vector<8x1x8xf32> to vector<8x8x8xf32>
    %12 = arith.addf %5, %11 : vector<8x8x8xf32>
    %cst_14 = arith.constant dense<0xFF800000> : vector<8x8xf32>
    %13 = vector.multi_reduction <maximumf>, %12, %cst_14 [2] : vector<8x8x8xf32> to vector<8x8xf32>
    %14 = vector.shape_cast %13 : vector<8x8xf32> to vector<8x8x1xf32>
    %15 = vector.broadcast %14 : vector<8x8x1xf32> to vector<8x8x8xf32>
    %16 = arith.subf %12, %15 : vector<8x8x8xf32>
    %17 = math.exp %16 : vector<8x8x8xf32>
    %cst_15 = arith.constant dense<0.000000e+00> : vector<8x8xf32>
    %18 = vector.multi_reduction <add>, %17, %cst_15 [2] : vector<8x8x8xf32> to vector<8x8xf32>
    %19 = vector.shape_cast %18 : vector<8x8xf32> to vector<8x8x1xf32>
    %20 = tpu.reciprocal %19 {approx = true} : vector<8x8x1xf32> -> vector<8x8x1xf32>
    %21 = vector.broadcast %20 : vector<8x8x1xf32> to vector<8x8x8xf32>
    %22 = arith.mulf %17, %21 : vector<8x8x8xf32>
    "tpu.trace_start"() <{level = 10 : i32, message = "bqk,bkd->bqd"}> : () -> ()
    %cst_16 = arith.constant dense<0.000000e+00> : vector<8x8x8xf32>
    %23 = tpu.matmul %22, %2, %cst_16 {dimension_numbers = #tpu.dot_dimension_numbers<[2], [1], [1], [2], [0, 0, 0, 1, 1, 2], [0], [0]>} : vector<8x8x8xf32>, vector<8x8x8xf32>, vector<8x8x8xf32> -> vector<8x8x8xf32>
    "tpu.trace_stop"() : () -> ()
    %c0_17 = arith.constant 0 : index
    %c0_18 = arith.constant 0 : index
    %c0_19 = arith.constant 0 : index
    %24 = vector.load %arg5[%c0_17, %c0_18, %c0_19] : memref<8x8x8xf32, #tpu.memory_space<vmem>>, vector<8x8x8xf32>
    tpu.vector_store %arg5[%c0_17, %c0_18, %c0_19], %23 {strides = array<i32>} : memref<8x8x8xf32, #tpu.memory_space<vmem>>, vector<8x8x8xf32>,
    return
  }
  func.func @transform_0(%arg0: i32) -> (i32, i32, i32) {
    %c0_i32 = arith.constant 0 : i32
    %c0_i32_0 = arith.constant 0 : i32
    %c0_i32_1 = arith.constant 0 : i32
    %c0_i32_2 = arith.constant 0 : i32
    return %c0_i32, %c0_i32_0, %c0_i32_1 : i32, i32, i32
  }
  func.func @transform_1(%arg0: i32) -> (i32, i32, i32) {
    %c0_i32 = arith.constant 0 : i32
    %c0_i32_0 = arith.constant 0 : i32
    %c0_i32_1 = arith.constant 0 : i32
    %c0_i32_2 = arith.constant 0 : i32
    return %c0_i32, %c0_i32_0, %c0_i32_1 : i32, i32, i32
  }
  func.func @transform_2(%arg0: i32) -> (i32, i32, i32) {
    %c0_i32 = arith.constant 0 : i32
    %c0_i32_0 = arith.constant 0 : i32
    %c0_i32_1 = arith.constant 0 : i32
    %c0_i32_2 = arith.constant 0 : i32
    return %c0_i32, %c0_i32_0, %c0_i32_1 : i32, i32, i32
  }
  func.func @transform_3(%arg0: i32) -> (i32, i32, i32) {
    %c0_i32 = arith.constant 0 : i32
    %c0_i32_0 = arith.constant 0 : i32
    %c0_i32_1 = arith.constant 0 : i32
    %c0_i32_2 = arith.constant 0 : i32
    return %c0_i32, %c0_i32_0, %c0_i32_1 : i32, i32, i32
  }
  func.func @transform_4(%arg0: i32) -> (i32, i32, i32) {
    %c0_i32 = arith.constant 0 : i32
    %c0_i32_0 = arith.constant 0 : i32
    %c0_i32_1 = arith.constant 0 : i32
    %c0_i32_2 = arith.constant 0 : i32
    return %c0_i32, %c0_i32_0, %c0_i32_1 : i32, i32, i32
  }
}

module attributes {stable_mosaic.version = 11 : i64} {
  func.func @_proj_res_ln_kernel(%arg0: i32, %arg1: memref<16x32xf32, #tpu.memory_space<vmem>>, %arg2: memref<32x32xf32, #tpu.memory_space<vmem>>, %arg3: memref<1x32xf32, #tpu.memory_space<vmem>>, %arg4: memref<16x32xf32, #tpu.memory_space<vmem>>, %arg5: memref<1x32xf32, #tpu.memory_space<vmem>>, %arg6: memref<1x32xf32, #tpu.memory_space<vmem>>, %arg7: memref<16x32xf32, #tpu.memory_space<vmem>>) attributes {dimension_semantics = [#tpu.dimension_semantics<arbitrary>], iteration_bounds = array<i64: 1>, scalar_prefetch = 0 : i64, scratch_operands = 0 : i64, tpu.core_type = #tpu.core_type<tc>, window_params = [{pipeline_mode = #tpu.pipeline_mode<synchronous>, transform_indices = @transform_0, window_bounds = array<i64: 16, 32>}, {pipeline_mode = #tpu.pipeline_mode<synchronous>, transform_indices = @transform_1, window_bounds = array<i64: 32, 32>}, {pipeline_mode = #tpu.pipeline_mode<synchronous>, transform_indices = @transform_2, window_bounds = array<i64: 1, 32>}, {pipeline_mode = #tpu.pipeline_mode<synchronous>, transform_indices = @transform_3, window_bounds = array<i64: 16, 32>}, {pipeline_mode = #tpu.pipeline_mode<synchronous>, transform_indices = @transform_4, window_bounds = array<i64: 1, 32>}, {pipeline_mode = #tpu.pipeline_mode<synchronous>, transform_indices = @transform_5, window_bounds = array<i64: 1, 32>}, {pipeline_mode = #tpu.pipeline_mode<synchronous>, transform_indices = @transform_6, window_bounds = array<i64: 16, 32>}]} {
    %c0 = arith.constant 0 : index
    %c0_0 = arith.constant 0 : index
    %0 = vector.load %arg1[%c0, %c0_0] : memref<16x32xf32, #tpu.memory_space<vmem>>, vector<16x32xf32>
    %c0_1 = arith.constant 0 : index
    %c0_2 = arith.constant 0 : index
    %1 = vector.load %arg2[%c0_1, %c0_2] : memref<32x32xf32, #tpu.memory_space<vmem>>, vector<32x32xf32>
    %cst = arith.constant dense<0.000000e+00> : vector<16x32xf32>
    %2 = tpu.matmul %0, %1, %cst {dimension_numbers = #tpu.dot_dimension_numbers<[1], [0], [0], [1], [0, 0, 1, 1], [], []>} : vector<16x32xf32>, vector<32x32xf32>, vector<16x32xf32> -> vector<16x32xf32>
    %c0_3 = arith.constant 0 : index
    %c0_4 = arith.constant 0 : index
    %3 = vector.load %arg3[%c0_3, %c0_4] : memref<1x32xf32, #tpu.memory_space<vmem>>, vector<1x32xf32>
    %4 = vector.broadcast %3 : vector<1x32xf32> to vector<16x32xf32>
    %5 = arith.addf %2, %4 : vector<16x32xf32>
    %c0_5 = arith.constant 0 : index
    %c0_6 = arith.constant 0 : index
    %6 = vector.load %arg4[%c0_5, %c0_6] : memref<16x32xf32, #tpu.memory_space<vmem>>, vector<16x32xf32>
    %7 = arith.addf %5, %6 : vector<16x32xf32>
    %c0_7 = arith.constant 0 : index
    %c0_8 = arith.constant 0 : index
    %8 = vector.load %arg5[%c0_7, %c0_8] : memref<1x32xf32, #tpu.memory_space<vmem>>, vector<1x32xf32>
    %c0_9 = arith.constant 0 : index
    %c0_10 = arith.constant 0 : index
    %9 = vector.load %arg6[%c0_9, %c0_10] : memref<1x32xf32, #tpu.memory_space<vmem>>, vector<1x32xf32>
    %cst_11 = arith.constant dense<0.000000e+00> : vector<16xf32>
    %10 = vector.multi_reduction <add>, %7, %cst_11 [1] : vector<16x32xf32> to vector<16xf32>
    %11 = vector.shape_cast %10 : vector<16xf32> to vector<16x1xf32>
    %cst_12 = arith.constant 3.200000e+01 : f32
    %12 = vector.broadcast %cst_12 : f32 to vector<16x1xf32>
    %13 = arith.divf %11, %12 : vector<16x1xf32>
    %14 = vector.broadcast %13 : vector<16x1xf32> to vector<16x32xf32>
    %15 = arith.subf %7, %14 : vector<16x32xf32>
    %16 = arith.mulf %15, %15 : vector<16x32xf32>
    %cst_13 = arith.constant dense<0.000000e+00> : vector<16xf32>
    %17 = vector.multi_reduction <add>, %16, %cst_13 [1] : vector<16x32xf32> to vector<16xf32>
    %18 = vector.shape_cast %17 : vector<16xf32> to vector<16x1xf32>
    %cst_14 = arith.constant 3.200000e+01 : f32
    %19 = vector.broadcast %cst_14 : f32 to vector<16x1xf32>
    %20 = arith.divf %18, %19 : vector<16x1xf32>
    %21 = vector.broadcast %13 : vector<16x1xf32> to vector<16x32xf32>
    %22 = arith.subf %7, %21 : vector<16x32xf32>
    %cst_15 = arith.constant 9.99999996E-13 : f32
    %23 = vector.broadcast %cst_15 : f32 to vector<16x1xf32>
    %24 = arith.addf %20, %23 : vector<16x1xf32>
    %25 = math.rsqrt %24 : vector<16x1xf32>
    %26 = vector.broadcast %25 : vector<16x1xf32> to vector<16x32xf32>
    %27 = arith.mulf %22, %26 : vector<16x32xf32>
    %28 = vector.broadcast %8 : vector<1x32xf32> to vector<16x32xf32>
    %29 = arith.mulf %27, %28 : vector<16x32xf32>
    %30 = vector.broadcast %9 : vector<1x32xf32> to vector<16x32xf32>
    %31 = arith.addf %29, %30 : vector<16x32xf32>
    %c0_16 = arith.constant 0 : index
    %c0_17 = arith.constant 0 : index
    %32 = vector.load %arg7[%c0_16, %c0_17] : memref<16x32xf32, #tpu.memory_space<vmem>>, vector<16x32xf32>
    tpu.vector_store %arg7[%c0_16, %c0_17], %31 {strides = array<i32>} : memref<16x32xf32, #tpu.memory_space<vmem>>, vector<16x32xf32>,
    return
  }
  func.func @transform_0(%arg0: i32) -> (i32, i32) {
    %c0_i32 = arith.constant 0 : i32
    %c0_i32_0 = arith.constant 0 : i32
    %c0_i32_1 = arith.constant 0 : i32
    return %c0_i32, %c0_i32_0 : i32, i32
  }
  func.func @transform_1(%arg0: i32) -> (i32, i32) {
    %c0_i32 = arith.constant 0 : i32
    %c0_i32_0 = arith.constant 0 : i32
    %c0_i32_1 = arith.constant 0 : i32
    return %c0_i32, %c0_i32_0 : i32, i32
  }
  func.func @transform_2(%arg0: i32) -> (i32, i32) {
    %c0_i32 = arith.constant 0 : i32
    %c0_i32_0 = arith.constant 0 : i32
    %c0_i32_1 = arith.constant 0 : i32
    return %c0_i32, %c0_i32_0 : i32, i32
  }
  func.func @transform_3(%arg0: i32) -> (i32, i32) {
    %c0_i32 = arith.constant 0 : i32
    %c0_i32_0 = arith.constant 0 : i32
    %c0_i32_1 = arith.constant 0 : i32
    return %c0_i32, %c0_i32_0 : i32, i32
  }
  func.func @transform_4(%arg0: i32) -> (i32, i32) {
    %c0_i32 = arith.constant 0 : i32
    %c0_i32_0 = arith.constant 0 : i32
    %c0_i32_1 = arith.constant 0 : i32
    return %c0_i32, %c0_i32_0 : i32, i32
  }
  func.func @transform_5(%arg0: i32) -> (i32, i32) {
    %c0_i32 = arith.constant 0 : i32
    %c0_i32_0 = arith.constant 0 : i32
    %c0_i32_1 = arith.constant 0 : i32
    return %c0_i32, %c0_i32_0 : i32, i32
  }
  func.func @transform_6(%arg0: i32) -> (i32, i32) {
    %c0_i32 = arith.constant 0 : i32
    %c0_i32_0 = arith.constant 0 : i32
    %c0_i32_1 = arith.constant 0 : i32
    return %c0_i32, %c0_i32_0 : i32, i32
  }
}

module attributes {stable_mosaic.version = 11 : i64} {
  func.func @_ffn_kernel(%arg0: i32, %arg1: memref<16x32xf32, #tpu.memory_space<vmem>>, %arg2: memref<32x64xf32, #tpu.memory_space<vmem>>, %arg3: memref<1x64xf32, #tpu.memory_space<vmem>>, %arg4: memref<64x32xf32, #tpu.memory_space<vmem>>, %arg5: memref<1x32xf32, #tpu.memory_space<vmem>>, %arg6: memref<1x32xf32, #tpu.memory_space<vmem>>, %arg7: memref<1x32xf32, #tpu.memory_space<vmem>>, %arg8: memref<16x32xf32, #tpu.memory_space<vmem>>) attributes {dimension_semantics = [#tpu.dimension_semantics<arbitrary>], iteration_bounds = array<i64: 1>, scalar_prefetch = 0 : i64, scratch_operands = 0 : i64, tpu.core_type = #tpu.core_type<tc>, window_params = [{pipeline_mode = #tpu.pipeline_mode<synchronous>, transform_indices = @transform_0, window_bounds = array<i64: 16, 32>}, {pipeline_mode = #tpu.pipeline_mode<synchronous>, transform_indices = @transform_1, window_bounds = array<i64: 32, 64>}, {pipeline_mode = #tpu.pipeline_mode<synchronous>, transform_indices = @transform_2, window_bounds = array<i64: 1, 64>}, {pipeline_mode = #tpu.pipeline_mode<synchronous>, transform_indices = @transform_3, window_bounds = array<i64: 64, 32>}, {pipeline_mode = #tpu.pipeline_mode<synchronous>, transform_indices = @transform_4, window_bounds = array<i64: 1, 32>}, {pipeline_mode = #tpu.pipeline_mode<synchronous>, transform_indices = @transform_5, window_bounds = array<i64: 1, 32>}, {pipeline_mode = #tpu.pipeline_mode<synchronous>, transform_indices = @transform_6, window_bounds = array<i64: 1, 32>}, {pipeline_mode = #tpu.pipeline_mode<synchronous>, transform_indices = @transform_7, window_bounds = array<i64: 16, 32>}]} {
    %c0 = arith.constant 0 : index
    %c0_0 = arith.constant 0 : index
    %0 = vector.load %arg1[%c0, %c0_0] : memref<16x32xf32, #tpu.memory_space<vmem>>, vector<16x32xf32>
    %c0_1 = arith.constant 0 : index
    %c0_2 = arith.constant 0 : index
    %1 = vector.load %arg2[%c0_1, %c0_2] : memref<32x64xf32, #tpu.memory_space<vmem>>, vector<32x64xf32>
    %cst = arith.constant dense<0.000000e+00> : vector<16x64xf32>
    %2 = tpu.matmul %0, %1, %cst {dimension_numbers = #tpu.dot_dimension_numbers<[1], [0], [0], [1], [0, 0, 1, 1], [], []>} : vector<16x32xf32>, vector<32x64xf32>, vector<16x64xf32> -> vector<16x64xf32>
    %c0_3 = arith.constant 0 : index
    %c0_4 = arith.constant 0 : index
    %3 = vector.load %arg3[%c0_3, %c0_4] : memref<1x64xf32, #tpu.memory_space<vmem>>, vector<1x64xf32>
    %4 = vector.broadcast %3 : vector<1x64xf32> to vector<16x64xf32>
    %5 = arith.addf %2, %4 : vector<16x64xf32>
    %6 = arith.mulf %5, %5 : vector<16x64xf32>
    %7 = arith.mulf %5, %6 : vector<16x64xf32>
    %cst_5 = arith.constant 4.471500e-02 : f32
    %8 = vector.broadcast %cst_5 : f32 to vector<16x64xf32>
    %9 = arith.mulf %8, %7 : vector<16x64xf32>
    %10 = arith.addf %5, %9 : vector<16x64xf32>
    %cst_6 = arith.constant 0.797884583 : f32
    %11 = vector.broadcast %cst_6 : f32 to vector<16x64xf32>
    %12 = arith.mulf %11, %10 : vector<16x64xf32>
    %13 = math.tanh %12 : vector<16x64xf32>
    %cst_7 = arith.constant 1.000000e+00 : f32
    %14 = vector.broadcast %cst_7 : f32 to vector<16x64xf32>
    %15 = arith.addf %14, %13 : vector<16x64xf32>
    %cst_8 = arith.constant 5.000000e-01 : f32
    %16 = vector.broadcast %cst_8 : f32 to vector<16x64xf32>
    %17 = arith.mulf %16, %15 : vector<16x64xf32>
    %18 = arith.mulf %5, %17 : vector<16x64xf32>
    %c0_9 = arith.constant 0 : index
    %c0_10 = arith.constant 0 : index
    %19 = vector.load %arg4[%c0_9, %c0_10] : memref<64x32xf32, #tpu.memory_space<vmem>>, vector<64x32xf32>
    %cst_11 = arith.constant dense<0.000000e+00> : vector<16x32xf32>
    %20 = tpu.matmul %18, %19, %cst_11 {dimension_numbers = #tpu.dot_dimension_numbers<[1], [0], [0], [1], [0, 0, 1, 1], [], []>} : vector<16x64xf32>, vector<64x32xf32>, vector<16x32xf32> -> vector<16x32xf32>
    %c0_12 = arith.constant 0 : index
    %c0_13 = arith.constant 0 : index
    %21 = vector.load %arg5[%c0_12, %c0_13] : memref<1x32xf32, #tpu.memory_space<vmem>>, vector<1x32xf32>
    %22 = vector.broadcast %21 : vector<1x32xf32> to vector<16x32xf32>
    %23 = arith.addf %20, %22 : vector<16x32xf32>
    %24 = arith.addf %23, %0 : vector<16x32xf32>
    %c0_14 = arith.constant 0 : index
    %c0_15 = arith.constant 0 : index
    %25 = vector.load %arg6[%c0_14, %c0_15] : memref<1x32xf32, #tpu.memory_space<vmem>>, vector<1x32xf32>
    %c0_16 = arith.constant 0 : index
    %c0_17 = arith.constant 0 : index
    %26 = vector.load %arg7[%c0_16, %c0_17] : memref<1x32xf32, #tpu.memory_space<vmem>>, vector<1x32xf32>
    %cst_18 = arith.constant dense<0.000000e+00> : vector<16xf32>
    %27 = vector.multi_reduction <add>, %24, %cst_18 [1] : vector<16x32xf32> to vector<16xf32>
    %28 = vector.shape_cast %27 : vector<16xf32> to vector<16x1xf32>
    %cst_19 = arith.constant 3.200000e+01 : f32
    %29 = vector.broadcast %cst_19 : f32 to vector<16x1xf32>
    %30 = arith.divf %28, %29 : vector<16x1xf32>
    %31 = vector.broadcast %30 : vector<16x1xf32> to vector<16x32xf32>
    %32 = arith.subf %24, %31 : vector<16x32xf32>
    %33 = arith.mulf %32, %32 : vector<16x32xf32>
    %cst_20 = arith.constant dense<0.000000e+00> : vector<16xf32>
    %34 = vector.multi_reduction <add>, %33, %cst_20 [1] : vector<16x32xf32> to vector<16xf32>
    %35 = vector.shape_cast %34 : vector<16xf32> to vector<16x1xf32>
    %cst_21 = arith.constant 3.200000e+01 : f32
    %36 = vector.broadcast %cst_21 : f32 to vector<16x1xf32>
    %37 = arith.divf %35, %36 : vector<16x1xf32>
    %38 = vector.broadcast %30 : vector<16x1xf32> to vector<16x32xf32>
    %39 = arith.subf %24, %38 : vector<16x32xf32>
    %cst_22 = arith.constant 9.99999996E-13 : f32
    %40 = vector.broadcast %cst_22 : f32 to vector<16x1xf32>
    %41 = arith.addf %37, %40 : vector<16x1xf32>
    %42 = math.rsqrt %41 : vector<16x1xf32>
    %43 = vector.broadcast %42 : vector<16x1xf32> to vector<16x32xf32>
    %44 = arith.mulf %39, %43 : vector<16x32xf32>
    %45 = vector.broadcast %25 : vector<1x32xf32> to vector<16x32xf32>
    %46 = arith.mulf %44, %45 : vector<16x32xf32>
    %47 = vector.broadcast %26 : vector<1x32xf32> to vector<16x32xf32>
    %48 = arith.addf %46, %47 : vector<16x32xf32>
    %c0_23 = arith.constant 0 : index
    %c0_24 = arith.constant 0 : index
    %49 = vector.load %arg8[%c0_23, %c0_24] : memref<16x32xf32, #tpu.memory_space<vmem>>, vector<16x32xf32>
    tpu.vector_store %arg8[%c0_23, %c0_24], %48 {strides = array<i32>} : memref<16x32xf32, #tpu.memory_space<vmem>>, vector<16x32xf32>,
    return
  }
  func.func @transform_0(%arg0: i32) -> (i32, i32) {
    %c0_i32 = arith.constant 0 : i32
    %c0_i32_0 = arith.constant 0 : i32
    %c0_i32_1 = arith.constant 0 : i32
    return %c0_i32, %c0_i32_0 : i32, i32
  }
  func.func @transform_1(%arg0: i32) -> (i32, i32) {
    %c0_i32 = arith.constant 0 : i32
    %c0_i32_0 = arith.constant 0 : i32
    %c0_i32_1 = arith.constant 0 : i32
    return %c0_i32, %c0_i32_0 : i32, i32
  }
  func.func @transform_2(%arg0: i32) -> (i32, i32) {
    %c0_i32 = arith.constant 0 : i32
    %c0_i32_0 = arith.constant 0 : i32
    %c0_i32_1 = arith.constant 0 : i32
    return %c0_i32, %c0_i32_0 : i32, i32
  }
  func.func @transform_3(%arg0: i32) -> (i32, i32) {
    %c0_i32 = arith.constant 0 : i32
    %c0_i32_0 = arith.constant 0 : i32
    %c0_i32_1 = arith.constant 0 : i32
    return %c0_i32, %c0_i32_0 : i32, i32
  }
  func.func @transform_4(%arg0: i32) -> (i32, i32) {
    %c0_i32 = arith.constant 0 : i32
    %c0_i32_0 = arith.constant 0 : i32
    %c0_i32_1 = arith.constant 0 : i32
    return %c0_i32, %c0_i32_0 : i32, i32
  }
  func.func @transform_5(%arg0: i32) -> (i32, i32) {
    %c0_i32 = arith.constant 0 : i32
    %c0_i32_0 = arith.constant 0 : i32
    %c0_i32_1 = arith.constant 0 : i32
    return %c0_i32, %c0_i32_0 : i32, i32
  }
  func.func @transform_6(%arg0: i32) -> (i32, i32) {
    %c0_i32 = arith.constant 0 : i32
    %c0_i32_0 = arith.constant 0 : i32
    %c0_i32_1 = arith.constant 0 : i32
    return %c0_i32, %c0_i32_0 : i32, i32
  }
  func.func @transform_7(%arg0: i32) -> (i32, i32) {
    %c0_i32 = arith.constant 0 : i32
    %c0_i32_0 = arith.constant 0 : i32
    %c0_i32_1 = arith.constant 0 : i32
    return %c0_i32, %c0_i32_0 : i32, i32
  }
}

module attributes {stable_mosaic.version = 11 : i64} {
  func.func @_dense_kernel(%arg0: i32, %arg1: memref<16x32xf32, #tpu.memory_space<vmem>>, %arg2: memref<32x64xf32, #tpu.memory_space<vmem>>, %arg3: memref<1x64xf32, #tpu.memory_space<vmem>>, %arg4: memref<16x64xf32, #tpu.memory_space<vmem>>) attributes {dimension_semantics = [#tpu.dimension_semantics<arbitrary>], iteration_bounds = array<i64: 1>, scalar_prefetch = 0 : i64, scratch_operands = 0 : i64, tpu.core_type = #tpu.core_type<tc>, window_params = [{pipeline_mode = #tpu.pipeline_mode<synchronous>, transform_indices = @transform_0, window_bounds = array<i64: 16, 32>}, {pipeline_mode = #tpu.pipeline_mode<synchronous>, transform_indices = @transform_1, window_bounds = array<i64: 32, 64>}, {pipeline_mode = #tpu.pipeline_mode<synchronous>, transform_indices = @transform_2, window_bounds = array<i64: 1, 64>}, {pipeline_mode = #tpu.pipeline_mode<synchronous>, transform_indices = @transform_3, window_bounds = array<i64: 16, 64>}]} {
    %c0 = arith.constant 0 : index
    %c0_0 = arith.constant 0 : index
    %0 = vector.load %arg1[%c0, %c0_0] : memref<16x32xf32, #tpu.memory_space<vmem>>, vector<16x32xf32>
    %c0_1 = arith.constant 0 : index
    %c0_2 = arith.constant 0 : index
    %1 = vector.load %arg2[%c0_1, %c0_2] : memref<32x64xf32, #tpu.memory_space<vmem>>, vector<32x64xf32>
    %cst = arith.constant dense<0.000000e+00> : vector<16x64xf32>
    %2 = tpu.matmul %0, %1, %cst {dimension_numbers = #tpu.dot_dimension_numbers<[1], [0], [0], [1], [0, 0, 1, 1], [], []>} : vector<16x32xf32>, vector<32x64xf32>, vector<16x64xf32> -> vector<16x64xf32>
    %c0_3 = arith.constant 0 : index
    %c0_4 = arith.constant 0 : index
    %3 = vector.load %arg3[%c0_3, %c0_4] : memref<1x64xf32, #tpu.memory_space<vmem>>, vector<1x64xf32>
    %4 = vector.broadcast %3 : vector<1x64xf32> to vector<16x64xf32>
    %5 = arith.addf %2, %4 : vector<16x64xf32>
    %c0_5 = arith.constant 0 : index
    %c0_6 = arith.constant 0 : index
    %6 = vector.load %arg4[%c0_5, %c0_6] : memref<16x64xf32, #tpu.memory_space<vmem>>, vector<16x64xf32>
    tpu.vector_store %arg4[%c0_5, %c0_6], %5 {strides = array<i32>} : memref<16x64xf32, #tpu.memory_space<vmem>>, vector<16x64xf32>,
    return
  }
  func.func @transform_0(%arg0: i32) -> (i32, i32) {
    %c0_i32 = arith.constant 0 : i32
    %c0_i32_0 = arith.constant 0 : i32
    %c0_i32_1 = arith.constant 0 : i32
    return %c0_i32, %c0_i32_0 : i32, i32
  }
  func.func @transform_1(%arg0: i32) -> (i32, i32) {
    %c0_i32 = arith.constant 0 : i32
    %c0_i32_0 = arith.constant 0 : i32
    %c0_i32_1 = arith.constant 0 : i32
    return %c0_i32, %c0_i32_0 : i32, i32
  }
  func.func @transform_2(%arg0: i32) -> (i32, i32) {
    %c0_i32 = arith.constant 0 : i32
    %c0_i32_0 = arith.constant 0 : i32
    %c0_i32_1 = arith.constant 0 : i32
    return %c0_i32, %c0_i32_0 : i32, i32
  }
  func.func @transform_3(%arg0: i32) -> (i32, i32) {
    %c0_i32 = arith.constant 0 : i32
    %c0_i32_0 = arith.constant 0 : i32
    %c0_i32_1 = arith.constant 0 : i32
    return %c0_i32, %c0_i32_0 : i32, i32
  }
}

module attributes {stable_mosaic.version = 11 : i64} {
  func.func @_attention_kernel(%arg0: i32, %arg1: memref<8x7x8xf32, #tpu.memory_space<vmem>>, %arg2: memref<8x8x8xf32, #tpu.memory_space<vmem>>, %arg3: memref<8x8x8xf32, #tpu.memory_space<vmem>>, %arg4: memref<8x1x8xf32, #tpu.memory_space<vmem>>, %arg5: memref<8x7x8xf32, #tpu.memory_space<vmem>>) attributes {dimension_semantics = [#tpu.dimension_semantics<arbitrary>], iteration_bounds = array<i64: 1>, scalar_prefetch = 0 : i64, scratch_operands = 0 : i64, tpu.core_type = #tpu.core_type<tc>, window_params = [{pipeline_mode = #tpu.pipeline_mode<synchronous>, transform_indices = @transform_0, window_bounds = array<i64: 8, 7, 8>}, {pipeline_mode = #tpu.pipeline_mode<synchronous>, transform_indices = @transform_1, window_bounds = array<i64: 8, 8, 8>}, {pipeline_mode = #tpu.pipeline_mode<synchronous>, transform_indices = @transform_2, window_bounds = array<i64: 8, 8, 8>}, {pipeline_mode = #tpu.pipeline_mode<synchronous>, transform_indices = @transform_3, window_bounds = array<i64: 8, 1, 8>}, {pipeline_mode = #tpu.pipeline_mode<synchronous>, transform_indices = @transform_4, window_bounds = array<i64: 8, 7, 8>}]} {
    %c0 = arith.constant 0 : index
    %c0_0 = arith.constant 0 : index
    %c0_1 = arith.constant 0 : index
    %0 = vector.load %arg1[%c0, %c0_0, %c0_1] : memref<8x7x8xf32, #tpu.memory_space<vmem>>, vector<8x7x8xf32>
    %c0_2 = arith.constant 0 : index
    %c0_3 = arith.constant 0 : index
    %c0_4 = arith.constant 0 : index
    %1 = vector.load %arg2[%c0_2, %c0_3, %c0_4] : memref<8x8x8xf32, #tpu.memory_space<vmem>>, vector<8x8x8xf32>
    %c0_5 = arith.constant 0 : index
    %c0_6 = arith.constant 0 : index
    %c0_7 = arith.constant 0 : index
    %2 = vector.load %arg3[%c0_5, %c0_6, %c0_7] : memref<8x8x8xf32, #tpu.memory_space<vmem>>, vector<8x8x8xf32>
    "tpu.trace_start"() <{level = 10 : i32, message = "bqd,bkd->bqk"}> : () -> ()
    %cst = arith.constant dense<0.000000e+00> : vector<8x7x8xf32>
    %3 = tpu.matmul %0, %1, %cst {dimension_numbers = #tpu.dot_dimension_numbers<[2], [2], [1], [1], [0, 0, 0, 1, 1, 1], [0], [0]>} : vector<8x7x8xf32>, vector<8x8x8xf32>, vector<8x7x8xf32> -> vector<8x7x8xf32>
    "tpu.trace_stop"() : () -> ()
    %cst_8 = arith.constant 0.353553385 : f32
    %4 = vector.broadcast %cst_8 : f32 to vector<8x7x8xf32>
    %5 = arith.mulf %3, %4 : vector<8x7x8xf32>
    %c0_9 = arith.constant 0 : index
    %c0_10 = arith.constant 0 : index
    %c0_11 = arith.constant 0 : index
    %6 = vector.load %arg4[%c0_9, %c0_10, %c0_11] : memref<8x1x8xf32, #tpu.memory_space<vmem>>, vector<8x1x8xf32>
    %cst_12 = arith.constant 1.000000e+00 : f32
    %7 = vector.broadcast %cst_12 : f32 to vector<8x1x8xf32>
    %8 = arith.subf %7, %6 : vector<8x1x8xf32>
    %cst_13 = arith.constant -1.000000e+04 : f32
    %9 = vector.broadcast %cst_13 : f32 to vector<8x1x8xf32>
    %10 = arith.mulf %8, %9 : vector<8x1x8xf32>
    %11 = vector.broadcast %10 : vector<8x1x8xf32> to vector<8x7x8xf32>
    %12 = arith.addf %5, %11 : vector<8x7x8xf32>
    %cst_14 = arith.constant dense<0xFF800000> : vector<8x7xf32>
    %13 = vector.multi_reduction <maximumf>, %12, %cst_14 [2] : vector<8x7x8xf32> to vector<8x7xf32>
    %14 = vector.shape_cast %13 : vector<8x7xf32> to vector<8x7x1xf32>
    %15 = vector.broadcast %14 : vector<8x7x1xf32> to vector<8x7x8xf32>
    %16 = arith.subf %12, %15 : vector<8x7x8xf32>
    %17 = math.exp %16 : vector<8x7x8xf32>
    %cst_15 = arith.constant dense<0.000000e+00> : vector<8x7xf32>
    %18 = vector.multi_reduction <add>, %17, %cst_15 [2] : vector<8x7x8xf32> to vector<8x7xf32>
    %19 = vector.shape_cast %18 : vector<8x7xf32> to vector<8x7x1xf32>
    %20 = tpu.reciprocal %19 {approx = true} : vector<8x7x1xf32> -> vector<8x7x1xf32>
    %21 = vector.broadcast %20 : vector<8x7x1xf32> to vector<8x7x8xf32>
    %22 = arith.mulf %17, %21 : vector<8x7x8xf32>
    "tpu.trace_start"() <{level = 10 : i32, message = "bqk,bkd->bqd"}> : () -> ()
    %cst_16 = arith.constant dense<0.000000e+00> : vector<8x7x8xf32>
    %23 = tpu.matmul %22, %2, %cst_16 {dimension_numbers = #tpu.dot_dimension_numbers<[2], [1], [1], [2], [0, 0, 0, 1, 1, 2], [0], [0]>} : vector<8x7x8xf32>, vector<8x8x8xf32>, vector<8x7x8xf32> -> vector<8x7x8xf32>
    "tpu.trace_stop"() : () -> ()
    %c0_17 = arith.constant 0 : index
    %c0_18 = arith.constant 0 : index
    %c0_19 = arith.constant 0 : index
    %24 = vector.load %arg5[%c0_17, %c0_18, %c0_19] : memref<8x7x8xf32, #tpu.memory_space<vmem>>, vector<8x7x8xf32>
    tpu.vector_store %arg5[%c0_17, %c0_18, %c0_19], %23 {strides = array<i32>} : memref<8x7x8xf32, #tpu.memory_space<vmem>>, vector<8x7x8xf32>,
    return
  }
  func.func @transform_0(%arg0: i32) -> (i32, i32, i32) {
    %c0_i32 = arith.constant 0 : i32
    %c0_i32_0 = arith.constant 0 : i32
    %c0_i32_1 = arith.constant 0 : i32
    %c0_i32_2 = arith.constant 0 : i32
    return %c0_i32, %c0_i32_0, %c0_i32_1 : i32, i32, i32
  }
  func.func @transform_1(%arg0: i32) -> (i32, i32, i32) {
    %c0_i32 = arith.constant 0 : i32
    %c0_i32_0 = arith.constant 0 : i32
    %c0_i32_1 = arith.constant 0 : i32
    %c0_i32_2 = arith.constant 0 : i32
    return %c0_i32, %c0_i32_0, %c0_i32_1 : i32, i32, i32
  }
  func.func @transform_2(%arg0: i32) -> (i32, i32, i32) {
    %c0_i32 = arith.constant 0 : i32
    %c0_i32_0 = arith.constant 0 : i32
    %c0_i32_1 = arith.constant 0 : i32
    %c0_i32_2 = arith.constant 0 : i32
    return %c0_i32, %c0_i32_0, %c0_i32_1 : i32, i32, i32
  }
  func.func @transform_3(%arg0: i32) -> (i32, i32, i32) {
    %c0_i32 = arith.constant 0 : i32
    %c0_i32_0 = arith.constant 0 : i32
    %c0_i32_1 = arith.constant 0 : i32
    %c0_i32_2 = arith.constant 0 : i32
    return %c0_i32, %c0_i32_0, %c0_i32_1 : i32, i32, i32
  }
  func.func @transform_4(%arg0: i32) -> (i32, i32, i32) {
    %c0_i32 = arith.constant 0 : i32
    %c0_i32_0 = arith.constant 0 : i32
    %c0_i32_1 = arith.constant 0 : i32
    %c0_i32_2 = arith.constant 0 : i32
    return %c0_i32, %c0_i32_0, %c0_i32_1 : i32, i32, i32
  }
}

module attributes {stable_mosaic.version = 11 : i64} {
  func.func @_ffn_kernel(%arg0: i32, %arg1: memref<14x32xf32, #tpu.memory_space<vmem>>, %arg2: memref<32x64xf32, #tpu.memory_space<vmem>>, %arg3: memref<1x64xf32, #tpu.memory_space<vmem>>, %arg4: memref<64x32xf32, #tpu.memory_space<vmem>>, %arg5: memref<1x32xf32, #tpu.memory_space<vmem>>, %arg6: memref<1x32xf32, #tpu.memory_space<vmem>>, %arg7: memref<1x32xf32, #tpu.memory_space<vmem>>, %arg8: memref<14x32xf32, #tpu.memory_space<vmem>>) attributes {dimension_semantics = [#tpu.dimension_semantics<arbitrary>], iteration_bounds = array<i64: 1>, scalar_prefetch = 0 : i64, scratch_operands = 0 : i64, tpu.core_type = #tpu.core_type<tc>, window_params = [{pipeline_mode = #tpu.pipeline_mode<synchronous>, transform_indices = @transform_0, window_bounds = array<i64: 14, 32>}, {pipeline_mode = #tpu.pipeline_mode<synchronous>, transform_indices = @transform_1, window_bounds = array<i64: 32, 64>}, {pipeline_mode = #tpu.pipeline_mode<synchronous>, transform_indices = @transform_2, window_bounds = array<i64: 1, 64>}, {pipeline_mode = #tpu.pipeline_mode<synchronous>, transform_indices = @transform_3, window_bounds = array<i64: 64, 32>}, {pipeline_mode = #tpu.pipeline_mode<synchronous>, transform_indices = @transform_4, window_bounds = array<i64: 1, 32>}, {pipeline_mode = #tpu.pipeline_mode<synchronous>, transform_indices = @transform_5, window_bounds = array<i64: 1, 32>}, {pipeline_mode = #tpu.pipeline_mode<synchronous>, transform_indices = @transform_6, window_bounds = array<i64: 1, 32>}, {pipeline_mode = #tpu.pipeline_mode<synchronous>, transform_indices = @transform_7, window_bounds = array<i64: 14, 32>}]} {
    %c0 = arith.constant 0 : index
    %c0_0 = arith.constant 0 : index
    %0 = vector.load %arg1[%c0, %c0_0] : memref<14x32xf32, #tpu.memory_space<vmem>>, vector<14x32xf32>
    %c0_1 = arith.constant 0 : index
    %c0_2 = arith.constant 0 : index
    %1 = vector.load %arg2[%c0_1, %c0_2] : memref<32x64xf32, #tpu.memory_space<vmem>>, vector<32x64xf32>
    %cst = arith.constant dense<0.000000e+00> : vector<14x64xf32>
    %2 = tpu.matmul %0, %1, %cst {dimension_numbers = #tpu.dot_dimension_numbers<[1], [0], [0], [1], [0, 0, 1, 1], [], []>} : vector<14x32xf32>, vector<32x64xf32>, vector<14x64xf32> -> vector<14x64xf32>
    %c0_3 = arith.constant 0 : index
    %c0_4 = arith.constant 0 : index
    %3 = vector.load %arg3[%c0_3, %c0_4] : memref<1x64xf32, #tpu.memory_space<vmem>>, vector<1x64xf32>
    %4 = vector.broadcast %3 : vector<1x64xf32> to vector<14x64xf32>
    %5 = arith.addf %2, %4 : vector<14x64xf32>
    %6 = arith.mulf %5, %5 : vector<14x64xf32>
    %7 = arith.mulf %5, %6 : vector<14x64xf32>
    %cst_5 = arith.constant 4.471500e-02 : f32
    %8 = vector.broadcast %cst_5 : f32 to vector<14x64xf32>
    %9 = arith.mulf %8, %7 : vector<14x64xf32>
    %10 = arith.addf %5, %9 : vector<14x64xf32>
    %cst_6 = arith.constant 0.797884583 : f32
    %11 = vector.broadcast %cst_6 : f32 to vector<14x64xf32>
    %12 = arith.mulf %11, %10 : vector<14x64xf32>
    %13 = math.tanh %12 : vector<14x64xf32>
    %cst_7 = arith.constant 1.000000e+00 : f32
    %14 = vector.broadcast %cst_7 : f32 to vector<14x64xf32>
    %15 = arith.addf %14, %13 : vector<14x64xf32>
    %cst_8 = arith.constant 5.000000e-01 : f32
    %16 = vector.broadcast %cst_8 : f32 to vector<14x64xf32>
    %17 = arith.mulf %16, %15 : vector<14x64xf32>
    %18 = arith.mulf %5, %17 : vector<14x64xf32>
    %c0_9 = arith.constant 0 : index
    %c0_10 = arith.constant 0 : index
    %19 = vector.load %arg4[%c0_9, %c0_10] : memref<64x32xf32, #tpu.memory_space<vmem>>, vector<64x32xf32>
    %cst_11 = arith.constant dense<0.000000e+00> : vector<14x32xf32>
    %20 = tpu.matmul %18, %19, %cst_11 {dimension_numbers = #tpu.dot_dimension_numbers<[1], [0], [0], [1], [0, 0, 1, 1], [], []>} : vector<14x64xf32>, vector<64x32xf32>, vector<14x32xf32> -> vector<14x32xf32>
    %c0_12 = arith.constant 0 : index
    %c0_13 = arith.constant 0 : index
    %21 = vector.load %arg5[%c0_12, %c0_13] : memref<1x32xf32, #tpu.memory_space<vmem>>, vector<1x32xf32>
    %22 = vector.broadcast %21 : vector<1x32xf32> to vector<14x32xf32>
    %23 = arith.addf %20, %22 : vector<14x32xf32>
    %24 = arith.addf %23, %0 : vector<14x32xf32>
    %c0_14 = arith.constant 0 : index
    %c0_15 = arith.constant 0 : index
    %25 = vector.load %arg6[%c0_14, %c0_15] : memref<1x32xf32, #tpu.memory_space<vmem>>, vector<1x32xf32>
    %c0_16 = arith.constant 0 : index
    %c0_17 = arith.constant 0 : index
    %26 = vector.load %arg7[%c0_16, %c0_17] : memref<1x32xf32, #tpu.memory_space<vmem>>, vector<1x32xf32>
    %cst_18 = arith.constant dense<0.000000e+00> : vector<14xf32>
    %27 = vector.multi_reduction <add>, %24, %cst_18 [1] : vector<14x32xf32> to vector<14xf32>
    %28 = vector.shape_cast %27 : vector<14xf32> to vector<14x1xf32>
    %cst_19 = arith.constant 3.200000e+01 : f32
    %29 = vector.broadcast %cst_19 : f32 to vector<14x1xf32>
    %30 = arith.divf %28, %29 : vector<14x1xf32>
    %31 = vector.broadcast %30 : vector<14x1xf32> to vector<14x32xf32>
    %32 = arith.subf %24, %31 : vector<14x32xf32>
    %33 = arith.mulf %32, %32 : vector<14x32xf32>
    %cst_20 = arith.constant dense<0.000000e+00> : vector<14xf32>
    %34 = vector.multi_reduction <add>, %33, %cst_20 [1] : vector<14x32xf32> to vector<14xf32>
    %35 = vector.shape_cast %34 : vector<14xf32> to vector<14x1xf32>
    %cst_21 = arith.constant 3.200000e+01 : f32
    %36 = vector.broadcast %cst_21 : f32 to vector<14x1xf32>
    %37 = arith.divf %35, %36 : vector<14x1xf32>
    %38 = vector.broadcast %30 : vector<14x1xf32> to vector<14x32xf32>
    %39 = arith.subf %24, %38 : vector<14x32xf32>
    %cst_22 = arith.constant 9.99999996E-13 : f32
    %40 = vector.broadcast %cst_22 : f32 to vector<14x1xf32>
    %41 = arith.addf %37, %40 : vector<14x1xf32>
    %42 = math.rsqrt %41 : vector<14x1xf32>
    %43 = vector.broadcast %42 : vector<14x1xf32> to vector<14x32xf32>
    %44 = arith.mulf %39, %43 : vector<14x32xf32>
    %45 = vector.broadcast %25 : vector<1x32xf32> to vector<14x32xf32>
    %46 = arith.mulf %44, %45 : vector<14x32xf32>
    %47 = vector.broadcast %26 : vector<1x32xf32> to vector<14x32xf32>
    %48 = arith.addf %46, %47 : vector<14x32xf32>
    %c0_23 = arith.constant 0 : index
    %c0_24 = arith.constant 0 : index
    %49 = vector.load %arg8[%c0_23, %c0_24] : memref<14x32xf32, #tpu.memory_space<vmem>>, vector<14x32xf32>
    tpu.vector_store %arg8[%c0_23, %c0_24], %48 {strides = array<i32>} : memref<14x32xf32, #tpu.memory_space<vmem>>, vector<14x32xf32>,
    return
  }
  func.func @transform_0(%arg0: i32) -> (i32, i32) {
    %c0_i32 = arith.constant 0 : i32
    %c0_i32_0 = arith.constant 0 : i32
    %c0_i32_1 = arith.constant 0 : i32
    return %c0_i32, %c0_i32_0 : i32, i32
  }
  func.func @transform_1(%arg0: i32) -> (i32, i32) {
    %c0_i32 = arith.constant 0 : i32
    %c0_i32_0 = arith.constant 0 : i32
    %c0_i32_1 = arith.constant 0 : i32
    return %c0_i32, %c0_i32_0 : i32, i32
  }
  func.func @transform_2(%arg0: i32) -> (i32, i32) {
    %c0_i32 = arith.constant 0 : i32
    %c0_i32_0 = arith.constant 0 : i32
    %c0_i32_1 = arith.constant 0 : i32
    return %c0_i32, %c0_i32_0 : i32, i32
  }
  func.func @transform_3(%arg0: i32) -> (i32, i32) {
    %c0_i32 = arith.constant 0 : i32
    %c0_i32_0 = arith.constant 0 : i32
    %c0_i32_1 = arith.constant 0 : i32
    return %c0_i32, %c0_i32_0 : i32, i32
  }
  func.func @transform_4(%arg0: i32) -> (i32, i32) {
    %c0_i32 = arith.constant 0 : i32
    %c0_i32_0 = arith.constant 0 : i32
    %c0_i32_1 = arith.constant 0 : i32
    return %c0_i32, %c0_i32_0 : i32, i32
  }
  func.func @transform_5(%arg0: i32) -> (i32, i32) {
    %c0_i32 = arith.constant 0 : i32
    %c0_i32_0 = arith.constant 0 : i32
    %c0_i32_1 = arith.constant 0 : i32
    return %c0_i32, %c0_i32_0 : i32, i32
  }
  func.func @transform_6(%arg0: i32) -> (i32, i32) {
    %c0_i32 = arith.constant 0 : i32
    %c0_i32_0 = arith.constant 0 : i32
    %c0_i32_1 = arith.constant 0 : i32
    return %c0_i32, %c0_i32_0 : i32, i32
  }
  func.func @transform_7(%arg0: i32) -> (i32, i32) {
    %c0_i32 = arith.constant 0 : i32
    %c0_i32_0 = arith.constant 0 : i32
    %c0_i32_1 = arith.constant 0 : i32
    return %c0_i32, %c0_i32_0 : i32, i32
  }
}

module attributes {stable_mosaic.version = 11 : i64} {
  func.func @_dense_kernel(%arg0: i32, %arg1: memref<14x32xf32, #tpu.memory_space<vmem>>, %arg2: memref<32x64xf32, #tpu.memory_space<vmem>>, %arg3: memref<1x64xf32, #tpu.memory_space<vmem>>, %arg4: memref<14x64xf32, #tpu.memory_space<vmem>>) attributes {dimension_semantics = [#tpu.dimension_semantics<arbitrary>], iteration_bounds = array<i64: 1>, scalar_prefetch = 0 : i64, scratch_operands = 0 : i64, tpu.core_type = #tpu.core_type<tc>, window_params = [{pipeline_mode = #tpu.pipeline_mode<synchronous>, transform_indices = @transform_0, window_bounds = array<i64: 14, 32>}, {pipeline_mode = #tpu.pipeline_mode<synchronous>, transform_indices = @transform_1, window_bounds = array<i64: 32, 64>}, {pipeline_mode = #tpu.pipeline_mode<synchronous>, transform_indices = @transform_2, window_bounds = array<i64: 1, 64>}, {pipeline_mode = #tpu.pipeline_mode<synchronous>, transform_indices = @transform_3, window_bounds = array<i64: 14, 64>}]} {
    %c0 = arith.constant 0 : index
    %c0_0 = arith.constant 0 : index
    %0 = vector.load %arg1[%c0, %c0_0] : memref<14x32xf32, #tpu.memory_space<vmem>>, vector<14x32xf32>
    %c0_1 = arith.constant 0 : index
    %c0_2 = arith.constant 0 : index
    %1 = vector.load %arg2[%c0_1, %c0_2] : memref<32x64xf32, #tpu.memory_space<vmem>>, vector<32x64xf32>
    %cst = arith.constant dense<0.000000e+00> : vector<14x64xf32>
    %2 = tpu.matmul %0, %1, %cst {dimension_numbers = #tpu.dot_dimension_numbers<[1], [0], [0], [1], [0, 0, 1, 1], [], []>} : vector<14x32xf32>, vector<32x64xf32>, vector<14x64xf32> -> vector<14x64xf32>
    %c0_3 = arith.constant 0 : index
    %c0_4 = arith.constant 0 : index
    %3 = vector.load %arg3[%c0_3, %c0_4] : memref<1x64xf32, #tpu.memory_space<vmem>>, vector<1x64xf32>
    %4 = vector.broadcast %3 : vector<1x64xf32> to vector<14x64xf32>
    %5 = arith.addf %2, %4 : vector<14x64xf32>
    %c0_5 = arith.constant 0 : index
    %c0_6 = arith.constant 0 : index
    %6 = vector.load %arg4[%c0_5, %c0_6] : memref<14x64xf32, #tpu.memory_space<vmem>>, vector<14x64xf32>
    tpu.vector_store %arg4[%c0_5, %c0_6], %5 {strides = array<i32>} : memref<14x64xf32, #tpu.memory_space<vmem>>, vector<14x64xf32>,
    return
  }
  func.func @transform_0(%arg0: i32) -> (i32, i32) {
    %c0_i32 = arith.constant 0 : i32
    %c0_i32_0 = arith.constant 0 : i32
    %c0_i32_1 = arith.constant 0 : i32
    return %c0_i32, %c0_i32_0 : i32, i32
  }
  func.func @transform_1(%arg0: i32) -> (i32, i32) {
    %c0_i32 = arith.constant 0 : i32
    %c0_i32_0 = arith.constant 0 : i32
    %c0_i32_1 = arith.constant 0 : i32
    return %c0_i32, %c0_i32_0 : i32, i32
  }
  func.func @transform_2(%arg0: i32) -> (i32, i32) {
    %c0_i32 = arith.constant 0 : i32
    %c0_i32_0 = arith.constant 0 : i32
    %c0_i32_1 = arith.constant 0 : i32
    return %c0_i32, %c0_i32_0 : i32, i32
  }
  func.func @transform_3(%arg0: i32) -> (i32, i32) {
    %c0_i32 = arith.constant 0 : i32
    %c0_i32_0 = arith.constant 0 : i32
    %c0_i32_1 = arith.constant 0 : i32
    return %c0_i32, %c0_i32_0 : i32, i32
  }
}

</mosaic_0001>

<llo_original>
// kernel: _seq2seq_core.37
$region0: #{_seq2seq_core.37}
  #allocation0 [shape = 'u32[]', space=smem, size = 0x4, offset = 0x4, fixed_abs, tag = 'smem constant byte address 0x4 - core index']
  #allocation1 [shape = 'u32[144,128]{1,0:T(1,128)}', space=vmem, size = 0x12000, scoped, tag = 'internal scratch']
  %s0 = inlined_call_operand.vmem [shape: f32[14,32], index: 0, kind: input, shape index: {}]
  %s1 = inlined_call_operand.vmem [shape: f32[32,96], index: 1, kind: input, shape index: {}]
  %s2 = inlined_call_operand.vmem [shape: f32[1,96], index: 2, kind: input, shape index: {}]
  %s3 = inlined_call_operand.vmem [shape: f32[14,96], index: 3, kind: output, shape index: {}]
  %s4 = sld [smem:[#allocation0]]
  $region22: #{_seq2seq_core.37} parent=0
    _
  %s6 = ssub.s32 1, %s4
  %s7 = scalar_select 0, %s6, %s4
  // Predicated region
  $region2: #{_seq2seq_core.37} parent=0 // pred_check
    _
  $region3: #{_seq2seq_core.37} parent=0 // pred_check_branch
    %9 = sbr.rel (0) target = $region5
  $region4: #{_seq2seq_core.37} parent=0 // pred_region
    _
  $region5: #{_seq2seq_core.37} parent=0 // pred_fallthru
    _
  // Predicated region
  $region6: #{_seq2seq_core.37} parent=0 // pred_check
    _
  $region7: #{_seq2seq_core.37} parent=0 // pred_check_branch
    %11 = sbr.rel (0) target = $region9
  $region8: #{_seq2seq_core.37} parent=0 // pred_region
    _
  $region9: #{_seq2seq_core.37} parent=0 // pred_fallthru
    _
  // Predicated region
  $region10: #{_seq2seq_core.37} parent=0 // pred_check
    _
  $region11: #{_seq2seq_core.37} parent=0 // pred_check_branch
    %13 = sbr.rel (0) target = $region13
  $region12: #{_seq2seq_core.37} parent=0 // pred_region
    _
  $region13: #{_seq2seq_core.37} parent=0 // pred_fallthru
    _
  %v14 = vld [vmem:[%s0] sm:$0xff]
  %v15 = vld [vmem:[%s0 + $0x8] sm:$0x3f]
  %v16 = vld [vmem:[%s1] sm:$0xff]
  %v17 = vld [vmem:[%s1 + $0x8] sm:$0xff]
  %v18 = vld [vmem:[%s1 + $0x10] sm:$0xff]
  %v19 = vld [vmem:[%s1 + $0x18] sm:$0xff]
  %v20 = vld [vmem:[%s2] sm:$0x1]
  %v22 = vlaneseq
  %v23 = vshrl.u32 %v22, 7
  %v24 = vsub.s32 0, %v23
  %v25 = vrot.slane %v20, %v24
  %vm27 = vcmask 261120
  %v29 = vsel %vm27, %v14, 0
  %v32 = vsel %vm27, %v15, 0
  %34 = vmatprep.subr.mxu0 0.0
  %35 = vmatpush1.msra.mxu0 %v16
  %36 = vmatprep.subr.mxu0 0.0
  %37 = vmatpush1.msra.mxu0 %v17
  %38 = vmatprep.subr.mxu0 0.0
  %39 = vmatpush1.msra.mxu0 %v18
  %40 = vmatprep.subr.mxu0 0.0
  %41 = vmatpush1.msra.mxu0 %v19
  %42 = vmatprep.subr.mxu0 0.0
  %43 = vmatpush1.msra.mxu0 0.0
  %44 = vmatprep.subr.mxu0 0.0
  %45 = vmatpush1.msra.mxu0 0.0
  %46 = vmatprep.subr.mxu0 0.0
  %47 = vmatpush1.msra.mxu0 0.0
  %48 = vmatprep.subr.mxu0 0.0
  %49 = vmatpush1.msra.mxu0 0.0
  %50 = vmatprep.subr.mxu0 0.0
  %51 = vmatpush1.msra.mxu0 0.0
  %52 = vmatprep.subr.mxu0 0.0
  %53 = vmatpush1.msra.mxu0 0.0
  %54 = vmatprep.subr.mxu0 0.0
  %55 = vmatpush1.msra.mxu0 0.0
  %56 = vmatprep.subr.mxu0 0.0
  %57 = vmatpush1.msra.mxu0 0.0
  %58 = vmatprep.subr.mxu0 0.0
  %59 = vmatpush1.msra.mxu0 0.0
  %60 = vmatprep.subr.mxu0 0.0
  %61 = vmatpush1.msra.mxu0 0.0
  %62 = vmatprep.subr.mxu0 0.0
  %63 = vmatpush1.msra.mxu0 0.0
  %64 = vmatprep.subr.mxu0 0.0
  %65 = vmatpush1.msra.mxu0 0.0
  %66 = vmatprep.subr.mxu0 0.0
  %67 = vmatpush1.msra.mxu0 0.0
  %68 = vmatprep.subr.mxu0 0.0
  %69 = vmatpush1.msra.mxu0 0.0
  %70 = vmatprep.subr.mxu0 0.0
  %71 = vmatpush1.msra.mxu0 0.0
  %72 = vmatprep.subr.mxu0 0.0
  %73 = vmatpush1.msra.mxu0 0.0
  %74 = vmatprep.subr.mxu0 0.0
  %75 = vmatpush1.msra.mxu0 0.0
  %76 = vmatprep.subr.mxu0 0.0
  %77 = vmatpush1.msra.mxu0 0.0
  %78 = vmatprep.subr.mxu0 0.0
  %79 = vmatpush1.msra.mxu0 0.0
  %80 = vmatprep.subr.mxu0 0.0
  %81 = vmatpush1.msra.mxu0 0.0
  %82 = vmatprep.subr.mxu0 0.0
  %83 = vmatpush1.msra.mxu0 0.0
  %84 = vmatprep.subr.mxu0 0.0
  %85 = vmatpush1.msra.mxu0 0.0
  %86 = vmatprep.subr.mxu0 0.0
  %87 = vmatpush1.msra.mxu0 0.0
  %88 = vmatprep.subr.mxu0 0.0
  %89 = vmatpush1.msra.mxu0 0.0
  %90 = vmatprep.subr.mxu0 0.0
  %91 = vmatpush1.msra.mxu0 0.0
  %92 = vmatprep.subr.mxu0 0.0
  %93 = vmatpush1.msra.mxu0 0.0
  %94 = vmatprep.subr.mxu0 0.0
  %95 = vmatpush1.msra.mxu0 0.0
  %96 = vmatprep.subr.mxu0 0.0
  %97 = vmatpush1.msra.mxu0 0.0
  %98 = vmatprep.mubr.f32.mxu0 0.0
  %99 = vmatmul.mubr.f32.gmra.mrb[0].mxu0 %v29
  %v100 = vpop.f32.mrb[0].mxu0
  %v101 = vadd.f32 %v25, %v100
  %v102 = vpop.f32.mrb[0].mxu0
  %103 = vmatprep.mubr.f32.mxu0 0.0
  %104 = vmatmul.mubr.f32.gmra.mrb[0].mxu0 %v32
  %v105 = vpop.f32.mrb[0].mxu0
  %v106 = vadd.f32 %v25, %v105
  %v107 = vpop.f32.mrb[0].mxu0
  %108 = vdwg.mxu0
  %vm109 = vcmask 785408
  %110 = vst.msk [vmem:[%s3] sm:$0xff] %vm109, %v101
  %vm111 = vcmask 783360
  %112 = vst.msk [vmem:[%s3 + $0x8] sm:$0x3f] %vm111, %v106
  // Predicated region
  $region14: #{_seq2seq_core.37} parent=0 // pred_check
    _
  $region15: #{_seq2seq_core.37} parent=0 // pred_check_branch
    %114 = sbr.rel (0) target = $region17
  $region16: #{_seq2seq_core.37} parent=0 // pred_region
    _
  $region17: #{_seq2seq_core.37} parent=0 // pred_fallthru
    _
  // Predicated region
  $region18: #{_seq2seq_core.37} parent=0 // pred_check
    _
  $region19: #{_seq2seq_core.37} parent=0 // pred_check_branch
    %116 = sbr.rel (0) target = $region21
  $region20: #{_seq2seq_core.37} parent=0 // pred_region
    _
  $region21: #{_seq2seq_core.37} parent=0 // pred_fallthru
    _

// kernel: _seq2seq_core.36
$region0: #{_seq2seq_core.36}
  #allocation0 [shape = 'u32[]', space=smem, size = 0x4, offset = 0x4, fixed_abs, tag = 'smem constant byte address 0x4 - core index']
  #allocation1 [shape = 'u32[144,128]{1,0:T(1,128)}', space=vmem, size = 0x12000, scoped, tag = 'internal scratch']
  %s0 = inlined_call_operand.vmem [shape: f32[14,32], index: 0, kind: input, shape index: {}]
  %s1 = inlined_call_operand.vmem [shape: f32[1,32], index: 1, kind: input, shape index: {}]
  %s2 = inlined_call_operand.vmem [shape: f32[1,32], index: 2, kind: input, shape index: {}]
  %s3 = inlined_call_operand.vmem [shape: f32[14,32], index: 3, kind: output, shape index: {}]
  %s4 = sld [smem:[#allocation0]]
  $region22: #{_seq2seq_core.36} parent=0
    _
  %s6 = ssub.s32 1, %s4
  %s7 = scalar_select 0, %s6, %s4
  // Predicated region
  $region2: #{_seq2seq_core.36} parent=0 // pred_check
    _
  $region3: #{_seq2seq_core.36} parent=0 // pred_check_branch
    %9 = sbr.rel (0) target = $region5
  $region4: #{_seq2seq_core.36} parent=0 // pred_region
    _
  $region5: #{_seq2seq_core.36} parent=0 // pred_fallthru
    _
  // Predicated region
  $region6: #{_seq2seq_core.36} parent=0 // pred_check
    _
  $region7: #{_seq2seq_core.36} parent=0 // pred_check_branch
    %11 = sbr.rel (0) target = $region9
  $region8: #{_seq2seq_core.36} parent=0 // pred_region
    _
  $region9: #{_seq2seq_core.36} parent=0 // pred_fallthru
    _
  // Predicated region
  $region10: #{_seq2seq_core.36} parent=0 // pred_check
    _
  $region11: #{_seq2seq_core.36} parent=0 // pred_check_branch
    %13 = sbr.rel (0) target = $region13
  $region12: #{_seq2seq_core.36} parent=0 // pred_region
    _
  $region13: #{_seq2seq_core.36} parent=0 // pred_fallthru
    _
  %v14 = vld [vmem:[%s0] sm:$0xff]
  %v15 = vld [vmem:[%s0 + $0x8] sm:$0x3f]
  %v16 = vld [vmem:[%s1] sm:$0x1]
  %v17 = vld [vmem:[%s2] sm:$0x1]
  %vm18 = vcmask 261120
  %v19 = vsel %vm18, %v14, 0.0
  %20 = vadd.xlane.f32.xlu0 %v19
  %v21 = vpop.xlane.xlu0 %20
  %vm22 = vcmask 259072
  %v23 = vsel %vm22, %v15, 0.0
  %24 = vadd.xlane.f32.xlu0 %v23
  %v25 = vpop.xlane.xlu0 %24
  %v26 = vrcp.pop 32.0
  %v27 = vmul.f32 %v21, %v26
  %v28 = vmul.f32 %v25, %v26
  %v29 = vsub.f32 %v14, %v27
  %v30 = vsub.f32 %v15, %v28
  %v31 = vmul.f32 %v29, %v29
  %v32 = vmul.f32 %v30, %v30
  %v33 = vsel %vm18, %v31, 0.0
  %34 = vadd.xlane.f32.xlu0 %v33
  %v35 = vpop.xlane.xlu0 %34
  %v36 = vsel %vm22, %v32, 0.0
  %37 = vadd.xlane.f32.xlu0 %v36
  %v38 = vpop.xlane.xlu0 %37
  %v39 = vmul.f32 %v35, %v26
  %v40 = vmul.f32 %v38, %v26
  %v41 = vadd.f32 %v39, 1e-12
  %v42 = vadd.f32 %v40, 1e-12
  %v43 = vrsqrt.pop %v41
  %v44 = vrsqrt.pop %v42
  %v45 = vmul.f32 %v29, %v43
  %v46 = vmul.f32 %v30, %v44
  %v48 = vlaneseq
  %v49 = vshrl.u32 %v48, 7
  %v50 = vsub.s32 0, %v49
  %v51 = vrot.slane %v16, %v50
  %v53 = vmul.f32 %v45, %v51
  %v54 = vmul.f32 %v46, %v51
  %v56 = vlaneseq
  %v57 = vshrl.u32 %v56, 7
  %v58 = vsub.s32 0, %v57
  %v59 = vrot.slane %v17, %v58
  %v61 = vadd.f32 %v53, %v59
  %v62 = vadd.f32 %v54, %v59
  %63 = vst.msk [vmem:[%s3] sm:$0xff] %vm18, %v61
  %64 = vst.msk [vmem:[%s3 + $0x8] sm:$0x3f] %vm22, %v62
  // Predicated region
  $region14: #{_seq2seq_core.36} parent=0 // pred_check
    _
  $region15: #{_seq2seq_core.36} parent=0 // pred_check_branch
    %66 = sbr.rel (0) target = $region17
  $region16: #{_seq2seq_core.36} parent=0 // pred_region
    _
  $region17: #{_seq2seq_core.36} parent=0 // pred_fallthru
    _
  // Predicated region
  $region18: #{_seq2seq_core.36} parent=0 // pred_check
    _
  $region19: #{_seq2seq_core.36} parent=0 // pred_check_branch
    %68 = sbr.rel (0) target = $region21
  $region20: #{_seq2seq_core.36} parent=0 // pred_region
    _
  $region21: #{_seq2seq_core.36} parent=0 // pred_fallthru
    _

// kernel: _seq2seq_core.39
$region0: #{_seq2seq_core.39}
  #allocation0 [shape = 'u32[]', space=smem, size = 0x4, offset = 0x4, fixed_abs, tag = 'smem constant byte address 0x4 - core index']
  #allocation1 [shape = 'u32[144,128]{1,0:T(1,128)}', space=vmem, size = 0x12000, scoped, tag = 'internal scratch']
  %s0 = inlined_call_operand.vmem [shape: f32[14,32], index: 0, kind: input, shape index: {}]
  %s1 = inlined_call_operand.vmem [shape: f32[32,32], index: 1, kind: input, shape index: {}]
  %s2 = inlined_call_operand.vmem [shape: f32[1,32], index: 2, kind: input, shape index: {}]
  %s3 = inlined_call_operand.vmem [shape: f32[14,32], index: 3, kind: input, shape index: {}]
  %s4 = inlined_call_operand.vmem [shape: f32[1,32], index: 4, kind: input, shape index: {}]
  %s5 = inlined_call_operand.vmem [shape: f32[1,32], index: 5, kind: input, shape index: {}]
  %s6 = inlined_call_operand.vmem [shape: f32[14,32], index: 6, kind: output, shape index: {}]
  %s7 = sld [smem:[#allocation0]]
  $region34: #{_seq2seq_core.39} parent=0
    _
  %s9 = ssub.s32 1, %s7
  %s10 = scalar_select 0, %s9, %s7
  // Predicated region
  $region2: #{_seq2seq_core.39} parent=0 // pred_check
    _
  $region3: #{_seq2seq_core.39} parent=0 // pred_check_branch
    %12 = sbr.rel (0) target = $region5
  $region4: #{_seq2seq_core.39} parent=0 // pred_region
    _
  $region5: #{_seq2seq_core.39} parent=0 // pred_fallthru
    _
  // Predicated region
  $region6: #{_seq2seq_core.39} parent=0 // pred_check
    _
  $region7: #{_seq2seq_core.39} parent=0 // pred_check_branch
    %14 = sbr.rel (0) target = $region9
  $region8: #{_seq2seq_core.39} parent=0 // pred_region
    _
  $region9: #{_seq2seq_core.39} parent=0 // pred_fallthru
    _
  // Predicated region
  $region10: #{_seq2seq_core.39} parent=0 // pred_check
    _
  $region11: #{_seq2seq_core.39} parent=0 // pred_check_branch
    %16 = sbr.rel (0) target = $region13
  $region12: #{_seq2seq_core.39} parent=0 // pred_region
    _
  $region13: #{_seq2seq_core.39} parent=0 // pred_fallthru
    _
  // Predicated region
  $region14: #{_seq2seq_core.39} parent=0 // pred_check
    _
  $region15: #{_seq2seq_core.39} parent=0 // pred_check_branch
    %18 = sbr.rel (0) target = $region17
  $region16: #{_seq2seq_core.39} parent=0 // pred_region
    _
  $region17: #{_seq2seq_core.39} parent=0 // pred_fallthru
    _
  // Predicated region
  $region18: #{_seq2seq_core.39} parent=0 // pred_check
    _
  $region19: #{_seq2seq_core.39} parent=0 // pred_check_branch
    %20 = sbr.rel (0) target = $region21
  $region20: #{_seq2seq_core.39} parent=0 // pred_region
    _
  $region21: #{_seq2seq_core.39} parent=0 // pred_fallthru
    _
  // Predicated region
  $region22: #{_seq2seq_core.39} parent=0 // pred_check
    _
  $region23: #{_seq2seq_core.39} parent=0 // pred_check_branch
    %22 = sbr.rel (0) target = $region25
  $region24: #{_seq2seq_core.39} parent=0 // pred_region
    _
  $region25: #{_seq2seq_core.39} parent=0 // pred_fallthru
    _
  %v23 = vld [vmem:[%s0] sm:$0xff]
  %v24 = vld [vmem:[%s0 + $0x8] sm:$0x3f]
  %v25 = vld [vmem:[%s1] sm:$0xff]
  %v26 = vld [vmem:[%s1 + $0x8] sm:$0xff]
  %v27 = vld [vmem:[%s1 + $0x10] sm:$0xff]
  %v28 = vld [vmem:[%s1 + $0x18] sm:$0xff]
  %v29 = vld [vmem:[%s2] sm:$0x1]
  %v31 = vlaneseq
  %v32 = vshrl.u32 %v31, 7
  %v33 = vsub.s32 0, %v32
  %v34 = vrot.slane %v29, %v33
  %vm36 = vcmask 261120
  %v38 = vsel %vm36, %v23, 0
  %v41 = vsel %vm36, %v24, 0
  %43 = vmatprep.subr.mxu0 0.0
  %44 = vmatpush1.msra.mxu0 %v25
  %45 = vmatprep.subr.mxu0 0.0
  %46 = vmatpush1.msra.mxu0 %v26
  %47 = vmatprep.subr.mxu0 0.0
  %48 = vmatpush1.msra.mxu0 %v27
  %49 = vmatprep.subr.mxu0 0.0
  %50 = vmatpush1.msra.mxu0 %v28
  %51 = vmatprep.subr.mxu0 0.0
  %52 = vmatpush1.msra.mxu0 0.0
  %53 = vmatprep.subr.mxu0 0.0
  %54 = vmatpush1.msra.mxu0 0.0
  %55 = vmatprep.subr.mxu0 0.0
  %56 = vmatpush1.msra.mxu0 0.0
  %57 = vmatprep.subr.mxu0 0.0
  %58 = vmatpush1.msra.mxu0 0.0
  %59 = vmatprep.subr.mxu0 0.0
  %60 = vmatpush1.msra.mxu0 0.0
  %61 = vmatprep.subr.mxu0 0.0
  %62 = vmatpush1.msra.mxu0 0.0
  %63 = vmatprep.subr.mxu0 0.0
  %64 = vmatpush1.msra.mxu0 0.0
  %65 = vmatprep.subr.mxu0 0.0
  %66 = vmatpush1.msra.mxu0 0.0
  %67 = vmatprep.subr.mxu0 0.0
  %68 = vmatpush1.msra.mxu0 0.0
  %69 = vmatprep.subr.mxu0 0.0
  %70 = vmatpush1.msra.mxu0 0.0
  %71 = vmatprep.subr.mxu0 0.0
  %72 = vmatpush1.msra.mxu0 0.0
  %73 = vmatprep.subr.mxu0 0.0
  %74 = vmatpush1.msra.mxu0 0.0
  %75 = vmatprep.subr.mxu0 0.0
  %76 = vmatpush1.msra.mxu0 0.0
  %77 = vmatprep.subr.mxu0 0.0
  %78 = vmatpush1.msra.mxu0 0.0
  %79 = vmatprep.subr.mxu0 0.0
  %80 = vmatpush1.msra.mxu0 0.0
  %81 = vmatprep.subr.mxu0 0.0
  %82 = vmatpush1.msra.mxu0 0.0
  %83 = vmatprep.subr.mxu0 0.0
  %84 = vmatpush1.msra.mxu0 0.0
  %85 = vmatprep.subr.mxu0 0.0
  %86 = vmatpush1.msra.mxu0 0.0
  %87 = vmatprep.subr.mxu0 0.0
  %88 = vmatpush1.msra.mxu0 0.0
  %89 = vmatprep.subr.mxu0 0.0
  %90 = vmatpush1.msra.mxu0 0.0
  %91 = vmatprep.subr.mxu0 0.0
  %92 = vmatpush1.msra.mxu0 0.0
  %93 = vmatprep.subr.mxu0 0.0
  %94 = vmatpush1.msra.mxu0 0.0
  %95 = vmatprep.subr.mxu0 0.0
  %96 = vmatpush1.msra.mxu0 0.0
  %97 = vmatprep.subr.mxu0 0.0
  %98 = vmatpush1.msra.mxu0 0.0
  %99 = vmatprep.subr.mxu0 0.0
  %100 = vmatpush1.msra.mxu0 0.0
  %101 = vmatprep.subr.mxu0 0.0
  %102 = vmatpush1.msra.mxu0 0.0
  %103 = vmatprep.subr.mxu0 0.0
  %104 = vmatpush1.msra.mxu0 0.0
  %105 = vmatprep.subr.mxu0 0.0
  %106 = vmatpush1.msra.mxu0 0.0
  %107 = vmatprep.mubr.f32.mxu0 0.0
  %108 = vmatmul.mubr.f32.gmra.mrb[0].mxu0 %v38
  %v109 = vpop.f32.mrb[0].mxu0
  %v110 = vadd.f32 %v34, %v109
  %v111 = vpop.f32.mrb[0].mxu0
  %112 = vmatprep.mubr.f32.mxu0 0.0
  %113 = vmatmul.mubr.f32.gmra.mrb[0].mxu0 %v41
  %v114 = vpop.f32.mrb[0].mxu0
  %v115 = vadd.f32 %v34, %v114
  %v116 = vpop.f32.mrb[0].mxu0
  %117 = vdwg.mxu0
  %v118 = vld [vmem:[%s3] sm:$0xff]
  %v119 = vld [vmem:[%s3 + $0x8] sm:$0x3f]
  %v120 = vadd.f32 %v110, %v118
  %v121 = vadd.f32 %v115, %v119
  %v122 = vld [vmem:[%s4] sm:$0x1]
  %v123 = vld [vmem:[%s5] sm:$0x1]
  %v124 = vsel %vm36, %v120, 0.0
  %125 = vadd.xlane.f32.xlu0 %v124
  %v126 = vpop.xlane.xlu0 %125
  %vm127 = vcmask 259072
  %v128 = vsel %vm127, %v121, 0.0
  %129 = vadd.xlane.f32.xlu0 %v128
  %v130 = vpop.xlane.xlu0 %129
  %v131 = vrcp.pop 32.0
  %v132 = vmul.f32 %v126, %v131
  %v133 = vmul.f32 %v130, %v131
  %v134 = vsub.f32 %v120, %v132
  %v135 = vsub.f32 %v121, %v133
  %v136 = vmul.f32 %v134, %v134
  %v137 = vmul.f32 %v135, %v135
  %v138 = vsel %vm36, %v136, 0.0
  %139 = vadd.xlane.f32.xlu0 %v138
  %v140 = vpop.xlane.xlu0 %139
  %v141 = vsel %vm127, %v137, 0.0
  %142 = vadd.xlane.f32.xlu0 %v141
  %v143 = vpop.xlane.xlu0 %142
  %v144 = vmul.f32 %v140, %v131
  %v145 = vmul.f32 %v143, %v131
  %v146 = vadd.f32 %v144, 1e-12
  %v147 = vadd.f32 %v145, 1e-12
  %v148 = vrsqrt.pop %v146
  %v149 = vrsqrt.pop %v147
  %v150 = vmul.f32 %v134, %v148
  %v151 = vmul.f32 %v135, %v149
  %v153 = vlaneseq
  %v154 = vshrl.u32 %v153, 7
  %v155 = vsub.s32 0, %v154
  %v156 = vrot.slane %v122, %v155
  %v158 = vmul.f32 %v150, %v156
  %v159 = vmul.f32 %v151, %v156
  %v161 = vlaneseq
  %v162 = vshrl.u32 %v161, 7
  %v163 = vsub.s32 0, %v162
  %v164 = vrot.slane %v123, %v163
  %v166 = vadd.f32 %v158, %v164
  %v167 = vadd.f32 %v159, %v164
  %168 = vst.msk [vmem:[%s6] sm:$0xff] %vm36, %v166
  %169 = vst.msk [vmem:[%s6 + $0x8] sm:$0x3f] %vm127, %v167
  // Predicated region
  $region26: #{_seq2seq_core.39} parent=0 // pred_check
    _
  $region27: #{_seq2seq_core.39} parent=0 // pred_check_branch
    %171 = sbr.rel (0) target = $region29
  $region28: #{_seq2seq_core.39} parent=0 // pred_region
    _
  $region29: #{_seq2seq_core.39} parent=0 // pred_fallthru
    _
  // Predicated region
  $region30: #{_seq2seq_core.39} parent=0 // pred_check
    _
  $region31: #{_seq2seq_core.39} parent=0 // pred_check_branch
    %173 = sbr.rel (0) target = $region33
  $region32: #{_seq2seq_core.39} parent=0 // pred_region
    _
  $region33: #{_seq2seq_core.39} parent=0 // pred_fallthru
    _

// kernel: _seq2seq_core.40
$region0: #{_seq2seq_core.40}
  #allocation0 [shape = 'u32[]', space=smem, size = 0x4, offset = 0x4, fixed_abs, tag = 'smem constant byte address 0x4 - core index']
  #allocation1 [shape = 'u32[144,128]{1,0:T(1,128)}', space=vmem, size = 0x12000, scoped, tag = 'internal scratch']
  %s0 = inlined_call_operand.vmem [shape: f32[14,32], index: 0, kind: input, shape index: {}]
  %s1 = inlined_call_operand.vmem [shape: f32[32,32], index: 1, kind: input, shape index: {}]
  %s2 = inlined_call_operand.vmem [shape: f32[1,32], index: 2, kind: input, shape index: {}]
  %s3 = inlined_call_operand.vmem [shape: f32[14,32], index: 3, kind: output, shape index: {}]
  %s4 = sld [smem:[#allocation0]]
  $region22: #{_seq2seq_core.40} parent=0
    _
  %s6 = ssub.s32 1, %s4
  %s7 = scalar_select 0, %s6, %s4
  // Predicated region
  $region2: #{_seq2seq_core.40} parent=0 // pred_check
    _
  $region3: #{_seq2seq_core.40} parent=0 // pred_check_branch
    %9 = sbr.rel (0) target = $region5
  $region4: #{_seq2seq_core.40} parent=0 // pred_region
    _
  $region5: #{_seq2seq_core.40} parent=0 // pred_fallthru
    _
  // Predicated region
  $region6: #{_seq2seq_core.40} parent=0 // pred_check
    _
  $region7: #{_seq2seq_core.40} parent=0 // pred_check_branch
    %11 = sbr.rel (0) target = $region9
  $region8: #{_seq2seq_core.40} parent=0 // pred_region
    _
  $region9: #{_seq2seq_core.40} parent=0 // pred_fallthru
    _
  // Predicated region
  $region10: #{_seq2seq_core.40} parent=0 // pred_check
    _
  $region11: #{_seq2seq_core.40} parent=0 // pred_check_branch
    %13 = sbr.rel (0) target = $region13
  $region12: #{_seq2seq_core.40} parent=0 // pred_region
    _
  $region13: #{_seq2seq_core.40} parent=0 // pred_fallthru
    _
  %v14 = vld [vmem:[%s0] sm:$0xff]
  %v15 = vld [vmem:[%s0 + $0x8] sm:$0x3f]
  %v16 = vld [vmem:[%s1] sm:$0xff]
  %v17 = vld [vmem:[%s1 + $0x8] sm:$0xff]
  %v18 = vld [vmem:[%s1 + $0x10] sm:$0xff]
  %v19 = vld [vmem:[%s1 + $0x18] sm:$0xff]
  %v20 = vld [vmem:[%s2] sm:$0x1]
  %v22 = vlaneseq
  %v23 = vshrl.u32 %v22, 7
  %v24 = vsub.s32 0, %v23
  %v25 = vrot.slane %v20, %v24
  %vm27 = vcmask 261120
  %v29 = vsel %vm27, %v14, 0
  %v32 = vsel %vm27, %v15, 0
  %34 = vmatprep.subr.mxu0 0.0
  %35 = vmatpush1.msra.mxu0 %v16
  %36 = vmatprep.subr.mxu0 0.0
  %37 = vmatpush1.msra.mxu0 %v17
  %38 = vmatprep.subr.mxu0 0.0
  %39 = vmatpush1.msra.mxu0 %v18
  %40 = vmatprep.subr.mxu0 0.0
  %41 = vmatpush1.msra.mxu0 %v19
  %42 = vmatprep.subr.mxu0 0.0
  %43 = vmatpush1.msra.mxu0 0.0
  %44 = vmatprep.subr.mxu0 0.0
  %45 = vmatpush1.msra.mxu0 0.0
  %46 = vmatprep.subr.mxu0 0.0
  %47 = vmatpush1.msra.mxu0 0.0
  %48 = vmatprep.subr.mxu0 0.0
  %49 = vmatpush1.msra.mxu0 0.0
  %50 = vmatprep.subr.mxu0 0.0
  %51 = vmatpush1.msra.mxu0 0.0
  %52 = vmatprep.subr.mxu0 0.0
  %53 = vmatpush1.msra.mxu0 0.0
  %54 = vmatprep.subr.mxu0 0.0
  %55 = vmatpush1.msra.mxu0 0.0
  %56 = vmatprep.subr.mxu0 0.0
  %57 = vmatpush1.msra.mxu0 0.0
  %58 = vmatprep.subr.mxu0 0.0
  %59 = vmatpush1.msra.mxu0 0.0
  %60 = vmatprep.subr.mxu0 0.0
  %61 = vmatpush1.msra.mxu0 0.0
  %62 = vmatprep.subr.mxu0 0.0
  %63 = vmatpush1.msra.mxu0 0.0
  %64 = vmatprep.subr.mxu0 0.0
  %65 = vmatpush1.msra.mxu0 0.0
  %66 = vmatprep.subr.mxu0 0.0
  %67 = vmatpush1.msra.mxu0 0.0
  %68 = vmatprep.subr.mxu0 0.0
  %69 = vmatpush1.msra.mxu0 0.0
  %70 = vmatprep.subr.mxu0 0.0
  %71 = vmatpush1.msra.mxu0 0.0
  %72 = vmatprep.subr.mxu0 0.0
  %73 = vmatpush1.msra.mxu0 0.0
  %74 = vmatprep.subr.mxu0 0.0
  %75 = vmatpush1.msra.mxu0 0.0
  %76 = vmatprep.subr.mxu0 0.0
  %77 = vmatpush1.msra.mxu0 0.0
  %78 = vmatprep.subr.mxu0 0.0
  %79 = vmatpush1.msra.mxu0 0.0
  %80 = vmatprep.subr.mxu0 0.0
  %81 = vmatpush1.msra.mxu0 0.0
  %82 = vmatprep.subr.mxu0 0.0
  %83 = vmatpush1.msra.mxu0 0.0
  %84 = vmatprep.subr.mxu0 0.0
  %85 = vmatpush1.msra.mxu0 0.0
  %86 = vmatprep.subr.mxu0 0.0
  %87 = vmatpush1.msra.mxu0 0.0
  %88 = vmatprep.subr.mxu0 0.0
  %89 = vmatpush1.msra.mxu0 0.0
  %90 = vmatprep.subr.mxu0 0.0
  %91 = vmatpush1.msra.mxu0 0.0
  %92 = vmatprep.subr.mxu0 0.0
  %93 = vmatpush1.msra.mxu0 0.0
  %94 = vmatprep.subr.mxu0 0.0
  %95 = vmatpush1.msra.mxu0 0.0
  %96 = vmatprep.subr.mxu0 0.0
  %97 = vmatpush1.msra.mxu0 0.0
  %98 = vmatprep.mubr.f32.mxu0 0.0
  %99 = vmatmul.mubr.f32.gmra.mrb[0].mxu0 %v29
  %v100 = vpop.f32.mrb[0].mxu0
  %v101 = vadd.f32 %v25, %v100
  %v102 = vpop.f32.mrb[0].mxu0
  %103 = vmatprep.mubr.f32.mxu0 0.0
  %104 = vmatmul.mubr.f32.gmra.mrb[0].mxu0 %v32
  %v105 = vpop.f32.mrb[0].mxu0
  %v106 = vadd.f32 %v25, %v105
  %v107 = vpop.f32.mrb[0].mxu0
  %108 = vdwg.mxu0
  %109 = vst.msk [vmem:[%s3] sm:$0xff] %vm27, %v101
  %vm110 = vcmask 259072
  %111 = vst.msk [vmem:[%s3 + $0x8] sm:$0x3f] %vm110, %v106
  // Predicated region
  $region14: #{_seq2seq_core.40} parent=0 // pred_check
    _
  $region15: #{_seq2seq_core.40} parent=0 // pred_check_branch
    %113 = sbr.rel (0) target = $region17
  $region16: #{_seq2seq_core.40} parent=0 // pred_region
    _
  $region17: #{_seq2seq_core.40} parent=0 // pred_fallthru
    _
  // Predicated region
  $region18: #{_seq2seq_core.40} parent=0 // pred_check
    _
  $region19: #{_seq2seq_core.40} parent=0 // pred_check_branch
    %115 = sbr.rel (0) target = $region21
  $region20: #{_seq2seq_core.40} parent=0 // pred_region
    _
  $region21: #{_seq2seq_core.40} parent=0 // pred_fallthru
    _

// kernel: _seq2seq_core.38
$region0: #{_seq2seq_core.38}
  #allocation0 [shape = 'u32[]', space=smem, size = 0x4, offset = 0x4, fixed_abs, tag = 'smem constant byte address 0x4 - core index']
  #allocation1 [shape = 'u32[144,128]{1,0:T(1,128)}', space=vmem, size = 0x12000, scoped, tag = 'internal scratch']
  %s0 = inlined_call_operand.vmem [shape: f32[8,7,8], index: 0, kind: input, shape index: {}]
  %s1 = inlined_call_operand.vmem [shape: f32[8,7,8], index: 1, kind: input, shape index: {}]
  %s2 = inlined_call_operand.vmem [shape: f32[8,7,8], index: 2, kind: input, shape index: {}]
  %s3 = inlined_call_operand.vmem [shape: f32[8,1,7], index: 3, kind: input, shape index: {}]
  %s4 = inlined_call_operand.vmem [shape: f32[8,7,8], index: 4, kind: output, shape index: {}]
  %s5 = sld [smem:[#allocation0]]
  $region26: #{_seq2seq_core.38} parent=0
    _
  %s7 = ssub.s32 1, %s5
  %s8 = scalar_select 0, %s7, %s5
  // Predicated region
  $region2: #{_seq2seq_core.38} parent=0 // pred_check
    _
  $region3: #{_seq2seq_core.38} parent=0 // pred_check_branch
    %10 = sbr.rel (0) target = $region5
  $region4: #{_seq2seq_core.38} parent=0 // pred_region
    _
  $region5: #{_seq2seq_core.38} parent=0 // pred_fallthru
    _
  // Predicated region
  $region6: #{_seq2seq_core.38} parent=0 // pred_check
    _
  $region7: #{_seq2seq_core.38} parent=0 // pred_check_branch
    %12 = sbr.rel (0) target = $region9
  $region8: #{_seq2seq_core.38} parent=0 // pred_region
    _
  $region9: #{_seq2seq_core.38} parent=0 // pred_fallthru
    _
  // Predicated region
  $region10: #{_seq2seq_core.38} parent=0 // pred_check
    _
  $region11: #{_seq2seq_core.38} parent=0 // pred_check_branch
    %14 = sbr.rel (0) target = $region13
  $region12: #{_seq2seq_core.38} parent=0 // pred_region
    _
  $region13: #{_seq2seq_core.38} parent=0 // pred_fallthru
    _
  // Predicated region
  $region14: #{_seq2seq_core.38} parent=0 // pred_check
    _
  $region15: #{_seq2seq_core.38} parent=0 // pred_check_branch
    %16 = sbr.rel (0) target = $region17
  $region16: #{_seq2seq_core.38} parent=0 // pred_region
    _
  $region17: #{_seq2seq_core.38} parent=0 // pred_fallthru
    _
  %v17 = vld [vmem:[%s0] sm:$0x7f]
  %v18 = vld [vmem:[%s0 + $0x8] sm:$0x7f]
  %v19 = vld [vmem:[%s0 + $0x10] sm:$0x7f]
  %v20 = vld [vmem:[%s0 + $0x18] sm:$0x7f]
  %v21 = vld [vmem:[%s0 + $0x20] sm:$0x7f]
  %v22 = vld [vmem:[%s0 + $0x28] sm:$0x7f]
  %v23 = vld [vmem:[%s0 + $0x30] sm:$0x7f]
  %v24 = vld [vmem:[%s0 + $0x38] sm:$0x7f]
  %v25 = vld [vmem:[%s1] sm:$0x7f]
  %v26 = vld [vmem:[%s1 + $0x8] sm:$0x7f]
  %v27 = vld [vmem:[%s1 + $0x10] sm:$0x7f]
  %v28 = vld [vmem:[%s1 + $0x18] sm:$0x7f]
  %v29 = vld [vmem:[%s1 + $0x20] sm:$0x7f]
  %v30 = vld [vmem:[%s1 + $0x28] sm:$0x7f]
  %v31 = vld [vmem:[%s1 + $0x30] sm:$0x7f]
  %v32 = vld [vmem:[%s1 + $0x38] sm:$0x7f]
  %v33 = vld [vmem:[%s2] sm:$0x7f]
  %v34 = vld [vmem:[%s2 + $0x8] sm:$0x7f]
  %v35 = vld [vmem:[%s2 + $0x10] sm:$0x7f]
  %v36 = vld [vmem:[%s2 + $0x18] sm:$0x7f]
  %v37 = vld [vmem:[%s2 + $0x20] sm:$0x7f]
  %v38 = vld [vmem:[%s2 + $0x28] sm:$0x7f]
  %v39 = vld [vmem:[%s2 + $0x30] sm:$0x7f]
  %v40 = vld [vmem:[%s2 + $0x38] sm:$0x7f]
  %vm41 = vcmask 64512
  %v43 = vsel %vm41, %v17, 0
  %v46 = vsel %vm41, %v25, 0
  %48 = vmatprep.subr.mxu0 0.0
  %49 = vmatpush1.xpose.msra.mxu0 %v46
  %50 = vmatprep.subr.mxu0 0.0
  %51 = vmatpush1.xpose.msra.mxu0 0.0
  %52 = vmatprep.subr.mxu0 0.0
  %53 = vmatpush1.xpose.msra.mxu0 0.0
  %54 = vmatprep.subr.mxu0 0.0
  %55 = vmatpush1.xpose.msra.mxu0 0.0
  %56 = vmatprep.subr.mxu0 0.0
  %57 = vmatpush1.xpose.msra.mxu0 0.0
  %58 = vmatprep.subr.mxu0 0.0
  %59 = vmatpush1.xpose.msra.mxu0 0.0
  %60 = vmatprep.subr.mxu0 0.0
  %61 = vmatpush1.xpose.msra.mxu0 0.0
  %62 = vmatprep.subr.mxu0 0.0
  %63 = vmatpush1.xpose.msra.mxu0 0.0
  %64 = vmatprep.subr.mxu0 0.0
  %65 = vmatpush1.xpose.msra.mxu0 0.0
  %66 = vmatprep.subr.mxu0 0.0
  %67 = vmatpush1.xpose.msra.mxu0 0.0
  %68 = vmatprep.subr.mxu0 0.0
  %69 = vmatpush1.xpose.msra.mxu0 0.0
  %70 = vmatprep.subr.mxu0 0.0
  %71 = vmatpush1.xpose.msra.mxu0 0.0
  %72 = vmatprep.subr.mxu0 0.0
  %73 = vmatpush1.xpose.msra.mxu0 0.0
  %74 = vmatprep.subr.mxu0 0.0
  %75 = vmatpush1.xpose.msra.mxu0 0.0
  %76 = vmatprep.subr.mxu0 0.0
  %77 = vmatpush1.xpose.msra.mxu0 0.0
  %78 = vmatprep.subr.mxu0 0.0
  %79 = vmatpush1.xpose.msra.mxu0 0.0
  %80 = vmatprep.subr.mxu0 0.0
  %81 = vmatpush1.xpose.msra.mxu0 0.0
  %82 = vmatprep.subr.mxu0 0.0
  %83 = vmatpush1.xpose.msra.mxu0 0.0
  %84 = vmatprep.subr.mxu0 0.0
  %85 = vmatpush1.xpose.msra.mxu0 0.0
  %86 = vmatprep.subr.mxu0 0.0
  %87 = vmatpush1.xpose.msra.mxu0 0.0
  %88 = vmatprep.subr.mxu0 0.0
  %89 = vmatpush1.xpose.msra.mxu0 0.0
  %90 = vmatprep.subr.mxu0 0.0
  %91 = vmatpush1.xpose.msra.mxu0 0.0
  %92 = vmatprep.subr.mxu0 0.0
  %93 = vmatpush1.xpose.msra.mxu0 0.0
  %94 = vmatprep.subr.mxu0 0.0
  %95 = vmatpush1.xpose.msra.mxu0 0.0
  %96 = vmatprep.subr.mxu0 0.0
  %97 = vmatpush1.xpose.msra.mxu0 0.0
  %98 = vmatprep.subr.mxu0 0.0
  %99 = vmatpush1.xpose.msra.mxu0 0.0
  %100 = vmatprep.subr.mxu0 0.0
  %101 = vmatpush1.xpose.msra.mxu0 0.0
  %102 = vmatprep.subr.mxu0 0.0
  %103 = vmatpush1.xpose.msra.mxu0 0.0
  %104 = vmatprep.subr.mxu0 0.0
  %105 = vmatpush1.xpose.msra.mxu0 0.0
  %106 = vmatprep.subr.mxu0 0.0
  %107 = vmatpush1.xpose.msra.mxu0 0.0
  %108 = vmatprep.subr.mxu0 0.0
  %109 = vmatpush1.xpose.msra.mxu0 0.0
  %110 = vmatprep.subr.mxu0 0.0
  %111 = vmatpush1.xpose.msra.mxu0 0.0
  %112 = vmatprep.mubr.f32.mxu0 0.0
  %113 = vmatmul.mubr.f32.gmra.mrb[0].mxu0 %v43
  %v114 = vpop.f32.mrb[0].mxu0
  %v115 = vadd.f32 0.0, %v114
  %v116 = vpop.f32.mrb[0].mxu0
  %117 = vdwg.mxu0
  %v119 = vsel %vm41, %v18, 0
  %v122 = vsel %vm41, %v26, 0
  %124 = vmatprep.subr.mxu0 0.0
  %125 = vmatpush1.xpose.msra.mxu0 %v122
  %126 = vmatprep.subr.mxu0 0.0
  %127 = vmatpush1.xpose.msra.mxu0 0.0
  %128 = vmatprep.subr.mxu0 0.0
  %129 = vmatpush1.xpose.msra.mxu0 0.0
  %130 = vmatprep.subr.mxu0 0.0
  %131 = vmatpush1.xpose.msra.mxu0 0.0
  %132 = vmatprep.subr.mxu0 0.0
  %133 = vmatpush1.xpose.msra.mxu0 0.0
  %134 = vmatprep.subr.mxu0 0.0
  %135 = vmatpush1.xpose.msra.mxu0 0.0
  %136 = vmatprep.subr.mxu0 0.0
  %137 = vmatpush1.xpose.msra.mxu0 0.0
  %138 = vmatprep.subr.mxu0 0.0
  %139 = vmatpush1.xpose.msra.mxu0 0.0
  %140 = vmatprep.subr.mxu0 0.0
  %141 = vmatpush1.xpose.msra.mxu0 0.0
  %142 = vmatprep.subr.mxu0 0.0
  %143 = vmatpush1.xpose.msra.mxu0 0.0
  %144 = vmatprep.subr.mxu0 0.0
  %145 = vmatpush1.xpose.msra.mxu0 0.0
  %146 = vmatprep.subr.mxu0 0.0
  %147 = vmatpush1.xpose.msra.mxu0 0.0
  %148 = vmatprep.subr.mxu0 0.0
  %149 = vmatpush1.xpose.msra.mxu0 0.0
  %150 = vmatprep.subr.mxu0 0.0
  %151 = vmatpush1.xpose.msra.mxu0 0.0
  %152 = vmatprep.subr.mxu0 0.0
  %153 = vmatpush1.xpose.msra.mxu0 0.0
  %154 = vmatprep.subr.mxu0 0.0
  %155 = vmatpush1.xpose.msra.mxu0 0.0
  %156 = vmatprep.subr.mxu0 0.0
  %157 = vmatpush1.xpose.msra.mxu0 0.0
  %158 = vmatprep.subr.mxu0 0.0
  %159 = vmatpush1.xpose.msra.mxu0 0.0
  %160 = vmatprep.subr.mxu0 0.0
  %161 = vmatpush1.xpose.msra.mxu0 0.0
  %162 = vmatprep.subr.mxu0 0.0
  %163 = vmatpush1.xpose.msra.mxu0 0.0
  %164 = vmatprep.subr.mxu0 0.0
  %165 = vmatpush1.xpose.msra.mxu0 0.0
  %166 = vmatprep.subr.mxu0 0.0
  %167 = vmatpush1.xpose.msra.mxu0 0.0
  %168 = vmatprep.subr.mxu0 0.0
  %169 = vmatpush1.xpose.msra.mxu0 0.0
  %170 = vmatprep.subr.mxu0 0.0
  %171 = vmatpush1.xpose.msra.mxu0 0.0
  %172 = vmatprep.subr.mxu0 0.0
  %173 = vmatpush1.xpose.msra.mxu0 0.0
  %174 = vmatprep.subr.mxu0 0.0
  %175 = vmatpush1.xpose.msra.mxu0 0.0
  %176 = vmatprep.subr.mxu0 0.0
  %177 = vmatpush1.xpose.msra.mxu0 0.0
  %178 = vmatprep.subr.mxu0 0.0
  %179 = vmatpush1.xpose.msra.mxu0 0.0
  %180 = vmatprep.subr.mxu0 0.0
  %181 = vmatpush1.xpose.msra.mxu0 0.0
  %182 = vmatprep.subr.mxu0 0.0
  %183 = vmatpush1.xpose.msra.mxu0 0.0
  %184 = vmatprep.subr.mxu0 0.0
  %185 = vmatpush1.xpose.msra.mxu0 0.0
  %186 = vmatprep.subr.mxu0 0.0
  %187 = vmatpush1.xpose.msra.mxu0 0.0
  %188 = vmatprep.mubr.f32.mxu0 0.0
  %189 = vmatmul.mubr.f32.gmra.mrb[0].mxu0 %v119
  %v190 = vpop.f32.mrb[0].mxu0
  %v191 = vadd.f32 0.0, %v190
  %v192 = vpop.f32.mrb[0].mxu0
  %193 = vdwg.mxu0
  %v195 = vsel %vm41, %v19, 0
  %v198 = vsel %vm41, %v27, 0
  %200 = vmatprep.subr.mxu0 0.0
  %201 = vmatpush1.xpose.msra.mxu0 %v198
  %202 = vmatprep.subr.mxu0 0.0
  %203 = vmatpush1.xpose.msra.mxu0 0.0
  %204 = vmatprep.subr.mxu0 0.0
  %205 = vmatpush1.xpose.msra.mxu0 0.0
  %206 = vmatprep.subr.mxu0 0.0
  %207 = vmatpush1.xpose.msra.mxu0 0.0
  %208 = vmatprep.subr.mxu0 0.0
  %209 = vmatpush1.xpose.msra.mxu0 0.0
  %210 = vmatprep.subr.mxu0 0.0
  %211 = vmatpush1.xpose.msra.mxu0 0.0
  %212 = vmatprep.subr.mxu0 0.0
  %213 = vmatpush1.xpose.msra.mxu0 0.0
  %214 = vmatprep.subr.mxu0 0.0
  %215 = vmatpush1.xpose.msra.mxu0 0.0
  %216 = vmatprep.subr.mxu0 0.0
  %217 = vmatpush1.xpose.msra.mxu0 0.0
  %218 = vmatprep.subr.mxu0 0.0
  %219 = vmatpush1.xpose.msra.mxu0 0.0
  %220 = vmatprep.subr.mxu0 0.0
  %221 = vmatpush1.xpose.msra.mxu0 0.0
  %222 = vmatprep.subr.mxu0 0.0
  %223 = vmatpush1.xpose.msra.mxu0 0.0
  %224 = vmatprep.subr.mxu0 0.0
  %225 = vmatpush1.xpose.msra.mxu0 0.0
  %226 = vmatprep.subr.mxu0 0.0
  %227 = vmatpush1.xpose.msra.mxu0 0.0
  %228 = vmatprep.subr.mxu0 0.0
  %229 = vmatpush1.xpose.msra.mxu0 0.0
  %230 = vmatprep.subr.mxu0 0.0
  %231 = vmatpush1.xpose.msra.mxu0 0.0
  %232 = vmatprep.subr.mxu0 0.0
  %233 = vmatpush1.xpose.msra.mxu0 0.0
  %234 = vmatprep.subr.mxu0 0.0
  %235 = vmatpush1.xpose.msra.mxu0 0.0
  %236 = vmatprep.subr.mxu0 0.0
  %237 = vmatpush1.xpose.msra.mxu0 0.0
  %238 = vmatprep.subr.mxu0 0.0
  %239 = vmatpush1.xpose.msra.mxu0 0.0
  %240 = vmatprep.subr.mxu0 0.0
  %241 = vmatpush1.xpose.msra.mxu0 0.0
  %242 = vmatprep.subr.mxu0 0.0
  %243 = vmatpush1.xpose.msra.mxu0 0.0
  %244 = vmatprep.subr.mxu0 0.0
  %245 = vmatpush1.xpose.msra.mxu0 0.0
  %246 = vmatprep.subr.mxu0 0.0
  %247 = vmatpush1.xpose.msra.mxu0 0.0
  %248 = vmatprep.subr.mxu0 0.0
  %249 = vmatpush1.xpose.msra.mxu0 0.0
  %250 = vmatprep.subr.mxu0 0.0
  %251 = vmatpush1.xpose.msra.mxu0 0.0
  %252 = vmatprep.subr.mxu0 0.0
  %253 = vmatpush1.xpose.msra.mxu0 0.0
  %254 = vmatprep.subr.mxu0 0.0
  %255 = vmatpush1.xpose.msra.mxu0 0.0
  %256 = vmatprep.subr.mxu0 0.0
  %257 = vmatpush1.xpose.msra.mxu0 0.0
  %258 = vmatprep.subr.mxu0 0.0
  %259 = vmatpush1.xpose.msra.mxu0 0.0
  %260 = vmatprep.subr.mxu0 0.0
  %261 = vmatpush1.xpose.msra.mxu0 0.0
  %262 = vmatprep.subr.mxu0 0.0
  %263 = vmatpush1.xpose.msra.mxu0 0.0
  %264 = vmatprep.mubr.f32.mxu0 0.0
  %265 = vmatmul.mubr.f32.gmra.mrb[0].mxu0 %v195
  %v266 = vpop.f32.mrb[0].mxu0
  %v267 = vadd.f32 0.0, %v266
  %v268 = vpop.f32.mrb[0].mxu0
  %269 = vdwg.mxu0
  %v271 = vsel %vm41, %v20, 0
  %v274 = vsel %vm41, %v28, 0
  %276 = vmatprep.subr.mxu0 0.0
  %277 = vmatpush1.xpose.msra.mxu0 %v274
  %278 = vmatprep.subr.mxu0 0.0
  %279 = vmatpush1.xpose.msra.mxu0 0.0
  %280 = vmatprep.subr.mxu0 0.0
  %281 = vmatpush1.xpose.msra.mxu0 0.0
  %282 = vmatprep.subr.mxu0 0.0
  %283 = vmatpush1.xpose.msra.mxu0 0.0
  %284 = vmatprep.subr.mxu0 0.0
  %285 = vmatpush1.xpose.msra.mxu0 0.0
  %286 = vmatprep.subr.mxu0 0.0
  %287 = vmatpush1.xpose.msra.mxu0 0.0
  %288 = vmatprep.subr.mxu0 0.0
  %289 = vmatpush1.xpose.msra.mxu0 0.0
  %290 = vmatprep.subr.mxu0 0.0
  %291 = vmatpush1.xpose.msra.mxu0 0.0
  %292 = vmatprep.subr.mxu0 0.0
  %293 = vmatpush1.xpose.msra.mxu0 0.0
  %294 = vmatprep.subr.mxu0 0.0
  %295 = vmatpush1.xpose.msra.mxu0 0.0
  %296 = vmatprep.subr.mxu0 0.0
  %297 = vmatpush1.xpose.msra.mxu0 0.0
  %298 = vmatprep.subr.mxu0 0.0
  %299 = vmatpush1.xpose.msra.mxu0 0.0
  %300 = vmatprep.subr.mxu0 0.0
  %301 = vmatpush1.xpose.msra.mxu0 0.0
  %302 = vmatprep.subr.mxu0 0.0
  %303 = vmatpush1.xpose.msra.mxu0 0.0
  %304 = vmatprep.subr.mxu0 0.0
  %305 = vmatpush1.xpose.msra.mxu0 0.0
  %306 = vmatprep.subr.mxu0 0.0
  %307 = vmatpush1.xpose.msra.mxu0 0.0
  %308 = vmatprep.subr.mxu0 0.0
  %309 = vmatpush1.xpose.msra.mxu0 0.0
  %310 = vmatprep.subr.mxu0 0.0
  %311 = vmatpush1.xpose.msra.mxu0 0.0
  %312 = vmatprep.subr.mxu0 0.0
  %313 = vmatpush1.xpose.msra.mxu0 0.0
  %314 = vmatprep.subr.mxu0 0.0
  %315 = vmatpush1.xpose.msra.mxu0 0.0
  %316 = vmatprep.subr.mxu0 0.0
  %317 = vmatpush1.xpose.msra.mxu0 0.0
  %318 = vmatprep.subr.mxu0 0.0
  %319 = vmatpush1.xpose.msra.mxu0 0.0
  %320 = vmatprep.subr.mxu0 0.0
  %321 = vmatpush1.xpose.msra.mxu0 0.0
  %322 = vmatprep.subr.mxu0 0.0
  %323 = vmatpush1.xpose.msra.mxu0 0.0
  %324 = vmatprep.subr.mxu0 0.0
  %325 = vmatpush1.xpose.msra.mxu0 0.0
  %326 = vmatprep.subr.mxu0 0.0
  %327 = vmatpush1.xpose.msra.mxu0 0.0
  %328 = vmatprep.subr.mxu0 0.0
  %329 = vmatpush1.xpose.msra.mxu0 0.0
  %330 = vmatprep.subr.mxu0 0.0
  %331 = vmatpush1.xpose.msra.mxu0 0.0
  %332 = vmatprep.subr.mxu0 0.0
  %333 = vmatpush1.xpose.msra.mxu0 0.0
  %334 = vmatprep.subr.mxu0 0.0
  %335 = vmatpush1.xpose.msra.mxu0 0.0
  %336 = vmatprep.subr.mxu0 0.0
  %337 = vmatpush1.xpose.msra.mxu0 0.0
  %338 = vmatprep.subr.mxu0 0.0
  %339 = vmatpush1.xpose.msra.mxu0 0.0
  %340 = vmatprep.mubr.f32.mxu0 0.0
  %341 = vmatmul.mubr.f32.gmra.mrb[0].mxu0 %v271
  %v342 = vpop.f32.mrb[0].mxu0
  %v343 = vadd.f32 0.0, %v342
  %v344 = vpop.f32.mrb[0].mxu0
  %345 = vdwg.mxu0
  %v347 = vsel %vm41, %v21, 0
  %v350 = vsel %vm41, %v29, 0
  %352 = vmatprep.subr.mxu0 0.0
  %353 = vmatpush1.xpose.msra.mxu0 %v350
  %354 = vmatprep.subr.mxu0 0.0
  %355 = vmatpush1.xpose.msra.mxu0 0.0
  %356 = vmatprep.subr.mxu0 0.0
  %357 = vmatpush1.xpose.msra.mxu0 0.0
  %358 = vmatprep.subr.mxu0 0.0
  %359 = vmatpush1.xpose.msra.mxu0 0.0
  %360 = vmatprep.subr.mxu0 0.0
  %361 = vmatpush1.xpose.msra.mxu0 0.0
  %362 = vmatprep.subr.mxu0 0.0
  %363 = vmatpush1.xpose.msra.mxu0 0.0
  %364 = vmatprep.subr.mxu0 0.0
  %365 = vmatpush1.xpose.msra.mxu0 0.0
  %366 = vmatprep.subr.mxu0 0.0
  %367 = vmatpush1.xpose.msra.mxu0 0.0
  %368 = vmatprep.subr.mxu0 0.0
  %369 = vmatpush1.xpose.msra.mxu0 0.0
  %370 = vmatprep.subr.mxu0 0.0
  %371 = vmatpush1.xpose.msra.mxu0 0.0
  %372 = vmatprep.subr.mxu0 0.0
  %373 = vmatpush1.xpose.msra.mxu0 0.0
  %374 = vmatprep.subr.mxu0 0.0
  %375 = vmatpush1.xpose.msra.mxu0 0.0
  %376 = vmatprep.subr.mxu0 0.0
  %377 = vmatpush1.xpose.msra.mxu0 0.0
  %378 = vmatprep.subr.mxu0 0.0
  %379 = vmatpush1.xpose.msra.mxu0 0.0
  %380 = vmatprep.subr.mxu0 0.0
  %381 = vmatpush1.xpose.msra.mxu0 0.0
  %382 = vmatprep.subr.mxu0 0.0
  %383 = vmatpush1.xpose.msra.mxu0 0.0
  %384 = vmatprep.subr.mxu0 0.0
  %385 = vmatpush1.xpose.msra.mxu0 0.0
  %386 = vmatprep.subr.mxu0 0.0
  %387 = vmatpush1.xpose.msra.mxu0 0.0
  %388 = vmatprep.subr.mxu0 0.0
  %389 = vmatpush1.xpose.msra.mxu0 0.0
  %390 = vmatprep.subr.mxu0 0.0
  %391 = vmatpush1.xpose.msra.mxu0 0.0
  %392 = vmatprep.subr.mxu0 0.0
  %393 = vmatpush1.xpose.msra.mxu0 0.0
  %394 = vmatprep.subr.mxu0 0.0
  %395 = vmatpush1.xpose.msra.mxu0 0.0
  %396 = vmatprep.subr.mxu0 0.0
  %397 = vmatpush1.xpose.msra.mxu0 0.0
  %398 = vmatprep.subr.mxu0 0.0
  %399 = vmatpush1.xpose.msra.mxu0 0.0
  %400 = vmatprep.subr.mxu0 0.0
  %401 = vmatpush1.xpose.msra.mxu0 0.0
  %402 = vmatprep.subr.mxu0 0.0
  %403 = vmatpush1.xpose.msra.mxu0 0.0
  %404 = vmatprep.subr.mxu0 0.0
  %405 = vmatpush1.xpose.msra.mxu0 0.0
  %406 = vmatprep.subr.mxu0 0.0
  %407 = vmatpush1.xpose.msra.mxu0 0.0
  %408 = vmatprep.subr.mxu0 0.0
  %409 = vmatpush1.xpose.msra.mxu0 0.0
  %410 = vmatprep.subr.mxu0 0.0
  %411 = vmatpush1.xpose.msra.mxu0 0.0
  %412 = vmatprep.subr.mxu0 0.0
  %413 = vmatpush1.xpose.msra.mxu0 0.0
  %414 = vmatprep.subr.mxu0 0.0
  %415 = vmatpush1.xpose.msra.mxu0 0.0
  %416 = vmatprep.mubr.f32.mxu0 0.0
  %417 = vmatmul.mubr.f32.gmra.mrb[0].mxu0 %v347
  %v418 = vpop.f32.mrb[0].mxu0
  %v419 = vadd.f32 0.0, %v418
  %v420 = vpop.f32.mrb[0].mxu0
  %421 = vdwg.mxu0
  %v423 = vsel %vm41, %v22, 0
  %v426 = vsel %vm41, %v30, 0
  %428 = vmatprep.subr.mxu0 0.0
  %429 = vmatpush1.xpose.msra.mxu0 %v426
  %430 = vmatprep.subr.mxu0 0.0
  %431 = vmatpush1.xpose.msra.mxu0 0.0
  %432 = vmatprep.subr.mxu0 0.0
  %433 = vmatpush1.xpose.msra.mxu0 0.0
  %434 = vmatprep.subr.mxu0 0.0
  %435 = vmatpush1.xpose.msra.mxu0 0.0
  %436 = vmatprep.subr.mxu0 0.0
  %437 = vmatpush1.xpose.msra.mxu0 0.0
  %438 = vmatprep.subr.mxu0 0.0
  %439 = vmatpush1.xpose.msra.mxu0 0.0
  %440 = vmatprep.subr.mxu0 0.0
  %441 = vmatpush1.xpose.msra.mxu0 0.0
  %442 = vmatprep.subr.mxu0 0.0
  %443 = vmatpush1.xpose.msra.mxu0 0.0
  %444 = vmatprep.subr.mxu0 0.0
  %445 = vmatpush1.xpose.msra.mxu0 0.0
  %446 = vmatprep.subr.mxu0 0.0
  %447 = vmatpush1.xpose.msra.mxu0 0.0
  %448 = vmatprep.subr.mxu0 0.0
  %449 = vmatpush1.xpose.msra.mxu0 0.0
  %450 = vmatprep.subr.mxu0 0.0
  %451 = vmatpush1.xpose.msra.mxu0 0.0
  %452 = vmatprep.subr.mxu0 0.0
  %453 = vmatpush1.xpose.msra.mxu0 0.0
  %454 = vmatprep.subr.mxu0 0.0
  %455 = vmatpush1.xpose.msra.mxu0 0.0
  %456 = vmatprep.subr.mxu0 0.0
  %457 = vmatpush1.xpose.msra.mxu0 0.0
  %458 = vmatprep.subr.mxu0 0.0
  %459 = vmatpush1.xpose.msra.mxu0 0.0
  %460 = vmatprep.subr.mxu0 0.0
  %461 = vmatpush1.xpose.msra.mxu0 0.0
  %462 = vmatprep.subr.mxu0 0.0
  %463 = vmatpush1.xpose.msra.mxu0 0.0
  %464 = vmatprep.subr.mxu0 0.0
  %465 = vmatpush1.xpose.msra.mxu0 0.0
  %466 = vmatprep.subr.mxu0 0.0
  %467 = vmatpush1.xpose.msra.mxu0 0.0
  %468 = vmatprep.subr.mxu0 0.0
  %469 = vmatpush1.xpose.msra.mxu0 0.0
  %470 = vmatprep.subr.mxu0 0.0
  %471 = vmatpush1.xpose.msra.mxu0 0.0
  %472 = vmatprep.subr.mxu0 0.0
  %473 = vmatpush1.xpose.msra.mxu0 0.0
  %474 = vmatprep.subr.mxu0 0.0
  %475 = vmatpush1.xpose.msra.mxu0 0.0
  %476 = vmatprep.subr.mxu0 0.0
  %477 = vmatpush1.xpose.msra.mxu0 0.0
  %478 = vmatprep.subr.mxu0 0.0
  %479 = vmatpush1.xpose.msra.mxu0 0.0
  %480 = vmatprep.subr.mxu0 0.0
  %481 = vmatpush1.xpose.msra.mxu0 0.0
  %482 = vmatprep.subr.mxu0 0.0
  %483 = vmatpush1.xpose.msra.mxu0 0.0
  %484 = vmatprep.subr.mxu0 0.0
  %485 = vmatpush1.xpose.msra.mxu0 0.0
  %486 = vmatprep.subr.mxu0 0.0
  %487 = vmatpush1.xpose.msra.mxu0 0.0
  %488 = vmatprep.subr.mxu0 0.0
  %489 = vmatpush1.xpose.msra.mxu0 0.0
  %490 = vmatprep.subr.mxu0 0.0
  %491 = vmatpush1.xpose.msra.mxu0 0.0
  %492 = vmatprep.mubr.f32.mxu0 0.0
  %493 = vmatmul.mubr.f32.gmra.mrb[0].mxu0 %v423
  %v494 = vpop.f32.mrb[0].mxu0
  %v495 = vadd.f32 0.0, %v494
  %v496 = vpop.f32.mrb[0].mxu0
  %497 = vdwg.mxu0
  %v499 = vsel %vm41, %v23, 0
  %v502 = vsel %vm41, %v31, 0
  %504 = vmatprep.subr.mxu0 0.0
  %505 = vmatpush1.xpose.msra.mxu0 %v502
  %506 = vmatprep.subr.mxu0 0.0
  %507 = vmatpush1.xpose.msra.mxu0 0.0
  %508 = vmatprep.subr.mxu0 0.0
  %509 = vmatpush1.xpose.msra.mxu0 0.0
  %510 = vmatprep.subr.mxu0 0.0
  %511 = vmatpush1.xpose.msra.mxu0 0.0
  %512 = vmatprep.subr.mxu0 0.0
  %513 = vmatpush1.xpose.msra.mxu0 0.0
  %514 = vmatprep.subr.mxu0 0.0
  %515 = vmatpush1.xpose.msra.mxu0 0.0
  %516 = vmatprep.subr.mxu0 0.0
  %517 = vmatpush1.xpose.msra.mxu0 0.0
  %518 = vmatprep.subr.mxu0 0.0
  %519 = vmatpush1.xpose.msra.mxu0 0.0
  %520 = vmatprep.subr.mxu0 0.0
  %521 = vmatpush1.xpose.msra.mxu0 0.0
  %522 = vmatprep.subr.mxu0 0.0
  %523 = vmatpush1.xpose.msra.mxu0 0.0
  %524 = vmatprep.subr.mxu0 0.0
  %525 = vmatpush1.xpose.msra.mxu0 0.0
  %526 = vmatprep.subr.mxu0 0.0
  %527 = vmatpush1.xpose.msra.mxu0 0.0
  %528 = vmatprep.subr.mxu0 0.0
  %529 = vmatpush1.xpose.msra.mxu0 0.0
  %530 = vmatprep.subr.mxu0 0.0
  %531 = vmatpush1.xpose.msra.mxu0 0.0
  %532 = vmatprep.subr.mxu0 0.0
  %533 = vmatpush1.xpose.msra.mxu0 0.0
  %534 = vmatprep.subr.mxu0 0.0
  %535 = vmatpush1.xpose.msra.mxu0 0.0
  %536 = vmatprep.subr.mxu0 0.0
  %537 = vmatpush1.xpose.msra.mxu0 0.0
  %538 = vmatprep.subr.mxu0 0.0
  %539 = vmatpush1.xpose.msra.mxu0 0.0
  %540 = vmatprep.subr.mxu0 0.0
  %541 = vmatpush1.xpose.msra.mxu0 0.0
  %542 = vmatprep.subr.mxu0 0.0
  %543 = vmatpush1.xpose.msra.mxu0 0.0
  %544 = vmatprep.subr.mxu0 0.0
  %545 = vmatpush1.xpose.msra.mxu0 0.0
  %546 = vmatprep.subr.mxu0 0.0
  %547 = vmatpush1.xpose.msra.mxu0 0.0
  %548 = vmatprep.subr.mxu0 0.0
  %549 = vmatpush1.xpose.msra.mxu0 0.0
  %550 = vmatprep.subr.mxu0 0.0
  %551 = vmatpush1.xpose.msra.mxu0 0.0
  %552 = vmatprep.subr.mxu0 0.0
  %553 = vmatpush1.xpose.msra.mxu0 0.0
  %554 = vmatprep.subr.mxu0 0.0
  %555 = vmatpush1.xpose.msra.mxu0 0.0
  %556 = vmatprep.subr.mxu0 0.0
  %557 = vmatpush1.xpose.msra.mxu0 0.0
  %558 = vmatprep.subr.mxu0 0.0
  %559 = vmatpush1.xpose.msra.mxu0 0.0
  %560 = vmatprep.subr.mxu0 0.0
  %561 = vmatpush1.xpose.msra.mxu0 0.0
  %562 = vmatprep.subr.mxu0 0.0
  %563 = vmatpush1.xpose.msra.mxu0 0.0
  %564 = vmatprep.subr.mxu0 0.0
  %565 = vmatpush1.xpose.msra.mxu0 0.0
  %566 = vmatprep.subr.mxu0 0.0
  %567 = vmatpush1.xpose.msra.mxu0 0.0
  %568 = vmatprep.mubr.f32.mxu0 0.0
  %569 = vmatmul.mubr.f32.gmra.mrb[0].mxu0 %v499
  %v570 = vpop.f32.mrb[0].mxu0
  %v571 = vadd.f32 0.0, %v570
  %v572 = vpop.f32.mrb[0].mxu0
  %573 = vdwg.mxu0
  %v575 = vsel %vm41, %v24, 0
  %v578 = vsel %vm41, %v32, 0
  %580 = vmatprep.subr.mxu0 0.0
  %581 = vmatpush1.xpose.msra.mxu0 %v578
  %582 = vmatprep.subr.mxu0 0.0
  %583 = vmatpush1.xpose.msra.mxu0 0.0
  %584 = vmatprep.subr.mxu0 0.0
  %585 = vmatpush1.xpose.msra.mxu0 0.0
  %586 = vmatprep.subr.mxu0 0.0
  %587 = vmatpush1.xpose.msra.mxu0 0.0
  %588 = vmatprep.subr.mxu0 0.0
  %589 = vmatpush1.xpose.msra.mxu0 0.0
  %590 = vmatprep.subr.mxu0 0.0
  %591 = vmatpush1.xpose.msra.mxu0 0.0
  %592 = vmatprep.subr.mxu0 0.0
  %593 = vmatpush1.xpose.msra.mxu0 0.0
  %594 = vmatprep.subr.mxu0 0.0
  %595 = vmatpush1.xpose.msra.mxu0 0.0
  %596 = vmatprep.subr.mxu0 0.0
  %597 = vmatpush1.xpose.msra.mxu0 0.0
  %598 = vmatprep.subr.mxu0 0.0
  %599 = vmatpush1.xpose.msra.mxu0 0.0
  %600 = vmatprep.subr.mxu0 0.0
  %601 = vmatpush1.xpose.msra.mxu0 0.0
  %602 = vmatprep.subr.mxu0 0.0
  %603 = vmatpush1.xpose.msra.mxu0 0.0
  %604 = vmatprep.subr.mxu0 0.0
  %605 = vmatpush1.xpose.msra.mxu0 0.0
  %606 = vmatprep.subr.mxu0 0.0
  %607 = vmatpush1.xpose.msra.mxu0 0.0
  %608 = vmatprep.subr.mxu0 0.0
  %609 = vmatpush1.xpose.msra.mxu0 0.0
  %610 = vmatprep.subr.mxu0 0.0
  %611 = vmatpush1.xpose.msra.mxu0 0.0
  %612 = vmatprep.subr.mxu0 0.0
  %613 = vmatpush1.xpose.msra.mxu0 0.0
  %614 = vmatprep.subr.mxu0 0.0
  %615 = vmatpush1.xpose.msra.mxu0 0.0
  %616 = vmatprep.subr.mxu0 0.0
  %617 = vmatpush1.xpose.msra.mxu0 0.0
  %618 = vmatprep.subr.mxu0 0.0
  %619 = vmatpush1.xpose.msra.mxu0 0.0
  %620 = vmatprep.subr.mxu0 0.0
  %621 = vmatpush1.xpose.msra.mxu0 0.0
  %622 = vmatprep.subr.mxu0 0.0
  %623 = vmatpush1.xpose.msra.mxu0 0.0
  %624 = vmatprep.subr.mxu0 0.0
  %625 = vmatpush1.xpose.msra.mxu0 0.0
  %626 = vmatprep.subr.mxu0 0.0
  %627 = vmatpush1.xpose.msra.mxu0 0.0
  %628 = vmatprep.subr.mxu0 0.0
  %629 = vmatpush1.xpose.msra.mxu0 0.0
  %630 = vmatprep.subr.mxu0 0.0
  %631 = vmatpush1.xpose.msra.mxu0 0.0
  %632 = vmatprep.subr.mxu0 0.0
  %633 = vmatpush1.xpose.msra.mxu0 0.0
  %634 = vmatprep.subr.mxu0 0.0
  %635 = vmatpush1.xpose.msra.mxu0 0.0
  %636 = vmatprep.subr.mxu0 0.0
  %637 = vmatpush1.xpose.msra.mxu0 0.0
  %638 = vmatprep.subr.mxu0 0.0
  %639 = vmatpush1.xpose.msra.mxu0 0.0
  %640 = vmatprep.subr.mxu0 0.0
  %641 = vmatpush1.xpose.msra.mxu0 0.0
  %642 = vmatprep.subr.mxu0 0.0
  %643 = vmatpush1.xpose.msra.mxu0 0.0
  %644 = vmatprep.mubr.f32.mxu0 0.0
  %645 = vmatmul.mubr.f32.gmra.mrb[0].mxu0 %v575
  %v646 = vpop.f32.mrb[0].mxu0
  %v647 = vadd.f32 0.0, %v646
  %v648 = vpop.f32.mrb[0].mxu0
  %649 = vdwg.mxu0
  %v650 = vmul.f32 %v115, 0.35355338
  %v651 = vmul.f32 %v191, 0.35355338
  %v652 = vmul.f32 %v267, 0.35355338
  %v653 = vmul.f32 %v343, 0.35355338
  %v654 = vmul.f32 %v419, 0.35355338
  %v655 = vmul.f32 %v495, 0.35355338
  %v656 = vmul.f32 %v571, 0.35355338
  %v657 = vmul.f32 %v647, 0.35355338
  %v658 = vld [vmem:[%s3] sm:$0x1]
  %v659 = vld [vmem:[%s3 + $0x1] sm:$0x1]
  %v660 = vld [vmem:[%s3 + $0x2] sm:$0x1]
  %v661 = vld [vmem:[%s3 + $0x3] sm:$0x1]
  %v662 = vld [vmem:[%s3 + $0x4] sm:$0x1]
  %v663 = vld [vmem:[%s3 + $0x5] sm:$0x1]
  %v664 = vld [vmem:[%s3 + $0x6] sm:$0x1]
  %v665 = vld [vmem:[%s3 + $0x7] sm:$0x1]
  %v666 = vsub.f32 1.0, %v658
  %v667 = vsub.f32 1.0, %v659
  %v668 = vsub.f32 1.0, %v660
  %v669 = vsub.f32 1.0, %v661
  %v670 = vsub.f32 1.0, %v662
  %v671 = vsub.f32 1.0, %v663
  %v672 = vsub.f32 1.0, %v664
  %v673 = vsub.f32 1.0, %v665
  %v674 = vmul.f32 %v666, -10000.0
  %v675 = vmul.f32 %v667, -10000.0
  %v676 = vmul.f32 %v668, -10000.0
  %v677 = vmul.f32 %v669, -10000.0
  %v678 = vmul.f32 %v670, -10000.0
  %v679 = vmul.f32 %v671, -10000.0
  %v680 = vmul.f32 %v672, -10000.0
  %v681 = vmul.f32 %v673, -10000.0
  %v690 = vlaneseq
  %v691 = vshrl.u32 %v690, 7
  %v692 = vsub.s32 0, %v691
  %v693 = vrot.slane %v674, %v692
  %v694 = vlaneseq
  %v695 = vshrl.u32 %v694, 7
  %v696 = vsub.s32 0, %v695
  %v697 = vrot.slane %v675, %v696
  %v698 = vlaneseq
  %v699 = vshrl.u32 %v698, 7
  %v700 = vsub.s32 0, %v699
  %v701 = vrot.slane %v676, %v700
  %v702 = vlaneseq
  %v703 = vshrl.u32 %v702, 7
  %v704 = vsub.s32 0, %v703
  %v705 = vrot.slane %v677, %v704
  %v706 = vlaneseq
  %v707 = vshrl.u32 %v706, 7
  %v708 = vsub.s32 0, %v707
  %v709 = vrot.slane %v678, %v708
  %v710 = vlaneseq
  %v711 = vshrl.u32 %v710, 7
  %v712 = vsub.s32 0, %v711
  %v713 = vrot.slane %v679, %v712
  %v714 = vlaneseq
  %v715 = vshrl.u32 %v714, 7
  %v716 = vsub.s32 0, %v715
  %v717 = vrot.slane %v680, %v716
  %v718 = vlaneseq
  %v719 = vshrl.u32 %v718, 7
  %v720 = vsub.s32 0, %v719
  %v721 = vrot.slane %v681, %v720
  %v730 = vadd.f32 %v650, %v693
  %v731 = vadd.f32 %v651, %v697
  %v732 = vadd.f32 %v652, %v701
  %v733 = vadd.f32 %v653, %v705
  %v734 = vadd.f32 %v654, %v709
  %v735 = vadd.f32 %v655, %v713
  %v736 = vadd.f32 %v656, %v717
  %v737 = vadd.f32 %v657, %v721
  %v738 = vlaneseq
  %v739 = vshrl.u32 %v738, 7
  %v740 = vlaneseq
  %v741 = vand.u32 %v740, 127
  %vm742 = vcmp.le.s32.totalorder %v741, %v739
  %v743 = vsel %vm742, 0.0, -10000.0
  %v744 = vadd.f32 %v730, %v743
  %v745 = vadd.f32 %v731, %v743
  %v746 = vadd.f32 %v732, %v743
  %v747 = vadd.f32 %v733, %v743
  %v748 = vadd.f32 %v734, %v743
  %v749 = vadd.f32 %v735, %v743
  %v750 = vadd.f32 %v736, %v743
  %v751 = vadd.f32 %v737, %v743
  %vm752 = vcmask 55296
  %v753 = vsel %vm752, %v744, -inf
  %754 = vmax.xlane.f32.xlu0 %v753
  %v755 = vpop.xlane.xlu0 %754
  %v756 = vsel %vm752, %v745, -inf
  %757 = vmax.xlane.f32.xlu0 %v756
  %v758 = vpop.xlane.xlu0 %757
  %v759 = vsel %vm752, %v746, -inf
  %760 = vmax.xlane.f32.xlu0 %v759
  %v761 = vpop.xlane.xlu0 %760
  %v762 = vsel %vm752, %v747, -inf
  %763 = vmax.xlane.f32.xlu0 %v762
  %v764 = vpop.xlane.xlu0 %763
  %v765 = vsel %vm752, %v748, -inf
  %766 = vmax.xlane.f32.xlu0 %v765
  %v767 = vpop.xlane.xlu0 %766
  %v768 = vsel %vm752, %v749, -inf
  %769 = vmax.xlane.f32.xlu0 %v768
  %v770 = vpop.xlane.xlu0 %769
  %v771 = vsel %vm752, %v750, -inf
  %772 = vmax.xlane.f32.xlu0 %v771
  %v773 = vpop.xlane.xlu0 %772
  %v774 = vsel %vm752, %v751, -inf
  %775 = vmax.xlane.f32.xlu0 %v774
  %v776 = vpop.xlane.xlu0 %775
  %v777 = vsub.f32 %v744, %v755
  %v778 = vsub.f32 %v745, %v758
  %v779 = vsub.f32 %v746, %v761
  %v780 = vsub.f32 %v747, %v764
  %v781 = vsub.f32 %v748, %v767
  %v782 = vsub.f32 %v749, %v770
  %v783 = vsub.f32 %v750, %v773
  %v784 = vsub.f32 %v751, %v776
  %v785 = vmul.f32 %v777, 1.442695
  %v786 = vpow.pop %v785
  %v787 = vmul.f32 %v778, 1.442695
  %v788 = vpow.pop %v787
  %v789 = vmul.f32 %v779, 1.442695
  %v790 = vpow.pop %v789
  %v791 = vmul.f32 %v780, 1.442695
  %v792 = vpow.pop %v791
  %v793 = vmul.f32 %v781, 1.442695
  %v794 = vpow.pop %v793
  %v795 = vmul.f32 %v782, 1.442695
  %v796 = vpow.pop %v795
  %v797 = vmul.f32 %v783, 1.442695
  %v798 = vpow.pop %v797
  %v799 = vmul.f32 %v784, 1.442695
  %v800 = vpow.pop %v799
  %v801 = vsel %vm752, %v786, 0.0
  %802 = vadd.xlane.f32.xlu0 %v801
  %v803 = vpop.xlane.xlu0 %802
  %v804 = vsel %vm752, %v788, 0.0
  %805 = vadd.xlane.f32.xlu0 %v804
  %v806 = vpop.xlane.xlu0 %805
  %v807 = vsel %vm752, %v790, 0.0
  %808 = vadd.xlane.f32.xlu0 %v807
  %v809 = vpop.xlane.xlu0 %808
  %v810 = vsel %vm752, %v792, 0.0
  %811 = vadd.xlane.f32.xlu0 %v810
  %v812 = vpop.xlane.xlu0 %811
  %v813 = vsel %vm752, %v794, 0.0
  %814 = vadd.xlane.f32.xlu0 %v813
  %v815 = vpop.xlane.xlu0 %814
  %v816 = vsel %vm752, %v796, 0.0
  %817 = vadd.xlane.f32.xlu0 %v816
  %v818 = vpop.xlane.xlu0 %817
  %v819 = vsel %vm752, %v798, 0.0
  %820 = vadd.xlane.f32.xlu0 %v819
  %v821 = vpop.xlane.xlu0 %820
  %v822 = vsel %vm752, %v800, 0.0
  %823 = vadd.xlane.f32.xlu0 %v822
  %v824 = vpop.xlane.xlu0 %823
  %v825 = vrcp.pop %v803
  %v826 = vrcp.pop %v806
  %v827 = vrcp.pop %v809
  %v828 = vrcp.pop %v812
  %v829 = vrcp.pop %v815
  %v830 = vrcp.pop %v818
  %v831 = vrcp.pop %v821
  %v832 = vrcp.pop %v824
  %v833 = vmul.f32 %v786, %v825
  %v834 = vmul.f32 %v788, %v826
  %v835 = vmul.f32 %v790, %v827
  %v836 = vmul.f32 %v792, %v828
  %v837 = vmul.f32 %v794, %v829
  %v838 = vmul.f32 %v796, %v830
  %v839 = vmul.f32 %v798, %v831
  %v840 = vmul.f32 %v800, %v832
  %vm841 = vcmask 56320
  %v843 = vsel %vm841, %v833, 0
  %vm845 = vcmask 1046528
  %v847 = vsel %vm845, %v33, 0
  %849 = vmatprep.subr.mxu0 0.0
  %850 = vmatpush1.msra.mxu0 %v847
  %851 = vmatprep.subr.mxu0 0.0
  %852 = vmatpush1.msra.mxu0 0.0
  %853 = vmatprep.subr.mxu0 0.0
  %854 = vmatpush1.msra.mxu0 0.0
  %855 = vmatprep.subr.mxu0 0.0
  %856 = vmatpush1.msra.mxu0 0.0
  %857 = vmatprep.subr.mxu0 0.0
  %858 = vmatpush1.msra.mxu0 0.0
  %859 = vmatprep.subr.mxu0 0.0
  %860 = vmatpush1.msra.mxu0 0.0
  %861 = vmatprep.subr.mxu0 0.0
  %862 = vmatpush1.msra.mxu0 0.0
  %863 = vmatprep.subr.mxu0 0.0
  %864 = vmatpush1.msra.mxu0 0.0
  %865 = vmatprep.subr.mxu0 0.0
  %866 = vmatpush1.msra.mxu0 0.0
  %867 = vmatprep.subr.mxu0 0.0
  %868 = vmatpush1.msra.mxu0 0.0
  %869 = vmatprep.subr.mxu0 0.0
  %870 = vmatpush1.msra.mxu0 0.0
  %871 = vmatprep.subr.mxu0 0.0
  %872 = vmatpush1.msra.mxu0 0.0
  %873 = vmatprep.subr.mxu0 0.0
  %874 = vmatpush1.msra.mxu0 0.0
  %875 = vmatprep.subr.mxu0 0.0
  %876 = vmatpush1.msra.mxu0 0.0
  %877 = vmatprep.subr.mxu0 0.0
  %878 = vmatpush1.msra.mxu0 0.0
  %879 = vmatprep.subr.mxu0 0.0
  %880 = vmatpush1.msra.mxu0 0.0
  %881 = vmatprep.subr.mxu0 0.0
  %882 = vmatpush1.msra.mxu0 0.0
  %883 = vmatprep.subr.mxu0 0.0
  %884 = vmatpush1.msra.mxu0 0.0
  %885 = vmatprep.subr.mxu0 0.0
  %886 = vmatpush1.msra.mxu0 0.0
  %887 = vmatprep.subr.mxu0 0.0
  %888 = vmatpush1.msra.mxu0 0.0
  %889 = vmatprep.subr.mxu0 0.0
  %890 = vmatpush1.msra.mxu0 0.0
  %891 = vmatprep.subr.mxu0 0.0
  %892 = vmatpush1.msra.mxu0 0.0
  %893 = vmatprep.subr.mxu0 0.0
  %894 = vmatpush1.msra.mxu0 0.0
  %895 = vmatprep.subr.mxu0 0.0
  %896 = vmatpush1.msra.mxu0 0.0
  %897 = vmatprep.subr.mxu0 0.0
  %898 = vmatpush1.msra.mxu0 0.0
  %899 = vmatprep.subr.mxu0 0.0
  %900 = vmatpush1.msra.mxu0 0.0
  %901 = vmatprep.subr.mxu0 0.0
  %902 = vmatpush1.msra.mxu0 0.0
  %903 = vmatprep.subr.mxu0 0.0
  %904 = vmatpush1.msra.mxu0 0.0
  %905 = vmatprep.subr.mxu0 0.0
  %906 = vmatpush1.msra.mxu0 0.0
  %907 = vmatprep.subr.mxu0 0.0
  %908 = vmatpush1.msra.mxu0 0.0
  %909 = vmatprep.subr.mxu0 0.0
  %910 = vmatpush1.msra.mxu0 0.0
  %911 = vmatprep.subr.mxu0 0.0
  %912 = vmatpush1.msra.mxu0 0.0
  %913 = vmatprep.mubr.f32.mxu0 0.0
  %914 = vmatmul.mubr.f32.gmra.mrb[0].mxu0 %v843
  %v915 = vpop.f32.mrb[0].mxu0
  %v916 = vadd.f32 0.0, %v915
  %v917 = vpop.f32.mrb[0].mxu0
  %918 = vdwg.mxu0
  %v920 = vsel %vm841, %v834, 0
  %v923 = vsel %vm845, %v34, 0
  %925 = vmatprep.subr.mxu0 0.0
  %926 = vmatpush1.msra.mxu0 %v923
  %927 = vmatprep.subr.mxu0 0.0
  %928 = vmatpush1.msra.mxu0 0.0
  %929 = vmatprep.subr.mxu0 0.0
  %930 = vmatpush1.msra.mxu0 0.0
  %931 = vmatprep.subr.mxu0 0.0
  %932 = vmatpush1.msra.mxu0 0.0
  %933 = vmatprep.subr.mxu0 0.0
  %934 = vmatpush1.msra.mxu0 0.0
  %935 = vmatprep.subr.mxu0 0.0
  %936 = vmatpush1.msra.mxu0 0.0
  %937 = vmatprep.subr.mxu0 0.0
  %938 = vmatpush1.msra.mxu0 0.0
  %939 = vmatprep.subr.mxu0 0.0
  %940 = vmatpush1.msra.mxu0 0.0
  %941 = vmatprep.subr.mxu0 0.0
  %942 = vmatpush1.msra.mxu0 0.0
  %943 = vmatprep.subr.mxu0 0.0
  %944 = vmatpush1.msra.mxu0 0.0
  %945 = vmatprep.subr.mxu0 0.0
  %946 = vmatpush1.msra.mxu0 0.0
  %947 = vmatprep.subr.mxu0 0.0
  %948 = vmatpush1.msra.mxu0 0.0
  %949 = vmatprep.subr.mxu0 0.0
  %950 = vmatpush1.msra.mxu0 0.0
  %951 = vmatprep.subr.mxu0 0.0
  %952 = vmatpush1.msra.mxu0 0.0
  %953 = vmatprep.subr.mxu0 0.0
  %954 = vmatpush1.msra.mxu0 0.0
  %955 = vmatprep.subr.mxu0 0.0
  %956 = vmatpush1.msra.mxu0 0.0
  %957 = vmatprep.subr.mxu0 0.0
  %958 = vmatpush1.msra.mxu0 0.0
  %959 = vmatprep.subr.mxu0 0.0
  %960 = vmatpush1.msra.mxu0 0.0
  %961 = vmatprep.subr.mxu0 0.0
  %962 = vmatpush1.msra.mxu0 0.0
  %963 = vmatprep.subr.mxu0 0.0
  %964 = vmatpush1.msra.mxu0 0.0
  %965 = vmatprep.subr.mxu0 0.0
  %966 = vmatpush1.msra.mxu0 0.0
  %967 = vmatprep.subr.mxu0 0.0
  %968 = vmatpush1.msra.mxu0 0.0
  %969 = vmatprep.subr.mxu0 0.0
  %970 = vmatpush1.msra.mxu0 0.0
  %971 = vmatprep.subr.mxu0 0.0
  %972 = vmatpush1.msra.mxu0 0.0
  %973 = vmatprep.subr.mxu0 0.0
  %974 = vmatpush1.msra.mxu0 0.0
  %975 = vmatprep.subr.mxu0 0.0
  %976 = vmatpush1.msra.mxu0 0.0
  %977 = vmatprep.subr.mxu0 0.0
  %978 = vmatpush1.msra.mxu0 0.0
  %979 = vmatprep.subr.mxu0 0.0
  %980 = vmatpush1.msra.mxu0 0.0
  %981 = vmatprep.subr.mxu0 0.0
  %982 = vmatpush1.msra.mxu0 0.0
  %983 = vmatprep.subr.mxu0 0.0
  %984 = vmatpush1.msra.mxu0 0.0
  %985 = vmatprep.subr.mxu0 0.0
  %986 = vmatpush1.msra.mxu0 0.0
  %987 = vmatprep.subr.mxu0 0.0
  %988 = vmatpush1.msra.mxu0 0.0
  %989 = vmatprep.mubr.f32.mxu0 0.0
  %990 = vmatmul.mubr.f32.gmra.mrb[0].mxu0 %v920
  %v991 = vpop.f32.mrb[0].mxu0
  %v992 = vadd.f32 0.0, %v991
  %v993 = vpop.f32.mrb[0].mxu0
  %994 = vdwg.mxu0
  %v996 = vsel %vm841, %v835, 0
  %v999 = vsel %vm845, %v35, 0
  %1001 = vmatprep.subr.mxu0 0.0
  %1002 = vmatpush1.msra.mxu0 %v999
  %1003 = vmatprep.subr.mxu0 0.0
  %1004 = vmatpush1.msra.mxu0 0.0
  %1005 = vmatprep.subr.mxu0 0.0
  %1006 = vmatpush1.msra.mxu0 0.0
  %1007 = vmatprep.subr.mxu0 0.0
  %1008 = vmatpush1.msra.mxu0 0.0
  %1009 = vmatprep.subr.mxu0 0.0
  %1010 = vmatpush1.msra.mxu0 0.0
  %1011 = vmatprep.subr.mxu0 0.0
  %1012 = vmatpush1.msra.mxu0 0.0
  %1013 = vmatprep.subr.mxu0 0.0
  %1014 = vmatpush1.msra.mxu0 0.0
  %1015 = vmatprep.subr.mxu0 0.0
  %1016 = vmatpush1.msra.mxu0 0.0
  %1017 = vmatprep.subr.mxu0 0.0
  %1018 = vmatpush1.msra.mxu0 0.0
  %1019 = vmatprep.subr.mxu0 0.0
  %1020 = vmatpush1.msra.mxu0 0.0
  %1021 = vmatprep.subr.mxu0 0.0
  %1022 = vmatpush1.msra.mxu0 0.0
  %1023 = vmatprep.subr.mxu0 0.0
  %1024 = vmatpush1.msra.mxu0 0.0
  %1025 = vmatprep.subr.mxu0 0.0
  %1026 = vmatpush1.msra.mxu0 0.0
  %1027 = vmatprep.subr.mxu0 0.0
  %1028 = vmatpush1.msra.mxu0 0.0
  %1029 = vmatprep.subr.mxu0 0.0
  %1030 = vmatpush1.msra.mxu0 0.0
  %1031 = vmatprep.subr.mxu0 0.0
  %1032 = vmatpush1.msra.mxu0 0.0
  %1033 = vmatprep.subr.mxu0 0.0
  %1034 = vmatpush1.msra.mxu0 0.0
  %1035 = vmatprep.subr.mxu0 0.0
  %1036 = vmatpush1.msra.mxu0 0.0
  %1037 = vmatprep.subr.mxu0 0.0
  %1038 = vmatpush1.msra.mxu0 0.0
  %1039 = vmatprep.subr.mxu0 0.0
  %1040 = vmatpush1.msra.mxu0 0.0
  %1041 = vmatprep.subr.mxu0 0.0
  %1042 = vmatpush1.msra.mxu0 0.0
  %1043 = vmatprep.subr.mxu0 0.0
  %1044 = vmatpush1.msra.mxu0 0.0
  %1045 = vmatprep.subr.mxu0 0.0
  %1046 = vmatpush1.msra.mxu0 0.0
  %1047 = vmatprep.subr.mxu0 0.0
  %1048 = vmatpush1.msra.mxu0 0.0
  %1049 = vmatprep.subr.mxu0 0.0
  %1050 = vmatpush1.msra.mxu0 0.0
  %1051 = vmatprep.subr.mxu0 0.0
  %1052 = vmatpush1.msra.mxu0 0.0
  %1053 = vmatprep.subr.mxu0 0.0
  %1054 = vmatpush1.msra.mxu0 0.0
  %1055 = vmatprep.subr.mxu0 0.0
  %1056 = vmatpush1.msra.mxu0 0.0
  %1057 = vmatprep.subr.mxu0 0.0
  %1058 = vmatpush1.msra.mxu0 0.0
  %1059 = vmatprep.subr.mxu0 0.0
  %1060 = vmatpush1.msra.mxu0 0.0
  %1061 = vmatprep.subr.mxu0 0.0
  %1062 = vmatpush1.msra.mxu0 0.0
  %1063 = vmatprep.subr.mxu0 0.0
  %1064 = vmatpush1.msra.mxu0 0.0
  %1065 = vmatprep.mubr.f32.mxu0 0.0
  %1066 = vmatmul.mubr.f32.gmra.mrb[0].mxu0 %v996
  %v1067 = vpop.f32.mrb[0].mxu0
  %v1068 = vadd.f32 0.0, %v1067
  %v1069 = vpop.f32.mrb[0].mxu0
  %1070 = vdwg.mxu0
  %v1072 = vsel %vm841, %v836, 0
  %v1075 = vsel %vm845, %v36, 0
  %1077 = vmatprep.subr.mxu0 0.0
  %1078 = vmatpush1.msra.mxu0 %v1075
  %1079 = vmatprep.subr.mxu0 0.0
  %1080 = vmatpush1.msra.mxu0 0.0
  %1081 = vmatprep.subr.mxu0 0.0
  %1082 = vmatpush1.msra.mxu0 0.0
  %1083 = vmatprep.subr.mxu0 0.0
  %1084 = vmatpush1.msra.mxu0 0.0
  %1085 = vmatprep.subr.mxu0 0.0
  %1086 = vmatpush1.msra.mxu0 0.0
  %1087 = vmatprep.subr.mxu0 0.0
  %1088 = vmatpush1.msra.mxu0 0.0
  %1089 = vmatprep.subr.mxu0 0.0
  %1090 = vmatpush1.msra.mxu0 0.0
  %1091 = vmatprep.subr.mxu0 0.0
  %1092 = vmatpush1.msra.mxu0 0.0
  %1093 = vmatprep.subr.mxu0 0.0
  %1094 = vmatpush1.msra.mxu0 0.0
  %1095 = vmatprep.subr.mxu0 0.0
  %1096 = vmatpush1.msra.mxu0 0.0
  %1097 = vmatprep.subr.mxu0 0.0
  %1098 = vmatpush1.msra.mxu0 0.0
  %1099 = vmatprep.subr.mxu0 0.0
  %1100 = vmatpush1.msra.mxu0 0.0
  %1101 = vmatprep.subr.mxu0 0.0
  %1102 = vmatpush1.msra.mxu0 0.0
  %1103 = vmatprep.subr.mxu0 0.0
  %1104 = vmatpush1.msra.mxu0 0.0
  %1105 = vmatprep.subr.mxu0 0.0
  %1106 = vmatpush1.msra.mxu0 0.0
  %1107 = vmatprep.subr.mxu0 0.0
  %1108 = vmatpush1.msra.mxu0 0.0
  %1109 = vmatprep.subr.mxu0 0.0
  %1110 = vmatpush1.msra.mxu0 0.0
  %1111 = vmatprep.subr.mxu0 0.0
  %1112 = vmatpush1.msra.mxu0 0.0
  %1113 = vmatprep.subr.mxu0 0.0
  %1114 = vmatpush1.msra.mxu0 0.0
  %1115 = vmatprep.subr.mxu0 0.0
  %1116 = vmatpush1.msra.mxu0 0.0
  %1117 = vmatprep.subr.mxu0 0.0
  %1118 = vmatpush1.msra.mxu0 0.0
  %1119 = vmatprep.subr.mxu0 0.0
  %1120 = vmatpush1.msra.mxu0 0.0
  %1121 = vmatprep.subr.mxu0 0.0
  %1122 = vmatpush1.msra.mxu0 0.0
  %1123 = vmatprep.subr.mxu0 0.0
  %1124 = vmatpush1.msra.mxu0 0.0
  %1125 = vmatprep.subr.mxu0 0.0
  %1126 = vmatpush1.msra.mxu0 0.0
  %1127 = vmatprep.subr.mxu0 0.0
  %1128 = vmatpush1.msra.mxu0 0.0
  %1129 = vmatprep.subr.mxu0 0.0
  %1130 = vmatpush1.msra.mxu0 0.0
  %1131 = vmatprep.subr.mxu0 0.0
  %1132 = vmatpush1.msra.mxu0 0.0
  %1133 = vmatprep.subr.mxu0 0.0
  %1134 = vmatpush1.msra.mxu0 0.0
  %1135 = vmatprep.subr.mxu0 0.0
  %1136 = vmatpush1.msra.mxu0 0.0
  %1137 = vmatprep.subr.mxu0 0.0
  %1138 = vmatpush1.msra.mxu0 0.0
  %1139 = vmatprep.subr.mxu0 0.0
  %1140 = vmatpush1.msra.mxu0 0.0
  %1141 = vmatprep.mubr.f32.mxu0 0.0
  %1142 = vmatmul.mubr.f32.gmra.mrb[0].mxu0 %v1072
  %v1143 = vpop.f32.mrb[0].mxu0
  %v1144 = vadd.f32 0.0, %v1143
  %v1145 = vpop.f32.mrb[0].mxu0
  %1146 = vdwg.mxu0
  %v1148 = vsel %vm841, %v837, 0
  %v1151 = vsel %vm845, %v37, 0
  %1153 = vmatprep.subr.mxu0 0.0
  %1154 = vmatpush1.msra.mxu0 %v1151
  %1155 = vmatprep.subr.mxu0 0.0
  %1156 = vmatpush1.msra.mxu0 0.0
  %1157 = vmatprep.subr.mxu0 0.0
  %1158 = vmatpush1.msra.mxu0 0.0
  %1159 = vmatprep.subr.mxu0 0.0
  %1160 = vmatpush1.msra.mxu0 0.0
  %1161 = vmatprep.subr.mxu0 0.0
  %1162 = vmatpush1.msra.mxu0 0.0
  %1163 = vmatprep.subr.mxu0 0.0
  %1164 = vmatpush1.msra.mxu0 0.0
  %1165 = vmatprep.subr.mxu0 0.0
  %1166 = vmatpush1.msra.mxu0 0.0
  %1167 = vmatprep.subr.mxu0 0.0
  %1168 = vmatpush1.msra.mxu0 0.0
  %1169 = vmatprep.subr.mxu0 0.0
  %1170 = vmatpush1.msra.mxu0 0.0
  %1171 = vmatprep.subr.mxu0 0.0
  %1172 = vmatpush1.msra.mxu0 0.0
  %1173 = vmatprep.subr.mxu0 0.0
  %1174 = vmatpush1.msra.mxu0 0.0
  %1175 = vmatprep.subr.mxu0 0.0
  %1176 = vmatpush1.msra.mxu0 0.0
  %1177 = vmatprep.subr.mxu0 0.0
  %1178 = vmatpush1.msra.mxu0 0.0
  %1179 = vmatprep.subr.mxu0 0.0
  %1180 = vmatpush1.msra.mxu0 0.0
  %1181 = vmatprep.subr.mxu0 0.0
  %1182 = vmatpush1.msra.mxu0 0.0
  %1183 = vmatprep.subr.mxu0 0.0
  %1184 = vmatpush1.msra.mxu0 0.0
  %1185 = vmatprep.subr.mxu0 0.0
  %1186 = vmatpush1.msra.mxu0 0.0
  %1187 = vmatprep.subr.mxu0 0.0
  %1188 = vmatpush1.msra.mxu0 0.0
  %1189 = vmatprep.subr.mxu0 0.0
  %1190 = vmatpush1.msra.mxu0 0.0
  %1191 = vmatprep.subr.mxu0 0.0
  %1192 = vmatpush1.msra.mxu0 0.0
  %1193 = vmatprep.subr.mxu0 0.0
  %1194 = vmatpush1.msra.mxu0 0.0
  %1195 = vmatprep.subr.mxu0 0.0
  %1196 = vmatpush1.msra.mxu0 0.0
  %1197 = vmatprep.subr.mxu0 0.0
  %1198 = vmatpush1.msra.mxu0 0.0
  %1199 = vmatprep.subr.mxu0 0.0
  %1200 = vmatpush1.msra.mxu0 0.0
  %1201 = vmatprep.subr.mxu0 0.0
  %1202 = vmatpush1.msra.mxu0 0.0
  %1203 = vmatprep.subr.mxu0 0.0
  %1204 = vmatpush1.msra.mxu0 0.0
  %1205 = vmatprep.subr.mxu0 0.0
  %1206 = vmatpush1.msra.mxu0 0.0
  %1207 = vmatprep.subr.mxu0 0.0
  %1208 = vmatpush1.msra.mxu0 0.0
  %1209 = vmatprep.subr.mxu0 0.0
  %1210 = vmatpush1.msra.mxu0 0.0
  %1211 = vmatprep.subr.mxu0 0.0
  %1212 = vmatpush1.msra.mxu0 0.0
  %1213 = vmatprep.subr.mxu0 0.0
  %1214 = vmatpush1.msra.mxu0 0.0
  %1215 = vmatprep.subr.mxu0 0.0
  %1216 = vmatpush1.msra.mxu0 0.0
  %1217 = vmatprep.mubr.f32.mxu0 0.0
  %1218 = vmatmul.mubr.f32.gmra.mrb[0].mxu0 %v1148
  %v1219 = vpop.f32.mrb[0].mxu0
  %v1220 = vadd.f32 0.0, %v1219
  %v1221 = vpop.f32.mrb[0].mxu0
  %1222 = vdwg.mxu0
  %v1224 = vsel %vm841, %v838, 0
  %v1227 = vsel %vm845, %v38, 0
  %1229 = vmatprep.subr.mxu0 0.0
  %1230 = vmatpush1.msra.mxu0 %v1227
  %1231 = vmatprep.subr.mxu0 0.0
  %1232 = vmatpush1.msra.mxu0 0.0
  %1233 = vmatprep.subr.mxu0 0.0
  %1234 = vmatpush1.msra.mxu0 0.0
  %1235 = vmatprep.subr.mxu0 0.0
  %1236 = vmatpush1.msra.mxu0 0.0
  %1237 = vmatprep.subr.mxu0 0.0
  %1238 = vmatpush1.msra.mxu0 0.0
  %1239 = vmatprep.subr.mxu0 0.0
  %1240 = vmatpush1.msra.mxu0 0.0
  %1241 = vmatprep.subr.mxu0 0.0
  %1242 = vmatpush1.msra.mxu0 0.0
  %1243 = vmatprep.subr.mxu0 0.0
  %1244 = vmatpush1.msra.mxu0 0.0
  %1245 = vmatprep.subr.mxu0 0.0
  %1246 = vmatpush1.msra.mxu0 0.0
  %1247 = vmatprep.subr.mxu0 0.0
  %1248 = vmatpush1.msra.mxu0 0.0
  %1249 = vmatprep.subr.mxu0 0.0
  %1250 = vmatpush1.msra.mxu0 0.0
  %1251 = vmatprep.subr.mxu0 0.0
  %1252 = vmatpush1.msra.mxu0 0.0
  %1253 = vmatprep.subr.mxu0 0.0
  %1254 = vmatpush1.msra.mxu0 0.0
  %1255 = vmatprep.subr.mxu0 0.0
  %1256 = vmatpush1.msra.mxu0 0.0
  %1257 = vmatprep.subr.mxu0 0.0
  %1258 = vmatpush1.msra.mxu0 0.0
  %1259 = vmatprep.subr.mxu0 0.0
  %1260 = vmatpush1.msra.mxu0 0.0
  %1261 = vmatprep.subr.mxu0 0.0
  %1262 = vmatpush1.msra.mxu0 0.0
  %1263 = vmatprep.subr.mxu0 0.0
  %1264 = vmatpush1.msra.mxu0 0.0
  %1265 = vmatprep.subr.mxu0 0.0
  %1266 = vmatpush1.msra.mxu0 0.0
  %1267 = vmatprep.subr.mxu0 0.0
  %1268 = vmatpush1.msra.mxu0 0.0
  %1269 = vmatprep.subr.mxu0 0.0
  %1270 = vmatpush1.msra.mxu0 0.0
  %1271 = vmatprep.subr.mxu0 0.0
  %1272 = vmatpush1.msra.mxu0 0.0
  %1273 = vmatprep.subr.mxu0 0.0
  %1274 = vmatpush1.msra.mxu0 0.0
  %1275 = vmatprep.subr.mxu0 0.0
  %1276 = vmatpush1.msra.mxu0 0.0
  %1277 = vmatprep.subr.mxu0 0.0
  %1278 = vmatpush1.msra.mxu0 0.0
  %1279 = vmatprep.subr.mxu0 0.0
  %1280 = vmatpush1.msra.mxu0 0.0
  %1281 = vmatprep.subr.mxu0 0.0
  %1282 = vmatpush1.msra.mxu0 0.0
  %1283 = vmatprep.subr.mxu0 0.0
  %1284 = vmatpush1.msra.mxu0 0.0
  %1285 = vmatprep.subr.mxu0 0.0
  %1286 = vmatpush1.msra.mxu0 0.0
  %1287 = vmatprep.subr.mxu0 0.0
  %1288 = vmatpush1.msra.mxu0 0.0
  %1289 = vmatprep.subr.mxu0 0.0
  %1290 = vmatpush1.msra.mxu0 0.0
  %1291 = vmatprep.subr.mxu0 0.0
  %1292 = vmatpush1.msra.mxu0 0.0
  %1293 = vmatprep.mubr.f32.mxu0 0.0
  %1294 = vmatmul.mubr.f32.gmra.mrb[0].mxu0 %v1224
  %v1295 = vpop.f32.mrb[0].mxu0
  %v1296 = vadd.f32 0.0, %v1295
  %v1297 = vpop.f32.mrb[0].mxu0
  %1298 = vdwg.mxu0
  %v1300 = vsel %vm841, %v839, 0
  %v1303 = vsel %vm845, %v39, 0
  %1305 = vmatprep.subr.mxu0 0.0
  %1306 = vmatpush1.msra.mxu0 %v1303
  %1307 = vmatprep.subr.mxu0 0.0
  %1308 = vmatpush1.msra.mxu0 0.0
  %1309 = vmatprep.subr.mxu0 0.0
  %1310 = vmatpush1.msra.mxu0 0.0
  %1311 = vmatprep.subr.mxu0 0.0
  %1312 = vmatpush1.msra.mxu0 0.0
  %1313 = vmatprep.subr.mxu0 0.0
  %1314 = vmatpush1.msra.mxu0 0.0
  %1315 = vmatprep.subr.mxu0 0.0
  %1316 = vmatpush1.msra.mxu0 0.0
  %1317 = vmatprep.subr.mxu0 0.0
  %1318 = vmatpush1.msra.mxu0 0.0
  %1319 = vmatprep.subr.mxu0 0.0
  %1320 = vmatpush1.msra.mxu0 0.0
  %1321 = vmatprep.subr.mxu0 0.0
  %1322 = vmatpush1.msra.mxu0 0.0
  %1323 = vmatprep.subr.mxu0 0.0
  %1324 = vmatpush1.msra.mxu0 0.0
  %1325 = vmatprep.subr.mxu0 0.0
  %1326 = vmatpush1.msra.mxu0 0.0
  %1327 = vmatprep.subr.mxu0 0.0
  %1328 = vmatpush1.msra.mxu0 0.0
  %1329 = vmatprep.subr.mxu0 0.0
  %1330 = vmatpush1.msra.mxu0 0.0
  %1331 = vmatprep.subr.mxu0 0.0
  %1332 = vmatpush1.msra.mxu0 0.0
  %1333 = vmatprep.subr.mxu0 0.0
  %1334 = vmatpush1.msra.mxu0 0.0
  %1335 = vmatprep.subr.mxu0 0.0
  %1336 = vmatpush1.msra.mxu0 0.0
  %1337 = vmatprep.subr.mxu0 0.0
  %1338 = vmatpush1.msra.mxu0 0.0
  %1339 = vmatprep.subr.mxu0 0.0
  %1340 = vmatpush1.msra.mxu0 0.0
  %1341 = vmatprep.subr.mxu0 0.0
  %1342 = vmatpush1.msra.mxu0 0.0
  %1343 = vmatprep.subr.mxu0 0.0
  %1344 = vmatpush1.msra.mxu0 0.0
  %1345 = vmatprep.subr.mxu0 0.0
  %1346 = vmatpush1.msra.mxu0 0.0
  %1347 = vmatprep.subr.mxu0 0.0
  %1348 = vmatpush1.msra.mxu0 0.0
  %1349 = vmatprep.subr.mxu0 0.0
  %1350 = vmatpush1.msra.mxu0 0.0
  %1351 = vmatprep.subr.mxu0 0.0
  %1352 = vmatpush1.msra.mxu0 0.0
  %1353 = vmatprep.subr.mxu0 0.0
  %1354 = vmatpush1.msra.mxu0 0.0
  %1355 = vmatprep.subr.mxu0 0.0
  %1356 = vmatpush1.msra.mxu0 0.0
  %1357 = vmatprep.subr.mxu0 0.0
  %1358 = vmatpush1.msra.mxu0 0.0
  %1359 = vmatprep.subr.mxu0 0.0
  %1360 = vmatpush1.msra.mxu0 0.0
  %1361 = vmatprep.subr.mxu0 0.0
  %1362 = vmatpush1.msra.mxu0 0.0
  %1363 = vmatprep.subr.mxu0 0.0
  %1364 = vmatpush1.msra.mxu0 0.0
  %1365 = vmatprep.subr.mxu0 0.0
  %1366 = vmatpush1.msra.mxu0 0.0
  %1367 = vmatprep.subr.mxu0 0.0
  %1368 = vmatpush1.msra.mxu0 0.0
  %1369 = vmatprep.mubr.f32.mxu0 0.0
  %1370 = vmatmul.mubr.f32.gmra.mrb[0].mxu0 %v1300
  %v1371 = vpop.f32.mrb[0].mxu0
  %v1372 = vadd.f32 0.0, %v1371
  %v1373 = vpop.f32.mrb[0].mxu0
  %1374 = vdwg.mxu0
  %v1376 = vsel %vm841, %v840, 0
  %v1379 = vsel %vm845, %v40, 0
  %1381 = vmatprep.subr.mxu0 0.0
  %1382 = vmatpush1.msra.mxu0 %v1379
  %1383 = vmatprep.subr.mxu0 0.0
  %1384 = vmatpush1.msra.mxu0 0.0
  %1385 = vmatprep.subr.mxu0 0.0
  %1386 = vmatpush1.msra.mxu0 0.0
  %1387 = vmatprep.subr.mxu0 0.0
  %1388 = vmatpush1.msra.mxu0 0.0
  %1389 = vmatprep.subr.mxu0 0.0
  %1390 = vmatpush1.msra.mxu0 0.0
  %1391 = vmatprep.subr.mxu0 0.0
  %1392 = vmatpush1.msra.mxu0 0.0
  %1393 = vmatprep.subr.mxu0 0.0
  %1394 = vmatpush1.msra.mxu0 0.0
  %1395 = vmatprep.subr.mxu0 0.0
  %1396 = vmatpush1.msra.mxu0 0.0
  %1397 = vmatprep.subr.mxu0 0.0
  %1398 = vmatpush1.msra.mxu0 0.0
  %1399 = vmatprep.subr.mxu0 0.0
  %1400 = vmatpush1.msra.mxu0 0.0
  %1401 = vmatprep.subr.mxu0 0.0
  %1402 = vmatpush1.msra.mxu0 0.0
  %1403 = vmatprep.subr.mxu0 0.0
  %1404 = vmatpush1.msra.mxu0 0.0
  %1405 = vmatprep.subr.mxu0 0.0
  %1406 = vmatpush1.msra.mxu0 0.0
  %1407 = vmatprep.subr.mxu0 0.0
  %1408 = vmatpush1.msra.mxu0 0.0
  %1409 = vmatprep.subr.mxu0 0.0
  %1410 = vmatpush1.msra.mxu0 0.0
  %1411 = vmatprep.subr.mxu0 0.0
  %1412 = vmatpush1.msra.mxu0 0.0
  %1413 = vmatprep.subr.mxu0 0.0
  %1414 = vmatpush1.msra.mxu0 0.0
  %1415 = vmatprep.subr.mxu0 0.0
  %1416 = vmatpush1.msra.mxu0 0.0
  %1417 = vmatprep.subr.mxu0 0.0
  %1418 = vmatpush1.msra.mxu0 0.0
  %1419 = vmatprep.subr.mxu0 0.0
  %1420 = vmatpush1.msra.mxu0 0.0
  %1421 = vmatprep.subr.mxu0 0.0
  %1422 = vmatpush1.msra.mxu0 0.0
  %1423 = vmatprep.subr.mxu0 0.0
  %1424 = vmatpush1.msra.mxu0 0.0
  %1425 = vmatprep.subr.mxu0 0.0
  %1426 = vmatpush1.msra.mxu0 0.0
  %1427 = vmatprep.subr.mxu0 0.0
  %1428 = vmatpush1.msra.mxu0 0.0
  %1429 = vmatprep.subr.mxu0 0.0
  %1430 = vmatpush1.msra.mxu0 0.0
  %1431 = vmatprep.subr.mxu0 0.0
  %1432 = vmatpush1.msra.mxu0 0.0
  %1433 = vmatprep.subr.mxu0 0.0
  %1434 = vmatpush1.msra.mxu0 0.0
  %1435 = vmatprep.subr.mxu0 0.0
  %1436 = vmatpush1.msra.mxu0 0.0
  %1437 = vmatprep.subr.mxu0 0.0
  %1438 = vmatpush1.msra.mxu0 0.0
  %1439 = vmatprep.subr.mxu0 0.0
  %1440 = vmatpush1.msra.mxu0 0.0
  %1441 = vmatprep.subr.mxu0 0.0
  %1442 = vmatpush1.msra.mxu0 0.0
  %1443 = vmatprep.subr.mxu0 0.0
  %1444 = vmatpush1.msra.mxu0 0.0
  %1445 = vmatprep.mubr.f32.mxu0 0.0
  %1446 = vmatmul.mubr.f32.gmra.mrb[0].mxu0 %v1376
  %v1447 = vpop.f32.mrb[0].mxu0
  %v1448 = vadd.f32 0.0, %v1447
  %v1449 = vpop.f32.mrb[0].mxu0
  %1450 = vdwg.mxu0
  %vm1451 = vcmask 63488
  %1452 = vst.msk [vmem:[%s4] sm:$0x7f] %vm1451, %v916
  %1453 = vst.msk [vmem:[%s4 + $0x8] sm:$0x7f] %vm1451, %v992
  %1454 = vst.msk [vmem:[%s4 + $0x10] sm:$0x7f] %vm1451, %v1068
  %1455 = vst.msk [vmem:[%s4 + $0x18] sm:$0x7f] %vm1451, %v1144
  %1456 = vst.msk [vmem:[%s4 + $0x20] sm:$0x7f] %vm1451, %v1220
  %1457 = vst.msk [vmem:[%s4 + $0x28] sm:$0x7f] %vm1451, %v1296
  %1458 = vst.msk [vmem:[%s4 + $0x30] sm:$0x7f] %vm1451, %v1372
  %1459 = vst.msk [vmem:[%s4 + $0x38] sm:$0x7f] %vm1451, %v1448
  // Predicated region
  $region18: #{_seq2seq_core.38} parent=0 // pred_check
    _
  $region19: #{_seq2seq_core.38} parent=0 // pred_check_branch
    %1461 = sbr.rel (0) target = $region21
  $region20: #{_seq2seq_core.38} parent=0 // pred_region
    _
  $region21: #{_seq2seq_core.38} parent=0 // pred_fallthru
    _
  // Predicated region
  $region22: #{_seq2seq_core.38} parent=0 // pred_check
    _
  $region23: #{_seq2seq_core.38} parent=0 // pred_check_branch
    %1463 = sbr.rel (0) target = $region25
  $region24: #{_seq2seq_core.38} parent=0 // pred_region
    _
  $region25: #{_seq2seq_core.38} parent=0 // pred_fallthru
    _

// kernel: _seq2seq_core.27
$region0: #{_seq2seq_core.27}
  #allocation0 [shape = 'u32[]', space=smem, size = 0x4, offset = 0x4, fixed_abs, tag = 'smem constant byte address 0x4 - core index']
  #allocation1 [shape = 'u32[144,128]{1,0:T(1,128)}', space=vmem, size = 0x12000, scoped, tag = 'internal scratch']
  %s0 = inlined_call_operand.vmem [shape: f32[16,32], index: 0, kind: input, shape index: {}]
  %s1 = inlined_call_operand.vmem [shape: f32[1,32], index: 1, kind: input, shape index: {}]
  %s2 = inlined_call_operand.vmem [shape: f32[1,32], index: 2, kind: input, shape index: {}]
  %s3 = inlined_call_operand.vmem [shape: f32[16,32], index: 3, kind: output, shape index: {}]
  %s4 = sld [smem:[#allocation0]]
  $region22: #{_seq2seq_core.27} parent=0
    _
  %s6 = ssub.s32 1, %s4
  %s7 = scalar_select 0, %s6, %s4
  // Predicated region
  $region2: #{_seq2seq_core.27} parent=0 // pred_check
    _
  $region3: #{_seq2seq_core.27} parent=0 // pred_check_branch
    %9 = sbr.rel (0) target = $region5
  $region4: #{_seq2seq_core.27} parent=0 // pred_region
    _
  $region5: #{_seq2seq_core.27} parent=0 // pred_fallthru
    _
  // Predicated region
  $region6: #{_seq2seq_core.27} parent=0 // pred_check
    _
  $region7: #{_seq2seq_core.27} parent=0 // pred_check_branch
    %11 = sbr.rel (0) target = $region9
  $region8: #{_seq2seq_core.27} parent=0 // pred_region
    _
  $region9: #{_seq2seq_core.27} parent=0 // pred_fallthru
    _
  // Predicated region
  $region10: #{_seq2seq_core.27} parent=0 // pred_check
    _
  $region11: #{_seq2seq_core.27} parent=0 // pred_check_branch
    %13 = sbr.rel (0) target = $region13
  $region12: #{_seq2seq_core.27} parent=0 // pred_region
    _
  $region13: #{_seq2seq_core.27} parent=0 // pred_fallthru
    _
  %v14 = vld [vmem:[%s0] sm:$0xff]
  %v15 = vld [vmem:[%s0 + $0x8] sm:$0xff]
  %v16 = vld [vmem:[%s1] sm:$0x1]
  %v17 = vld [vmem:[%s2] sm:$0x1]
  %vm18 = vcmask 261120
  %v19 = vsel %vm18, %v14, 0.0
  %20 = vadd.xlane.f32.xlu0 %v19
  %v21 = vpop.xlane.xlu0 %20
  %v22 = vsel %vm18, %v15, 0.0
  %23 = vadd.xlane.f32.xlu0 %v22
  %v24 = vpop.xlane.xlu0 %23
  %v25 = vrcp.pop 32.0
  %v26 = vmul.f32 %v21, %v25
  %v27 = vmul.f32 %v24, %v25
  %v28 = vsub.f32 %v14, %v26
  %v29 = vsub.f32 %v15, %v27
  %v30 = vmul.f32 %v28, %v28
  %v31 = vmul.f32 %v29, %v29
  %v32 = vsel %vm18, %v30, 0.0
  %33 = vadd.xlane.f32.xlu0 %v32
  %v34 = vpop.xlane.xlu0 %33
  %v35 = vsel %vm18, %v31, 0.0
  %36 = vadd.xlane.f32.xlu0 %v35
  %v37 = vpop.xlane.xlu0 %36
  %v38 = vmul.f32 %v34, %v25
  %v39 = vmul.f32 %v37, %v25
  %v40 = vadd.f32 %v38, 1e-12
  %v41 = vadd.f32 %v39, 1e-12
  %v42 = vrsqrt.pop %v40
  %v43 = vrsqrt.pop %v41
  %v44 = vmul.f32 %v28, %v42
  %v45 = vmul.f32 %v29, %v43
  %v47 = vlaneseq
  %v48 = vshrl.u32 %v47, 7
  %v49 = vsub.s32 0, %v48
  %v50 = vrot.slane %v16, %v49
  %v52 = vmul.f32 %v44, %v50
  %v53 = vmul.f32 %v45, %v50
  %v55 = vlaneseq
  %v56 = vshrl.u32 %v55, 7
  %v57 = vsub.s32 0, %v56
  %v58 = vrot.slane %v17, %v57
  %v60 = vadd.f32 %v52, %v58
  %v61 = vadd.f32 %v53, %v58
  %62 = vst.msk [vmem:[%s3] sm:$0xff] %vm18, %v60
  %63 = vst.msk [vmem:[%s3 + $0x8] sm:$0xff] %vm18, %v61
  // Predicated region
  $region14: #{_seq2seq_core.27} parent=0 // pred_check
    _
  $region15: #{_seq2seq_core.27} parent=0 // pred_check_branch
    %65 = sbr.rel (0) target = $region17
  $region16: #{_seq2seq_core.27} parent=0 // pred_region
    _
  $region17: #{_seq2seq_core.27} parent=0 // pred_fallthru
    _
  // Predicated region
  $region18: #{_seq2seq_core.27} parent=0 // pred_check
    _
  $region19: #{_seq2seq_core.27} parent=0 // pred_check_branch
    %67 = sbr.rel (0) target = $region21
  $region20: #{_seq2seq_core.27} parent=0 // pred_region
    _
  $region21: #{_seq2seq_core.27} parent=0 // pred_fallthru
    _

// kernel: _seq2seq_core.28
$region0: #{_seq2seq_core.28}
  #allocation0 [shape = 'u32[]', space=smem, size = 0x4, offset = 0x4, fixed_abs, tag = 'smem constant byte address 0x4 - core index']
  #allocation1 [shape = 'u32[144,128]{1,0:T(1,128)}', space=vmem, size = 0x12000, scoped, tag = 'internal scratch']
  %s0 = inlined_call_operand.vmem [shape: f32[16,32], index: 0, kind: input, shape index: {}]
  %s1 = inlined_call_operand.vmem [shape: f32[32,96], index: 1, kind: input, shape index: {}]
  %s2 = inlined_call_operand.vmem [shape: f32[1,96], index: 2, kind: input, shape index: {}]
  %s3 = inlined_call_operand.vmem [shape: f32[16,96], index: 3, kind: output, shape index: {}]
  %s4 = sld [smem:[#allocation0]]
  $region22: #{_seq2seq_core.28} parent=0
    _
  %s6 = ssub.s32 1, %s4
  %s7 = scalar_select 0, %s6, %s4
  // Predicated region
  $region2: #{_seq2seq_core.28} parent=0 // pred_check
    _
  $region3: #{_seq2seq_core.28} parent=0 // pred_check_branch
    %9 = sbr.rel (0) target = $region5
  $region4: #{_seq2seq_core.28} parent=0 // pred_region
    _
  $region5: #{_seq2seq_core.28} parent=0 // pred_fallthru
    _
  // Predicated region
  $region6: #{_seq2seq_core.28} parent=0 // pred_check
    _
  $region7: #{_seq2seq_core.28} parent=0 // pred_check_branch
    %11 = sbr.rel (0) target = $region9
  $region8: #{_seq2seq_core.28} parent=0 // pred_region
    _
  $region9: #{_seq2seq_core.28} parent=0 // pred_fallthru
    _
  // Predicated region
  $region10: #{_seq2seq_core.28} parent=0 // pred_check
    _
  $region11: #{_seq2seq_core.28} parent=0 // pred_check_branch
    %13 = sbr.rel (0) target = $region13
  $region12: #{_seq2seq_core.28} parent=0 // pred_region
    _
  $region13: #{_seq2seq_core.28} parent=0 // pred_fallthru
    _
  %v14 = vld [vmem:[%s0] sm:$0xff]
  %v15 = vld [vmem:[%s0 + $0x8] sm:$0xff]
  %v16 = vld [vmem:[%s1] sm:$0xff]
  %v17 = vld [vmem:[%s1 + $0x8] sm:$0xff]
  %v18 = vld [vmem:[%s1 + $0x10] sm:$0xff]
  %v19 = vld [vmem:[%s1 + $0x18] sm:$0xff]
  %v20 = vld [vmem:[%s2] sm:$0x1]
  %v22 = vlaneseq
  %v23 = vshrl.u32 %v22, 7
  %v24 = vsub.s32 0, %v23
  %v25 = vrot.slane %v20, %v24
  %vm27 = vcmask 261120
  %v29 = vsel %vm27, %v14, 0
  %v32 = vsel %vm27, %v15, 0
  %34 = vmatprep.subr.mxu0 0.0
  %35 = vmatpush1.msra.mxu0 %v16
  %36 = vmatprep.subr.mxu0 0.0
  %37 = vmatpush1.msra.mxu0 %v17
  %38 = vmatprep.subr.mxu0 0.0
  %39 = vmatpush1.msra.mxu0 %v18
  %40 = vmatprep.subr.mxu0 0.0
  %41 = vmatpush1.msra.mxu0 %v19
  %42 = vmatprep.subr.mxu0 0.0
  %43 = vmatpush1.msra.mxu0 0.0
  %44 = vmatprep.subr.mxu0 0.0
  %45 = vmatpush1.msra.mxu0 0.0
  %46 = vmatprep.subr.mxu0 0.0
  %47 = vmatpush1.msra.mxu0 0.0
  %48 = vmatprep.subr.mxu0 0.0
  %49 = vmatpush1.msra.mxu0 0.0
  %50 = vmatprep.subr.mxu0 0.0
  %51 = vmatpush1.msra.mxu0 0.0
  %52 = vmatprep.subr.mxu0 0.0
  %53 = vmatpush1.msra.mxu0 0.0
  %54 = vmatprep.subr.mxu0 0.0
  %55 = vmatpush1.msra.mxu0 0.0
  %56 = vmatprep.subr.mxu0 0.0
  %57 = vmatpush1.msra.mxu0 0.0
  %58 = vmatprep.subr.mxu0 0.0
  %59 = vmatpush1.msra.mxu0 0.0
  %60 = vmatprep.subr.mxu0 0.0
  %61 = vmatpush1.msra.mxu0 0.0
  %62 = vmatprep.subr.mxu0 0.0
  %63 = vmatpush1.msra.mxu0 0.0
  %64 = vmatprep.subr.mxu0 0.0
  %65 = vmatpush1.msra.mxu0 0.0
  %66 = vmatprep.subr.mxu0 0.0
  %67 = vmatpush1.msra.mxu0 0.0
  %68 = vmatprep.subr.mxu0 0.0
  %69 = vmatpush1.msra.mxu0 0.0
  %70 = vmatprep.subr.mxu0 0.0
  %71 = vmatpush1.msra.mxu0 0.0
  %72 = vmatprep.subr.mxu0 0.0
  %73 = vmatpush1.msra.mxu0 0.0
  %74 = vmatprep.subr.mxu0 0.0
  %75 = vmatpush1.msra.mxu0 0.0
  %76 = vmatprep.subr.mxu0 0.0
  %77 = vmatpush1.msra.mxu0 0.0
  %78 = vmatprep.subr.mxu0 0.0
  %79 = vmatpush1.msra.mxu0 0.0
  %80 = vmatprep.subr.mxu0 0.0
  %81 = vmatpush1.msra.mxu0 0.0
  %82 = vmatprep.subr.mxu0 0.0
  %83 = vmatpush1.msra.mxu0 0.0
  %84 = vmatprep.subr.mxu0 0.0
  %85 = vmatpush1.msra.mxu0 0.0
  %86 = vmatprep.subr.mxu0 0.0
  %87 = vmatpush1.msra.mxu0 0.0
  %88 = vmatprep.subr.mxu0 0.0
  %89 = vmatpush1.msra.mxu0 0.0
  %90 = vmatprep.subr.mxu0 0.0
  %91 = vmatpush1.msra.mxu0 0.0
  %92 = vmatprep.subr.mxu0 0.0
  %93 = vmatpush1.msra.mxu0 0.0
  %94 = vmatprep.subr.mxu0 0.0
  %95 = vmatpush1.msra.mxu0 0.0
  %96 = vmatprep.subr.mxu0 0.0
  %97 = vmatpush1.msra.mxu0 0.0
  %98 = vmatprep.mubr.f32.mxu0 0.0
  %99 = vmatmul.mubr.f32.gmra.mrb[0].mxu0 %v29
  %v100 = vpop.f32.mrb[0].mxu0
  %v101 = vadd.f32 %v25, %v100
  %v102 = vpop.f32.mrb[0].mxu0
  %103 = vmatprep.mubr.f32.mxu0 0.0
  %104 = vmatmul.mubr.f32.gmra.mrb[0].mxu0 %v32
  %v105 = vpop.f32.mrb[0].mxu0
  %v106 = vadd.f32 %v25, %v105
  %v107 = vpop.f32.mrb[0].mxu0
  %108 = vdwg.mxu0
  %vm109 = vcmask 785408
  %110 = vst.msk [vmem:[%s3] sm:$0xff] %vm109, %v101
  %111 = vst.msk [vmem:[%s3 + $0x8] sm:$0xff] %vm109, %v106
  // Predicated region
  $region14: #{_seq2seq_core.28} parent=0 // pred_check
    _
  $region15: #{_seq2seq_core.28} parent=0 // pred_check_branch
    %113 = sbr.rel (0) target = $region17
  $region16: #{_seq2seq_core.28} parent=0 // pred_region
    _
  $region17: #{_seq2seq_core.28} parent=0 // pred_fallthru
    _
  // Predicated region
  $region18: #{_seq2seq_core.28} parent=0 // pred_check
    _
  $region19: #{_seq2seq_core.28} parent=0 // pred_check_branch
    %115 = sbr.rel (0) target = $region21
  $region20: #{_seq2seq_core.28} parent=0 // pred_region
    _
  $region21: #{_seq2seq_core.28} parent=0 // pred_fallthru
    _

// kernel: _seq2seq_core.30
$region0: #{_seq2seq_core.30}
  #allocation0 [shape = 'u32[]', space=smem, size = 0x4, offset = 0x4, fixed_abs, tag = 'smem constant byte address 0x4 - core index']
  #allocation1 [shape = 'u32[144,128]{1,0:T(1,128)}', space=vmem, size = 0x12000, scoped, tag = 'internal scratch']
  %s0 = inlined_call_operand.vmem [shape: f32[16,32], index: 0, kind: input, shape index: {}]
  %s1 = inlined_call_operand.vmem [shape: f32[32,32], index: 1, kind: input, shape index: {}]
  %s2 = inlined_call_operand.vmem [shape: f32[1,32], index: 2, kind: input, shape index: {}]
  %s3 = inlined_call_operand.vmem [shape: f32[16,32], index: 3, kind: input, shape index: {}]
  %s4 = inlined_call_operand.vmem [shape: f32[1,32], index: 4, kind: input, shape index: {}]
  %s5 = inlined_call_operand.vmem [shape: f32[1,32], index: 5, kind: input, shape index: {}]
  %s6 = inlined_call_operand.vmem [shape: f32[16,32], index: 6, kind: output, shape index: {}]
  %s7 = sld [smem:[#allocation0]]
  $region34: #{_seq2seq_core.30} parent=0
    _
  %s9 = ssub.s32 1, %s7
  %s10 = scalar_select 0, %s9, %s7
  // Predicated region
  $region2: #{_seq2seq_core.30} parent=0 // pred_check
    _
  $region3: #{_seq2seq_core.30} parent=0 // pred_check_branch
    %12 = sbr.rel (0) target = $region5
  $region4: #{_seq2seq_core.30} parent=0 // pred_region
    _
  $region5: #{_seq2seq_core.30} parent=0 // pred_fallthru
    _
  // Predicated region
  $region6: #{_seq2seq_core.30} parent=0 // pred_check
    _
  $region7: #{_seq2seq_core.30} parent=0 // pred_check_branch
    %14 = sbr.rel (0) target = $region9
  $region8: #{_seq2seq_core.30} parent=0 // pred_region
    _
  $region9: #{_seq2seq_core.30} parent=0 // pred_fallthru
    _
  // Predicated region
  $region10: #{_seq2seq_core.30} parent=0 // pred_check
    _
  $region11: #{_seq2seq_core.30} parent=0 // pred_check_branch
    %16 = sbr.rel (0) target = $region13
  $region12: #{_seq2seq_core.30} parent=0 // pred_region
    _
  $region13: #{_seq2seq_core.30} parent=0 // pred_fallthru
    _
  // Predicated region
  $region14: #{_seq2seq_core.30} parent=0 // pred_check
    _
  $region15: #{_seq2seq_core.30} parent=0 // pred_check_branch
    %18 = sbr.rel (0) target = $region17
  $region16: #{_seq2seq_core.30} parent=0 // pred_region
    _
  $region17: #{_seq2seq_core.30} parent=0 // pred_fallthru
    _
  // Predicated region
  $region18: #{_seq2seq_core.30} parent=0 // pred_check
    _
  $region19: #{_seq2seq_core.30} parent=0 // pred_check_branch
    %20 = sbr.rel (0) target = $region21
  $region20: #{_seq2seq_core.30} parent=0 // pred_region
    _
  $region21: #{_seq2seq_core.30} parent=0 // pred_fallthru
    _
  // Predicated region
  $region22: #{_seq2seq_core.30} parent=0 // pred_check
    _
  $region23: #{_seq2seq_core.30} parent=0 // pred_check_branch
    %22 = sbr.rel (0) target = $region25
  $region24: #{_seq2seq_core.30} parent=0 // pred_region
    _
  $region25: #{_seq2seq_core.30} parent=0 // pred_fallthru
    _
  %v23 = vld [vmem:[%s0] sm:$0xff]
  %v24 = vld [vmem:[%s0 + $0x8] sm:$0xff]
  %v25 = vld [vmem:[%s1] sm:$0xff]
  %v26 = vld [vmem:[%s1 + $0x8] sm:$0xff]
  %v27 = vld [vmem:[%s1 + $0x10] sm:$0xff]
  %v28 = vld [vmem:[%s1 + $0x18] sm:$0xff]
  %v29 = vld [vmem:[%s2] sm:$0x1]
  %v31 = vlaneseq
  %v32 = vshrl.u32 %v31, 7
  %v33 = vsub.s32 0, %v32
  %v34 = vrot.slane %v29, %v33
  %vm36 = vcmask 261120
  %v38 = vsel %vm36, %v23, 0
  %v41 = vsel %vm36, %v24, 0
  %43 = vmatprep.subr.mxu0 0.0
  %44 = vmatpush1.msra.mxu0 %v25
  %45 = vmatprep.subr.mxu0 0.0
  %46 = vmatpush1.msra.mxu0 %v26
  %47 = vmatprep.subr.mxu0 0.0
  %48 = vmatpush1.msra.mxu0 %v27
  %49 = vmatprep.subr.mxu0 0.0
  %50 = vmatpush1.msra.mxu0 %v28
  %51 = vmatprep.subr.mxu0 0.0
  %52 = vmatpush1.msra.mxu0 0.0
  %53 = vmatprep.subr.mxu0 0.0
  %54 = vmatpush1.msra.mxu0 0.0
  %55 = vmatprep.subr.mxu0 0.0
  %56 = vmatpush1.msra.mxu0 0.0
  %57 = vmatprep.subr.mxu0 0.0
  %58 = vmatpush1.msra.mxu0 0.0
  %59 = vmatprep.subr.mxu0 0.0
  %60 = vmatpush1.msra.mxu0 0.0
  %61 = vmatprep.subr.mxu0 0.0
  %62 = vmatpush1.msra.mxu0 0.0
  %63 = vmatprep.subr.mxu0 0.0
  %64 = vmatpush1.msra.mxu0 0.0
  %65 = vmatprep.subr.mxu0 0.0
  %66 = vmatpush1.msra.mxu0 0.0
  %67 = vmatprep.subr.mxu0 0.0
  %68 = vmatpush1.msra.mxu0 0.0
  %69 = vmatprep.subr.mxu0 0.0
  %70 = vmatpush1.msra.mxu0 0.0
  %71 = vmatprep.subr.mxu0 0.0
  %72 = vmatpush1.msra.mxu0 0.0
  %73 = vmatprep.subr.mxu0 0.0
  %74 = vmatpush1.msra.mxu0 0.0
  %75 = vmatprep.subr.mxu0 0.0
  %76 = vmatpush1.msra.mxu0 0.0
  %77 = vmatprep.subr.mxu0 0.0
  %78 = vmatpush1.msra.mxu0 0.0
  %79 = vmatprep.subr.mxu0 0.0
  %80 = vmatpush1.msra.mxu0 0.0
  %81 = vmatprep.subr.mxu0 0.0
  %82 = vmatpush1.msra.mxu0 0.0
  %83 = vmatprep.subr.mxu0 0.0
  %84 = vmatpush1.msra.mxu0 0.0
  %85 = vmatprep.subr.mxu0 0.0
  %86 = vmatpush1.msra.mxu0 0.0
  %87 = vmatprep.subr.mxu0 0.0
  %88 = vmatpush1.msra.mxu0 0.0
  %89 = vmatprep.subr.mxu0 0.0
  %90 = vmatpush1.msra.mxu0 0.0
  %91 = vmatprep.subr.mxu0 0.0
  %92 = vmatpush1.msra.mxu0 0.0
  %93 = vmatprep.subr.mxu0 0.0
  %94 = vmatpush1.msra.mxu0 0.0
  %95 = vmatprep.subr.mxu0 0.0
  %96 = vmatpush1.msra.mxu0 0.0
  %97 = vmatprep.subr.mxu0 0.0
  %98 = vmatpush1.msra.mxu0 0.0
  %99 = vmatprep.subr.mxu0 0.0
  %100 = vmatpush1.msra.mxu0 0.0
  %101 = vmatprep.subr.mxu0 0.0
  %102 = vmatpush1.msra.mxu0 0.0
  %103 = vmatprep.subr.mxu0 0.0
  %104 = vmatpush1.msra.mxu0 0.0
  %105 = vmatprep.subr.mxu0 0.0
  %106 = vmatpush1.msra.mxu0 0.0
  %107 = vmatprep.mubr.f32.mxu0 0.0
  %108 = vmatmul.mubr.f32.gmra.mrb[0].mxu0 %v38
  %v109 = vpop.f32.mrb[0].mxu0
  %v110 = vadd.f32 %v34, %v109
  %v111 = vpop.f32.mrb[0].mxu0
  %112 = vmatprep.mubr.f32.mxu0 0.0
  %113 = vmatmul.mubr.f32.gmra.mrb[0].mxu0 %v41
  %v114 = vpop.f32.mrb[0].mxu0
  %v115 = vadd.f32 %v34, %v114
  %v116 = vpop.f32.mrb[0].mxu0
  %117 = vdwg.mxu0
  %v118 = vld [vmem:[%s3] sm:$0xff]
  %v119 = vld [vmem:[%s3 + $0x8] sm:$0xff]
  %v120 = vadd.f32 %v110, %v118
  %v121 = vadd.f32 %v115, %v119
  %v122 = vld [vmem:[%s4] sm:$0x1]
  %v123 = vld [vmem:[%s5] sm:$0x1]
  %v124 = vsel %vm36, %v120, 0.0
  %125 = vadd.xlane.f32.xlu0 %v124
  %v126 = vpop.xlane.xlu0 %125
  %v127 = vsel %vm36, %v121, 0.0
  %128 = vadd.xlane.f32.xlu0 %v127
  %v129 = vpop.xlane.xlu0 %128
  %v130 = vrcp.pop 32.0
  %v131 = vmul.f32 %v126, %v130
  %v132 = vmul.f32 %v129, %v130
  %v133 = vsub.f32 %v120, %v131
  %v134 = vsub.f32 %v121, %v132
  %v135 = vmul.f32 %v133, %v133
  %v136 = vmul.f32 %v134, %v134
  %v137 = vsel %vm36, %v135, 0.0
  %138 = vadd.xlane.f32.xlu0 %v137
  %v139 = vpop.xlane.xlu0 %138
  %v140 = vsel %vm36, %v136, 0.0
  %141 = vadd.xlane.f32.xlu0 %v140
  %v142 = vpop.xlane.xlu0 %141
  %v143 = vmul.f32 %v139, %v130
  %v144 = vmul.f32 %v142, %v130
  %v145 = vadd.f32 %v143, 1e-12
  %v146 = vadd.f32 %v144, 1e-12
  %v147 = vrsqrt.pop %v145
  %v148 = vrsqrt.pop %v146
  %v149 = vmul.f32 %v133, %v147
  %v150 = vmul.f32 %v134, %v148
  %v152 = vlaneseq
  %v153 = vshrl.u32 %v152, 7
  %v154 = vsub.s32 0, %v153
  %v155 = vrot.slane %v122, %v154
  %v157 = vmul.f32 %v149, %v155
  %v158 = vmul.f32 %v150, %v155
  %v160 = vlaneseq
  %v161 = vshrl.u32 %v160, 7
  %v162 = vsub.s32 0, %v161
  %v163 = vrot.slane %v123, %v162
  %v165 = vadd.f32 %v157, %v163
  %v166 = vadd.f32 %v158, %v163
  %167 = vst.msk [vmem:[%s6] sm:$0xff] %vm36, %v165
  %168 = vst.msk [vmem:[%s6 + $0x8] sm:$0xff] %vm36, %v166
  // Predicated region
  $region26: #{_seq2seq_core.30} parent=0 // pred_check
    _
  $region27: #{_seq2seq_core.30} parent=0 // pred_check_branch
    %170 = sbr.rel (0) target = $region29
  $region28: #{_seq2seq_core.30} parent=0 // pred_region
    _
  $region29: #{_seq2seq_core.30} parent=0 // pred_fallthru
    _
  // Predicated region
  $region30: #{_seq2seq_core.30} parent=0 // pred_check
    _
  $region31: #{_seq2seq_core.30} parent=0 // pred_check_branch
    %172 = sbr.rel (0) target = $region33
  $region32: #{_seq2seq_core.30} parent=0 // pred_region
    _
  $region33: #{_seq2seq_core.30} parent=0 // pred_fallthru
    _

// kernel: _seq2seq_core.31
$region0: #{_seq2seq_core.31}
  #allocation0 [shape = 'u32[]', space=smem, size = 0x4, offset = 0x4, fixed_abs, tag = 'smem constant byte address 0x4 - core index']
  #allocation1 [shape = 'u32[144,128]{1,0:T(1,128)}', space=vmem, size = 0x12000, scoped, tag = 'internal scratch']
  %s0 = inlined_call_operand.vmem [shape: f32[16,32], index: 0, kind: input, shape index: {}]
  %s1 = inlined_call_operand.vmem [shape: f32[32,64], index: 1, kind: input, shape index: {}]
  %s2 = inlined_call_operand.vmem [shape: f32[1,64], index: 2, kind: input, shape index: {}]
  %s3 = inlined_call_operand.vmem [shape: f32[64,32], index: 3, kind: input, shape index: {}]
  %s4 = inlined_call_operand.vmem [shape: f32[1,32], index: 4, kind: input, shape index: {}]
  %s5 = inlined_call_operand.vmem [shape: f32[1,32], index: 5, kind: input, shape index: {}]
  %s6 = inlined_call_operand.vmem [shape: f32[1,32], index: 6, kind: input, shape index: {}]
  %s7 = inlined_call_operand.vmem [shape: f32[16,32], index: 7, kind: output, shape index: {}]
  %s8 = sld [smem:[#allocation0]]
  $region38: #{_seq2seq_core.31} parent=0
    _
  %s10 = ssub.s32 1, %s8
  %s11 = scalar_select 0, %s10, %s8
  // Predicated region
  $region2: #{_seq2seq_core.31} parent=0 // pred_check
    _
  $region3: #{_seq2seq_core.31} parent=0 // pred_check_branch
    %13 = sbr.rel (0) target = $region5
  $region4: #{_seq2seq_core.31} parent=0 // pred_region
    _
  $region5: #{_seq2seq_core.31} parent=0 // pred_fallthru
    _
  // Predicated region
  $region6: #{_seq2seq_core.31} parent=0 // pred_check
    _
  $region7: #{_seq2seq_core.31} parent=0 // pred_check_branch
    %15 = sbr.rel (0) target = $region9
  $region8: #{_seq2seq_core.31} parent=0 // pred_region
    _
  $region9: #{_seq2seq_core.31} parent=0 // pred_fallthru
    _
  // Predicated region
  $region10: #{_seq2seq_core.31} parent=0 // pred_check
    _
  $region11: #{_seq2seq_core.31} parent=0 // pred_check_branch
    %17 = sbr.rel (0) target = $region13
  $region12: #{_seq2seq_core.31} parent=0 // pred_region
    _
  $region13: #{_seq2seq_core.31} parent=0 // pred_fallthru
    _
  // Predicated region
  $region14: #{_seq2seq_core.31} parent=0 // pred_check
    _
  $region15: #{_seq2seq_core.31} parent=0 // pred_check_branch
    %19 = sbr.rel (0) target = $region17
  $region16: #{_seq2seq_core.31} parent=0 // pred_region
    _
  $region17: #{_seq2seq_core.31} parent=0 // pred_fallthru
    _
  // Predicated region
  $region18: #{_seq2seq_core.31} parent=0 // pred_check
    _
  $region19: #{_seq2seq_core.31} parent=0 // pred_check_branch
    %21 = sbr.rel (0) target = $region21
  $region20: #{_seq2seq_core.31} parent=0 // pred_region
    _
  $region21: #{_seq2seq_core.31} parent=0 // pred_fallthru
    _
  // Predicated region
  $region22: #{_seq2seq_core.31} parent=0 // pred_check
    _
  $region23: #{_seq2seq_core.31} parent=0 // pred_check_branch
    %23 = sbr.rel (0) target = $region25
  $region24: #{_seq2seq_core.31} parent=0 // pred_region
    _
  $region25: #{_seq2seq_core.31} parent=0 // pred_fallthru
    _
  // Predicated region
  $region26: #{_seq2seq_core.31} parent=0 // pred_check
    _
  $region27: #{_seq2seq_core.31} parent=0 // pred_check_branch
    %25 = sbr.rel (0) target = $region29
  $region28: #{_seq2seq_core.31} parent=0 // pred_region
    _
  $region29: #{_seq2seq_core.31} parent=0 // pred_fallthru
    _
  %v26 = vld [vmem:[%s0] sm:$0xff]
  %v27 = vld [vmem:[%s0 + $0x8] sm:$0xff]
  %v28 = vld [vmem:[%s1] sm:$0xff]
  %v29 = vld [vmem:[%s1 + $0x8] sm:$0xff]
  %v30 = vld [vmem:[%s1 + $0x10] sm:$0xff]
  %v31 = vld [vmem:[%s1 + $0x18] sm:$0xff]
  %v32 = vld [vmem:[%s2] sm:$0x1]
  %v34 = vlaneseq
  %v35 = vshrl.u32 %v34, 7
  %v36 = vsub.s32 0, %v35
  %v37 = vrot.slane %v32, %v36
  %vm39 = vcmask 261120
  %v41 = vsel %vm39, %v26, 0
  %v44 = vsel %vm39, %v27, 0
  %46 = vmatprep.subr.mxu0 0.0
  %47 = vmatpush1.msra.mxu0 %v28
  %48 = vmatprep.subr.mxu0 0.0
  %49 = vmatpush1.msra.mxu0 %v29
  %50 = vmatprep.subr.mxu0 0.0
  %51 = vmatpush1.msra.mxu0 %v30
  %52 = vmatprep.subr.mxu0 0.0
  %53 = vmatpush1.msra.mxu0 %v31
  %54 = vmatprep.subr.mxu0 0.0
  %55 = vmatpush1.msra.mxu0 0.0
  %56 = vmatprep.subr.mxu0 0.0
  %57 = vmatpush1.msra.mxu0 0.0
  %58 = vmatprep.subr.mxu0 0.0
  %59 = vmatpush1.msra.mxu0 0.0
  %60 = vmatprep.subr.mxu0 0.0
  %61 = vmatpush1.msra.mxu0 0.0
  %62 = vmatprep.subr.mxu0 0.0
  %63 = vmatpush1.msra.mxu0 0.0
  %64 = vmatprep.subr.mxu0 0.0
  %65 = vmatpush1.msra.mxu0 0.0
  %66 = vmatprep.subr.mxu0 0.0
  %67 = vmatpush1.msra.mxu0 0.0
  %68 = vmatprep.subr.mxu0 0.0
  %69 = vmatpush1.msra.mxu0 0.0
  %70 = vmatprep.subr.mxu0 0.0
  %71 = vmatpush1.msra.mxu0 0.0
  %72 = vmatprep.subr.mxu0 0.0
  %73 = vmatpush1.msra.mxu0 0.0
  %74 = vmatprep.subr.mxu0 0.0
  %75 = vmatpush1.msra.mxu0 0.0
  %76 = vmatprep.subr.mxu0 0.0
  %77 = vmatpush1.msra.mxu0 0.0
  %78 = vmatprep.subr.mxu0 0.0
  %79 = vmatpush1.msra.mxu0 0.0
  %80 = vmatprep.subr.mxu0 0.0
  %81 = vmatpush1.msra.mxu0 0.0
  %82 = vmatprep.subr.mxu0 0.0
  %83 = vmatpush1.msra.mxu0 0.0
  %84 = vmatprep.subr.mxu0 0.0
  %85 = vmatpush1.msra.mxu0 0.0
  %86 = vmatprep.subr.mxu0 0.0
  %87 = vmatpush1.msra.mxu0 0.0
  %88 = vmatprep.subr.mxu0 0.0
  %89 = vmatpush1.msra.mxu0 0.0
  %90 = vmatprep.subr.mxu0 0.0
  %91 = vmatpush1.msra.mxu0 0.0
  %92 = vmatprep.subr.mxu0 0.0
  %93 = vmatpush1.msra.mxu0 0.0
  %94 = vmatprep.subr.mxu0 0.0
  %95 = vmatpush1.msra.mxu0 0.0
  %96 = vmatprep.subr.mxu0 0.0
  %97 = vmatpush1.msra.mxu0 0.0
  %98 = vmatprep.subr.mxu0 0.0
  %99 = vmatpush1.msra.mxu0 0.0
  %100 = vmatprep.subr.mxu0 0.0
  %101 = vmatpush1.msra.mxu0 0.0
  %102 = vmatprep.subr.mxu0 0.0
  %103 = vmatpush1.msra.mxu0 0.0
  %104 = vmatprep.subr.mxu0 0.0
  %105 = vmatpush1.msra.mxu0 0.0
  %106 = vmatprep.subr.mxu0 0.0
  %107 = vmatpush1.msra.mxu0 0.0
  %108 = vmatprep.subr.mxu0 0.0
  %109 = vmatpush1.msra.mxu0 0.0
  %110 = vmatprep.mubr.f32.mxu0 0.0
  %111 = vmatmul.mubr.f32.gmra.mrb[0].mxu0 %v41
  %v112 = vpop.f32.mrb[0].mxu0
  %v113 = vadd.f32 %v37, %v112
  %v114 = vpop.f32.mrb[0].mxu0
  %115 = vmatprep.mubr.f32.mxu0 0.0
  %116 = vmatmul.mubr.f32.gmra.mrb[0].mxu0 %v44
  %v117 = vpop.f32.mrb[0].mxu0
  %v118 = vadd.f32 %v37, %v117
  %v119 = vpop.f32.mrb[0].mxu0
  %120 = vdwg.mxu0
  %v121 = vmul.f32 %v113, %v113
  %v122 = vmul.f32 %v118, %v118
  %v123 = vmul.f32 %v113, %v121
  %v124 = vmul.f32 %v118, %v122
  %v125 = vmul.f32 %v123, 0.044715
  %v126 = vmul.f32 %v124, 0.044715
  %v127 = vadd.f32 %v113, %v125
  %v128 = vadd.f32 %v118, %v126
  %v129 = vmul.f32 %v127, 0.7978846
  %v130 = vmul.f32 %v128, 0.7978846
  %v131 = vtanh.pop %v129
  %v132 = vtanh.pop %v130
  %v133 = vadd.f32 %v131, 1.0
  %v134 = vadd.f32 %v132, 1.0
  %v135 = vmul.f32 %v133, 0.5
  %v136 = vmul.f32 %v134, 0.5
  %v137 = vmul.f32 %v113, %v135
  %v138 = vmul.f32 %v118, %v136
  %v139 = vld [vmem:[%s3] sm:$0xff]
  %v140 = vld [vmem:[%s3 + $0x8] sm:$0xff]
  %v141 = vld [vmem:[%s3 + $0x10] sm:$0xff]
  %v142 = vld [vmem:[%s3 + $0x18] sm:$0xff]
  %v143 = vld [vmem:[%s3 + $0x20] sm:$0xff]
  %v144 = vld [vmem:[%s3 + $0x28] sm:$0xff]
  %v145 = vld [vmem:[%s3 + $0x30] sm:$0xff]
  %v146 = vld [vmem:[%s3 + $0x38] sm:$0xff]
  %v147 = vld [vmem:[%s4] sm:$0x1]
  %v149 = vlaneseq
  %v150 = vshrl.u32 %v149, 7
  %v151 = vsub.s32 0, %v150
  %v152 = vrot.slane %v147, %v151
  %vm154 = vcmask 523264
  %v156 = vsel %vm154, %v137, 0
  %v159 = vsel %vm154, %v138, 0
  %161 = vmatprep.subr.mxu0 0.0
  %162 = vmatpush1.msra.mxu0 %v139
  %163 = vmatprep.subr.mxu0 0.0
  %164 = vmatpush1.msra.mxu0 %v140
  %165 = vmatprep.subr.mxu0 0.0
  %166 = vmatpush1.msra.mxu0 %v141
  %167 = vmatprep.subr.mxu0 0.0
  %168 = vmatpush1.msra.mxu0 %v142
  %169 = vmatprep.subr.mxu0 0.0
  %170 = vmatpush1.msra.mxu0 %v143
  %171 = vmatprep.subr.mxu0 0.0
  %172 = vmatpush1.msra.mxu0 %v144
  %173 = vmatprep.subr.mxu0 0.0
  %174 = vmatpush1.msra.mxu0 %v145
  %175 = vmatprep.subr.mxu0 0.0
  %176 = vmatpush1.msra.mxu0 %v146
  %177 = vmatprep.subr.mxu0 0.0
  %178 = vmatpush1.msra.mxu0 0.0
  %179 = vmatprep.subr.mxu0 0.0
  %180 = vmatpush1.msra.mxu0 0.0
  %181 = vmatprep.subr.mxu0 0.0
  %182 = vmatpush1.msra.mxu0 0.0
  %183 = vmatprep.subr.mxu0 0.0
  %184 = vmatpush1.msra.mxu0 0.0
  %185 = vmatprep.subr.mxu0 0.0
  %186 = vmatpush1.msra.mxu0 0.0
  %187 = vmatprep.subr.mxu0 0.0
  %188 = vmatpush1.msra.mxu0 0.0
  %189 = vmatprep.subr.mxu0 0.0
  %190 = vmatpush1.msra.mxu0 0.0
  %191 = vmatprep.subr.mxu0 0.0
  %192 = vmatpush1.msra.mxu0 0.0
  %193 = vmatprep.subr.mxu0 0.0
  %194 = vmatpush1.msra.mxu0 0.0
  %195 = vmatprep.subr.mxu0 0.0
  %196 = vmatpush1.msra.mxu0 0.0
  %197 = vmatprep.subr.mxu0 0.0
  %198 = vmatpush1.msra.mxu0 0.0
  %199 = vmatprep.subr.mxu0 0.0
  %200 = vmatpush1.msra.mxu0 0.0
  %201 = vmatprep.subr.mxu0 0.0
  %202 = vmatpush1.msra.mxu0 0.0
  %203 = vmatprep.subr.mxu0 0.0
  %204 = vmatpush1.msra.mxu0 0.0
  %205 = vmatprep.subr.mxu0 0.0
  %206 = vmatpush1.msra.mxu0 0.0
  %207 = vmatprep.subr.mxu0 0.0
  %208 = vmatpush1.msra.mxu0 0.0
  %209 = vmatprep.subr.mxu0 0.0
  %210 = vmatpush1.msra.mxu0 0.0
  %211 = vmatprep.subr.mxu0 0.0
  %212 = vmatpush1.msra.mxu0 0.0
  %213 = vmatprep.subr.mxu0 0.0
  %214 = vmatpush1.msra.mxu0 0.0
  %215 = vmatprep.subr.mxu0 0.0
  %216 = vmatpush1.msra.mxu0 0.0
  %217 = vmatprep.subr.mxu0 0.0
  %218 = vmatpush1.msra.mxu0 0.0
  %219 = vmatprep.subr.mxu0 0.0
  %220 = vmatpush1.msra.mxu0 0.0
  %221 = vmatprep.subr.mxu0 0.0
  %222 = vmatpush1.msra.mxu0 0.0
  %223 = vmatprep.subr.mxu0 0.0
  %224 = vmatpush1.msra.mxu0 0.0
  %225 = vmatprep.mubr.f32.mxu0 0.0
  %226 = vmatmul.mubr.f32.gmra.mrb[0].mxu0 %v156
  %v227 = vpop.f32.mrb[0].mxu0
  %v228 = vadd.f32 %v152, %v227
  %v229 = vpop.f32.mrb[0].mxu0
  %230 = vmatprep.mubr.f32.mxu0 0.0
  %231 = vmatmul.mubr.f32.gmra.mrb[0].mxu0 %v159
  %v232 = vpop.f32.mrb[0].mxu0
  %v233 = vadd.f32 %v152, %v232
  %v234 = vpop.f32.mrb[0].mxu0
  %235 = vdwg.mxu0
  %v236 = vadd.f32 %v228, %v26
  %v237 = vadd.f32 %v233, %v27
  %v238 = vld [vmem:[%s5] sm:$0x1]
  %v239 = vld [vmem:[%s6] sm:$0x1]
  %v240 = vsel %vm39, %v236, 0.0
  %241 = vadd.xlane.f32.xlu0 %v240
  %v242 = vpop.xlane.xlu0 %241
  %v243 = vsel %vm39, %v237, 0.0
  %244 = vadd.xlane.f32.xlu0 %v243
  %v245 = vpop.xlane.xlu0 %244
  %v246 = vrcp.pop 32.0
  %v247 = vmul.f32 %v242, %v246
  %v248 = vmul.f32 %v245, %v246
  %v249 = vsub.f32 %v236, %v247
  %v250 = vsub.f32 %v237, %v248
  %v251 = vmul.f32 %v249, %v249
  %v252 = vmul.f32 %v250, %v250
  %v253 = vsel %vm39, %v251, 0.0
  %254 = vadd.xlane.f32.xlu0 %v253
  %v255 = vpop.xlane.xlu0 %254
  %v256 = vsel %vm39, %v252, 0.0
  %257 = vadd.xlane.f32.xlu0 %v256
  %v258 = vpop.xlane.xlu0 %257
  %v259 = vmul.f32 %v255, %v246
  %v260 = vmul.f32 %v258, %v246
  %v261 = vadd.f32 %v259, 1e-12
  %v262 = vadd.f32 %v260, 1e-12
  %v263 = vrsqrt.pop %v261
  %v264 = vrsqrt.pop %v262
  %v265 = vmul.f32 %v249, %v263
  %v266 = vmul.f32 %v250, %v264
  %v268 = vlaneseq
  %v269 = vshrl.u32 %v268, 7
  %v270 = vsub.s32 0, %v269
  %v271 = vrot.slane %v238, %v270
  %v273 = vmul.f32 %v265, %v271
  %v274 = vmul.f32 %v266, %v271
  %v276 = vlaneseq
  %v277 = vshrl.u32 %v276, 7
  %v278 = vsub.s32 0, %v277
  %v279 = vrot.slane %v239, %v278
  %v281 = vadd.f32 %v273, %v279
  %v282 = vadd.f32 %v274, %v279
  %283 = vst.msk [vmem:[%s7] sm:$0xff] %vm39, %v281
  %284 = vst.msk [vmem:[%s7 + $0x8] sm:$0xff] %vm39, %v282
  // Predicated region
  $region30: #{_seq2seq_core.31} parent=0 // pred_check
    _
  $region31: #{_seq2seq_core.31} parent=0 // pred_check_branch
    %286 = sbr.rel (0) target = $region33
  $region32: #{_seq2seq_core.31} parent=0 // pred_region
    _
  $region33: #{_seq2seq_core.31} parent=0 // pred_fallthru
    _
  // Predicated region
  $region34: #{_seq2seq_core.31} parent=0 // pred_check
    _
  $region35: #{_seq2seq_core.31} parent=0 // pred_check_branch
    %288 = sbr.rel (0) target = $region37
  $region36: #{_seq2seq_core.31} parent=0 // pred_region
    _
  $region37: #{_seq2seq_core.31} parent=0 // pred_fallthru
    _

// kernel: _seq2seq_core.41
$region0: #{_seq2seq_core.41}
  #allocation0 [shape = 'u32[]', space=smem, size = 0x4, offset = 0x4, fixed_abs, tag = 'smem constant byte address 0x4 - core index']
  #allocation1 [shape = 'u32[144,128]{1,0:T(1,128)}', space=vmem, size = 0x12000, scoped, tag = 'internal scratch']
  %s0 = inlined_call_operand.vmem [shape: f32[16,32], index: 0, kind: input, shape index: {}]
  %s1 = inlined_call_operand.vmem [shape: f32[32,64], index: 1, kind: input, shape index: {}]
  %s2 = inlined_call_operand.vmem [shape: f32[1,64], index: 2, kind: input, shape index: {}]
  %s3 = inlined_call_operand.vmem [shape: f32[16,64], index: 3, kind: output, shape index: {}]
  %s4 = sld [smem:[#allocation0]]
  $region22: #{_seq2seq_core.41} parent=0
    _
  %s6 = ssub.s32 1, %s4
  %s7 = scalar_select 0, %s6, %s4
  // Predicated region
  $region2: #{_seq2seq_core.41} parent=0 // pred_check
    _
  $region3: #{_seq2seq_core.41} parent=0 // pred_check_branch
    %9 = sbr.rel (0) target = $region5
  $region4: #{_seq2seq_core.41} parent=0 // pred_region
    _
  $region5: #{_seq2seq_core.41} parent=0 // pred_fallthru
    _
  // Predicated region
  $region6: #{_seq2seq_core.41} parent=0 // pred_check
    _
  $region7: #{_seq2seq_core.41} parent=0 // pred_check_branch
    %11 = sbr.rel (0) target = $region9
  $region8: #{_seq2seq_core.41} parent=0 // pred_region
    _
  $region9: #{_seq2seq_core.41} parent=0 // pred_fallthru
    _
  // Predicated region
  $region10: #{_seq2seq_core.41} parent=0 // pred_check
    _
  $region11: #{_seq2seq_core.41} parent=0 // pred_check_branch
    %13 = sbr.rel (0) target = $region13
  $region12: #{_seq2seq_core.41} parent=0 // pred_region
    _
  $region13: #{_seq2seq_core.41} parent=0 // pred_fallthru
    _
  %v14 = vld [vmem:[%s0] sm:$0xff]
  %v15 = vld [vmem:[%s0 + $0x8] sm:$0xff]
  %v16 = vld [vmem:[%s1] sm:$0xff]
  %v17 = vld [vmem:[%s1 + $0x8] sm:$0xff]
  %v18 = vld [vmem:[%s1 + $0x10] sm:$0xff]
  %v19 = vld [vmem:[%s1 + $0x18] sm:$0xff]
  %v20 = vld [vmem:[%s2] sm:$0x1]
  %v22 = vlaneseq
  %v23 = vshrl.u32 %v22, 7
  %v24 = vsub.s32 0, %v23
  %v25 = vrot.slane %v20, %v24
  %vm27 = vcmask 261120
  %v29 = vsel %vm27, %v14, 0
  %v32 = vsel %vm27, %v15, 0
  %34 = vmatprep.subr.mxu0 0.0
  %35 = vmatpush1.msra.mxu0 %v16
  %36 = vmatprep.subr.mxu0 0.0
  %37 = vmatpush1.msra.mxu0 %v17
  %38 = vmatprep.subr.mxu0 0.0
  %39 = vmatpush1.msra.mxu0 %v18
  %40 = vmatprep.subr.mxu0 0.0
  %41 = vmatpush1.msra.mxu0 %v19
  %42 = vmatprep.subr.mxu0 0.0
  %43 = vmatpush1.msra.mxu0 0.0
  %44 = vmatprep.subr.mxu0 0.0
  %45 = vmatpush1.msra.mxu0 0.0
  %46 = vmatprep.subr.mxu0 0.0
  %47 = vmatpush1.msra.mxu0 0.0
  %48 = vmatprep.subr.mxu0 0.0
  %49 = vmatpush1.msra.mxu0 0.0
  %50 = vmatprep.subr.mxu0 0.0
  %51 = vmatpush1.msra.mxu0 0.0
  %52 = vmatprep.subr.mxu0 0.0
  %53 = vmatpush1.msra.mxu0 0.0
  %54 = vmatprep.subr.mxu0 0.0
  %55 = vmatpush1.msra.mxu0 0.0
  %56 = vmatprep.subr.mxu0 0.0
  %57 = vmatpush1.msra.mxu0 0.0
  %58 = vmatprep.subr.mxu0 0.0
  %59 = vmatpush1.msra.mxu0 0.0
  %60 = vmatprep.subr.mxu0 0.0
  %61 = vmatpush1.msra.mxu0 0.0
  %62 = vmatprep.subr.mxu0 0.0
  %63 = vmatpush1.msra.mxu0 0.0
  %64 = vmatprep.subr.mxu0 0.0
  %65 = vmatpush1.msra.mxu0 0.0
  %66 = vmatprep.subr.mxu0 0.0
  %67 = vmatpush1.msra.mxu0 0.0
  %68 = vmatprep.subr.mxu0 0.0
  %69 = vmatpush1.msra.mxu0 0.0
  %70 = vmatprep.subr.mxu0 0.0
  %71 = vmatpush1.msra.mxu0 0.0
  %72 = vmatprep.subr.mxu0 0.0
  %73 = vmatpush1.msra.mxu0 0.0
  %74 = vmatprep.subr.mxu0 0.0
  %75 = vmatpush1.msra.mxu0 0.0
  %76 = vmatprep.subr.mxu0 0.0
  %77 = vmatpush1.msra.mxu0 0.0
  %78 = vmatprep.subr.mxu0 0.0
  %79 = vmatpush1.msra.mxu0 0.0
  %80 = vmatprep.subr.mxu0 0.0
  %81 = vmatpush1.msra.mxu0 0.0
  %82 = vmatprep.subr.mxu0 0.0
  %83 = vmatpush1.msra.mxu0 0.0
  %84 = vmatprep.subr.mxu0 0.0
  %85 = vmatpush1.msra.mxu0 0.0
  %86 = vmatprep.subr.mxu0 0.0
  %87 = vmatpush1.msra.mxu0 0.0
  %88 = vmatprep.subr.mxu0 0.0
  %89 = vmatpush1.msra.mxu0 0.0
  %90 = vmatprep.subr.mxu0 0.0
  %91 = vmatpush1.msra.mxu0 0.0
  %92 = vmatprep.subr.mxu0 0.0
  %93 = vmatpush1.msra.mxu0 0.0
  %94 = vmatprep.subr.mxu0 0.0
  %95 = vmatpush1.msra.mxu0 0.0
  %96 = vmatprep.subr.mxu0 0.0
  %97 = vmatpush1.msra.mxu0 0.0
  %98 = vmatprep.mubr.f32.mxu0 0.0
  %99 = vmatmul.mubr.f32.gmra.mrb[0].mxu0 %v29
  %v100 = vpop.f32.mrb[0].mxu0
  %v101 = vadd.f32 %v25, %v100
  %v102 = vpop.f32.mrb[0].mxu0
  %103 = vmatprep.mubr.f32.mxu0 0.0
  %104 = vmatmul.mubr.f32.gmra.mrb[0].mxu0 %v32
  %v105 = vpop.f32.mrb[0].mxu0
  %v106 = vadd.f32 %v25, %v105
  %v107 = vpop.f32.mrb[0].mxu0
  %108 = vdwg.mxu0
  %vm109 = vcmask 523264
  %110 = vst.msk [vmem:[%s3] sm:$0xff] %vm109, %v101
  %111 = vst.msk [vmem:[%s3 + $0x8] sm:$0xff] %vm109, %v106
  // Predicated region
  $region14: #{_seq2seq_core.41} parent=0 // pred_check
    _
  $region15: #{_seq2seq_core.41} parent=0 // pred_check_branch
    %113 = sbr.rel (0) target = $region17
  $region16: #{_seq2seq_core.41} parent=0 // pred_region
    _
  $region17: #{_seq2seq_core.41} parent=0 // pred_fallthru
    _
  // Predicated region
  $region18: #{_seq2seq_core.41} parent=0 // pred_check
    _
  $region19: #{_seq2seq_core.41} parent=0 // pred_check_branch
    %115 = sbr.rel (0) target = $region21
  $region20: #{_seq2seq_core.41} parent=0 // pred_region
    _
  $region21: #{_seq2seq_core.41} parent=0 // pred_fallthru
    _

// kernel: _seq2seq_core.29
$region0: #{_seq2seq_core.29}
  #allocation0 [shape = 'u32[]', space=smem, size = 0x4, offset = 0x4, fixed_abs, tag = 'smem constant byte address 0x4 - core index']
  #allocation1 [shape = 'u32[144,128]{1,0:T(1,128)}', space=vmem, size = 0x12000, scoped, tag = 'internal scratch']
  %s0 = inlined_call_operand.vmem [shape: f32[8,8,8], index: 0, kind: input, shape index: {}]
  %s1 = inlined_call_operand.vmem [shape: f32[8,8,8], index: 1, kind: input, shape index: {}]
  %s2 = inlined_call_operand.vmem [shape: f32[8,8,8], index: 2, kind: input, shape index: {}]
  %s3 = inlined_call_operand.vmem [shape: f32[8,1,8], index: 3, kind: input, shape index: {}]
  %s4 = inlined_call_operand.vmem [shape: f32[8,8,8], index: 4, kind: output, shape index: {}]
  %s5 = sld [smem:[#allocation0]]
  $region26: #{_seq2seq_core.29} parent=0
    _
  %s7 = ssub.s32 1, %s5
  %s8 = scalar_select 0, %s7, %s5
  // Predicated region
  $region2: #{_seq2seq_core.29} parent=0 // pred_check
    _
  $region3: #{_seq2seq_core.29} parent=0 // pred_check_branch
    %10 = sbr.rel (0) target = $region5
  $region4: #{_seq2seq_core.29} parent=0 // pred_region
    _
  $region5: #{_seq2seq_core.29} parent=0 // pred_fallthru
    _
  // Predicated region
  $region6: #{_seq2seq_core.29} parent=0 // pred_check
    _
  $region7: #{_seq2seq_core.29} parent=0 // pred_check_branch
    %12 = sbr.rel (0) target = $region9
  $region8: #{_seq2seq_core.29} parent=0 // pred_region
    _
  $region9: #{_seq2seq_core.29} parent=0 // pred_fallthru
    _
  // Predicated region
  $region10: #{_seq2seq_core.29} parent=0 // pred_check
    _
  $region11: #{_seq2seq_core.29} parent=0 // pred_check_branch
    %14 = sbr.rel (0) target = $region13
  $region12: #{_seq2seq_core.29} parent=0 // pred_region
    _
  $region13: #{_seq2seq_core.29} parent=0 // pred_fallthru
    _
  // Predicated region
  $region14: #{_seq2seq_core.29} parent=0 // pred_check
    _
  $region15: #{_seq2seq_core.29} parent=0 // pred_check_branch
    %16 = sbr.rel (0) target = $region17
  $region16: #{_seq2seq_core.29} parent=0 // pred_region
    _
  $region17: #{_seq2seq_core.29} parent=0 // pred_fallthru
    _
  %v17 = vld [vmem:[%s0] sm:$0xff]
  %v18 = vld [vmem:[%s0 + $0x8] sm:$0xff]
  %v19 = vld [vmem:[%s0 + $0x10] sm:$0xff]
  %v20 = vld [vmem:[%s0 + $0x18] sm:$0xff]
  %v21 = vld [vmem:[%s0 + $0x20] sm:$0xff]
  %v22 = vld [vmem:[%s0 + $0x28] sm:$0xff]
  %v23 = vld [vmem:[%s0 + $0x30] sm:$0xff]
  %v24 = vld [vmem:[%s0 + $0x38] sm:$0xff]
  %v25 = vld [vmem:[%s1] sm:$0xff]
  %v26 = vld [vmem:[%s1 + $0x8] sm:$0xff]
  %v27 = vld [vmem:[%s1 + $0x10] sm:$0xff]
  %v28 = vld [vmem:[%s1 + $0x18] sm:$0xff]
  %v29 = vld [vmem:[%s1 + $0x20] sm:$0xff]
  %v30 = vld [vmem:[%s1 + $0x28] sm:$0xff]
  %v31 = vld [vmem:[%s1 + $0x30] sm:$0xff]
  %v32 = vld [vmem:[%s1 + $0x38] sm:$0xff]
  %v33 = vld [vmem:[%s2] sm:$0xff]
  %v34 = vld [vmem:[%s2 + $0x8] sm:$0xff]
  %v35 = vld [vmem:[%s2 + $0x10] sm:$0xff]
  %v36 = vld [vmem:[%s2 + $0x18] sm:$0xff]
  %v37 = vld [vmem:[%s2 + $0x20] sm:$0xff]
  %v38 = vld [vmem:[%s2 + $0x28] sm:$0xff]
  %v39 = vld [vmem:[%s2 + $0x30] sm:$0xff]
  %v40 = vld [vmem:[%s2 + $0x38] sm:$0xff]
  %vm41 = vcmask 64512
  %v43 = vsel %vm41, %v17, 0
  %v46 = vsel %vm41, %v25, 0
  %48 = vmatprep.subr.mxu0 0.0
  %49 = vmatpush1.xpose.msra.mxu0 %v46
  %50 = vmatprep.subr.mxu0 0.0
  %51 = vmatpush1.xpose.msra.mxu0 0.0
  %52 = vmatprep.subr.mxu0 0.0
  %53 = vmatpush1.xpose.msra.mxu0 0.0
  %54 = vmatprep.subr.mxu0 0.0
  %55 = vmatpush1.xpose.msra.mxu0 0.0
  %56 = vmatprep.subr.mxu0 0.0
  %57 = vmatpush1.xpose.msra.mxu0 0.0
  %58 = vmatprep.subr.mxu0 0.0
  %59 = vmatpush1.xpose.msra.mxu0 0.0
  %60 = vmatprep.subr.mxu0 0.0
  %61 = vmatpush1.xpose.msra.mxu0 0.0
  %62 = vmatprep.subr.mxu0 0.0
  %63 = vmatpush1.xpose.msra.mxu0 0.0
  %64 = vmatprep.subr.mxu0 0.0
  %65 = vmatpush1.xpose.msra.mxu0 0.0
  %66 = vmatprep.subr.mxu0 0.0
  %67 = vmatpush1.xpose.msra.mxu0 0.0
  %68 = vmatprep.subr.mxu0 0.0
  %69 = vmatpush1.xpose.msra.mxu0 0.0
  %70 = vmatprep.subr.mxu0 0.0
  %71 = vmatpush1.xpose.msra.mxu0 0.0
  %72 = vmatprep.subr.mxu0 0.0
  %73 = vmatpush1.xpose.msra.mxu0 0.0
  %74 = vmatprep.subr.mxu0 0.0
  %75 = vmatpush1.xpose.msra.mxu0 0.0
  %76 = vmatprep.subr.mxu0 0.0
  %77 = vmatpush1.xpose.msra.mxu0 0.0
  %78 = vmatprep.subr.mxu0 0.0
  %79 = vmatpush1.xpose.msra.mxu0 0.0
  %80 = vmatprep.subr.mxu0 0.0
  %81 = vmatpush1.xpose.msra.mxu0 0.0
  %82 = vmatprep.subr.mxu0 0.0
  %83 = vmatpush1.xpose.msra.mxu0 0.0
  %84 = vmatprep.subr.mxu0 0.0
  %85 = vmatpush1.xpose.msra.mxu0 0.0
  %86 = vmatprep.subr.mxu0 0.0
  %87 = vmatpush1.xpose.msra.mxu0 0.0
  %88 = vmatprep.subr.mxu0 0.0
  %89 = vmatpush1.xpose.msra.mxu0 0.0
  %90 = vmatprep.subr.mxu0 0.0
  %91 = vmatpush1.xpose.msra.mxu0 0.0
  %92 = vmatprep.subr.mxu0 0.0
  %93 = vmatpush1.xpose.msra.mxu0 0.0
  %94 = vmatprep.subr.mxu0 0.0
  %95 = vmatpush1.xpose.msra.mxu0 0.0
  %96 = vmatprep.subr.mxu0 0.0
  %97 = vmatpush1.xpose.msra.mxu0 0.0
  %98 = vmatprep.subr.mxu0 0.0
  %99 = vmatpush1.xpose.msra.mxu0 0.0
  %100 = vmatprep.subr.mxu0 0.0
  %101 = vmatpush1.xpose.msra.mxu0 0.0
  %102 = vmatprep.subr.mxu0 0.0
  %103 = vmatpush1.xpose.msra.mxu0 0.0
  %104 = vmatprep.subr.mxu0 0.0
  %105 = vmatpush1.xpose.msra.mxu0 0.0
  %106 = vmatprep.subr.mxu0 0.0
  %107 = vmatpush1.xpose.msra.mxu0 0.0
  %108 = vmatprep.subr.mxu0 0.0
  %109 = vmatpush1.xpose.msra.mxu0 0.0
  %110 = vmatprep.subr.mxu0 0.0
  %111 = vmatpush1.xpose.msra.mxu0 0.0
  %112 = vmatprep.mubr.f32.mxu0 0.0
  %113 = vmatmul.mubr.f32.gmra.mrb[0].mxu0 %v43
  %v114 = vpop.f32.mrb[0].mxu0
  %v115 = vadd.f32 0.0, %v114
  %v116 = vpop.f32.mrb[0].mxu0
  %117 = vdwg.mxu0
  %v119 = vsel %vm41, %v18, 0
  %v122 = vsel %vm41, %v26, 0
  %124 = vmatprep.subr.mxu0 0.0
  %125 = vmatpush1.xpose.msra.mxu0 %v122
  %126 = vmatprep.subr.mxu0 0.0
  %127 = vmatpush1.xpose.msra.mxu0 0.0
  %128 = vmatprep.subr.mxu0 0.0
  %129 = vmatpush1.xpose.msra.mxu0 0.0
  %130 = vmatprep.subr.mxu0 0.0
  %131 = vmatpush1.xpose.msra.mxu0 0.0
  %132 = vmatprep.subr.mxu0 0.0
  %133 = vmatpush1.xpose.msra.mxu0 0.0
  %134 = vmatprep.subr.mxu0 0.0
  %135 = vmatpush1.xpose.msra.mxu0 0.0
  %136 = vmatprep.subr.mxu0 0.0
  %137 = vmatpush1.xpose.msra.mxu0 0.0
  %138 = vmatprep.subr.mxu0 0.0
  %139 = vmatpush1.xpose.msra.mxu0 0.0
  %140 = vmatprep.subr.mxu0 0.0
  %141 = vmatpush1.xpose.msra.mxu0 0.0
  %142 = vmatprep.subr.mxu0 0.0
  %143 = vmatpush1.xpose.msra.mxu0 0.0
  %144 = vmatprep.subr.mxu0 0.0
  %145 = vmatpush1.xpose.msra.mxu0 0.0
  %146 = vmatprep.subr.mxu0 0.0
  %147 = vmatpush1.xpose.msra.mxu0 0.0
  %148 = vmatprep.subr.mxu0 0.0
  %149 = vmatpush1.xpose.msra.mxu0 0.0
  %150 = vmatprep.subr.mxu0 0.0
  %151 = vmatpush1.xpose.msra.mxu0 0.0
  %152 = vmatprep.subr.mxu0 0.0
  %153 = vmatpush1.xpose.msra.mxu0 0.0
  %154 = vmatprep.subr.mxu0 0.0
  %155 = vmatpush1.xpose.msra.mxu0 0.0
  %156 = vmatprep.subr.mxu0 0.0
  %157 = vmatpush1.xpose.msra.mxu0 0.0
  %158 = vmatprep.subr.mxu0 0.0
  %159 = vmatpush1.xpose.msra.mxu0 0.0
  %160 = vmatprep.subr.mxu0 0.0
  %161 = vmatpush1.xpose.msra.mxu0 0.0
  %162 = vmatprep.subr.mxu0 0.0
  %163 = vmatpush1.xpose.msra.mxu0 0.0
  %164 = vmatprep.subr.mxu0 0.0
  %165 = vmatpush1.xpose.msra.mxu0 0.0
  %166 = vmatprep.subr.mxu0 0.0
  %167 = vmatpush1.xpose.msra.mxu0 0.0
  %168 = vmatprep.subr.mxu0 0.0
  %169 = vmatpush1.xpose.msra.mxu0 0.0
  %170 = vmatprep.subr.mxu0 0.0
  %171 = vmatpush1.xpose.msra.mxu0 0.0
  %172 = vmatprep.subr.mxu0 0.0
  %173 = vmatpush1.xpose.msra.mxu0 0.0
  %174 = vmatprep.subr.mxu0 0.0
  %175 = vmatpush1.xpose.msra.mxu0 0.0
  %176 = vmatprep.subr.mxu0 0.0
  %177 = vmatpush1.xpose.msra.mxu0 0.0
  %178 = vmatprep.subr.mxu0 0.0
  %179 = vmatpush1.xpose.msra.mxu0 0.0
  %180 = vmatprep.subr.mxu0 0.0
  %181 = vmatpush1.xpose.msra.mxu0 0.0
  %182 = vmatprep.subr.mxu0 0.0
  %183 = vmatpush1.xpose.msra.mxu0 0.0
  %184 = vmatprep.subr.mxu0 0.0
  %185 = vmatpush1.xpose.msra.mxu0 0.0
  %186 = vmatprep.subr.mxu0 0.0
  %187 = vmatpush1.xpose.msra.mxu0 0.0
  %188 = vmatprep.mubr.f32.mxu0 0.0
  %189 = vmatmul.mubr.f32.gmra.mrb[0].mxu0 %v119
  %v190 = vpop.f32.mrb[0].mxu0
  %v191 = vadd.f32 0.0, %v190
  %v192 = vpop.f32.mrb[0].mxu0
  %193 = vdwg.mxu0
  %v195 = vsel %vm41, %v19, 0
  %v198 = vsel %vm41, %v27, 0
  %200 = vmatprep.subr.mxu0 0.0
  %201 = vmatpush1.xpose.msra.mxu0 %v198
  %202 = vmatprep.subr.mxu0 0.0
  %203 = vmatpush1.xpose.msra.mxu0 0.0
  %204 = vmatprep.subr.mxu0 0.0
  %205 = vmatpush1.xpose.msra.mxu0 0.0
  %206 = vmatprep.subr.mxu0 0.0
  %207 = vmatpush1.xpose.msra.mxu0 0.0
  %208 = vmatprep.subr.mxu0 0.0
  %209 = vmatpush1.xpose.msra.mxu0 0.0
  %210 = vmatprep.subr.mxu0 0.0
  %211 = vmatpush1.xpose.msra.mxu0 0.0
  %212 = vmatprep.subr.mxu0 0.0
  %213 = vmatpush1.xpose.msra.mxu0 0.0
  %214 = vmatprep.subr.mxu0 0.0
  %215 = vmatpush1.xpose.msra.mxu0 0.0
  %216 = vmatprep.subr.mxu0 0.0
  %217 = vmatpush1.xpose.msra.mxu0 0.0
  %218 = vmatprep.subr.mxu0 0.0
  %219 = vmatpush1.xpose.msra.mxu0 0.0
  %220 = vmatprep.subr.mxu0 0.0
  %221 = vmatpush1.xpose.msra.mxu0 0.0
  %222 = vmatprep.subr.mxu0 0.0
  %223 = vmatpush1.xpose.msra.mxu0 0.0
  %224 = vmatprep.subr.mxu0 0.0
  %225 = vmatpush1.xpose.msra.mxu0 0.0
  %226 = vmatprep.subr.mxu0 0.0
  %227 = vmatpush1.xpose.msra.mxu0 0.0
  %228 = vmatprep.subr.mxu0 0.0
  %229 = vmatpush1.xpose.msra.mxu0 0.0
  %230 = vmatprep.subr.mxu0 0.0
  %231 = vmatpush1.xpose.msra.mxu0 0.0
  %232 = vmatprep.subr.mxu0 0.0
  %233 = vmatpush1.xpose.msra.mxu0 0.0
  %234 = vmatprep.subr.mxu0 0.0
  %235 = vmatpush1.xpose.msra.mxu0 0.0
  %236 = vmatprep.subr.mxu0 0.0
  %237 = vmatpush1.xpose.msra.mxu0 0.0
  %238 = vmatprep.subr.mxu0 0.0
  %239 = vmatpush1.xpose.msra.mxu0 0.0
  %240 = vmatprep.subr.mxu0 0.0
  %241 = vmatpush1.xpose.msra.mxu0 0.0
  %242 = vmatprep.subr.mxu0 0.0
  %243 = vmatpush1.xpose.msra.mxu0 0.0
  %244 = vmatprep.subr.mxu0 0.0
  %245 = vmatpush1.xpose.msra.mxu0 0.0
  %246 = vmatprep.subr.mxu0 0.0
  %247 = vmatpush1.xpose.msra.mxu0 0.0
  %248 = vmatprep.subr.mxu0 0.0
  %249 = vmatpush1.xpose.msra.mxu0 0.0
  %250 = vmatprep.subr.mxu0 0.0
  %251 = vmatpush1.xpose.msra.mxu0 0.0
  %252 = vmatprep.subr.mxu0 0.0
  %253 = vmatpush1.xpose.msra.mxu0 0.0
  %254 = vmatprep.subr.mxu0 0.0
  %255 = vmatpush1.xpose.msra.mxu0 0.0
  %256 = vmatprep.subr.mxu0 0.0
  %257 = vmatpush1.xpose.msra.mxu0 0.0
  %258 = vmatprep.subr.mxu0 0.0
  %259 = vmatpush1.xpose.msra.mxu0 0.0
  %260 = vmatprep.subr.mxu0 0.0
  %261 = vmatpush1.xpose.msra.mxu0 0.0
  %262 = vmatprep.subr.mxu0 0.0
  %263 = vmatpush1.xpose.msra.mxu0 0.0
  %264 = vmatprep.mubr.f32.mxu0 0.0
  %265 = vmatmul.mubr.f32.gmra.mrb[0].mxu0 %v195
  %v266 = vpop.f32.mrb[0].mxu0
  %v267 = vadd.f32 0.0, %v266
  %v268 = vpop.f32.mrb[0].mxu0
  %269 = vdwg.mxu0
  %v271 = vsel %vm41, %v20, 0
  %v274 = vsel %vm41, %v28, 0
  %276 = vmatprep.subr.mxu0 0.0
  %277 = vmatpush1.xpose.msra.mxu0 %v274
  %278 = vmatprep.subr.mxu0 0.0
  %279 = vmatpush1.xpose.msra.mxu0 0.0
  %280 = vmatprep.subr.mxu0 0.0
  %281 = vmatpush1.xpose.msra.mxu0 0.0
  %282 = vmatprep.subr.mxu0 0.0
  %283 = vmatpush1.xpose.msra.mxu0 0.0
  %284 = vmatprep.subr.mxu0 0.0
  %285 = vmatpush1.xpose.msra.mxu0 0.0
  %286 = vmatprep.subr.mxu0 0.0
  %287 = vmatpush1.xpose.msra.mxu0 0.0
  %288 = vmatprep.subr.mxu0 0.0
  %289 = vmatpush1.xpose.msra.mxu0 0.0
  %290 = vmatprep.subr.mxu0 0.0
  %291 = vmatpush1.xpose.msra.mxu0 0.0
  %292 = vmatprep.subr.mxu0 0.0
  %293 = vmatpush1.xpose.msra.mxu0 0.0
  %294 = vmatprep.subr.mxu0 0.0
  %295 = vmatpush1.xpose.msra.mxu0 0.0
  %296 = vmatprep.subr.mxu0 0.0
  %297 = vmatpush1.xpose.msra.mxu0 0.0
  %298 = vmatprep.subr.mxu0 0.0
  %299 = vmatpush1.xpose.msra.mxu0 0.0
  %300 = vmatprep.subr.mxu0 0.0
  %301 = vmatpush1.xpose.msra.mxu0 0.0
  %302 = vmatprep.subr.mxu0 0.0
  %303 = vmatpush1.xpose.msra.mxu0 0.0
  %304 = vmatprep.subr.mxu0 0.0
  %305 = vmatpush1.xpose.msra.mxu0 0.0
  %306 = vmatprep.subr.mxu0 0.0
  %307 = vmatpush1.xpose.msra.mxu0 0.0
  %308 = vmatprep.subr.mxu0 0.0
  %309 = vmatpush1.xpose.msra.mxu0 0.0
  %310 = vmatprep.subr.mxu0 0.0
  %311 = vmatpush1.xpose.msra.mxu0 0.0
  %312 = vmatprep.subr.mxu0 0.0
  %313 = vmatpush1.xpose.msra.mxu0 0.0
  %314 = vmatprep.subr.mxu0 0.0
  %315 = vmatpush1.xpose.msra.mxu0 0.0
  %316 = vmatprep.subr.mxu0 0.0
  %317 = vmatpush1.xpose.msra.mxu0 0.0
  %318 = vmatprep.subr.mxu0 0.0
  %319 = vmatpush1.xpose.msra.mxu0 0.0
  %320 = vmatprep.subr.mxu0 0.0
  %321 = vmatpush1.xpose.msra.mxu0 0.0
  %322 = vmatprep.subr.mxu0 0.0
  %323 = vmatpush1.xpose.msra.mxu0 0.0
  %324 = vmatprep.subr.mxu0 0.0
  %325 = vmatpush1.xpose.msra.mxu0 0.0
  %326 = vmatprep.subr.mxu0 0.0
  %327 = vmatpush1.xpose.msra.mxu0 0.0
  %328 = vmatprep.subr.mxu0 0.0
  %329 = vmatpush1.xpose.msra.mxu0 0.0
  %330 = vmatprep.subr.mxu0 0.0
  %331 = vmatpush1.xpose.msra.mxu0 0.0
  %332 = vmatprep.subr.mxu0 0.0
  %333 = vmatpush1.xpose.msra.mxu0 0.0
  %334 = vmatprep.subr.mxu0 0.0
  %335 = vmatpush1.xpose.msra.mxu0 0.0
  %336 = vmatprep.subr.mxu0 0.0
  %337 = vmatpush1.xpose.msra.mxu0 0.0
  %338 = vmatprep.subr.mxu0 0.0
  %339 = vmatpush1.xpose.msra.mxu0 0.0
  %340 = vmatprep.mubr.f32.mxu0 0.0
  %341 = vmatmul.mubr.f32.gmra.mrb[0].mxu0 %v271
  %v342 = vpop.f32.mrb[0].mxu0
  %v343 = vadd.f32 0.0, %v342
  %v344 = vpop.f32.mrb[0].mxu0
  %345 = vdwg.mxu0
  %v347 = vsel %vm41, %v21, 0
  %v350 = vsel %vm41, %v29, 0
  %352 = vmatprep.subr.mxu0 0.0
  %353 = vmatpush1.xpose.msra.mxu0 %v350
  %354 = vmatprep.subr.mxu0 0.0
  %355 = vmatpush1.xpose.msra.mxu0 0.0
  %356 = vmatprep.subr.mxu0 0.0
  %357 = vmatpush1.xpose.msra.mxu0 0.0
  %358 = vmatprep.subr.mxu0 0.0
  %359 = vmatpush1.xpose.msra.mxu0 0.0
  %360 = vmatprep.subr.mxu0 0.0
  %361 = vmatpush1.xpose.msra.mxu0 0.0
  %362 = vmatprep.subr.mxu0 0.0
  %363 = vmatpush1.xpose.msra.mxu0 0.0
  %364 = vmatprep.subr.mxu0 0.0
  %365 = vmatpush1.xpose.msra.mxu0 0.0
  %366 = vmatprep.subr.mxu0 0.0
  %367 = vmatpush1.xpose.msra.mxu0 0.0
  %368 = vmatprep.subr.mxu0 0.0
  %369 = vmatpush1.xpose.msra.mxu0 0.0
  %370 = vmatprep.subr.mxu0 0.0
  %371 = vmatpush1.xpose.msra.mxu0 0.0
  %372 = vmatprep.subr.mxu0 0.0
  %373 = vmatpush1.xpose.msra.mxu0 0.0
  %374 = vmatprep.subr.mxu0 0.0
  %375 = vmatpush1.xpose.msra.mxu0 0.0
  %376 = vmatprep.subr.mxu0 0.0
  %377 = vmatpush1.xpose.msra.mxu0 0.0
  %378 = vmatprep.subr.mxu0 0.0
  %379 = vmatpush1.xpose.msra.mxu0 0.0
  %380 = vmatprep.subr.mxu0 0.0
  %381 = vmatpush1.xpose.msra.mxu0 0.0
  %382 = vmatprep.subr.mxu0 0.0
  %383 = vmatpush1.xpose.msra.mxu0 0.0
  %384 = vmatprep.subr.mxu0 0.0
  %385 = vmatpush1.xpose.msra.mxu0 0.0
  %386 = vmatprep.subr.mxu0 0.0
  %387 = vmatpush1.xpose.msra.mxu0 0.0
  %388 = vmatprep.subr.mxu0 0.0
  %389 = vmatpush1.xpose.msra.mxu0 0.0
  %390 = vmatprep.subr.mxu0 0.0
  %391 = vmatpush1.xpose.msra.mxu0 0.0
  %392 = vmatprep.subr.mxu0 0.0
  %393 = vmatpush1.xpose.msra.mxu0 0.0
  %394 = vmatprep.subr.mxu0 0.0
  %395 = vmatpush1.xpose.msra.mxu0 0.0
  %396 = vmatprep.subr.mxu0 0.0
  %397 = vmatpush1.xpose.msra.mxu0 0.0
  %398 = vmatprep.subr.mxu0 0.0
  %399 = vmatpush1.xpose.msra.mxu0 0.0
  %400 = vmatprep.subr.mxu0 0.0
  %401 = vmatpush1.xpose.msra.mxu0 0.0
  %402 = vmatprep.subr.mxu0 0.0
  %403 = vmatpush1.xpose.msra.mxu0 0.0
  %404 = vmatprep.subr.mxu0 0.0
  %405 = vmatpush1.xpose.msra.mxu0 0.0
  %406 = vmatprep.subr.mxu0 0.0
  %407 = vmatpush1.xpose.msra.mxu0 0.0
  %408 = vmatprep.subr.mxu0 0.0
  %409 = vmatpush1.xpose.msra.mxu0 0.0
  %410 = vmatprep.subr.mxu0 0.0
  %411 = vmatpush1.xpose.msra.mxu0 0.0
  %412 = vmatprep.subr.mxu0 0.0
  %413 = vmatpush1.xpose.msra.mxu0 0.0
  %414 = vmatprep.subr.mxu0 0.0
  %415 = vmatpush1.xpose.msra.mxu0 0.0
  %416 = vmatprep.mubr.f32.mxu0 0.0
  %417 = vmatmul.mubr.f32.gmra.mrb[0].mxu0 %v347
  %v418 = vpop.f32.mrb[0].mxu0
  %v419 = vadd.f32 0.0, %v418
  %v420 = vpop.f32.mrb[0].mxu0
  %421 = vdwg.mxu0
  %v423 = vsel %vm41, %v22, 0
  %v426 = vsel %vm41, %v30, 0
  %428 = vmatprep.subr.mxu0 0.0
  %429 = vmatpush1.xpose.msra.mxu0 %v426
  %430 = vmatprep.subr.mxu0 0.0
  %431 = vmatpush1.xpose.msra.mxu0 0.0
  %432 = vmatprep.subr.mxu0 0.0
  %433 = vmatpush1.xpose.msra.mxu0 0.0
  %434 = vmatprep.subr.mxu0 0.0
  %435 = vmatpush1.xpose.msra.mxu0 0.0
  %436 = vmatprep.subr.mxu0 0.0
  %437 = vmatpush1.xpose.msra.mxu0 0.0
  %438 = vmatprep.subr.mxu0 0.0
  %439 = vmatpush1.xpose.msra.mxu0 0.0
  %440 = vmatprep.subr.mxu0 0.0
  %441 = vmatpush1.xpose.msra.mxu0 0.0
  %442 = vmatprep.subr.mxu0 0.0
  %443 = vmatpush1.xpose.msra.mxu0 0.0
  %444 = vmatprep.subr.mxu0 0.0
  %445 = vmatpush1.xpose.msra.mxu0 0.0
  %446 = vmatprep.subr.mxu0 0.0
  %447 = vmatpush1.xpose.msra.mxu0 0.0
  %448 = vmatprep.subr.mxu0 0.0
  %449 = vmatpush1.xpose.msra.mxu0 0.0
  %450 = vmatprep.subr.mxu0 0.0
  %451 = vmatpush1.xpose.msra.mxu0 0.0
  %452 = vmatprep.subr.mxu0 0.0
  %453 = vmatpush1.xpose.msra.mxu0 0.0
  %454 = vmatprep.subr.mxu0 0.0
  %455 = vmatpush1.xpose.msra.mxu0 0.0
  %456 = vmatprep.subr.mxu0 0.0
  %457 = vmatpush1.xpose.msra.mxu0 0.0
  %458 = vmatprep.subr.mxu0 0.0
  %459 = vmatpush1.xpose.msra.mxu0 0.0
  %460 = vmatprep.subr.mxu0 0.0
  %461 = vmatpush1.xpose.msra.mxu0 0.0
  %462 = vmatprep.subr.mxu0 0.0
  %463 = vmatpush1.xpose.msra.mxu0 0.0
  %464 = vmatprep.subr.mxu0 0.0
  %465 = vmatpush1.xpose.msra.mxu0 0.0
  %466 = vmatprep.subr.mxu0 0.0
  %467 = vmatpush1.xpose.msra.mxu0 0.0
  %468 = vmatprep.subr.mxu0 0.0
  %469 = vmatpush1.xpose.msra.mxu0 0.0
  %470 = vmatprep.subr.mxu0 0.0
  %471 = vmatpush1.xpose.msra.mxu0 0.0
  %472 = vmatprep.subr.mxu0 0.0
  %473 = vmatpush1.xpose.msra.mxu0 0.0
  %474 = vmatprep.subr.mxu0 0.0
  %475 = vmatpush1.xpose.msra.mxu0 0.0
  %476 = vmatprep.subr.mxu0 0.0
  %477 = vmatpush1.xpose.msra.mxu0 0.0
  %478 = vmatprep.subr.mxu0 0.0
  %479 = vmatpush1.xpose.msra.mxu0 0.0
  %480 = vmatprep.subr.mxu0 0.0
  %481 = vmatpush1.xpose.msra.mxu0 0.0
  %482 = vmatprep.subr.mxu0 0.0
  %483 = vmatpush1.xpose.msra.mxu0 0.0
  %484 = vmatprep.subr.mxu0 0.0
  %485 = vmatpush1.xpose.msra.mxu0 0.0
  %486 = vmatprep.subr.mxu0 0.0
  %487 = vmatpush1.xpose.msra.mxu0 0.0
  %488 = vmatprep.subr.mxu0 0.0
  %489 = vmatpush1.xpose.msra.mxu0 0.0
  %490 = vmatprep.subr.mxu0 0.0
  %491 = vmatpush1.xpose.msra.mxu0 0.0
  %492 = vmatprep.mubr.f32.mxu0 0.0
  %493 = vmatmul.mubr.f32.gmra.mrb[0].mxu0 %v423
  %v494 = vpop.f32.mrb[0].mxu0
  %v495 = vadd.f32 0.0, %v494
  %v496 = vpop.f32.mrb[0].mxu0
  %497 = vdwg.mxu0
  %v499 = vsel %vm41, %v23, 0
  %v502 = vsel %vm41, %v31, 0
  %504 = vmatprep.subr.mxu0 0.0
  %505 = vmatpush1.xpose.msra.mxu0 %v502
  %506 = vmatprep.subr.mxu0 0.0
  %507 = vmatpush1.xpose.msra.mxu0 0.0
  %508 = vmatprep.subr.mxu0 0.0
  %509 = vmatpush1.xpose.msra.mxu0 0.0
  %510 = vmatprep.subr.mxu0 0.0
  %511 = vmatpush1.xpose.msra.mxu0 0.0
  %512 = vmatprep.subr.mxu0 0.0
  %513 = vmatpush1.xpose.msra.mxu0 0.0
  %514 = vmatprep.subr.mxu0 0.0
  %515 = vmatpush1.xpose.msra.mxu0 0.0
  %516 = vmatprep.subr.mxu0 0.0
  %517 = vmatpush1.xpose.msra.mxu0 0.0
  %518 = vmatprep.subr.mxu0 0.0
  %519 = vmatpush1.xpose.msra.mxu0 0.0
  %520 = vmatprep.subr.mxu0 0.0
  %521 = vmatpush1.xpose.msra.mxu0 0.0
  %522 = vmatprep.subr.mxu0 0.0
  %523 = vmatpush1.xpose.msra.mxu0 0.0
  %524 = vmatprep.subr.mxu0 0.0
  %525 = vmatpush1.xpose.msra.mxu0 0.0
  %526 = vmatprep.subr.mxu0 0.0
  %527 = vmatpush1.xpose.msra.mxu0 0.0
  %528 = vmatprep.subr.mxu0 0.0
  %529 = vmatpush1.xpose.msra.mxu0 0.0
  %530 = vmatprep.subr.mxu0 0.0
  %531 = vmatpush1.xpose.msra.mxu0 0.0
  %532 = vmatprep.subr.mxu0 0.0
  %533 = vmatpush1.xpose.msra.mxu0 0.0
  %534 = vmatprep.subr.mxu0 0.0
  %535 = vmatpush1.xpose.msra.mxu0 0.0
  %536 = vmatprep.subr.mxu0 0.0
  %537 = vmatpush1.xpose.msra.mxu0 0.0
  %538 = vmatprep.subr.mxu0 0.0
  %539 = vmatpush1.xpose.msra.mxu0 0.0
  %540 = vmatprep.subr.mxu0 0.0
  %541 = vmatpush1.xpose.msra.mxu0 0.0
  %542 = vmatprep.subr.mxu0 0.0
  %543 = vmatpush1.xpose.msra.mxu0 0.0
  %544 = vmatprep.subr.mxu0 0.0
  %545 = vmatpush1.xpose.msra.mxu0 0.0
  %546 = vmatprep.subr.mxu0 0.0
  %547 = vmatpush1.xpose.msra.mxu0 0.0
  %548 = vmatprep.subr.mxu0 0.0
  %549 = vmatpush1.xpose.msra.mxu0 0.0
  %550 = vmatprep.subr.mxu0 0.0
  %551 = vmatpush1.xpose.msra.mxu0 0.0
  %552 = vmatprep.subr.mxu0 0.0
  %553 = vmatpush1.xpose.msra.mxu0 0.0
  %554 = vmatprep.subr.mxu0 0.0
  %555 = vmatpush1.xpose.msra.mxu0 0.0
  %556 = vmatprep.subr.mxu0 0.0
  %557 = vmatpush1.xpose.msra.mxu0 0.0
  %558 = vmatprep.subr.mxu0 0.0
  %559 = vmatpush1.xpose.msra.mxu0 0.0
  %560 = vmatprep.subr.mxu0 0.0
  %561 = vmatpush1.xpose.msra.mxu0 0.0
  %562 = vmatprep.subr.mxu0 0.0
  %563 = vmatpush1.xpose.msra.mxu0 0.0
  %564 = vmatprep.subr.mxu0 0.0
  %565 = vmatpush1.xpose.msra.mxu0 0.0
  %566 = vmatprep.subr.mxu0 0.0
  %567 = vmatpush1.xpose.msra.mxu0 0.0
  %568 = vmatprep.mubr.f32.mxu0 0.0
  %569 = vmatmul.mubr.f32.gmra.mrb[0].mxu0 %v499
  %v570 = vpop.f32.mrb[0].mxu0
  %v571 = vadd.f32 0.0, %v570
  %v572 = vpop.f32.mrb[0].mxu0
  %573 = vdwg.mxu0
  %v575 = vsel %vm41, %v24, 0
  %v578 = vsel %vm41, %v32, 0
  %580 = vmatprep.subr.mxu0 0.0
  %581 = vmatpush1.xpose.msra.mxu0 %v578
  %582 = vmatprep.subr.mxu0 0.0
  %583 = vmatpush1.xpose.msra.mxu0 0.0
  %584 = vmatprep.subr.mxu0 0.0
  %585 = vmatpush1.xpose.msra.mxu0 0.0
  %586 = vmatprep.subr.mxu0 0.0
  %587 = vmatpush1.xpose.msra.mxu0 0.0
  %588 = vmatprep.subr.mxu0 0.0
  %589 = vmatpush1.xpose.msra.mxu0 0.0
  %590 = vmatprep.subr.mxu0 0.0
  %591 = vmatpush1.xpose.msra.mxu0 0.0
  %592 = vmatprep.subr.mxu0 0.0
  %593 = vmatpush1.xpose.msra.mxu0 0.0
  %594 = vmatprep.subr.mxu0 0.0
  %595 = vmatpush1.xpose.msra.mxu0 0.0
  %596 = vmatprep.subr.mxu0 0.0
  %597 = vmatpush1.xpose.msra.mxu0 0.0
  %598 = vmatprep.subr.mxu0 0.0
  %599 = vmatpush1.xpose.msra.mxu0 0.0
  %600 = vmatprep.subr.mxu0 0.0
  %601 = vmatpush1.xpose.msra.mxu0 0.0
  %602 = vmatprep.subr.mxu0 0.0
  %603 = vmatpush1.xpose.msra.mxu0 0.0
  %604 = vmatprep.subr.mxu0 0.0
  %605 = vmatpush1.xpose.msra.mxu0 0.0
  %606 = vmatprep.subr.mxu0 0.0
  %607 = vmatpush1.xpose.msra.mxu0 0.0
  %608 = vmatprep.subr.mxu0 0.0
  %609 = vmatpush1.xpose.msra.mxu0 0.0
  %610 = vmatprep.subr.mxu0 0.0
  %611 = vmatpush1.xpose.msra.mxu0 0.0
  %612 = vmatprep.subr.mxu0 0.0
  %613 = vmatpush1.xpose.msra.mxu0 0.0
  %614 = vmatprep.subr.mxu0 0.0
  %615 = vmatpush1.xpose.msra.mxu0 0.0
  %616 = vmatprep.subr.mxu0 0.0
  %617 = vmatpush1.xpose.msra.mxu0 0.0
  %618 = vmatprep.subr.mxu0 0.0
  %619 = vmatpush1.xpose.msra.mxu0 0.0
  %620 = vmatprep.subr.mxu0 0.0
  %621 = vmatpush1.xpose.msra.mxu0 0.0
  %622 = vmatprep.subr.mxu0 0.0
  %623 = vmatpush1.xpose.msra.mxu0 0.0
  %624 = vmatprep.subr.mxu0 0.0
  %625 = vmatpush1.xpose.msra.mxu0 0.0
  %626 = vmatprep.subr.mxu0 0.0
  %627 = vmatpush1.xpose.msra.mxu0 0.0
  %628 = vmatprep.subr.mxu0 0.0
  %629 = vmatpush1.xpose.msra.mxu0 0.0
  %630 = vmatprep.subr.mxu0 0.0
  %631 = vmatpush1.xpose.msra.mxu0 0.0
  %632 = vmatprep.subr.mxu0 0.0
  %633 = vmatpush1.xpose.msra.mxu0 0.0
  %634 = vmatprep.subr.mxu0 0.0
  %635 = vmatpush1.xpose.msra.mxu0 0.0
  %636 = vmatprep.subr.mxu0 0.0
  %637 = vmatpush1.xpose.msra.mxu0 0.0
  %638 = vmatprep.subr.mxu0 0.0
  %639 = vmatpush1.xpose.msra.mxu0 0.0
  %640 = vmatprep.subr.mxu0 0.0
  %641 = vmatpush1.xpose.msra.mxu0 0.0
  %642 = vmatprep.subr.mxu0 0.0
  %643 = vmatpush1.xpose.msra.mxu0 0.0
  %644 = vmatprep.mubr.f32.mxu0 0.0
  %645 = vmatmul.mubr.f32.gmra.mrb[0].mxu0 %v575
  %v646 = vpop.f32.mrb[0].mxu0
  %v647 = vadd.f32 0.0, %v646
  %v648 = vpop.f32.mrb[0].mxu0
  %649 = vdwg.mxu0
  %v650 = vmul.f32 %v115, 0.35355338
  %v651 = vmul.f32 %v191, 0.35355338
  %v652 = vmul.f32 %v267, 0.35355338
  %v653 = vmul.f32 %v343, 0.35355338
  %v654 = vmul.f32 %v419, 0.35355338
  %v655 = vmul.f32 %v495, 0.35355338
  %v656 = vmul.f32 %v571, 0.35355338
  %v657 = vmul.f32 %v647, 0.35355338
  %v658 = vld [vmem:[%s3] sm:$0x1]
  %v659 = vld [vmem:[%s3 + $0x1] sm:$0x1]
  %v660 = vld [vmem:[%s3 + $0x2] sm:$0x1]
  %v661 = vld [vmem:[%s3 + $0x3] sm:$0x1]
  %v662 = vld [vmem:[%s3 + $0x4] sm:$0x1]
  %v663 = vld [vmem:[%s3 + $0x5] sm:$0x1]
  %v664 = vld [vmem:[%s3 + $0x6] sm:$0x1]
  %v665 = vld [vmem:[%s3 + $0x7] sm:$0x1]
  %v666 = vsub.f32 1.0, %v658
  %v667 = vsub.f32 1.0, %v659
  %v668 = vsub.f32 1.0, %v660
  %v669 = vsub.f32 1.0, %v661
  %v670 = vsub.f32 1.0, %v662
  %v671 = vsub.f32 1.0, %v663
  %v672 = vsub.f32 1.0, %v664
  %v673 = vsub.f32 1.0, %v665
  %v674 = vmul.f32 %v666, -10000.0
  %v675 = vmul.f32 %v667, -10000.0
  %v676 = vmul.f32 %v668, -10000.0
  %v677 = vmul.f32 %v669, -10000.0
  %v678 = vmul.f32 %v670, -10000.0
  %v679 = vmul.f32 %v671, -10000.0
  %v680 = vmul.f32 %v672, -10000.0
  %v681 = vmul.f32 %v673, -10000.0
  %v690 = vlaneseq
  %v691 = vshrl.u32 %v690, 7
  %v692 = vsub.s32 0, %v691
  %v693 = vrot.slane %v674, %v692
  %v694 = vlaneseq
  %v695 = vshrl.u32 %v694, 7
  %v696 = vsub.s32 0, %v695
  %v697 = vrot.slane %v675, %v696
  %v698 = vlaneseq
  %v699 = vshrl.u32 %v698, 7
  %v700 = vsub.s32 0, %v699
  %v701 = vrot.slane %v676, %v700
  %v702 = vlaneseq
  %v703 = vshrl.u32 %v702, 7
  %v704 = vsub.s32 0, %v703
  %v705 = vrot.slane %v677, %v704
  %v706 = vlaneseq
  %v707 = vshrl.u32 %v706, 7
  %v708 = vsub.s32 0, %v707
  %v709 = vrot.slane %v678, %v708
  %v710 = vlaneseq
  %v711 = vshrl.u32 %v710, 7
  %v712 = vsub.s32 0, %v711
  %v713 = vrot.slane %v679, %v712
  %v714 = vlaneseq
  %v715 = vshrl.u32 %v714, 7
  %v716 = vsub.s32 0, %v715
  %v717 = vrot.slane %v680, %v716
  %v718 = vlaneseq
  %v719 = vshrl.u32 %v718, 7
  %v720 = vsub.s32 0, %v719
  %v721 = vrot.slane %v681, %v720
  %v730 = vadd.f32 %v650, %v693
  %v731 = vadd.f32 %v651, %v697
  %v732 = vadd.f32 %v652, %v701
  %v733 = vadd.f32 %v653, %v705
  %v734 = vadd.f32 %v654, %v709
  %v735 = vadd.f32 %v655, %v713
  %v736 = vadd.f32 %v656, %v717
  %v737 = vadd.f32 %v657, %v721
  %v738 = vsel %vm41, %v730, -inf
  %739 = vmax.xlane.f32.xlu0 %v738
  %v740 = vpop.xlane.xlu0 %739
  %v741 = vsel %vm41, %v731, -inf
  %742 = vmax.xlane.f32.xlu0 %v741
  %v743 = vpop.xlane.xlu0 %742
  %v744 = vsel %vm41, %v732, -inf
  %745 = vmax.xlane.f32.xlu0 %v744
  %v746 = vpop.xlane.xlu0 %745
  %v747 = vsel %vm41, %v733, -inf
  %748 = vmax.xlane.f32.xlu0 %v747
  %v749 = vpop.xlane.xlu0 %748
  %v750 = vsel %vm41, %v734, -inf
  %751 = vmax.xlane.f32.xlu0 %v750
  %v752 = vpop.xlane.xlu0 %751
  %v753 = vsel %vm41, %v735, -inf
  %754 = vmax.xlane.f32.xlu0 %v753
  %v755 = vpop.xlane.xlu0 %754
  %v756 = vsel %vm41, %v736, -inf
  %757 = vmax.xlane.f32.xlu0 %v756
  %v758 = vpop.xlane.xlu0 %757
  %v759 = vsel %vm41, %v737, -inf
  %760 = vmax.xlane.f32.xlu0 %v759
  %v761 = vpop.xlane.xlu0 %760
  %v762 = vsub.f32 %v730, %v740
  %v763 = vsub.f32 %v731, %v743
  %v764 = vsub.f32 %v732, %v746
  %v765 = vsub.f32 %v733, %v749
  %v766 = vsub.f32 %v734, %v752
  %v767 = vsub.f32 %v735, %v755
  %v768 = vsub.f32 %v736, %v758
  %v769 = vsub.f32 %v737, %v761
  %v770 = vmul.f32 %v762, 1.442695
  %v771 = vpow.pop %v770
  %v772 = vmul.f32 %v763, 1.442695
  %v773 = vpow.pop %v772
  %v774 = vmul.f32 %v764, 1.442695
  %v775 = vpow.pop %v774
  %v776 = vmul.f32 %v765, 1.442695
  %v777 = vpow.pop %v776
  %v778 = vmul.f32 %v766, 1.442695
  %v779 = vpow.pop %v778
  %v780 = vmul.f32 %v767, 1.442695
  %v781 = vpow.pop %v780
  %v782 = vmul.f32 %v768, 1.442695
  %v783 = vpow.pop %v782
  %v784 = vmul.f32 %v769, 1.442695
  %v785 = vpow.pop %v784
  %v786 = vsel %vm41, %v771, 0.0
  %787 = vadd.xlane.f32.xlu0 %v786
  %v788 = vpop.xlane.xlu0 %787
  %v789 = vsel %vm41, %v773, 0.0
  %790 = vadd.xlane.f32.xlu0 %v789
  %v791 = vpop.xlane.xlu0 %790
  %v792 = vsel %vm41, %v775, 0.0
  %793 = vadd.xlane.f32.xlu0 %v792
  %v794 = vpop.xlane.xlu0 %793
  %v795 = vsel %vm41, %v777, 0.0
  %796 = vadd.xlane.f32.xlu0 %v795
  %v797 = vpop.xlane.xlu0 %796
  %v798 = vsel %vm41, %v779, 0.0
  %799 = vadd.xlane.f32.xlu0 %v798
  %v800 = vpop.xlane.xlu0 %799
  %v801 = vsel %vm41, %v781, 0.0
  %802 = vadd.xlane.f32.xlu0 %v801
  %v803 = vpop.xlane.xlu0 %802
  %v804 = vsel %vm41, %v783, 0.0
  %805 = vadd.xlane.f32.xlu0 %v804
  %v806 = vpop.xlane.xlu0 %805
  %v807 = vsel %vm41, %v785, 0.0
  %808 = vadd.xlane.f32.xlu0 %v807
  %v809 = vpop.xlane.xlu0 %808
  %v810 = vrcp.pop %v788
  %v811 = vrcp.pop %v791
  %v812 = vrcp.pop %v794
  %v813 = vrcp.pop %v797
  %v814 = vrcp.pop %v800
  %v815 = vrcp.pop %v803
  %v816 = vrcp.pop %v806
  %v817 = vrcp.pop %v809
  %v818 = vmul.f32 %v771, %v810
  %v819 = vmul.f32 %v773, %v811
  %v820 = vmul.f32 %v775, %v812
  %v821 = vmul.f32 %v777, %v813
  %v822 = vmul.f32 %v779, %v814
  %v823 = vmul.f32 %v781, %v815
  %v824 = vmul.f32 %v783, %v816
  %v825 = vmul.f32 %v785, %v817
  %v827 = vsel %vm41, %v818, 0
  %829 = vmatprep.subr.mxu0 0.0
  %830 = vmatpush1.msra.mxu0 %v33
  %831 = vmatprep.subr.mxu0 0.0
  %832 = vmatpush1.msra.mxu0 0.0
  %833 = vmatprep.subr.mxu0 0.0
  %834 = vmatpush1.msra.mxu0 0.0
  %835 = vmatprep.subr.mxu0 0.0
  %836 = vmatpush1.msra.mxu0 0.0
  %837 = vmatprep.subr.mxu0 0.0
  %838 = vmatpush1.msra.mxu0 0.0
  %839 = vmatprep.subr.mxu0 0.0
  %840 = vmatpush1.msra.mxu0 0.0
  %841 = vmatprep.subr.mxu0 0.0
  %842 = vmatpush1.msra.mxu0 0.0
  %843 = vmatprep.subr.mxu0 0.0
  %844 = vmatpush1.msra.mxu0 0.0
  %845 = vmatprep.subr.mxu0 0.0
  %846 = vmatpush1.msra.mxu0 0.0
  %847 = vmatprep.subr.mxu0 0.0
  %848 = vmatpush1.msra.mxu0 0.0
  %849 = vmatprep.subr.mxu0 0.0
  %850 = vmatpush1.msra.mxu0 0.0
  %851 = vmatprep.subr.mxu0 0.0
  %852 = vmatpush1.msra.mxu0 0.0
  %853 = vmatprep.subr.mxu0 0.0
  %854 = vmatpush1.msra.mxu0 0.0
  %855 = vmatprep.subr.mxu0 0.0
  %856 = vmatpush1.msra.mxu0 0.0
  %857 = vmatprep.subr.mxu0 0.0
  %858 = vmatpush1.msra.mxu0 0.0
  %859 = vmatprep.subr.mxu0 0.0
  %860 = vmatpush1.msra.mxu0 0.0
  %861 = vmatprep.subr.mxu0 0.0
  %862 = vmatpush1.msra.mxu0 0.0
  %863 = vmatprep.subr.mxu0 0.0
  %864 = vmatpush1.msra.mxu0 0.0
  %865 = vmatprep.subr.mxu0 0.0
  %866 = vmatpush1.msra.mxu0 0.0
  %867 = vmatprep.subr.mxu0 0.0
  %868 = vmatpush1.msra.mxu0 0.0
  %869 = vmatprep.subr.mxu0 0.0
  %870 = vmatpush1.msra.mxu0 0.0
  %871 = vmatprep.subr.mxu0 0.0
  %872 = vmatpush1.msra.mxu0 0.0
  %873 = vmatprep.subr.mxu0 0.0
  %874 = vmatpush1.msra.mxu0 0.0
  %875 = vmatprep.subr.mxu0 0.0
  %876 = vmatpush1.msra.mxu0 0.0
  %877 = vmatprep.subr.mxu0 0.0
  %878 = vmatpush1.msra.mxu0 0.0
  %879 = vmatprep.subr.mxu0 0.0
  %880 = vmatpush1.msra.mxu0 0.0
  %881 = vmatprep.subr.mxu0 0.0
  %882 = vmatpush1.msra.mxu0 0.0
  %883 = vmatprep.subr.mxu0 0.0
  %884 = vmatpush1.msra.mxu0 0.0
  %885 = vmatprep.subr.mxu0 0.0
  %886 = vmatpush1.msra.mxu0 0.0
  %887 = vmatprep.subr.mxu0 0.0
  %888 = vmatpush1.msra.mxu0 0.0
  %889 = vmatprep.subr.mxu0 0.0
  %890 = vmatpush1.msra.mxu0 0.0
  %891 = vmatprep.subr.mxu0 0.0
  %892 = vmatpush1.msra.mxu0 0.0
  %893 = vmatprep.mubr.f32.mxu0 0.0
  %894 = vmatmul.mubr.f32.gmra.mrb[0].mxu0 %v827
  %v895 = vpop.f32.mrb[0].mxu0
  %v896 = vadd.f32 0.0, %v895
  %v897 = vpop.f32.mrb[0].mxu0
  %898 = vdwg.mxu0
  %v900 = vsel %vm41, %v819, 0
  %902 = vmatprep.subr.mxu0 0.0
  %903 = vmatpush1.msra.mxu0 %v34
  %904 = vmatprep.subr.mxu0 0.0
  %905 = vmatpush1.msra.mxu0 0.0
  %906 = vmatprep.subr.mxu0 0.0
  %907 = vmatpush1.msra.mxu0 0.0
  %908 = vmatprep.subr.mxu0 0.0
  %909 = vmatpush1.msra.mxu0 0.0
  %910 = vmatprep.subr.mxu0 0.0
  %911 = vmatpush1.msra.mxu0 0.0
  %912 = vmatprep.subr.mxu0 0.0
  %913 = vmatpush1.msra.mxu0 0.0
  %914 = vmatprep.subr.mxu0 0.0
  %915 = vmatpush1.msra.mxu0 0.0
  %916 = vmatprep.subr.mxu0 0.0
  %917 = vmatpush1.msra.mxu0 0.0
  %918 = vmatprep.subr.mxu0 0.0
  %919 = vmatpush1.msra.mxu0 0.0
  %920 = vmatprep.subr.mxu0 0.0
  %921 = vmatpush1.msra.mxu0 0.0
  %922 = vmatprep.subr.mxu0 0.0
  %923 = vmatpush1.msra.mxu0 0.0
  %924 = vmatprep.subr.mxu0 0.0
  %925 = vmatpush1.msra.mxu0 0.0
  %926 = vmatprep.subr.mxu0 0.0
  %927 = vmatpush1.msra.mxu0 0.0
  %928 = vmatprep.subr.mxu0 0.0
  %929 = vmatpush1.msra.mxu0 0.0
  %930 = vmatprep.subr.mxu0 0.0
  %931 = vmatpush1.msra.mxu0 0.0
  %932 = vmatprep.subr.mxu0 0.0
  %933 = vmatpush1.msra.mxu0 0.0
  %934 = vmatprep.subr.mxu0 0.0
  %935 = vmatpush1.msra.mxu0 0.0
  %936 = vmatprep.subr.mxu0 0.0
  %937 = vmatpush1.msra.mxu0 0.0
  %938 = vmatprep.subr.mxu0 0.0
  %939 = vmatpush1.msra.mxu0 0.0
  %940 = vmatprep.subr.mxu0 0.0
  %941 = vmatpush1.msra.mxu0 0.0
  %942 = vmatprep.subr.mxu0 0.0
  %943 = vmatpush1.msra.mxu0 0.0
  %944 = vmatprep.subr.mxu0 0.0
  %945 = vmatpush1.msra.mxu0 0.0
  %946 = vmatprep.subr.mxu0 0.0
  %947 = vmatpush1.msra.mxu0 0.0
  %948 = vmatprep.subr.mxu0 0.0
  %949 = vmatpush1.msra.mxu0 0.0
  %950 = vmatprep.subr.mxu0 0.0
  %951 = vmatpush1.msra.mxu0 0.0
  %952 = vmatprep.subr.mxu0 0.0
  %953 = vmatpush1.msra.mxu0 0.0
  %954 = vmatprep.subr.mxu0 0.0
  %955 = vmatpush1.msra.mxu0 0.0
  %956 = vmatprep.subr.mxu0 0.0
  %957 = vmatpush1.msra.mxu0 0.0
  %958 = vmatprep.subr.mxu0 0.0
  %959 = vmatpush1.msra.mxu0 0.0
  %960 = vmatprep.subr.mxu0 0.0
  %961 = vmatpush1.msra.mxu0 0.0
  %962 = vmatprep.subr.mxu0 0.0
  %963 = vmatpush1.msra.mxu0 0.0
  %964 = vmatprep.subr.mxu0 0.0
  %965 = vmatpush1.msra.mxu0 0.0
  %966 = vmatprep.mubr.f32.mxu0 0.0
  %967 = vmatmul.mubr.f32.gmra.mrb[0].mxu0 %v900
  %v968 = vpop.f32.mrb[0].mxu0
  %v969 = vadd.f32 0.0, %v968
  %v970 = vpop.f32.mrb[0].mxu0
  %971 = vdwg.mxu0
  %v973 = vsel %vm41, %v820, 0
  %975 = vmatprep.subr.mxu0 0.0
  %976 = vmatpush1.msra.mxu0 %v35
  %977 = vmatprep.subr.mxu0 0.0
  %978 = vmatpush1.msra.mxu0 0.0
  %979 = vmatprep.subr.mxu0 0.0
  %980 = vmatpush1.msra.mxu0 0.0
  %981 = vmatprep.subr.mxu0 0.0
  %982 = vmatpush1.msra.mxu0 0.0
  %983 = vmatprep.subr.mxu0 0.0
  %984 = vmatpush1.msra.mxu0 0.0
  %985 = vmatprep.subr.mxu0 0.0
  %986 = vmatpush1.msra.mxu0 0.0
  %987 = vmatprep.subr.mxu0 0.0
  %988 = vmatpush1.msra.mxu0 0.0
  %989 = vmatprep.subr.mxu0 0.0
  %990 = vmatpush1.msra.mxu0 0.0
  %991 = vmatprep.subr.mxu0 0.0
  %992 = vmatpush1.msra.mxu0 0.0
  %993 = vmatprep.subr.mxu0 0.0
  %994 = vmatpush1.msra.mxu0 0.0
  %995 = vmatprep.subr.mxu0 0.0
  %996 = vmatpush1.msra.mxu0 0.0
  %997 = vmatprep.subr.mxu0 0.0
  %998 = vmatpush1.msra.mxu0 0.0
  %999 = vmatprep.subr.mxu0 0.0
  %1000 = vmatpush1.msra.mxu0 0.0
  %1001 = vmatprep.subr.mxu0 0.0
  %1002 = vmatpush1.msra.mxu0 0.0
  %1003 = vmatprep.subr.mxu0 0.0
  %1004 = vmatpush1.msra.mxu0 0.0
  %1005 = vmatprep.subr.mxu0 0.0
  %1006 = vmatpush1.msra.mxu0 0.0
  %1007 = vmatprep.subr.mxu0 0.0
  %1008 = vmatpush1.msra.mxu0 0.0
  %1009 = vmatprep.subr.mxu0 0.0
  %1010 = vmatpush1.msra.mxu0 0.0
  %1011 = vmatprep.subr.mxu0 0.0
  %1012 = vmatpush1.msra.mxu0 0.0
  %1013 = vmatprep.subr.mxu0 0.0
  %1014 = vmatpush1.msra.mxu0 0.0
  %1015 = vmatprep.subr.mxu0 0.0
  %1016 = vmatpush1.msra.mxu0 0.0
  %1017 = vmatprep.subr.mxu0 0.0
  %1018 = vmatpush1.msra.mxu0 0.0
  %1019 = vmatprep.subr.mxu0 0.0
  %1020 = vmatpush1.msra.mxu0 0.0
  %1021 = vmatprep.subr.mxu0 0.0
  %1022 = vmatpush1.msra.mxu0 0.0
  %1023 = vmatprep.subr.mxu0 0.0
  %1024 = vmatpush1.msra.mxu0 0.0
  %1025 = vmatprep.subr.mxu0 0.0
  %1026 = vmatpush1.msra.mxu0 0.0
  %1027 = vmatprep.subr.mxu0 0.0
  %1028 = vmatpush1.msra.mxu0 0.0
  %1029 = vmatprep.subr.mxu0 0.0
  %1030 = vmatpush1.msra.mxu0 0.0
  %1031 = vmatprep.subr.mxu0 0.0
  %1032 = vmatpush1.msra.mxu0 0.0
  %1033 = vmatprep.subr.mxu0 0.0
  %1034 = vmatpush1.msra.mxu0 0.0
  %1035 = vmatprep.subr.mxu0 0.0
  %1036 = vmatpush1.msra.mxu0 0.0
  %1037 = vmatprep.subr.mxu0 0.0
  %1038 = vmatpush1.msra.mxu0 0.0
  %1039 = vmatprep.mubr.f32.mxu0 0.0
  %1040 = vmatmul.mubr.f32.gmra.mrb[0].mxu0 %v973
  %v1041 = vpop.f32.mrb[0].mxu0
  %v1042 = vadd.f32 0.0, %v1041
  %v1043 = vpop.f32.mrb[0].mxu0
  %1044 = vdwg.mxu0
  %v1046 = vsel %vm41, %v821, 0
  %1048 = vmatprep.subr.mxu0 0.0
  %1049 = vmatpush1.msra.mxu0 %v36
  %1050 = vmatprep.subr.mxu0 0.0
  %1051 = vmatpush1.msra.mxu0 0.0
  %1052 = vmatprep.subr.mxu0 0.0
  %1053 = vmatpush1.msra.mxu0 0.0
  %1054 = vmatprep.subr.mxu0 0.0
  %1055 = vmatpush1.msra.mxu0 0.0
  %1056 = vmatprep.subr.mxu0 0.0
  %1057 = vmatpush1.msra.mxu0 0.0
  %1058 = vmatprep.subr.mxu0 0.0
  %1059 = vmatpush1.msra.mxu0 0.0
  %1060 = vmatprep.subr.mxu0 0.0
  %1061 = vmatpush1.msra.mxu0 0.0
  %1062 = vmatprep.subr.mxu0 0.0
  %1063 = vmatpush1.msra.mxu0 0.0
  %1064 = vmatprep.subr.mxu0 0.0
  %1065 = vmatpush1.msra.mxu0 0.0
  %1066 = vmatprep.subr.mxu0 0.0
  %1067 = vmatpush1.msra.mxu0 0.0
  %1068 = vmatprep.subr.mxu0 0.0
  %1069 = vmatpush1.msra.mxu0 0.0
  %1070 = vmatprep.subr.mxu0 0.0
  %1071 = vmatpush1.msra.mxu0 0.0
  %1072 = vmatprep.subr.mxu0 0.0
  %1073 = vmatpush1.msra.mxu0 0.0
  %1074 = vmatprep.subr.mxu0 0.0
  %1075 = vmatpush1.msra.mxu0 0.0
  %1076 = vmatprep.subr.mxu0 0.0
  %1077 = vmatpush1.msra.mxu0 0.0
  %1078 = vmatprep.subr.mxu0 0.0
  %1079 = vmatpush1.msra.mxu0 0.0
  %1080 = vmatprep.subr.mxu0 0.0
  %1081 = vmatpush1.msra.mxu0 0.0
  %1082 = vmatprep.subr.mxu0 0.0
  %1083 = vmatpush1.msra.mxu0 0.0
  %1084 = vmatprep.subr.mxu0 0.0
  %1085 = vmatpush1.msra.mxu0 0.0
  %1086 = vmatprep.subr.mxu0 0.0
  %1087 = vmatpush1.msra.mxu0 0.0
  %1088 = vmatprep.subr.mxu0 0.0
  %1089 = vmatpush1.msra.mxu0 0.0
  %1090 = vmatprep.subr.mxu0 0.0
  %1091 = vmatpush1.msra.mxu0 0.0
  %1092 = vmatprep.subr.mxu0 0.0
  %1093 = vmatpush1.msra.mxu0 0.0
  %1094 = vmatprep.subr.mxu0 0.0
  %1095 = vmatpush1.msra.mxu0 0.0
  %1096 = vmatprep.subr.mxu0 0.0
  %1097 = vmatpush1.msra.mxu0 0.0
  %1098 = vmatprep.subr.mxu0 0.0
  %1099 = vmatpush1.msra.mxu0 0.0
  %1100 = vmatprep.subr.mxu0 0.0
  %1101 = vmatpush1.msra.mxu0 0.0
  %1102 = vmatprep.subr.mxu0 0.0
  %1103 = vmatpush1.msra.mxu0 0.0
  %1104 = vmatprep.subr.mxu0 0.0
  %1105 = vmatpush1.msra.mxu0 0.0
  %1106 = vmatprep.subr.mxu0 0.0
  %1107 = vmatpush1.msra.mxu0 0.0
  %1108 = vmatprep.subr.mxu0 0.0
  %1109 = vmatpush1.msra.mxu0 0.0
  %1110 = vmatprep.subr.mxu0 0.0
  %1111 = vmatpush1.msra.mxu0 0.0
  %1112 = vmatprep.mubr.f32.mxu0 0.0
  %1113 = vmatmul.mubr.f32.gmra.mrb[0].mxu0 %v1046
  %v1114 = vpop.f32.mrb[0].mxu0
  %v1115 = vadd.f32 0.0, %v1114
  %v1116 = vpop.f32.mrb[0].mxu0
  %1117 = vdwg.mxu0
  %v1119 = vsel %vm41, %v822, 0
  %1121 = vmatprep.subr.mxu0 0.0
  %1122 = vmatpush1.msra.mxu0 %v37
  %1123 = vmatprep.subr.mxu0 0.0
  %1124 = vmatpush1.msra.mxu0 0.0
  %1125 = vmatprep.subr.mxu0 0.0
  %1126 = vmatpush1.msra.mxu0 0.0
  %1127 = vmatprep.subr.mxu0 0.0
  %1128 = vmatpush1.msra.mxu0 0.0
  %1129 = vmatprep.subr.mxu0 0.0
  %1130 = vmatpush1.msra.mxu0 0.0
  %1131 = vmatprep.subr.mxu0 0.0
  %1132 = vmatpush1.msra.mxu0 0.0
  %1133 = vmatprep.subr.mxu0 0.0
  %1134 = vmatpush1.msra.mxu0 0.0
  %1135 = vmatprep.subr.mxu0 0.0
  %1136 = vmatpush1.msra.mxu0 0.0
  %1137 = vmatprep.subr.mxu0 0.0
  %1138 = vmatpush1.msra.mxu0 0.0
  %1139 = vmatprep.subr.mxu0 0.0
  %1140 = vmatpush1.msra.mxu0 0.0
  %1141 = vmatprep.subr.mxu0 0.0
  %1142 = vmatpush1.msra.mxu0 0.0
  %1143 = vmatprep.subr.mxu0 0.0
  %1144 = vmatpush1.msra.mxu0 0.0
  %1145 = vmatprep.subr.mxu0 0.0
  %1146 = vmatpush1.msra.mxu0 0.0
  %1147 = vmatprep.subr.mxu0 0.0
  %1148 = vmatpush1.msra.mxu0 0.0
  %1149 = vmatprep.subr.mxu0 0.0
  %1150 = vmatpush1.msra.mxu0 0.0
  %1151 = vmatprep.subr.mxu0 0.0
  %1152 = vmatpush1.msra.mxu0 0.0
  %1153 = vmatprep.subr.mxu0 0.0
  %1154 = vmatpush1.msra.mxu0 0.0
  %1155 = vmatprep.subr.mxu0 0.0
  %1156 = vmatpush1.msra.mxu0 0.0
  %1157 = vmatprep.subr.mxu0 0.0
  %1158 = vmatpush1.msra.mxu0 0.0
  %1159 = vmatprep.subr.mxu0 0.0
  %1160 = vmatpush1.msra.mxu0 0.0
  %1161 = vmatprep.subr.mxu0 0.0
  %1162 = vmatpush1.msra.mxu0 0.0
  %1163 = vmatprep.subr.mxu0 0.0
  %1164 = vmatpush1.msra.mxu0 0.0
  %1165 = vmatprep.subr.mxu0 0.0
  %1166 = vmatpush1.msra.mxu0 0.0
  %1167 = vmatprep.subr.mxu0 0.0
  %1168 = vmatpush1.msra.mxu0 0.0
  %1169 = vmatprep.subr.mxu0 0.0
  %1170 = vmatpush1.msra.mxu0 0.0
  %1171 = vmatprep.subr.mxu0 0.0
  %1172 = vmatpush1.msra.mxu0 0.0
  %1173 = vmatprep.subr.mxu0 0.0
  %1174 = vmatpush1.msra.mxu0 0.0
  %1175 = vmatprep.subr.mxu0 0.0
  %1176 = vmatpush1.msra.mxu0 0.0
  %1177 = vmatprep.subr.mxu0 0.0
  %1178 = vmatpush1.msra.mxu0 0.0
  %1179 = vmatprep.subr.mxu0 0.0
  %1180 = vmatpush1.msra.mxu0 0.0
  %1181 = vmatprep.subr.mxu0 0.0
  %1182 = vmatpush1.msra.mxu0 0.0
  %1183 = vmatprep.subr.mxu0 0.0
  %1184 = vmatpush1.msra.mxu0 0.0
  %1185 = vmatprep.mubr.f32.mxu0 0.0
  %1186 = vmatmul.mubr.f32.gmra.mrb[0].mxu0 %v1119
  %v1187 = vpop.f32.mrb[0].mxu0
  %v1188 = vadd.f32 0.0, %v1187
  %v1189 = vpop.f32.mrb[0].mxu0
  %1190 = vdwg.mxu0
  %v1192 = vsel %vm41, %v823, 0
  %1194 = vmatprep.subr.mxu0 0.0
  %1195 = vmatpush1.msra.mxu0 %v38
  %1196 = vmatprep.subr.mxu0 0.0
  %1197 = vmatpush1.msra.mxu0 0.0
  %1198 = vmatprep.subr.mxu0 0.0
  %1199 = vmatpush1.msra.mxu0 0.0
  %1200 = vmatprep.subr.mxu0 0.0
  %1201 = vmatpush1.msra.mxu0 0.0
  %1202 = vmatprep.subr.mxu0 0.0
  %1203 = vmatpush1.msra.mxu0 0.0
  %1204 = vmatprep.subr.mxu0 0.0
  %1205 = vmatpush1.msra.mxu0 0.0
  %1206 = vmatprep.subr.mxu0 0.0
  %1207 = vmatpush1.msra.mxu0 0.0
  %1208 = vmatprep.subr.mxu0 0.0
  %1209 = vmatpush1.msra.mxu0 0.0
  %1210 = vmatprep.subr.mxu0 0.0
  %1211 = vmatpush1.msra.mxu0 0.0
  %1212 = vmatprep.subr.mxu0 0.0
  %1213 = vmatpush1.msra.mxu0 0.0
  %1214 = vmatprep.subr.mxu0 0.0
  %1215 = vmatpush1.msra.mxu0 0.0
  %1216 = vmatprep.subr.mxu0 0.0
  %1217 = vmatpush1.msra.mxu0 0.0
  %1218 = vmatprep.subr.mxu0 0.0
  %1219 = vmatpush1.msra.mxu0 0.0
  %1220 = vmatprep.subr.mxu0 0.0
  %1221 = vmatpush1.msra.mxu0 0.0
  %1222 = vmatprep.subr.mxu0 0.0
  %1223 = vmatpush1.msra.mxu0 0.0
  %1224 = vmatprep.subr.mxu0 0.0
  %1225 = vmatpush1.msra.mxu0 0.0
  %1226 = vmatprep.subr.mxu0 0.0
  %1227 = vmatpush1.msra.mxu0 0.0
  %1228 = vmatprep.subr.mxu0 0.0
  %1229 = vmatpush1.msra.mxu0 0.0
  %1230 = vmatprep.subr.mxu0 0.0
  %1231 = vmatpush1.msra.mxu0 0.0
  %1232 = vmatprep.subr.mxu0 0.0
  %1233 = vmatpush1.msra.mxu0 0.0
  %1234 = vmatprep.subr.mxu0 0.0
  %1235 = vmatpush1.msra.mxu0 0.0
  %1236 = vmatprep.subr.mxu0 0.0
  %1237 = vmatpush1.msra.mxu0 0.0
  %1238 = vmatprep.subr.mxu0 0.0
  %1239 = vmatpush1.msra.mxu0 0.0
  %1240 = vmatprep.subr.mxu0 0.0
  %1241 = vmatpush1.msra.mxu0 0.0
  %1242 = vmatprep.subr.mxu0 0.0
  %1243 = vmatpush1.msra.mxu0 0.0
  %1244 = vmatprep.subr.mxu0 0.0
  %1245 = vmatpush1.msra.mxu0 0.0
  %1246 = vmatprep.subr.mxu0 0.0
  %1247 = vmatpush1.msra.mxu0 0.0
  %1248 = vmatprep.subr.mxu0 0.0
  %1249 = vmatpush1.msra.mxu0 0.0
  %1250 = vmatprep.subr.mxu0 0.0
  %1251 = vmatpush1.msra.mxu0 0.0
  %1252 = vmatprep.subr.mxu0 0.0
  %1253 = vmatpush1.msra.mxu0 0.0
  %1254 = vmatprep.subr.mxu0 0.0
  %1255 = vmatpush1.msra.mxu0 0.0
  %1256 = vmatprep.subr.mxu0 0.0
  %1257 = vmatpush1.msra.mxu0 0.0
  %1258 = vmatprep.mubr.f32.mxu0 0.0
  %1259 = vmatmul.mubr.f32.gmra.mrb[0].mxu0 %v1192
  %v1260 = vpop.f32.mrb[0].mxu0
  %v1261 = vadd.f32 0.0, %v1260
  %v1262 = vpop.f32.mrb[0].mxu0
  %1263 = vdwg.mxu0
  %v1265 = vsel %vm41, %v824, 0
  %1267 = vmatprep.subr.mxu0 0.0
  %1268 = vmatpush1.msra.mxu0 %v39
  %1269 = vmatprep.subr.mxu0 0.0
  %1270 = vmatpush1.msra.mxu0 0.0
  %1271 = vmatprep.subr.mxu0 0.0
  %1272 = vmatpush1.msra.mxu0 0.0
  %1273 = vmatprep.subr.mxu0 0.0
  %1274 = vmatpush1.msra.mxu0 0.0
  %1275 = vmatprep.subr.mxu0 0.0
  %1276 = vmatpush1.msra.mxu0 0.0
  %1277 = vmatprep.subr.mxu0 0.0
  %1278 = vmatpush1.msra.mxu0 0.0
  %1279 = vmatprep.subr.mxu0 0.0
  %1280 = vmatpush1.msra.mxu0 0.0
  %1281 = vmatprep.subr.mxu0 0.0
  %1282 = vmatpush1.msra.mxu0 0.0
  %1283 = vmatprep.subr.mxu0 0.0
  %1284 = vmatpush1.msra.mxu0 0.0
  %1285 = vmatprep.subr.mxu0 0.0
  %1286 = vmatpush1.msra.mxu0 0.0
  %1287 = vmatprep.subr.mxu0 0.0
  %1288 = vmatpush1.msra.mxu0 0.0
  %1289 = vmatprep.subr.mxu0 0.0
  %1290 = vmatpush1.msra.mxu0 0.0
  %1291 = vmatprep.subr.mxu0 0.0
  %1292 = vmatpush1.msra.mxu0 0.0
  %1293 = vmatprep.subr.mxu0 0.0
  %1294 = vmatpush1.msra.mxu0 0.0
  %1295 = vmatprep.subr.mxu0 0.0
  %1296 = vmatpush1.msra.mxu0 0.0
  %1297 = vmatprep.subr.mxu0 0.0
  %1298 = vmatpush1.msra.mxu0 0.0
  %1299 = vmatprep.subr.mxu0 0.0
  %1300 = vmatpush1.msra.mxu0 0.0
  %1301 = vmatprep.subr.mxu0 0.0
  %1302 = vmatpush1.msra.mxu0 0.0
  %1303 = vmatprep.subr.mxu0 0.0
  %1304 = vmatpush1.msra.mxu0 0.0
  %1305 = vmatprep.subr.mxu0 0.0
  %1306 = vmatpush1.msra.mxu0 0.0
  %1307 = vmatprep.subr.mxu0 0.0
  %1308 = vmatpush1.msra.mxu0 0.0
  %1309 = vmatprep.subr.mxu0 0.0
  %1310 = vmatpush1.msra.mxu0 0.0
  %1311 = vmatprep.subr.mxu0 0.0
  %1312 = vmatpush1.msra.mxu0 0.0
  %1313 = vmatprep.subr.mxu0 0.0
  %1314 = vmatpush1.msra.mxu0 0.0
  %1315 = vmatprep.subr.mxu0 0.0
  %1316 = vmatpush1.msra.mxu0 0.0
  %1317 = vmatprep.subr.mxu0 0.0
  %1318 = vmatpush1.msra.mxu0 0.0
  %1319 = vmatprep.subr.mxu0 0.0
  %1320 = vmatpush1.msra.mxu0 0.0
  %1321 = vmatprep.subr.mxu0 0.0
  %1322 = vmatpush1.msra.mxu0 0.0
  %1323 = vmatprep.subr.mxu0 0.0
  %1324 = vmatpush1.msra.mxu0 0.0
  %1325 = vmatprep.subr.mxu0 0.0
  %1326 = vmatpush1.msra.mxu0 0.0
  %1327 = vmatprep.subr.mxu0 0.0
  %1328 = vmatpush1.msra.mxu0 0.0
  %1329 = vmatprep.subr.mxu0 0.0
  %1330 = vmatpush1.msra.mxu0 0.0
  %1331 = vmatprep.mubr.f32.mxu0 0.0
  %1332 = vmatmul.mubr.f32.gmra.mrb[0].mxu0 %v1265
  %v1333 = vpop.f32.mrb[0].mxu0
  %v1334 = vadd.f32 0.0, %v1333
  %v1335 = vpop.f32.mrb[0].mxu0
  %1336 = vdwg.mxu0
  %v1338 = vsel %vm41, %v825, 0
  %1340 = vmatprep.subr.mxu0 0.0
  %1341 = vmatpush1.msra.mxu0 %v40
  %1342 = vmatprep.subr.mxu0 0.0
  %1343 = vmatpush1.msra.mxu0 0.0
  %1344 = vmatprep.subr.mxu0 0.0
  %1345 = vmatpush1.msra.mxu0 0.0
  %1346 = vmatprep.subr.mxu0 0.0
  %1347 = vmatpush1.msra.mxu0 0.0
  %1348 = vmatprep.subr.mxu0 0.0
  %1349 = vmatpush1.msra.mxu0 0.0
  %1350 = vmatprep.subr.mxu0 0.0
  %1351 = vmatpush1.msra.mxu0 0.0
  %1352 = vmatprep.subr.mxu0 0.0
  %1353 = vmatpush1.msra.mxu0 0.0
  %1354 = vmatprep.subr.mxu0 0.0
  %1355 = vmatpush1.msra.mxu0 0.0
  %1356 = vmatprep.subr.mxu0 0.0
  %1357 = vmatpush1.msra.mxu0 0.0
  %1358 = vmatprep.subr.mxu0 0.0
  %1359 = vmatpush1.msra.mxu0 0.0
  %1360 = vmatprep.subr.mxu0 0.0
  %1361 = vmatpush1.msra.mxu0 0.0
  %1362 = vmatprep.subr.mxu0 0.0
  %1363 = vmatpush1.msra.mxu0 0.0
  %1364 = vmatprep.subr.mxu0 0.0
  %1365 = vmatpush1.msra.mxu0 0.0
  %1366 = vmatprep.subr.mxu0 0.0
  %1367 = vmatpush1.msra.mxu0 0.0
  %1368 = vmatprep.subr.mxu0 0.0
  %1369 = vmatpush1.msra.mxu0 0.0
  %1370 = vmatprep.subr.mxu0 0.0
  %1371 = vmatpush1.msra.mxu0 0.0
  %1372 = vmatprep.subr.mxu0 0.0
  %1373 = vmatpush1.msra.mxu0 0.0
  %1374 = vmatprep.subr.mxu0 0.0
  %1375 = vmatpush1.msra.mxu0 0.0
  %1376 = vmatprep.subr.mxu0 0.0
  %1377 = vmatpush1.msra.mxu0 0.0
  %1378 = vmatprep.subr.mxu0 0.0
  %1379 = vmatpush1.msra.mxu0 0.0
  %1380 = vmatprep.subr.mxu0 0.0
  %1381 = vmatpush1.msra.mxu0 0.0
  %1382 = vmatprep.subr.mxu0 0.0
  %1383 = vmatpush1.msra.mxu0 0.0
  %1384 = vmatprep.subr.mxu0 0.0
  %1385 = vmatpush1.msra.mxu0 0.0
  %1386 = vmatprep.subr.mxu0 0.0
  %1387 = vmatpush1.msra.mxu0 0.0
  %1388 = vmatprep.subr.mxu0 0.0
  %1389 = vmatpush1.msra.mxu0 0.0
  %1390 = vmatprep.subr.mxu0 0.0
  %1391 = vmatpush1.msra.mxu0 0.0
  %1392 = vmatprep.subr.mxu0 0.0
  %1393 = vmatpush1.msra.mxu0 0.0
  %1394 = vmatprep.subr.mxu0 0.0
  %1395 = vmatpush1.msra.mxu0 0.0
  %1396 = vmatprep.subr.mxu0 0.0
  %1397 = vmatpush1.msra.mxu0 0.0
  %1398 = vmatprep.subr.mxu0 0.0
  %1399 = vmatpush1.msra.mxu0 0.0
  %1400 = vmatprep.subr.mxu0 0.0
  %1401 = vmatpush1.msra.mxu0 0.0
  %1402 = vmatprep.subr.mxu0 0.0
  %1403 = vmatpush1.msra.mxu0 0.0
  %1404 = vmatprep.mubr.f32.mxu0 0.0
  %1405 = vmatmul.mubr.f32.gmra.mrb[0].mxu0 %v1338
  %v1406 = vpop.f32.mrb[0].mxu0
  %v1407 = vadd.f32 0.0, %v1406
  %v1408 = vpop.f32.mrb[0].mxu0
  %1409 = vdwg.mxu0
  %1410 = vst.msk [vmem:[%s4] sm:$0xff] %vm41, %v896
  %1411 = vst.msk [vmem:[%s4 + $0x8] sm:$0xff] %vm41, %v969
  %1412 = vst.msk [vmem:[%s4 + $0x10] sm:$0xff] %vm41, %v1042
  %1413 = vst.msk [vmem:[%s4 + $0x18] sm:$0xff] %vm41, %v1115
  %1414 = vst.msk [vmem:[%s4 + $0x20] sm:$0xff] %vm41, %v1188
  %1415 = vst.msk [vmem:[%s4 + $0x28] sm:$0xff] %vm41, %v1261
  %1416 = vst.msk [vmem:[%s4 + $0x30] sm:$0xff] %vm41, %v1334
  %1417 = vst.msk [vmem:[%s4 + $0x38] sm:$0xff] %vm41, %v1407
  // Predicated region
  $region18: #{_seq2seq_core.29} parent=0 // pred_check
    _
  $region19: #{_seq2seq_core.29} parent=0 // pred_check_branch
    %1419 = sbr.rel (0) target = $region21
  $region20: #{_seq2seq_core.29} parent=0 // pred_region
    _
  $region21: #{_seq2seq_core.29} parent=0 // pred_fallthru
    _
  // Predicated region
  $region22: #{_seq2seq_core.29} parent=0 // pred_check
    _
  $region23: #{_seq2seq_core.29} parent=0 // pred_check_branch
    %1421 = sbr.rel (0) target = $region25
  $region24: #{_seq2seq_core.29} parent=0 // pred_region
    _
  $region25: #{_seq2seq_core.29} parent=0 // pred_fallthru
    _

// kernel: _seq2seq_core.44
$region0: #{_seq2seq_core.44}
  #allocation0 [shape = 'u32[]', space=smem, size = 0x4, offset = 0x4, fixed_abs, tag = 'smem constant byte address 0x4 - core index']
  #allocation1 [shape = 'u32[144,128]{1,0:T(1,128)}', space=vmem, size = 0x12000, scoped, tag = 'internal scratch']
  %s0 = inlined_call_operand.vmem [shape: f32[14,32], index: 0, kind: input, shape index: {}]
  %s1 = inlined_call_operand.vmem [shape: f32[32,64], index: 1, kind: input, shape index: {}]
  %s2 = inlined_call_operand.vmem [shape: f32[1,64], index: 2, kind: input, shape index: {}]
  %s3 = inlined_call_operand.vmem [shape: f32[64,32], index: 3, kind: input, shape index: {}]
  %s4 = inlined_call_operand.vmem [shape: f32[1,32], index: 4, kind: input, shape index: {}]
  %s5 = inlined_call_operand.vmem [shape: f32[1,32], index: 5, kind: input, shape index: {}]
  %s6 = inlined_call_operand.vmem [shape: f32[1,32], index: 6, kind: input, shape index: {}]
  %s7 = inlined_call_operand.vmem [shape: f32[14,32], index: 7, kind: output, shape index: {}]
  %s8 = sld [smem:[#allocation0]]
  $region38: #{_seq2seq_core.44} parent=0
    _
  %s10 = ssub.s32 1, %s8
  %s11 = scalar_select 0, %s10, %s8
  // Predicated region
  $region2: #{_seq2seq_core.44} parent=0 // pred_check
    _
  $region3: #{_seq2seq_core.44} parent=0 // pred_check_branch
    %13 = sbr.rel (0) target = $region5
  $region4: #{_seq2seq_core.44} parent=0 // pred_region
    _
  $region5: #{_seq2seq_core.44} parent=0 // pred_fallthru
    _
  // Predicated region
  $region6: #{_seq2seq_core.44} parent=0 // pred_check
    _
  $region7: #{_seq2seq_core.44} parent=0 // pred_check_branch
    %15 = sbr.rel (0) target = $region9
  $region8: #{_seq2seq_core.44} parent=0 // pred_region
    _
  $region9: #{_seq2seq_core.44} parent=0 // pred_fallthru
    _
  // Predicated region
  $region10: #{_seq2seq_core.44} parent=0 // pred_check
    _
  $region11: #{_seq2seq_core.44} parent=0 // pred_check_branch
    %17 = sbr.rel (0) target = $region13
  $region12: #{_seq2seq_core.44} parent=0 // pred_region
    _
  $region13: #{_seq2seq_core.44} parent=0 // pred_fallthru
    _
  // Predicated region
  $region14: #{_seq2seq_core.44} parent=0 // pred_check
    _
  $region15: #{_seq2seq_core.44} parent=0 // pred_check_branch
    %19 = sbr.rel (0) target = $region17
  $region16: #{_seq2seq_core.44} parent=0 // pred_region
    _
  $region17: #{_seq2seq_core.44} parent=0 // pred_fallthru
    _
  // Predicated region
  $region18: #{_seq2seq_core.44} parent=0 // pred_check
    _
  $region19: #{_seq2seq_core.44} parent=0 // pred_check_branch
    %21 = sbr.rel (0) target = $region21
  $region20: #{_seq2seq_core.44} parent=0 // pred_region
    _
  $region21: #{_seq2seq_core.44} parent=0 // pred_fallthru
    _
  // Predicated region
  $region22: #{_seq2seq_core.44} parent=0 // pred_check
    _
  $region23: #{_seq2seq_core.44} parent=0 // pred_check_branch
    %23 = sbr.rel (0) target = $region25
  $region24: #{_seq2seq_core.44} parent=0 // pred_region
    _
  $region25: #{_seq2seq_core.44} parent=0 // pred_fallthru
    _
  // Predicated region
  $region26: #{_seq2seq_core.44} parent=0 // pred_check
    _
  $region27: #{_seq2seq_core.44} parent=0 // pred_check_branch
    %25 = sbr.rel (0) target = $region29
  $region28: #{_seq2seq_core.44} parent=0 // pred_region
    _
  $region29: #{_seq2seq_core.44} parent=0 // pred_fallthru
    _
  %v26 = vld [vmem:[%s0] sm:$0xff]
  %v27 = vld [vmem:[%s0 + $0x8] sm:$0x3f]
  %v28 = vld [vmem:[%s1] sm:$0xff]
  %v29 = vld [vmem:[%s1 + $0x8] sm:$0xff]
  %v30 = vld [vmem:[%s1 + $0x10] sm:$0xff]
  %v31 = vld [vmem:[%s1 + $0x18] sm:$0xff]
  %v32 = vld [vmem:[%s2] sm:$0x1]
  %v34 = vlaneseq
  %v35 = vshrl.u32 %v34, 7
  %v36 = vsub.s32 0, %v35
  %v37 = vrot.slane %v32, %v36
  %vm39 = vcmask 261120
  %v41 = vsel %vm39, %v26, 0
  %v44 = vsel %vm39, %v27, 0
  %46 = vmatprep.subr.mxu0 0.0
  %47 = vmatpush1.msra.mxu0 %v28
  %48 = vmatprep.subr.mxu0 0.0
  %49 = vmatpush1.msra.mxu0 %v29
  %50 = vmatprep.subr.mxu0 0.0
  %51 = vmatpush1.msra.mxu0 %v30
  %52 = vmatprep.subr.mxu0 0.0
  %53 = vmatpush1.msra.mxu0 %v31
  %54 = vmatprep.subr.mxu0 0.0
  %55 = vmatpush1.msra.mxu0 0.0
  %56 = vmatprep.subr.mxu0 0.0
  %57 = vmatpush1.msra.mxu0 0.0
  %58 = vmatprep.subr.mxu0 0.0
  %59 = vmatpush1.msra.mxu0 0.0
  %60 = vmatprep.subr.mxu0 0.0
  %61 = vmatpush1.msra.mxu0 0.0
  %62 = vmatprep.subr.mxu0 0.0
  %63 = vmatpush1.msra.mxu0 0.0
  %64 = vmatprep.subr.mxu0 0.0
  %65 = vmatpush1.msra.mxu0 0.0
  %66 = vmatprep.subr.mxu0 0.0
  %67 = vmatpush1.msra.mxu0 0.0
  %68 = vmatprep.subr.mxu0 0.0
  %69 = vmatpush1.msra.mxu0 0.0
  %70 = vmatprep.subr.mxu0 0.0
  %71 = vmatpush1.msra.mxu0 0.0
  %72 = vmatprep.subr.mxu0 0.0
  %73 = vmatpush1.msra.mxu0 0.0
  %74 = vmatprep.subr.mxu0 0.0
  %75 = vmatpush1.msra.mxu0 0.0
  %76 = vmatprep.subr.mxu0 0.0
  %77 = vmatpush1.msra.mxu0 0.0
  %78 = vmatprep.subr.mxu0 0.0
  %79 = vmatpush1.msra.mxu0 0.0
  %80 = vmatprep.subr.mxu0 0.0
  %81 = vmatpush1.msra.mxu0 0.0
  %82 = vmatprep.subr.mxu0 0.0
  %83 = vmatpush1.msra.mxu0 0.0
  %84 = vmatprep.subr.mxu0 0.0
  %85 = vmatpush1.msra.mxu0 0.0
  %86 = vmatprep.subr.mxu0 0.0
  %87 = vmatpush1.msra.mxu0 0.0
  %88 = vmatprep.subr.mxu0 0.0
  %89 = vmatpush1.msra.mxu0 0.0
  %90 = vmatprep.subr.mxu0 0.0
  %91 = vmatpush1.msra.mxu0 0.0
  %92 = vmatprep.subr.mxu0 0.0
  %93 = vmatpush1.msra.mxu0 0.0
  %94 = vmatprep.subr.mxu0 0.0
  %95 = vmatpush1.msra.mxu0 0.0
  %96 = vmatprep.subr.mxu0 0.0
  %97 = vmatpush1.msra.mxu0 0.0
  %98 = vmatprep.subr.mxu0 0.0
  %99 = vmatpush1.msra.mxu0 0.0
  %100 = vmatprep.subr.mxu0 0.0
  %101 = vmatpush1.msra.mxu0 0.0
  %102 = vmatprep.subr.mxu0 0.0
  %103 = vmatpush1.msra.mxu0 0.0
  %104 = vmatprep.subr.mxu0 0.0
  %105 = vmatpush1.msra.mxu0 0.0
  %106 = vmatprep.subr.mxu0 0.0
  %107 = vmatpush1.msra.mxu0 0.0
  %108 = vmatprep.subr.mxu0 0.0
  %109 = vmatpush1.msra.mxu0 0.0
  %110 = vmatprep.mubr.f32.mxu0 0.0
  %111 = vmatmul.mubr.f32.gmra.mrb[0].mxu0 %v41
  %v112 = vpop.f32.mrb[0].mxu0
  %v113 = vadd.f32 %v37, %v112
  %v114 = vpop.f32.mrb[0].mxu0
  %115 = vmatprep.mubr.f32.mxu0 0.0
  %116 = vmatmul.mubr.f32.gmra.mrb[0].mxu0 %v44
  %v117 = vpop.f32.mrb[0].mxu0
  %v118 = vadd.f32 %v37, %v117
  %v119 = vpop.f32.mrb[0].mxu0
  %120 = vdwg.mxu0
  %v121 = vmul.f32 %v113, %v113
  %v122 = vmul.f32 %v118, %v118
  %v123 = vmul.f32 %v113, %v121
  %v124 = vmul.f32 %v118, %v122
  %v125 = vmul.f32 %v123, 0.044715
  %v126 = vmul.f32 %v124, 0.044715
  %v127 = vadd.f32 %v113, %v125
  %v128 = vadd.f32 %v118, %v126
  %v129 = vmul.f32 %v127, 0.7978846
  %v130 = vmul.f32 %v128, 0.7978846
  %v131 = vtanh.pop %v129
  %v132 = vtanh.pop %v130
  %v133 = vadd.f32 %v131, 1.0
  %v134 = vadd.f32 %v132, 1.0
  %v135 = vmul.f32 %v133, 0.5
  %v136 = vmul.f32 %v134, 0.5
  %v137 = vmul.f32 %v113, %v135
  %v138 = vmul.f32 %v118, %v136
  %v139 = vld [vmem:[%s3] sm:$0xff]
  %v140 = vld [vmem:[%s3 + $0x8] sm:$0xff]
  %v141 = vld [vmem:[%s3 + $0x10] sm:$0xff]
  %v142 = vld [vmem:[%s3 + $0x18] sm:$0xff]
  %v143 = vld [vmem:[%s3 + $0x20] sm:$0xff]
  %v144 = vld [vmem:[%s3 + $0x28] sm:$0xff]
  %v145 = vld [vmem:[%s3 + $0x30] sm:$0xff]
  %v146 = vld [vmem:[%s3 + $0x38] sm:$0xff]
  %v147 = vld [vmem:[%s4] sm:$0x1]
  %v149 = vlaneseq
  %v150 = vshrl.u32 %v149, 7
  %v151 = vsub.s32 0, %v150
  %v152 = vrot.slane %v147, %v151
  %vm154 = vcmask 523264
  %v156 = vsel %vm154, %v137, 0
  %v159 = vsel %vm154, %v138, 0
  %161 = vmatprep.subr.mxu0 0.0
  %162 = vmatpush1.msra.mxu0 %v139
  %163 = vmatprep.subr.mxu0 0.0
  %164 = vmatpush1.msra.mxu0 %v140
  %165 = vmatprep.subr.mxu0 0.0
  %166 = vmatpush1.msra.mxu0 %v141
  %167 = vmatprep.subr.mxu0 0.0
  %168 = vmatpush1.msra.mxu0 %v142
  %169 = vmatprep.subr.mxu0 0.0
  %170 = vmatpush1.msra.mxu0 %v143
  %171 = vmatprep.subr.mxu0 0.0
  %172 = vmatpush1.msra.mxu0 %v144
  %173 = vmatprep.subr.mxu0 0.0
  %174 = vmatpush1.msra.mxu0 %v145
  %175 = vmatprep.subr.mxu0 0.0
  %176 = vmatpush1.msra.mxu0 %v146
  %177 = vmatprep.subr.mxu0 0.0
  %178 = vmatpush1.msra.mxu0 0.0
  %179 = vmatprep.subr.mxu0 0.0
  %180 = vmatpush1.msra.mxu0 0.0
  %181 = vmatprep.subr.mxu0 0.0
  %182 = vmatpush1.msra.mxu0 0.0
  %183 = vmatprep.subr.mxu0 0.0
  %184 = vmatpush1.msra.mxu0 0.0
  %185 = vmatprep.subr.mxu0 0.0
  %186 = vmatpush1.msra.mxu0 0.0
  %187 = vmatprep.subr.mxu0 0.0
  %188 = vmatpush1.msra.mxu0 0.0
  %189 = vmatprep.subr.mxu0 0.0
  %190 = vmatpush1.msra.mxu0 0.0
  %191 = vmatprep.subr.mxu0 0.0
  %192 = vmatpush1.msra.mxu0 0.0
  %193 = vmatprep.subr.mxu0 0.0
  %194 = vmatpush1.msra.mxu0 0.0
  %195 = vmatprep.subr.mxu0 0.0
  %196 = vmatpush1.msra.mxu0 0.0
  %197 = vmatprep.subr.mxu0 0.0
  %198 = vmatpush1.msra.mxu0 0.0
  %199 = vmatprep.subr.mxu0 0.0
  %200 = vmatpush1.msra.mxu0 0.0
  %201 = vmatprep.subr.mxu0 0.0
  %202 = vmatpush1.msra.mxu0 0.0
  %203 = vmatprep.subr.mxu0 0.0
  %204 = vmatpush1.msra.mxu0 0.0
  %205 = vmatprep.subr.mxu0 0.0
  %206 = vmatpush1.msra.mxu0 0.0
  %207 = vmatprep.subr.mxu0 0.0
  %208 = vmatpush1.msra.mxu0 0.0
  %209 = vmatprep.subr.mxu0 0.0
  %210 = vmatpush1.msra.mxu0 0.0
  %211 = vmatprep.subr.mxu0 0.0
  %212 = vmatpush1.msra.mxu0 0.0
  %213 = vmatprep.subr.mxu0 0.0
  %214 = vmatpush1.msra.mxu0 0.0
  %215 = vmatprep.subr.mxu0 0.0
  %216 = vmatpush1.msra.mxu0 0.0
  %217 = vmatprep.subr.mxu0 0.0
  %218 = vmatpush1.msra.mxu0 0.0
  %219 = vmatprep.subr.mxu0 0.0
  %220 = vmatpush1.msra.mxu0 0.0
  %221 = vmatprep.subr.mxu0 0.0
  %222 = vmatpush1.msra.mxu0 0.0
  %223 = vmatprep.subr.mxu0 0.0
  %224 = vmatpush1.msra.mxu0 0.0
  %225 = vmatprep.mubr.f32.mxu0 0.0
  %226 = vmatmul.mubr.f32.gmra.mrb[0].mxu0 %v156
  %v227 = vpop.f32.mrb[0].mxu0
  %v228 = vadd.f32 %v152, %v227
  %v229 = vpop.f32.mrb[0].mxu0
  %230 = vmatprep.mubr.f32.mxu0 0.0
  %231 = vmatmul.mubr.f32.gmra.mrb[0].mxu0 %v159
  %v232 = vpop.f32.mrb[0].mxu0
  %v233 = vadd.f32 %v152, %v232
  %v234 = vpop.f32.mrb[0].mxu0
  %235 = vdwg.mxu0
  %v236 = vadd.f32 %v228, %v26
  %v237 = vadd.f32 %v233, %v27
  %v238 = vld [vmem:[%s5] sm:$0x1]
  %v239 = vld [vmem:[%s6] sm:$0x1]
  %v240 = vsel %vm39, %v236, 0.0
  %241 = vadd.xlane.f32.xlu0 %v240
  %v242 = vpop.xlane.xlu0 %241
  %vm243 = vcmask 259072
  %v244 = vsel %vm243, %v237, 0.0
  %245 = vadd.xlane.f32.xlu0 %v244
  %v246 = vpop.xlane.xlu0 %245
  %v247 = vrcp.pop 32.0
  %v248 = vmul.f32 %v242, %v247
  %v249 = vmul.f32 %v246, %v247
  %v250 = vsub.f32 %v236, %v248
  %v251 = vsub.f32 %v237, %v249
  %v252 = vmul.f32 %v250, %v250
  %v253 = vmul.f32 %v251, %v251
  %v254 = vsel %vm39, %v252, 0.0
  %255 = vadd.xlane.f32.xlu0 %v254
  %v256 = vpop.xlane.xlu0 %255
  %v257 = vsel %vm243, %v253, 0.0
  %258 = vadd.xlane.f32.xlu0 %v257
  %v259 = vpop.xlane.xlu0 %258
  %v260 = vmul.f32 %v256, %v247
  %v261 = vmul.f32 %v259, %v247
  %v262 = vadd.f32 %v260, 1e-12
  %v263 = vadd.f32 %v261, 1e-12
  %v264 = vrsqrt.pop %v262
  %v265 = vrsqrt.pop %v263
  %v266 = vmul.f32 %v250, %v264
  %v267 = vmul.f32 %v251, %v265
  %v269 = vlaneseq
  %v270 = vshrl.u32 %v269, 7
  %v271 = vsub.s32 0, %v270
  %v272 = vrot.slane %v238, %v271
  %v274 = vmul.f32 %v266, %v272
  %v275 = vmul.f32 %v267, %v272
  %v277 = vlaneseq
  %v278 = vshrl.u32 %v277, 7
  %v279 = vsub.s32 0, %v278
  %v280 = vrot.slane %v239, %v279
  %v282 = vadd.f32 %v274, %v280
  %v283 = vadd.f32 %v275, %v280
  %284 = vst.msk [vmem:[%s7] sm:$0xff] %vm39, %v282
  %285 = vst.msk [vmem:[%s7 + $0x8] sm:$0x3f] %vm243, %v283
  // Predicated region
  $region30: #{_seq2seq_core.44} parent=0 // pred_check
    _
  $region31: #{_seq2seq_core.44} parent=0 // pred_check_branch
    %287 = sbr.rel (0) target = $region33
  $region32: #{_seq2seq_core.44} parent=0 // pred_region
    _
  $region33: #{_seq2seq_core.44} parent=0 // pred_fallthru
    _
  // Predicated region
  $region34: #{_seq2seq_core.44} parent=0 // pred_check
    _
  $region35: #{_seq2seq_core.44} parent=0 // pred_check_branch
    %289 = sbr.rel (0) target = $region37
  $region36: #{_seq2seq_core.44} parent=0 // pred_region
    _
  $region37: #{_seq2seq_core.44} parent=0 // pred_fallthru
    _

// kernel: _seq2seq_core.53
$region0: #{_seq2seq_core.53}
  #allocation0 [shape = 'u32[]', space=smem, size = 0x4, offset = 0x4, fixed_abs, tag = 'smem constant byte address 0x4 - core index']
  #allocation1 [shape = 'u32[144,128]{1,0:T(1,128)}', space=vmem, size = 0x12000, scoped, tag = 'internal scratch']
  %s0 = inlined_call_operand.vmem [shape: f32[14,32], index: 0, kind: input, shape index: {}]
  %s1 = inlined_call_operand.vmem [shape: f32[32,64], index: 1, kind: input, shape index: {}]
  %s2 = inlined_call_operand.vmem [shape: f32[1,64], index: 2, kind: input, shape index: {}]
  %s3 = inlined_call_operand.hbm [shape: f32[14,64], index: 3, kind: output, shape index: {}]
  %s4 = sld [smem:[#allocation0]]
  $region22: #{_seq2seq_core.53} parent=0
    _
  %s6 = ssub.s32 1, %s4
  %s7 = scalar_select 0, %s6, %s4
  $region1: #{_seq2seq_core.53} parent=0
    #allocation2 [shape = 'u8[8192]{0}', space=vmem, size = 0x2000, scoped, tag = 'output window, operand 0, single buffered']
    #allocation3 [shape = 's32[1]{0}', space=sflag, size = 0x4, scoped, tag = 'scoped memory for _seq2seq_core.53']
    %8 = vsyncpa [#allocation3], 0
    // Predicated region
    $region2: #{_seq2seq_core.53} parent=1 // pred_check
      _
    $region3: #{_seq2seq_core.53} parent=1 // pred_check_branch
      %10 = sbr.rel (0) target = $region5
    $region4: #{_seq2seq_core.53} parent=1 // pred_region
      _
    $region5: #{_seq2seq_core.53} parent=1 // pred_fallthru
      _
    // Predicated region
    $region6: #{_seq2seq_core.53} parent=1 // pred_check
      _
    $region7: #{_seq2seq_core.53} parent=1 // pred_check_branch
      %12 = sbr.rel (0) target = $region9
    $region8: #{_seq2seq_core.53} parent=1 // pred_region
      _
    $region9: #{_seq2seq_core.53} parent=1 // pred_fallthru
      _
    // Predicated region
    $region10: #{_seq2seq_core.53} parent=1 // pred_check
      _
    $region11: #{_seq2seq_core.53} parent=1 // pred_check_branch
      %14 = sbr.rel (0) target = $region13
    $region12: #{_seq2seq_core.53} parent=1 // pred_region
      _
    $region13: #{_seq2seq_core.53} parent=1 // pred_fallthru
      _
    %v15 = vld [vmem:[%s0] sm:$0xff]
    %v16 = vld [vmem:[%s0 + $0x8] sm:$0x3f]
    %v17 = vld [vmem:[%s1] sm:$0xff]
    %v18 = vld [vmem:[%s1 + $0x8] sm:$0xff]
    %v19 = vld [vmem:[%s1 + $0x10] sm:$0xff]
    %v20 = vld [vmem:[%s1 + $0x18] sm:$0xff]
    %v21 = vld [vmem:[%s2] sm:$0x1]
    %v23 = vlaneseq
    %v24 = vshrl.u32 %v23, 7
    %v25 = vsub.s32 0, %v24
    %v26 = vrot.slane %v21, %v25
    %vm28 = vcmask 261120
    %v30 = vsel %vm28, %v15, 0
    %v33 = vsel %vm28, %v16, 0
    %35 = vmatprep.subr.mxu0 0.0
    %36 = vmatpush1.msra.mxu0 %v17
    %37 = vmatprep.subr.mxu0 0.0
    %38 = vmatpush1.msra.mxu0 %v18
    %39 = vmatprep.subr.mxu0 0.0
    %40 = vmatpush1.msra.mxu0 %v19
    %41 = vmatprep.subr.mxu0 0.0
    %42 = vmatpush1.msra.mxu0 %v20
    %43 = vmatprep.subr.mxu0 0.0
    %44 = vmatpush1.msra.mxu0 0.0
    %45 = vmatprep.subr.mxu0 0.0
    %46 = vmatpush1.msra.mxu0 0.0
    %47 = vmatprep.subr.mxu0 0.0
    %48 = vmatpush1.msra.mxu0 0.0
    %49 = vmatprep.subr.mxu0 0.0
    %50 = vmatpush1.msra.mxu0 0.0
    %51 = vmatprep.subr.mxu0 0.0
    %52 = vmatpush1.msra.mxu0 0.0
    %53 = vmatprep.subr.mxu0 0.0
    %54 = vmatpush1.msra.mxu0 0.0
    %55 = vmatprep.subr.mxu0 0.0
    %56 = vmatpush1.msra.mxu0 0.0
    %57 = vmatprep.subr.mxu0 0.0
    %58 = vmatpush1.msra.mxu0 0.0
    %59 = vmatprep.subr.mxu0 0.0
    %60 = vmatpush1.msra.mxu0 0.0
    %61 = vmatprep.subr.mxu0 0.0
    %62 = vmatpush1.msra.mxu0 0.0
    %63 = vmatprep.subr.mxu0 0.0
    %64 = vmatpush1.msra.mxu0 0.0
    %65 = vmatprep.subr.mxu0 0.0
    %66 = vmatpush1.msra.mxu0 0.0
    %67 = vmatprep.subr.mxu0 0.0
    %68 = vmatpush1.msra.mxu0 0.0
    %69 = vmatprep.subr.mxu0 0.0
    %70 = vmatpush1.msra.mxu0 0.0
    %71 = vmatprep.subr.mxu0 0.0
    %72 = vmatpush1.msra.mxu0 0.0
    %73 = vmatprep.subr.mxu0 0.0
    %74 = vmatpush1.msra.mxu0 0.0
    %75 = vmatprep.subr.mxu0 0.0
    %76 = vmatpush1.msra.mxu0 0.0
    %77 = vmatprep.subr.mxu0 0.0
    %78 = vmatpush1.msra.mxu0 0.0
    %79 = vmatprep.subr.mxu0 0.0
    %80 = vmatpush1.msra.mxu0 0.0
    %81 = vmatprep.subr.mxu0 0.0
    %82 = vmatpush1.msra.mxu0 0.0
    %83 = vmatprep.subr.mxu0 0.0
    %84 = vmatpush1.msra.mxu0 0.0
    %85 = vmatprep.subr.mxu0 0.0
    %86 = vmatpush1.msra.mxu0 0.0
    %87 = vmatprep.subr.mxu0 0.0
    %88 = vmatpush1.msra.mxu0 0.0
    %89 = vmatprep.subr.mxu0 0.0
    %90 = vmatpush1.msra.mxu0 0.0
    %91 = vmatprep.subr.mxu0 0.0
    %92 = vmatpush1.msra.mxu0 0.0
    %93 = vmatprep.subr.mxu0 0.0
    %94 = vmatpush1.msra.mxu0 0.0
    %95 = vmatprep.subr.mxu0 0.0
    %96 = vmatpush1.msra.mxu0 0.0
    %97 = vmatprep.subr.mxu0 0.0
    %98 = vmatpush1.msra.mxu0 0.0
    %99 = vmatprep.mubr.f32.mxu0 0.0
    %100 = vmatmul.mubr.f32.gmra.mrb[0].mxu0 %v30
    %v101 = vpop.f32.mrb[0].mxu0
    %v102 = vadd.f32 %v26, %v101
    %v103 = vpop.f32.mrb[0].mxu0
    %104 = vmatprep.mubr.f32.mxu0 0.0
    %105 = vmatmul.mubr.f32.gmra.mrb[0].mxu0 %v33
    %v106 = vpop.f32.mrb[0].mxu0
    %v107 = vadd.f32 %v26, %v106
    %v108 = vpop.f32.mrb[0].mxu0
    %109 = vdwg.mxu0
    %vm110 = vcmask 523264
    %111 = vst.msk [vmem:[#allocation2] sm:$0xff] %vm110, %v102
    %vm112 = vcmask 521216
    %113 = vst.msk [vmem:[#allocation2 + $0x8] sm:$0x3f] %vm112, %v107
    // Predicated region
    $region14: #{_seq2seq_core.53} parent=1 // pred_check
      _
    $region15: #{_seq2seq_core.53} parent=1 // pred_check_branch
      %115 = sbr.rel (0) target = $region17
    $region16: #{_seq2seq_core.53} parent=1 // pred_region
      %s117 = ssub.s32 256, 256
      %118 = vsyncadd [#allocation3], %s117
      %s119 = sshll.u32 [#allocation2], 4
      %s120 = int_to_ptr.vmem [resolvable:$true] %s119
      %125 = dma.vmem_to_hbm [thread:$0]  %s120, 256, %s3, [#allocation3], 128, 128, 8
    $region17: #{_seq2seq_core.53} parent=1 // pred_fallthru
      _
    // Predicated region
    $region18: #{_seq2seq_core.53} parent=1 // pred_check
      _
    $region19: #{_seq2seq_core.53} parent=1 // pred_check_branch
      %127 = sbr.rel (0) target = $region21
    $region20: #{_seq2seq_core.53} parent=1 // pred_region
      %128 = dma.done [#allocation3], 256
    $region21: #{_seq2seq_core.53} parent=1 // pred_fallthru
      _
    %129 = vsyncpa [#allocation3], 1

// kernel: _seq2seq_core.42
$region0: #{_seq2seq_core.42}
  #allocation0 [shape = 'u32[]', space=smem, size = 0x4, offset = 0x4, fixed_abs, tag = 'smem constant byte address 0x4 - core index']
  #allocation1 [shape = 'u32[144,128]{1,0:T(1,128)}', space=vmem, size = 0x12000, scoped, tag = 'internal scratch']
  %s0 = inlined_call_operand.vmem [shape: f32[8,7,8], index: 0, kind: input, shape index: {}]
  %s1 = inlined_call_operand.vmem [shape: f32[8,8,8], index: 1, kind: input, shape index: {}]
  %s2 = inlined_call_operand.vmem [shape: f32[8,8,8], index: 2, kind: input, shape index: {}]
  %s3 = inlined_call_operand.vmem [shape: f32[8,1,8], index: 3, kind: input, shape index: {}]
  %s4 = inlined_call_operand.vmem [shape: f32[8,7,8], index: 4, kind: output, shape index: {}]
  %s5 = sld [smem:[#allocation0]]
  $region26: #{_seq2seq_core.42} parent=0
    _
  %s7 = ssub.s32 1, %s5
  %s8 = scalar_select 0, %s7, %s5
  // Predicated region
  $region2: #{_seq2seq_core.42} parent=0 // pred_check
    _
  $region3: #{_seq2seq_core.42} parent=0 // pred_check_branch
    %10 = sbr.rel (0) target = $region5
  $region4: #{_seq2seq_core.42} parent=0 // pred_region
    _
  $region5: #{_seq2seq_core.42} parent=0 // pred_fallthru
    _
  // Predicated region
  $region6: #{_seq2seq_core.42} parent=0 // pred_check
    _
  $region7: #{_seq2seq_core.42} parent=0 // pred_check_branch
    %12 = sbr.rel (0) target = $region9
  $region8: #{_seq2seq_core.42} parent=0 // pred_region
    _
  $region9: #{_seq2seq_core.42} parent=0 // pred_fallthru
    _
  // Predicated region
  $region10: #{_seq2seq_core.42} parent=0 // pred_check
    _
  $region11: #{_seq2seq_core.42} parent=0 // pred_check_branch
    %14 = sbr.rel (0) target = $region13
  $region12: #{_seq2seq_core.42} parent=0 // pred_region
    _
  $region13: #{_seq2seq_core.42} parent=0 // pred_fallthru
    _
  // Predicated region
  $region14: #{_seq2seq_core.42} parent=0 // pred_check
    _
  $region15: #{_seq2seq_core.42} parent=0 // pred_check_branch
    %16 = sbr.rel (0) target = $region17
  $region16: #{_seq2seq_core.42} parent=0 // pred_region
    _
  $region17: #{_seq2seq_core.42} parent=0 // pred_fallthru
    _
  %v17 = vld [vmem:[%s0] sm:$0x7f]
  %v18 = vld [vmem:[%s0 + $0x8] sm:$0x7f]
  %v19 = vld [vmem:[%s0 + $0x10] sm:$0x7f]
  %v20 = vld [vmem:[%s0 + $0x18] sm:$0x7f]
  %v21 = vld [vmem:[%s0 + $0x20] sm:$0x7f]
  %v22 = vld [vmem:[%s0 + $0x28] sm:$0x7f]
  %v23 = vld [vmem:[%s0 + $0x30] sm:$0x7f]
  %v24 = vld [vmem:[%s0 + $0x38] sm:$0x7f]
  %v25 = vld [vmem:[%s1] sm:$0xff]
  %v26 = vld [vmem:[%s1 + $0x8] sm:$0xff]
  %v27 = vld [vmem:[%s1 + $0x10] sm:$0xff]
  %v28 = vld [vmem:[%s1 + $0x18] sm:$0xff]
  %v29 = vld [vmem:[%s1 + $0x20] sm:$0xff]
  %v30 = vld [vmem:[%s1 + $0x28] sm:$0xff]
  %v31 = vld [vmem:[%s1 + $0x30] sm:$0xff]
  %v32 = vld [vmem:[%s1 + $0x38] sm:$0xff]
  %v33 = vld [vmem:[%s2] sm:$0xff]
  %v34 = vld [vmem:[%s2 + $0x8] sm:$0xff]
  %v35 = vld [vmem:[%s2 + $0x10] sm:$0xff]
  %v36 = vld [vmem:[%s2 + $0x18] sm:$0xff]
  %v37 = vld [vmem:[%s2 + $0x20] sm:$0xff]
  %v38 = vld [vmem:[%s2 + $0x28] sm:$0xff]
  %v39 = vld [vmem:[%s2 + $0x30] sm:$0xff]
  %v40 = vld [vmem:[%s2 + $0x38] sm:$0xff]
  %vm41 = vcmask 64512
  %v43 = vsel %vm41, %v17, 0
  %v46 = vsel %vm41, %v25, 0
  %48 = vmatprep.subr.mxu0 0.0
  %49 = vmatpush1.xpose.msra.mxu0 %v46
  %50 = vmatprep.subr.mxu0 0.0
  %51 = vmatpush1.xpose.msra.mxu0 0.0
  %52 = vmatprep.subr.mxu0 0.0
  %53 = vmatpush1.xpose.msra.mxu0 0.0
  %54 = vmatprep.subr.mxu0 0.0
  %55 = vmatpush1.xpose.msra.mxu0 0.0
  %56 = vmatprep.subr.mxu0 0.0
  %57 = vmatpush1.xpose.msra.mxu0 0.0
  %58 = vmatprep.subr.mxu0 0.0
  %59 = vmatpush1.xpose.msra.mxu0 0.0
  %60 = vmatprep.subr.mxu0 0.0
  %61 = vmatpush1.xpose.msra.mxu0 0.0
  %62 = vmatprep.subr.mxu0 0.0
  %63 = vmatpush1.xpose.msra.mxu0 0.0
  %64 = vmatprep.subr.mxu0 0.0
  %65 = vmatpush1.xpose.msra.mxu0 0.0
  %66 = vmatprep.subr.mxu0 0.0
  %67 = vmatpush1.xpose.msra.mxu0 0.0
  %68 = vmatprep.subr.mxu0 0.0
  %69 = vmatpush1.xpose.msra.mxu0 0.0
  %70 = vmatprep.subr.mxu0 0.0
  %71 = vmatpush1.xpose.msra.mxu0 0.0
  %72 = vmatprep.subr.mxu0 0.0
  %73 = vmatpush1.xpose.msra.mxu0 0.0
  %74 = vmatprep.subr.mxu0 0.0
  %75 = vmatpush1.xpose.msra.mxu0 0.0
  %76 = vmatprep.subr.mxu0 0.0
  %77 = vmatpush1.xpose.msra.mxu0 0.0
  %78 = vmatprep.subr.mxu0 0.0
  %79 = vmatpush1.xpose.msra.mxu0 0.0
  %80 = vmatprep.subr.mxu0 0.0
  %81 = vmatpush1.xpose.msra.mxu0 0.0
  %82 = vmatprep.subr.mxu0 0.0
  %83 = vmatpush1.xpose.msra.mxu0 0.0
  %84 = vmatprep.subr.mxu0 0.0
  %85 = vmatpush1.xpose.msra.mxu0 0.0
  %86 = vmatprep.subr.mxu0 0.0
  %87 = vmatpush1.xpose.msra.mxu0 0.0
  %88 = vmatprep.subr.mxu0 0.0
  %89 = vmatpush1.xpose.msra.mxu0 0.0
  %90 = vmatprep.subr.mxu0 0.0
  %91 = vmatpush1.xpose.msra.mxu0 0.0
  %92 = vmatprep.subr.mxu0 0.0
  %93 = vmatpush1.xpose.msra.mxu0 0.0
  %94 = vmatprep.subr.mxu0 0.0
  %95 = vmatpush1.xpose.msra.mxu0 0.0
  %96 = vmatprep.subr.mxu0 0.0
  %97 = vmatpush1.xpose.msra.mxu0 0.0
  %98 = vmatprep.subr.mxu0 0.0
  %99 = vmatpush1.xpose.msra.mxu0 0.0
  %100 = vmatprep.subr.mxu0 0.0
  %101 = vmatpush1.xpose.msra.mxu0 0.0
  %102 = vmatprep.subr.mxu0 0.0
  %103 = vmatpush1.xpose.msra.mxu0 0.0
  %104 = vmatprep.subr.mxu0 0.0
  %105 = vmatpush1.xpose.msra.mxu0 0.0
  %106 = vmatprep.subr.mxu0 0.0
  %107 = vmatpush1.xpose.msra.mxu0 0.0
  %108 = vmatprep.subr.mxu0 0.0
  %109 = vmatpush1.xpose.msra.mxu0 0.0
  %110 = vmatprep.subr.mxu0 0.0
  %111 = vmatpush1.xpose.msra.mxu0 0.0
  %112 = vmatprep.mubr.f32.mxu0 0.0
  %113 = vmatmul.mubr.f32.gmra.mrb[0].mxu0 %v43
  %v114 = vpop.f32.mrb[0].mxu0
  %v115 = vadd.f32 0.0, %v114
  %v116 = vpop.f32.mrb[0].mxu0
  %117 = vdwg.mxu0
  %v119 = vsel %vm41, %v18, 0
  %v122 = vsel %vm41, %v26, 0
  %124 = vmatprep.subr.mxu0 0.0
  %125 = vmatpush1.xpose.msra.mxu0 %v122
  %126 = vmatprep.subr.mxu0 0.0
  %127 = vmatpush1.xpose.msra.mxu0 0.0
  %128 = vmatprep.subr.mxu0 0.0
  %129 = vmatpush1.xpose.msra.mxu0 0.0
  %130 = vmatprep.subr.mxu0 0.0
  %131 = vmatpush1.xpose.msra.mxu0 0.0
  %132 = vmatprep.subr.mxu0 0.0
  %133 = vmatpush1.xpose.msra.mxu0 0.0
  %134 = vmatprep.subr.mxu0 0.0
  %135 = vmatpush1.xpose.msra.mxu0 0.0
  %136 = vmatprep.subr.mxu0 0.0
  %137 = vmatpush1.xpose.msra.mxu0 0.0
  %138 = vmatprep.subr.mxu0 0.0
  %139 = vmatpush1.xpose.msra.mxu0 0.0
  %140 = vmatprep.subr.mxu0 0.0
  %141 = vmatpush1.xpose.msra.mxu0 0.0
  %142 = vmatprep.subr.mxu0 0.0
  %143 = vmatpush1.xpose.msra.mxu0 0.0
  %144 = vmatprep.subr.mxu0 0.0
  %145 = vmatpush1.xpose.msra.mxu0 0.0
  %146 = vmatprep.subr.mxu0 0.0
  %147 = vmatpush1.xpose.msra.mxu0 0.0
  %148 = vmatprep.subr.mxu0 0.0
  %149 = vmatpush1.xpose.msra.mxu0 0.0
  %150 = vmatprep.subr.mxu0 0.0
  %151 = vmatpush1.xpose.msra.mxu0 0.0
  %152 = vmatprep.subr.mxu0 0.0
  %153 = vmatpush1.xpose.msra.mxu0 0.0
  %154 = vmatprep.subr.mxu0 0.0
  %155 = vmatpush1.xpose.msra.mxu0 0.0
  %156 = vmatprep.subr.mxu0 0.0
  %157 = vmatpush1.xpose.msra.mxu0 0.0
  %158 = vmatprep.subr.mxu0 0.0
  %159 = vmatpush1.xpose.msra.mxu0 0.0
  %160 = vmatprep.subr.mxu0 0.0
  %161 = vmatpush1.xpose.msra.mxu0 0.0
  %162 = vmatprep.subr.mxu0 0.0
  %163 = vmatpush1.xpose.msra.mxu0 0.0
  %164 = vmatprep.subr.mxu0 0.0
  %165 = vmatpush1.xpose.msra.mxu0 0.0
  %166 = vmatprep.subr.mxu0 0.0
  %167 = vmatpush1.xpose.msra.mxu0 0.0
  %168 = vmatprep.subr.mxu0 0.0
  %169 = vmatpush1.xpose.msra.mxu0 0.0
  %170 = vmatprep.subr.mxu0 0.0
  %171 = vmatpush1.xpose.msra.mxu0 0.0
  %172 = vmatprep.subr.mxu0 0.0
  %173 = vmatpush1.xpose.msra.mxu0 0.0
  %174 = vmatprep.subr.mxu0 0.0
  %175 = vmatpush1.xpose.msra.mxu0 0.0
  %176 = vmatprep.subr.mxu0 0.0
  %177 = vmatpush1.xpose.msra.mxu0 0.0
  %178 = vmatprep.subr.mxu0 0.0
  %179 = vmatpush1.xpose.msra.mxu0 0.0
  %180 = vmatprep.subr.mxu0 0.0
  %181 = vmatpush1.xpose.msra.mxu0 0.0
  %182 = vmatprep.subr.mxu0 0.0
  %183 = vmatpush1.xpose.msra.mxu0 0.0
  %184 = vmatprep.subr.mxu0 0.0
  %185 = vmatpush1.xpose.msra.mxu0 0.0
  %186 = vmatprep.subr.mxu0 0.0
  %187 = vmatpush1.xpose.msra.mxu0 0.0
  %188 = vmatprep.mubr.f32.mxu0 0.0
  %189 = vmatmul.mubr.f32.gmra.mrb[0].mxu0 %v119
  %v190 = vpop.f32.mrb[0].mxu0
  %v191 = vadd.f32 0.0, %v190
  %v192 = vpop.f32.mrb[0].mxu0
  %193 = vdwg.mxu0
  %v195 = vsel %vm41, %v19, 0
  %v198 = vsel %vm41, %v27, 0
  %200 = vmatprep.subr.mxu0 0.0
  %201 = vmatpush1.xpose.msra.mxu0 %v198
  %202 = vmatprep.subr.mxu0 0.0
  %203 = vmatpush1.xpose.msra.mxu0 0.0
  %204 = vmatprep.subr.mxu0 0.0
  %205 = vmatpush1.xpose.msra.mxu0 0.0
  %206 = vmatprep.subr.mxu0 0.0
  %207 = vmatpush1.xpose.msra.mxu0 0.0
  %208 = vmatprep.subr.mxu0 0.0
  %209 = vmatpush1.xpose.msra.mxu0 0.0
  %210 = vmatprep.subr.mxu0 0.0
  %211 = vmatpush1.xpose.msra.mxu0 0.0
  %212 = vmatprep.subr.mxu0 0.0
  %213 = vmatpush1.xpose.msra.mxu0 0.0
  %214 = vmatprep.subr.mxu0 0.0
  %215 = vmatpush1.xpose.msra.mxu0 0.0
  %216 = vmatprep.subr.mxu0 0.0
  %217 = vmatpush1.xpose.msra.mxu0 0.0
  %218 = vmatprep.subr.mxu0 0.0
  %219 = vmatpush1.xpose.msra.mxu0 0.0
  %220 = vmatprep.subr.mxu0 0.0
  %221 = vmatpush1.xpose.msra.mxu0 0.0
  %222 = vmatprep.subr.mxu0 0.0
  %223 = vmatpush1.xpose.msra.mxu0 0.0
  %224 = vmatprep.subr.mxu0 0.0
  %225 = vmatpush1.xpose.msra.mxu0 0.0
  %226 = vmatprep.subr.mxu0 0.0
  %227 = vmatpush1.xpose.msra.mxu0 0.0
  %228 = vmatprep.subr.mxu0 0.0
  %229 = vmatpush1.xpose.msra.mxu0 0.0
  %230 = vmatprep.subr.mxu0 0.0
  %231 = vmatpush1.xpose.msra.mxu0 0.0
  %232 = vmatprep.subr.mxu0 0.0
  %233 = vmatpush1.xpose.msra.mxu0 0.0
  %234 = vmatprep.subr.mxu0 0.0
  %235 = vmatpush1.xpose.msra.mxu0 0.0
  %236 = vmatprep.subr.mxu0 0.0
  %237 = vmatpush1.xpose.msra.mxu0 0.0
  %238 = vmatprep.subr.mxu0 0.0
  %239 = vmatpush1.xpose.msra.mxu0 0.0
  %240 = vmatprep.subr.mxu0 0.0
  %241 = vmatpush1.xpose.msra.mxu0 0.0
  %242 = vmatprep.subr.mxu0 0.0
  %243 = vmatpush1.xpose.msra.mxu0 0.0
  %244 = vmatprep.subr.mxu0 0.0
  %245 = vmatpush1.xpose.msra.mxu0 0.0
  %246 = vmatprep.subr.mxu0 0.0
  %247 = vmatpush1.xpose.msra.mxu0 0.0
  %248 = vmatprep.subr.mxu0 0.0
  %249 = vmatpush1.xpose.msra.mxu0 0.0
  %250 = vmatprep.subr.mxu0 0.0
  %251 = vmatpush1.xpose.msra.mxu0 0.0
  %252 = vmatprep.subr.mxu0 0.0
  %253 = vmatpush1.xpose.msra.mxu0 0.0
  %254 = vmatprep.subr.mxu0 0.0
  %255 = vmatpush1.xpose.msra.mxu0 0.0
  %256 = vmatprep.subr.mxu0 0.0
  %257 = vmatpush1.xpose.msra.mxu0 0.0
  %258 = vmatprep.subr.mxu0 0.0
  %259 = vmatpush1.xpose.msra.mxu0 0.0
  %260 = vmatprep.subr.mxu0 0.0
  %261 = vmatpush1.xpose.msra.mxu0 0.0
  %262 = vmatprep.subr.mxu0 0.0
  %263 = vmatpush1.xpose.msra.mxu0 0.0
  %264 = vmatprep.mubr.f32.mxu0 0.0
  %265 = vmatmul.mubr.f32.gmra.mrb[0].mxu0 %v195
  %v266 = vpop.f32.mrb[0].mxu0
  %v267 = vadd.f32 0.0, %v266
  %v268 = vpop.f32.mrb[0].mxu0
  %269 = vdwg.mxu0
  %v271 = vsel %vm41, %v20, 0
  %v274 = vsel %vm41, %v28, 0
  %276 = vmatprep.subr.mxu0 0.0
  %277 = vmatpush1.xpose.msra.mxu0 %v274
  %278 = vmatprep.subr.mxu0 0.0
  %279 = vmatpush1.xpose.msra.mxu0 0.0
  %280 = vmatprep.subr.mxu0 0.0
  %281 = vmatpush1.xpose.msra.mxu0 0.0
  %282 = vmatprep.subr.mxu0 0.0
  %283 = vmatpush1.xpose.msra.mxu0 0.0
  %284 = vmatprep.subr.mxu0 0.0
  %285 = vmatpush1.xpose.msra.mxu0 0.0
  %286 = vmatprep.subr.mxu0 0.0
  %287 = vmatpush1.xpose.msra.mxu0 0.0
  %288 = vmatprep.subr.mxu0 0.0
  %289 = vmatpush1.xpose.msra.mxu0 0.0
  %290 = vmatprep.subr.mxu0 0.0
  %291 = vmatpush1.xpose.msra.mxu0 0.0
  %292 = vmatprep.subr.mxu0 0.0
  %293 = vmatpush1.xpose.msra.mxu0 0.0
  %294 = vmatprep.subr.mxu0 0.0
  %295 = vmatpush1.xpose.msra.mxu0 0.0
  %296 = vmatprep.subr.mxu0 0.0
  %297 = vmatpush1.xpose.msra.mxu0 0.0
  %298 = vmatprep.subr.mxu0 0.0
  %299 = vmatpush1.xpose.msra.mxu0 0.0
  %300 = vmatprep.subr.mxu0 0.0
  %301 = vmatpush1.xpose.msra.mxu0 0.0
  %302 = vmatprep.subr.mxu0 0.0
  %303 = vmatpush1.xpose.msra.mxu0 0.0
  %304 = vmatprep.subr.mxu0 0.0
  %305 = vmatpush1.xpose.msra.mxu0 0.0
  %306 = vmatprep.subr.mxu0 0.0
  %307 = vmatpush1.xpose.msra.mxu0 0.0
  %308 = vmatprep.subr.mxu0 0.0
  %309 = vmatpush1.xpose.msra.mxu0 0.0
  %310 = vmatprep.subr.mxu0 0.0
  %311 = vmatpush1.xpose.msra.mxu0 0.0
  %312 = vmatprep.subr.mxu0 0.0
  %313 = vmatpush1.xpose.msra.mxu0 0.0
  %314 = vmatprep.subr.mxu0 0.0
  %315 = vmatpush1.xpose.msra.mxu0 0.0
  %316 = vmatprep.subr.mxu0 0.0
  %317 = vmatpush1.xpose.msra.mxu0 0.0
  %318 = vmatprep.subr.mxu0 0.0
  %319 = vmatpush1.xpose.msra.mxu0 0.0
  %320 = vmatprep.subr.mxu0 0.0
  %321 = vmatpush1.xpose.msra.mxu0 0.0
  %322 = vmatprep.subr.mxu0 0.0
  %323 = vmatpush1.xpose.msra.mxu0 0.0
  %324 = vmatprep.subr.mxu0 0.0
  %325 = vmatpush1.xpose.msra.mxu0 0.0
  %326 = vmatprep.subr.mxu0 0.0
  %327 = vmatpush1.xpose.msra.mxu0 0.0
  %328 = vmatprep.subr.mxu0 0.0
  %329 = vmatpush1.xpose.msra.mxu0 0.0
  %330 = vmatprep.subr.mxu0 0.0
  %331 = vmatpush1.xpose.msra.mxu0 0.0
  %332 = vmatprep.subr.mxu0 0.0
  %333 = vmatpush1.xpose.msra.mxu0 0.0
  %334 = vmatprep.subr.mxu0 0.0
  %335 = vmatpush1.xpose.msra.mxu0 0.0
  %336 = vmatprep.subr.mxu0 0.0
  %337 = vmatpush1.xpose.msra.mxu0 0.0
  %338 = vmatprep.subr.mxu0 0.0
  %339 = vmatpush1.xpose.msra.mxu0 0.0
  %340 = vmatprep.mubr.f32.mxu0 0.0
  %341 = vmatmul.mubr.f32.gmra.mrb[0].mxu0 %v271
  %v342 = vpop.f32.mrb[0].mxu0
  %v343 = vadd.f32 0.0, %v342
  %v344 = vpop.f32.mrb[0].mxu0
  %345 = vdwg.mxu0
  %v347 = vsel %vm41, %v21, 0
  %v350 = vsel %vm41, %v29, 0
  %352 = vmatprep.subr.mxu0 0.0
  %353 = vmatpush1.xpose.msra.mxu0 %v350
  %354 = vmatprep.subr.mxu0 0.0
  %355 = vmatpush1.xpose.msra.mxu0 0.0
  %356 = vmatprep.subr.mxu0 0.0
  %357 = vmatpush1.xpose.msra.mxu0 0.0
  %358 = vmatprep.subr.mxu0 0.0
  %359 = vmatpush1.xpose.msra.mxu0 0.0
  %360 = vmatprep.subr.mxu0 0.0
  %361 = vmatpush1.xpose.msra.mxu0 0.0
  %362 = vmatprep.subr.mxu0 0.0
  %363 = vmatpush1.xpose.msra.mxu0 0.0
  %364 = vmatprep.subr.mxu0 0.0
  %365 = vmatpush1.xpose.msra.mxu0 0.0
  %366 = vmatprep.subr.mxu0 0.0
  %367 = vmatpush1.xpose.msra.mxu0 0.0
  %368 = vmatprep.subr.mxu0 0.0
  %369 = vmatpush1.xpose.msra.mxu0 0.0
  %370 = vmatprep.subr.mxu0 0.0
  %371 = vmatpush1.xpose.msra.mxu0 0.0
  %372 = vmatprep.subr.mxu0 0.0
  %373 = vmatpush1.xpose.msra.mxu0 0.0
  %374 = vmatprep.subr.mxu0 0.0
  %375 = vmatpush1.xpose.msra.mxu0 0.0
  %376 = vmatprep.subr.mxu0 0.0
  %377 = vmatpush1.xpose.msra.mxu0 0.0
  %378 = vmatprep.subr.mxu0 0.0
  %379 = vmatpush1.xpose.msra.mxu0 0.0
  %380 = vmatprep.subr.mxu0 0.0
  %381 = vmatpush1.xpose.msra.mxu0 0.0
  %382 = vmatprep.subr.mxu0 0.0
  %383 = vmatpush1.xpose.msra.mxu0 0.0
  %384 = vmatprep.subr.mxu0 0.0
  %385 = vmatpush1.xpose.msra.mxu0 0.0
  %386 = vmatprep.subr.mxu0 0.0
  %387 = vmatpush1.xpose.msra.mxu0 0.0
  %388 = vmatprep.subr.mxu0 0.0
  %389 = vmatpush1.xpose.msra.mxu0 0.0
  %390 = vmatprep.subr.mxu0 0.0
  %391 = vmatpush1.xpose.msra.mxu0 0.0
  %392 = vmatprep.subr.mxu0 0.0
  %393 = vmatpush1.xpose.msra.mxu0 0.0
  %394 = vmatprep.subr.mxu0 0.0
  %395 = vmatpush1.xpose.msra.mxu0 0.0
  %396 = vmatprep.subr.mxu0 0.0
  %397 = vmatpush1.xpose.msra.mxu0 0.0
  %398 = vmatprep.subr.mxu0 0.0
  %399 = vmatpush1.xpose.msra.mxu0 0.0
  %400 = vmatprep.subr.mxu0 0.0
  %401 = vmatpush1.xpose.msra.mxu0 0.0
  %402 = vmatprep.subr.mxu0 0.0
  %403 = vmatpush1.xpose.msra.mxu0 0.0
  %404 = vmatprep.subr.mxu0 0.0
  %405 = vmatpush1.xpose.msra.mxu0 0.0
  %406 = vmatprep.subr.mxu0 0.0
  %407 = vmatpush1.xpose.msra.mxu0 0.0
  %408 = vmatprep.subr.mxu0 0.0
  %409 = vmatpush1.xpose.msra.mxu0 0.0
  %410 = vmatprep.subr.mxu0 0.0
  %411 = vmatpush1.xpose.msra.mxu0 0.0
  %412 = vmatprep.subr.mxu0 0.0
  %413 = vmatpush1.xpose.msra.mxu0 0.0
  %414 = vmatprep.subr.mxu0 0.0
  %415 = vmatpush1.xpose.msra.mxu0 0.0
  %416 = vmatprep.mubr.f32.mxu0 0.0
  %417 = vmatmul.mubr.f32.gmra.mrb[0].mxu0 %v347
  %v418 = vpop.f32.mrb[0].mxu0
  %v419 = vadd.f32 0.0, %v418
  %v420 = vpop.f32.mrb[0].mxu0
  %421 = vdwg.mxu0
  %v423 = vsel %vm41, %v22, 0
  %v426 = vsel %vm41, %v30, 0
  %428 = vmatprep.subr.mxu0 0.0
  %429 = vmatpush1.xpose.msra.mxu0 %v426
  %430 = vmatprep.subr.mxu0 0.0
  %431 = vmatpush1.xpose.msra.mxu0 0.0
  %432 = vmatprep.subr.mxu0 0.0
  %433 = vmatpush1.xpose.msra.mxu0 0.0
  %434 = vmatprep.subr.mxu0 0.0
  %435 = vmatpush1.xpose.msra.mxu0 0.0
  %436 = vmatprep.subr.mxu0 0.0
  %437 = vmatpush1.xpose.msra.mxu0 0.0
  %438 = vmatprep.subr.mxu0 0.0
  %439 = vmatpush1.xpose.msra.mxu0 0.0
  %440 = vmatprep.subr.mxu0 0.0
  %441 = vmatpush1.xpose.msra.mxu0 0.0
  %442 = vmatprep.subr.mxu0 0.0
  %443 = vmatpush1.xpose.msra.mxu0 0.0
  %444 = vmatprep.subr.mxu0 0.0
  %445 = vmatpush1.xpose.msra.mxu0 0.0
  %446 = vmatprep.subr.mxu0 0.0
  %447 = vmatpush1.xpose.msra.mxu0 0.0
  %448 = vmatprep.subr.mxu0 0.0
  %449 = vmatpush1.xpose.msra.mxu0 0.0
  %450 = vmatprep.subr.mxu0 0.0
  %451 = vmatpush1.xpose.msra.mxu0 0.0
  %452 = vmatprep.subr.mxu0 0.0
  %453 = vmatpush1.xpose.msra.mxu0 0.0
  %454 = vmatprep.subr.mxu0 0.0
  %455 = vmatpush1.xpose.msra.mxu0 0.0
  %456 = vmatprep.subr.mxu0 0.0
  %457 = vmatpush1.xpose.msra.mxu0 0.0
  %458 = vmatprep.subr.mxu0 0.0
  %459 = vmatpush1.xpose.msra.mxu0 0.0
  %460 = vmatprep.subr.mxu0 0.0
  %461 = vmatpush1.xpose.msra.mxu0 0.0
  %462 = vmatprep.subr.mxu0 0.0
  %463 = vmatpush1.xpose.msra.mxu0 0.0
  %464 = vmatprep.subr.mxu0 0.0
  %465 = vmatpush1.xpose.msra.mxu0 0.0
  %466 = vmatprep.subr.mxu0 0.0
  %467 = vmatpush1.xpose.msra.mxu0 0.0
  %468 = vmatprep.subr.mxu0 0.0
  %469 = vmatpush1.xpose.msra.mxu0 0.0
  %470 = vmatprep.subr.mxu0 0.0
  %471 = vmatpush1.xpose.msra.mxu0 0.0
  %472 = vmatprep.subr.mxu0 0.0
  %473 = vmatpush1.xpose.msra.mxu0 0.0
  %474 = vmatprep.subr.mxu0 0.0
  %475 = vmatpush1.xpose.msra.mxu0 0.0
  %476 = vmatprep.subr.mxu0 0.0
  %477 = vmatpush1.xpose.msra.mxu0 0.0
  %478 = vmatprep.subr.mxu0 0.0
  %479 = vmatpush1.xpose.msra.mxu0 0.0
  %480 = vmatprep.subr.mxu0 0.0
  %481 = vmatpush1.xpose.msra.mxu0 0.0
  %482 = vmatprep.subr.mxu0 0.0
  %483 = vmatpush1.xpose.msra.mxu0 0.0
  %484 = vmatprep.subr.mxu0 0.0
  %485 = vmatpush1.xpose.msra.mxu0 0.0
  %486 = vmatprep.subr.mxu0 0.0
  %487 = vmatpush1.xpose.msra.mxu0 0.0
  %488 = vmatprep.subr.mxu0 0.0
  %489 = vmatpush1.xpose.msra.mxu0 0.0
  %490 = vmatprep.subr.mxu0 0.0
  %491 = vmatpush1.xpose.msra.mxu0 0.0
  %492 = vmatprep.mubr.f32.mxu0 0.0
  %493 = vmatmul.mubr.f32.gmra.mrb[0].mxu0 %v423
  %v494 = vpop.f32.mrb[0].mxu0
  %v495 = vadd.f32 0.0, %v494
  %v496 = vpop.f32.mrb[0].mxu0
  %497 = vdwg.mxu0
  %v499 = vsel %vm41, %v23, 0
  %v502 = vsel %vm41, %v31, 0
  %504 = vmatprep.subr.mxu0 0.0
  %505 = vmatpush1.xpose.msra.mxu0 %v502
  %506 = vmatprep.subr.mxu0 0.0
  %507 = vmatpush1.xpose.msra.mxu0 0.0
  %508 = vmatprep.subr.mxu0 0.0
  %509 = vmatpush1.xpose.msra.mxu0 0.0
  %510 = vmatprep.subr.mxu0 0.0
  %511 = vmatpush1.xpose.msra.mxu0 0.0
  %512 = vmatprep.subr.mxu0 0.0
  %513 = vmatpush1.xpose.msra.mxu0 0.0
  %514 = vmatprep.subr.mxu0 0.0
  %515 = vmatpush1.xpose.msra.mxu0 0.0
  %516 = vmatprep.subr.mxu0 0.0
  %517 = vmatpush1.xpose.msra.mxu0 0.0
  %518 = vmatprep.subr.mxu0 0.0
  %519 = vmatpush1.xpose.msra.mxu0 0.0
  %520 = vmatprep.subr.mxu0 0.0
  %521 = vmatpush1.xpose.msra.mxu0 0.0
  %522 = vmatprep.subr.mxu0 0.0
  %523 = vmatpush1.xpose.msra.mxu0 0.0
  %524 = vmatprep.subr.mxu0 0.0
  %525 = vmatpush1.xpose.msra.mxu0 0.0
  %526 = vmatprep.subr.mxu0 0.0
  %527 = vmatpush1.xpose.msra.mxu0 0.0
  %528 = vmatprep.subr.mxu0 0.0
  %529 = vmatpush1.xpose.msra.mxu0 0.0
  %530 = vmatprep.subr.mxu0 0.0
  %531 = vmatpush1.xpose.msra.mxu0 0.0
  %532 = vmatprep.subr.mxu0 0.0
  %533 = vmatpush1.xpose.msra.mxu0 0.0
  %534 = vmatprep.subr.mxu0 0.0
  %535 = vmatpush1.xpose.msra.mxu0 0.0
  %536 = vmatprep.subr.mxu0 0.0
  %537 = vmatpush1.xpose.msra.mxu0 0.0
  %538 = vmatprep.subr.mxu0 0.0
  %539 = vmatpush1.xpose.msra.mxu0 0.0
  %540 = vmatprep.subr.mxu0 0.0
  %541 = vmatpush1.xpose.msra.mxu0 0.0
  %542 = vmatprep.subr.mxu0 0.0
  %543 = vmatpush1.xpose.msra.mxu0 0.0
  %544 = vmatprep.subr.mxu0 0.0
  %545 = vmatpush1.xpose.msra.mxu0 0.0
  %546 = vmatprep.subr.mxu0 0.0
  %547 = vmatpush1.xpose.msra.mxu0 0.0
  %548 = vmatprep.subr.mxu0 0.0
  %549 = vmatpush1.xpose.msra.mxu0 0.0
  %550 = vmatprep.subr.mxu0 0.0
  %551 = vmatpush1.xpose.msra.mxu0 0.0
  %552 = vmatprep.subr.mxu0 0.0
  %553 = vmatpush1.xpose.msra.mxu0 0.0
  %554 = vmatprep.subr.mxu0 0.0
  %555 = vmatpush1.xpose.msra.mxu0 0.0
  %556 = vmatprep.subr.mxu0 0.0
  %557 = vmatpush1.xpose.msra.mxu0 0.0
  %558 = vmatprep.subr.mxu0 0.0
  %559 = vmatpush1.xpose.msra.mxu0 0.0
  %560 = vmatprep.subr.mxu0 0.0
  %561 = vmatpush1.xpose.msra.mxu0 0.0
  %562 = vmatprep.subr.mxu0 0.0
  %563 = vmatpush1.xpose.msra.mxu0 0.0
  %564 = vmatprep.subr.mxu0 0.0
  %565 = vmatpush1.xpose.msra.mxu0 0.0
  %566 = vmatprep.subr.mxu0 0.0
  %567 = vmatpush1.xpose.msra.mxu0 0.0
  %568 = vmatprep.mubr.f32.mxu0 0.0
  %569 = vmatmul.mubr.f32.gmra.mrb[0].mxu0 %v499
  %v570 = vpop.f32.mrb[0].mxu0
  %v571 = vadd.f32 0.0, %v570
  %v572 = vpop.f32.mrb[0].mxu0
  %573 = vdwg.mxu0
  %v575 = vsel %vm41, %v24, 0
  %v578 = vsel %vm41, %v32, 0
  %580 = vmatprep.subr.mxu0 0.0
  %581 = vmatpush1.xpose.msra.mxu0 %v578
  %582 = vmatprep.subr.mxu0 0.0
  %583 = vmatpush1.xpose.msra.mxu0 0.0
  %584 = vmatprep.subr.mxu0 0.0
  %585 = vmatpush1.xpose.msra.mxu0 0.0
  %586 = vmatprep.subr.mxu0 0.0
  %587 = vmatpush1.xpose.msra.mxu0 0.0
  %588 = vmatprep.subr.mxu0 0.0
  %589 = vmatpush1.xpose.msra.mxu0 0.0
  %590 = vmatprep.subr.mxu0 0.0
  %591 = vmatpush1.xpose.msra.mxu0 0.0
  %592 = vmatprep.subr.mxu0 0.0
  %593 = vmatpush1.xpose.msra.mxu0 0.0
  %594 = vmatprep.subr.mxu0 0.0
  %595 = vmatpush1.xpose.msra.mxu0 0.0
  %596 = vmatprep.subr.mxu0 0.0
  %597 = vmatpush1.xpose.msra.mxu0 0.0
  %598 = vmatprep.subr.mxu0 0.0
  %599 = vmatpush1.xpose.msra.mxu0 0.0
  %600 = vmatprep.subr.mxu0 0.0
  %601 = vmatpush1.xpose.msra.mxu0 0.0
  %602 = vmatprep.subr.mxu0 0.0
  %603 = vmatpush1.xpose.msra.mxu0 0.0
  %604 = vmatprep.subr.mxu0 0.0
  %605 = vmatpush1.xpose.msra.mxu0 0.0
  %606 = vmatprep.subr.mxu0 0.0
  %607 = vmatpush1.xpose.msra.mxu0 0.0
  %608 = vmatprep.subr.mxu0 0.0
  %609 = vmatpush1.xpose.msra.mxu0 0.0
  %610 = vmatprep.subr.mxu0 0.0
  %611 = vmatpush1.xpose.msra.mxu0 0.0
  %612 = vmatprep.subr.mxu0 0.0
  %613 = vmatpush1.xpose.msra.mxu0 0.0
  %614 = vmatprep.subr.mxu0 0.0
  %615 = vmatpush1.xpose.msra.mxu0 0.0
  %616 = vmatprep.subr.mxu0 0.0
  %617 = vmatpush1.xpose.msra.mxu0 0.0
  %618 = vmatprep.subr.mxu0 0.0
  %619 = vmatpush1.xpose.msra.mxu0 0.0
  %620 = vmatprep.subr.mxu0 0.0
  %621 = vmatpush1.xpose.msra.mxu0 0.0
  %622 = vmatprep.subr.mxu0 0.0
  %623 = vmatpush1.xpose.msra.mxu0 0.0
  %624 = vmatprep.subr.mxu0 0.0
  %625 = vmatpush1.xpose.msra.mxu0 0.0
  %626 = vmatprep.subr.mxu0 0.0
  %627 = vmatpush1.xpose.msra.mxu0 0.0
  %628 = vmatprep.subr.mxu0 0.0
  %629 = vmatpush1.xpose.msra.mxu0 0.0
  %630 = vmatprep.subr.mxu0 0.0
  %631 = vmatpush1.xpose.msra.mxu0 0.0
  %632 = vmatprep.subr.mxu0 0.0
  %633 = vmatpush1.xpose.msra.mxu0 0.0
  %634 = vmatprep.subr.mxu0 0.0
  %635 = vmatpush1.xpose.msra.mxu0 0.0
  %636 = vmatprep.subr.mxu0 0.0
  %637 = vmatpush1.xpose.msra.mxu0 0.0
  %638 = vmatprep.subr.mxu0 0.0
  %639 = vmatpush1.xpose.msra.mxu0 0.0
  %640 = vmatprep.subr.mxu0 0.0
  %641 = vmatpush1.xpose.msra.mxu0 0.0
  %642 = vmatprep.subr.mxu0 0.0
  %643 = vmatpush1.xpose.msra.mxu0 0.0
  %644 = vmatprep.mubr.f32.mxu0 0.0
  %645 = vmatmul.mubr.f32.gmra.mrb[0].mxu0 %v575
  %v646 = vpop.f32.mrb[0].mxu0
  %v647 = vadd.f32 0.0, %v646
  %v648 = vpop.f32.mrb[0].mxu0
  %649 = vdwg.mxu0
  %v650 = vmul.f32 %v115, 0.35355338
  %v651 = vmul.f32 %v191, 0.35355338
  %v652 = vmul.f32 %v267, 0.35355338
  %v653 = vmul.f32 %v343, 0.35355338
  %v654 = vmul.f32 %v419, 0.35355338
  %v655 = vmul.f32 %v495, 0.35355338
  %v656 = vmul.f32 %v571, 0.35355338
  %v657 = vmul.f32 %v647, 0.35355338
  %v658 = vld [vmem:[%s3] sm:$0x1]
  %v659 = vld [vmem:[%s3 + $0x1] sm:$0x1]
  %v660 = vld [vmem:[%s3 + $0x2] sm:$0x1]
  %v661 = vld [vmem:[%s3 + $0x3] sm:$0x1]
  %v662 = vld [vmem:[%s3 + $0x4] sm:$0x1]
  %v663 = vld [vmem:[%s3 + $0x5] sm:$0x1]
  %v664 = vld [vmem:[%s3 + $0x6] sm:$0x1]
  %v665 = vld [vmem:[%s3 + $0x7] sm:$0x1]
  %v666 = vsub.f32 1.0, %v658
  %v667 = vsub.f32 1.0, %v659
  %v668 = vsub.f32 1.0, %v660
  %v669 = vsub.f32 1.0, %v661
  %v670 = vsub.f32 1.0, %v662
  %v671 = vsub.f32 1.0, %v663
  %v672 = vsub.f32 1.0, %v664
  %v673 = vsub.f32 1.0, %v665
  %v674 = vmul.f32 %v666, -10000.0
  %v675 = vmul.f32 %v667, -10000.0
  %v676 = vmul.f32 %v668, -10000.0
  %v677 = vmul.f32 %v669, -10000.0
  %v678 = vmul.f32 %v670, -10000.0
  %v679 = vmul.f32 %v671, -10000.0
  %v680 = vmul.f32 %v672, -10000.0
  %v681 = vmul.f32 %v673, -10000.0
  %v690 = vlaneseq
  %v691 = vshrl.u32 %v690, 7
  %v692 = vsub.s32 0, %v691
  %v693 = vrot.slane %v674, %v692
  %v694 = vlaneseq
  %v695 = vshrl.u32 %v694, 7
  %v696 = vsub.s32 0, %v695
  %v697 = vrot.slane %v675, %v696
  %v698 = vlaneseq
  %v699 = vshrl.u32 %v698, 7
  %v700 = vsub.s32 0, %v699
  %v701 = vrot.slane %v676, %v700
  %v702 = vlaneseq
  %v703 = vshrl.u32 %v702, 7
  %v704 = vsub.s32 0, %v703
  %v705 = vrot.slane %v677, %v704
  %v706 = vlaneseq
  %v707 = vshrl.u32 %v706, 7
  %v708 = vsub.s32 0, %v707
  %v709 = vrot.slane %v678, %v708
  %v710 = vlaneseq
  %v711 = vshrl.u32 %v710, 7
  %v712 = vsub.s32 0, %v711
  %v713 = vrot.slane %v679, %v712
  %v714 = vlaneseq
  %v715 = vshrl.u32 %v714, 7
  %v716 = vsub.s32 0, %v715
  %v717 = vrot.slane %v680, %v716
  %v718 = vlaneseq
  %v719 = vshrl.u32 %v718, 7
  %v720 = vsub.s32 0, %v719
  %v721 = vrot.slane %v681, %v720
  %v730 = vadd.f32 %v650, %v693
  %v731 = vadd.f32 %v651, %v697
  %v732 = vadd.f32 %v652, %v701
  %v733 = vadd.f32 %v653, %v705
  %v734 = vadd.f32 %v654, %v709
  %v735 = vadd.f32 %v655, %v713
  %v736 = vadd.f32 %v656, %v717
  %v737 = vadd.f32 %v657, %v721
  %vm738 = vcmask 63488
  %v739 = vsel %vm738, %v730, -inf
  %740 = vmax.xlane.f32.xlu0 %v739
  %v741 = vpop.xlane.xlu0 %740
  %v742 = vsel %vm738, %v731, -inf
  %743 = vmax.xlane.f32.xlu0 %v742
  %v744 = vpop.xlane.xlu0 %743
  %v745 = vsel %vm738, %v732, -inf
  %746 = vmax.xlane.f32.xlu0 %v745
  %v747 = vpop.xlane.xlu0 %746
  %v748 = vsel %vm738, %v733, -inf
  %749 = vmax.xlane.f32.xlu0 %v748
  %v750 = vpop.xlane.xlu0 %749
  %v751 = vsel %vm738, %v734, -inf
  %752 = vmax.xlane.f32.xlu0 %v751
  %v753 = vpop.xlane.xlu0 %752
  %v754 = vsel %vm738, %v735, -inf
  %755 = vmax.xlane.f32.xlu0 %v754
  %v756 = vpop.xlane.xlu0 %755
  %v757 = vsel %vm738, %v736, -inf
  %758 = vmax.xlane.f32.xlu0 %v757
  %v759 = vpop.xlane.xlu0 %758
  %v760 = vsel %vm738, %v737, -inf
  %761 = vmax.xlane.f32.xlu0 %v760
  %v762 = vpop.xlane.xlu0 %761
  %v763 = vsub.f32 %v730, %v741
  %v764 = vsub.f32 %v731, %v744
  %v765 = vsub.f32 %v732, %v747
  %v766 = vsub.f32 %v733, %v750
  %v767 = vsub.f32 %v734, %v753
  %v768 = vsub.f32 %v735, %v756
  %v769 = vsub.f32 %v736, %v759
  %v770 = vsub.f32 %v737, %v762
  %v771 = vmul.f32 %v763, 1.442695
  %v772 = vpow.pop %v771
  %v773 = vmul.f32 %v764, 1.442695
  %v774 = vpow.pop %v773
  %v775 = vmul.f32 %v765, 1.442695
  %v776 = vpow.pop %v775
  %v777 = vmul.f32 %v766, 1.442695
  %v778 = vpow.pop %v777
  %v779 = vmul.f32 %v767, 1.442695
  %v780 = vpow.pop %v779
  %v781 = vmul.f32 %v768, 1.442695
  %v782 = vpow.pop %v781
  %v783 = vmul.f32 %v769, 1.442695
  %v784 = vpow.pop %v783
  %v785 = vmul.f32 %v770, 1.442695
  %v786 = vpow.pop %v785
  %v787 = vsel %vm738, %v772, 0.0
  %788 = vadd.xlane.f32.xlu0 %v787
  %v789 = vpop.xlane.xlu0 %788
  %v790 = vsel %vm738, %v774, 0.0
  %791 = vadd.xlane.f32.xlu0 %v790
  %v792 = vpop.xlane.xlu0 %791
  %v793 = vsel %vm738, %v776, 0.0
  %794 = vadd.xlane.f32.xlu0 %v793
  %v795 = vpop.xlane.xlu0 %794
  %v796 = vsel %vm738, %v778, 0.0
  %797 = vadd.xlane.f32.xlu0 %v796
  %v798 = vpop.xlane.xlu0 %797
  %v799 = vsel %vm738, %v780, 0.0
  %800 = vadd.xlane.f32.xlu0 %v799
  %v801 = vpop.xlane.xlu0 %800
  %v802 = vsel %vm738, %v782, 0.0
  %803 = vadd.xlane.f32.xlu0 %v802
  %v804 = vpop.xlane.xlu0 %803
  %v805 = vsel %vm738, %v784, 0.0
  %806 = vadd.xlane.f32.xlu0 %v805
  %v807 = vpop.xlane.xlu0 %806
  %v808 = vsel %vm738, %v786, 0.0
  %809 = vadd.xlane.f32.xlu0 %v808
  %v810 = vpop.xlane.xlu0 %809
  %v811 = vrcp.pop %v789
  %v812 = vrcp.pop %v792
  %v813 = vrcp.pop %v795
  %v814 = vrcp.pop %v798
  %v815 = vrcp.pop %v801
  %v816 = vrcp.pop %v804
  %v817 = vrcp.pop %v807
  %v818 = vrcp.pop %v810
  %v819 = vmul.f32 %v772, %v811
  %v820 = vmul.f32 %v774, %v812
  %v821 = vmul.f32 %v776, %v813
  %v822 = vmul.f32 %v778, %v814
  %v823 = vmul.f32 %v780, %v815
  %v824 = vmul.f32 %v782, %v816
  %v825 = vmul.f32 %v784, %v817
  %v826 = vmul.f32 %v786, %v818
  %v828 = vsel %vm41, %v819, 0
  %830 = vmatprep.subr.mxu0 0.0
  %831 = vmatpush1.msra.mxu0 %v33
  %832 = vmatprep.subr.mxu0 0.0
  %833 = vmatpush1.msra.mxu0 0.0
  %834 = vmatprep.subr.mxu0 0.0
  %835 = vmatpush1.msra.mxu0 0.0
  %836 = vmatprep.subr.mxu0 0.0
  %837 = vmatpush1.msra.mxu0 0.0
  %838 = vmatprep.subr.mxu0 0.0
  %839 = vmatpush1.msra.mxu0 0.0
  %840 = vmatprep.subr.mxu0 0.0
  %841 = vmatpush1.msra.mxu0 0.0
  %842 = vmatprep.subr.mxu0 0.0
  %843 = vmatpush1.msra.mxu0 0.0
  %844 = vmatprep.subr.mxu0 0.0
  %845 = vmatpush1.msra.mxu0 0.0
  %846 = vmatprep.subr.mxu0 0.0
  %847 = vmatpush1.msra.mxu0 0.0
  %848 = vmatprep.subr.mxu0 0.0
  %849 = vmatpush1.msra.mxu0 0.0
  %850 = vmatprep.subr.mxu0 0.0
  %851 = vmatpush1.msra.mxu0 0.0
  %852 = vmatprep.subr.mxu0 0.0
  %853 = vmatpush1.msra.mxu0 0.0
  %854 = vmatprep.subr.mxu0 0.0
  %855 = vmatpush1.msra.mxu0 0.0
  %856 = vmatprep.subr.mxu0 0.0
  %857 = vmatpush1.msra.mxu0 0.0
  %858 = vmatprep.subr.mxu0 0.0
  %859 = vmatpush1.msra.mxu0 0.0
  %860 = vmatprep.subr.mxu0 0.0
  %861 = vmatpush1.msra.mxu0 0.0
  %862 = vmatprep.subr.mxu0 0.0
  %863 = vmatpush1.msra.mxu0 0.0
  %864 = vmatprep.subr.mxu0 0.0
  %865 = vmatpush1.msra.mxu0 0.0
  %866 = vmatprep.subr.mxu0 0.0
  %867 = vmatpush1.msra.mxu0 0.0
  %868 = vmatprep.subr.mxu0 0.0
  %869 = vmatpush1.msra.mxu0 0.0
  %870 = vmatprep.subr.mxu0 0.0
  %871 = vmatpush1.msra.mxu0 0.0
  %872 = vmatprep.subr.mxu0 0.0
  %873 = vmatpush1.msra.mxu0 0.0
  %874 = vmatprep.subr.mxu0 0.0
  %875 = vmatpush1.msra.mxu0 0.0
  %876 = vmatprep.subr.mxu0 0.0
  %877 = vmatpush1.msra.mxu0 0.0
  %878 = vmatprep.subr.mxu0 0.0
  %879 = vmatpush1.msra.mxu0 0.0
  %880 = vmatprep.subr.mxu0 0.0
  %881 = vmatpush1.msra.mxu0 0.0
  %882 = vmatprep.subr.mxu0 0.0
  %883 = vmatpush1.msra.mxu0 0.0
  %884 = vmatprep.subr.mxu0 0.0
  %885 = vmatpush1.msra.mxu0 0.0
  %886 = vmatprep.subr.mxu0 0.0
  %887 = vmatpush1.msra.mxu0 0.0
  %888 = vmatprep.subr.mxu0 0.0
  %889 = vmatpush1.msra.mxu0 0.0
  %890 = vmatprep.subr.mxu0 0.0
  %891 = vmatpush1.msra.mxu0 0.0
  %892 = vmatprep.subr.mxu0 0.0
  %893 = vmatpush1.msra.mxu0 0.0
  %894 = vmatprep.mubr.f32.mxu0 0.0
  %895 = vmatmul.mubr.f32.gmra.mrb[0].mxu0 %v828
  %v896 = vpop.f32.mrb[0].mxu0
  %v897 = vadd.f32 0.0, %v896
  %v898 = vpop.f32.mrb[0].mxu0
  %899 = vdwg.mxu0
  %v901 = vsel %vm41, %v820, 0
  %903 = vmatprep.subr.mxu0 0.0
  %904 = vmatpush1.msra.mxu0 %v34
  %905 = vmatprep.subr.mxu0 0.0
  %906 = vmatpush1.msra.mxu0 0.0
  %907 = vmatprep.subr.mxu0 0.0
  %908 = vmatpush1.msra.mxu0 0.0
  %909 = vmatprep.subr.mxu0 0.0
  %910 = vmatpush1.msra.mxu0 0.0
  %911 = vmatprep.subr.mxu0 0.0
  %912 = vmatpush1.msra.mxu0 0.0
  %913 = vmatprep.subr.mxu0 0.0
  %914 = vmatpush1.msra.mxu0 0.0
  %915 = vmatprep.subr.mxu0 0.0
  %916 = vmatpush1.msra.mxu0 0.0
  %917 = vmatprep.subr.mxu0 0.0
  %918 = vmatpush1.msra.mxu0 0.0
  %919 = vmatprep.subr.mxu0 0.0
  %920 = vmatpush1.msra.mxu0 0.0
  %921 = vmatprep.subr.mxu0 0.0
  %922 = vmatpush1.msra.mxu0 0.0
  %923 = vmatprep.subr.mxu0 0.0
  %924 = vmatpush1.msra.mxu0 0.0
  %925 = vmatprep.subr.mxu0 0.0
  %926 = vmatpush1.msra.mxu0 0.0
  %927 = vmatprep.subr.mxu0 0.0
  %928 = vmatpush1.msra.mxu0 0.0
  %929 = vmatprep.subr.mxu0 0.0
  %930 = vmatpush1.msra.mxu0 0.0
  %931 = vmatprep.subr.mxu0 0.0
  %932 = vmatpush1.msra.mxu0 0.0
  %933 = vmatprep.subr.mxu0 0.0
  %934 = vmatpush1.msra.mxu0 0.0
  %935 = vmatprep.subr.mxu0 0.0
  %936 = vmatpush1.msra.mxu0 0.0
  %937 = vmatprep.subr.mxu0 0.0
  %938 = vmatpush1.msra.mxu0 0.0
  %939 = vmatprep.subr.mxu0 0.0
  %940 = vmatpush1.msra.mxu0 0.0
  %941 = vmatprep.subr.mxu0 0.0
  %942 = vmatpush1.msra.mxu0 0.0
  %943 = vmatprep.subr.mxu0 0.0
  %944 = vmatpush1.msra.mxu0 0.0
  %945 = vmatprep.subr.mxu0 0.0
  %946 = vmatpush1.msra.mxu0 0.0
  %947 = vmatprep.subr.mxu0 0.0
  %948 = vmatpush1.msra.mxu0 0.0
  %949 = vmatprep.subr.mxu0 0.0
  %950 = vmatpush1.msra.mxu0 0.0
  %951 = vmatprep.subr.mxu0 0.0
  %952 = vmatpush1.msra.mxu0 0.0
  %953 = vmatprep.subr.mxu0 0.0
  %954 = vmatpush1.msra.mxu0 0.0
  %955 = vmatprep.subr.mxu0 0.0
  %956 = vmatpush1.msra.mxu0 0.0
  %957 = vmatprep.subr.mxu0 0.0
  %958 = vmatpush1.msra.mxu0 0.0
  %959 = vmatprep.subr.mxu0 0.0
  %960 = vmatpush1.msra.mxu0 0.0
  %961 = vmatprep.subr.mxu0 0.0
  %962 = vmatpush1.msra.mxu0 0.0
  %963 = vmatprep.subr.mxu0 0.0
  %964 = vmatpush1.msra.mxu0 0.0
  %965 = vmatprep.subr.mxu0 0.0
  %966 = vmatpush1.msra.mxu0 0.0
  %967 = vmatprep.mubr.f32.mxu0 0.0
  %968 = vmatmul.mubr.f32.gmra.mrb[0].mxu0 %v901
  %v969 = vpop.f32.mrb[0].mxu0
  %v970 = vadd.f32 0.0, %v969
  %v971 = vpop.f32.mrb[0].mxu0
  %972 = vdwg.mxu0
  %v974 = vsel %vm41, %v821, 0
  %976 = vmatprep.subr.mxu0 0.0
  %977 = vmatpush1.msra.mxu0 %v35
  %978 = vmatprep.subr.mxu0 0.0
  %979 = vmatpush1.msra.mxu0 0.0
  %980 = vmatprep.subr.mxu0 0.0
  %981 = vmatpush1.msra.mxu0 0.0
  %982 = vmatprep.subr.mxu0 0.0
  %983 = vmatpush1.msra.mxu0 0.0
  %984 = vmatprep.subr.mxu0 0.0
  %985 = vmatpush1.msra.mxu0 0.0
  %986 = vmatprep.subr.mxu0 0.0
  %987 = vmatpush1.msra.mxu0 0.0
  %988 = vmatprep.subr.mxu0 0.0
  %989 = vmatpush1.msra.mxu0 0.0
  %990 = vmatprep.subr.mxu0 0.0
  %991 = vmatpush1.msra.mxu0 0.0
  %992 = vmatprep.subr.mxu0 0.0
  %993 = vmatpush1.msra.mxu0 0.0
  %994 = vmatprep.subr.mxu0 0.0
  %995 = vmatpush1.msra.mxu0 0.0
  %996 = vmatprep.subr.mxu0 0.0
  %997 = vmatpush1.msra.mxu0 0.0
  %998 = vmatprep.subr.mxu0 0.0
  %999 = vmatpush1.msra.mxu0 0.0
  %1000 = vmatprep.subr.mxu0 0.0
  %1001 = vmatpush1.msra.mxu0 0.0
  %1002 = vmatprep.subr.mxu0 0.0
  %1003 = vmatpush1.msra.mxu0 0.0
  %1004 = vmatprep.subr.mxu0 0.0
  %1005 = vmatpush1.msra.mxu0 0.0
  %1006 = vmatprep.subr.mxu0 0.0
  %1007 = vmatpush1.msra.mxu0 0.0
  %1008 = vmatprep.subr.mxu0 0.0
  %1009 = vmatpush1.msra.mxu0 0.0
  %1010 = vmatprep.subr.mxu0 0.0
  %1011 = vmatpush1.msra.mxu0 0.0
  %1012 = vmatprep.subr.mxu0 0.0
  %1013 = vmatpush1.msra.mxu0 0.0
  %1014 = vmatprep.subr.mxu0 0.0
  %1015 = vmatpush1.msra.mxu0 0.0
  %1016 = vmatprep.subr.mxu0 0.0
  %1017 = vmatpush1.msra.mxu0 0.0
  %1018 = vmatprep.subr.mxu0 0.0
  %1019 = vmatpush1.msra.mxu0 0.0
  %1020 = vmatprep.subr.mxu0 0.0
  %1021 = vmatpush1.msra.mxu0 0.0
  %1022 = vmatprep.subr.mxu0 0.0
  %1023 = vmatpush1.msra.mxu0 0.0
  %1024 = vmatprep.subr.mxu0 0.0
  %1025 = vmatpush1.msra.mxu0 0.0
  %1026 = vmatprep.subr.mxu0 0.0
  %1027 = vmatpush1.msra.mxu0 0.0
  %1028 = vmatprep.subr.mxu0 0.0
  %1029 = vmatpush1.msra.mxu0 0.0
  %1030 = vmatprep.subr.mxu0 0.0
  %1031 = vmatpush1.msra.mxu0 0.0
  %1032 = vmatprep.subr.mxu0 0.0
  %1033 = vmatpush1.msra.mxu0 0.0
  %1034 = vmatprep.subr.mxu0 0.0
  %1035 = vmatpush1.msra.mxu0 0.0
  %1036 = vmatprep.subr.mxu0 0.0
  %1037 = vmatpush1.msra.mxu0 0.0
  %1038 = vmatprep.subr.mxu0 0.0
  %1039 = vmatpush1.msra.mxu0 0.0
  %1040 = vmatprep.mubr.f32.mxu0 0.0
  %1041 = vmatmul.mubr.f32.gmra.mrb[0].mxu0 %v974
  %v1042 = vpop.f32.mrb[0].mxu0
  %v1043 = vadd.f32 0.0, %v1042
  %v1044 = vpop.f32.mrb[0].mxu0
  %1045 = vdwg.mxu0
  %v1047 = vsel %vm41, %v822, 0
  %1049 = vmatprep.subr.mxu0 0.0
  %1050 = vmatpush1.msra.mxu0 %v36
  %1051 = vmatprep.subr.mxu0 0.0
  %1052 = vmatpush1.msra.mxu0 0.0
  %1053 = vmatprep.subr.mxu0 0.0
  %1054 = vmatpush1.msra.mxu0 0.0
  %1055 = vmatprep.subr.mxu0 0.0
  %1056 = vmatpush1.msra.mxu0 0.0
  %1057 = vmatprep.subr.mxu0 0.0
  %1058 = vmatpush1.msra.mxu0 0.0
  %1059 = vmatprep.subr.mxu0 0.0
  %1060 = vmatpush1.msra.mxu0 0.0
  %1061 = vmatprep.subr.mxu0 0.0
  %1062 = vmatpush1.msra.mxu0 0.0
  %1063 = vmatprep.subr.mxu0 0.0
  %1064 = vmatpush1.msra.mxu0 0.0
  %1065 = vmatprep.subr.mxu0 0.0
  %1066 = vmatpush1.msra.mxu0 0.0
  %1067 = vmatprep.subr.mxu0 0.0
  %1068 = vmatpush1.msra.mxu0 0.0
  %1069 = vmatprep.subr.mxu0 0.0
  %1070 = vmatpush1.msra.mxu0 0.0
  %1071 = vmatprep.subr.mxu0 0.0
  %1072 = vmatpush1.msra.mxu0 0.0
  %1073 = vmatprep.subr.mxu0 0.0
  %1074 = vmatpush1.msra.mxu0 0.0
  %1075 = vmatprep.subr.mxu0 0.0
  %1076 = vmatpush1.msra.mxu0 0.0
  %1077 = vmatprep.subr.mxu0 0.0
  %1078 = vmatpush1.msra.mxu0 0.0
  %1079 = vmatprep.subr.mxu0 0.0
  %1080 = vmatpush1.msra.mxu0 0.0
  %1081 = vmatprep.subr.mxu0 0.0
  %1082 = vmatpush1.msra.mxu0 0.0
  %1083 = vmatprep.subr.mxu0 0.0
  %1084 = vmatpush1.msra.mxu0 0.0
  %1085 = vmatprep.subr.mxu0 0.0
  %1086 = vmatpush1.msra.mxu0 0.0
  %1087 = vmatprep.subr.mxu0 0.0
  %1088 = vmatpush1.msra.mxu0 0.0
  %1089 = vmatprep.subr.mxu0 0.0
  %1090 = vmatpush1.msra.mxu0 0.0
  %1091 = vmatprep.subr.mxu0 0.0
  %1092 = vmatpush1.msra.mxu0 0.0
  %1093 = vmatprep.subr.mxu0 0.0
  %1094 = vmatpush1.msra.mxu0 0.0
  %1095 = vmatprep.subr.mxu0 0.0
  %1096 = vmatpush1.msra.mxu0 0.0
  %1097 = vmatprep.subr.mxu0 0.0
  %1098 = vmatpush1.msra.mxu0 0.0
  %1099 = vmatprep.subr.mxu0 0.0
  %1100 = vmatpush1.msra.mxu0 0.0
  %1101 = vmatprep.subr.mxu0 0.0
  %1102 = vmatpush1.msra.mxu0 0.0
  %1103 = vmatprep.subr.mxu0 0.0
  %1104 = vmatpush1.msra.mxu0 0.0
  %1105 = vmatprep.subr.mxu0 0.0
  %1106 = vmatpush1.msra.mxu0 0.0
  %1107 = vmatprep.subr.mxu0 0.0
  %1108 = vmatpush1.msra.mxu0 0.0
  %1109 = vmatprep.subr.mxu0 0.0
  %1110 = vmatpush1.msra.mxu0 0.0
  %1111 = vmatprep.subr.mxu0 0.0
  %1112 = vmatpush1.msra.mxu0 0.0
  %1113 = vmatprep.mubr.f32.mxu0 0.0
  %1114 = vmatmul.mubr.f32.gmra.mrb[0].mxu0 %v1047
  %v1115 = vpop.f32.mrb[0].mxu0
  %v1116 = vadd.f32 0.0, %v1115
  %v1117 = vpop.f32.mrb[0].mxu0
  %1118 = vdwg.mxu0
  %v1120 = vsel %vm41, %v823, 0
  %1122 = vmatprep.subr.mxu0 0.0
  %1123 = vmatpush1.msra.mxu0 %v37
  %1124 = vmatprep.subr.mxu0 0.0
  %1125 = vmatpush1.msra.mxu0 0.0
  %1126 = vmatprep.subr.mxu0 0.0
  %1127 = vmatpush1.msra.mxu0 0.0
  %1128 = vmatprep.subr.mxu0 0.0
  %1129 = vmatpush1.msra.mxu0 0.0
  %1130 = vmatprep.subr.mxu0 0.0
  %1131 = vmatpush1.msra.mxu0 0.0
  %1132 = vmatprep.subr.mxu0 0.0
  %1133 = vmatpush1.msra.mxu0 0.0
  %1134 = vmatprep.subr.mxu0 0.0
  %1135 = vmatpush1.msra.mxu0 0.0
  %1136 = vmatprep.subr.mxu0 0.0
  %1137 = vmatpush1.msra.mxu0 0.0
  %1138 = vmatprep.subr.mxu0 0.0
  %1139 = vmatpush1.msra.mxu0 0.0
  %1140 = vmatprep.subr.mxu0 0.0
  %1141 = vmatpush1.msra.mxu0 0.0
  %1142 = vmatprep.subr.mxu0 0.0
  %1143 = vmatpush1.msra.mxu0 0.0
  %1144 = vmatprep.subr.mxu0 0.0
  %1145 = vmatpush1.msra.mxu0 0.0
  %1146 = vmatprep.subr.mxu0 0.0
  %1147 = vmatpush1.msra.mxu0 0.0
  %1148 = vmatprep.subr.mxu0 0.0
  %1149 = vmatpush1.msra.mxu0 0.0
  %1150 = vmatprep.subr.mxu0 0.0
  %1151 = vmatpush1.msra.mxu0 0.0
  %1152 = vmatprep.subr.mxu0 0.0
  %1153 = vmatpush1.msra.mxu0 0.0
  %1154 = vmatprep.subr.mxu0 0.0
  %1155 = vmatpush1.msra.mxu0 0.0
  %1156 = vmatprep.subr.mxu0 0.0
  %1157 = vmatpush1.msra.mxu0 0.0
  %1158 = vmatprep.subr.mxu0 0.0
  %1159 = vmatpush1.msra.mxu0 0.0
  %1160 = vmatprep.subr.mxu0 0.0
  %1161 = vmatpush1.msra.mxu0 0.0
  %1162 = vmatprep.subr.mxu0 0.0
  %1163 = vmatpush1.msra.mxu0 0.0
  %1164 = vmatprep.subr.mxu0 0.0
  %1165 = vmatpush1.msra.mxu0 0.0
  %1166 = vmatprep.subr.mxu0 0.0
  %1167 = vmatpush1.msra.mxu0 0.0
  %1168 = vmatprep.subr.mxu0 0.0
  %1169 = vmatpush1.msra.mxu0 0.0
  %1170 = vmatprep.subr.mxu0 0.0
  %1171 = vmatpush1.msra.mxu0 0.0
  %1172 = vmatprep.subr.mxu0 0.0
  %1173 = vmatpush1.msra.mxu0 0.0
  %1174 = vmatprep.subr.mxu0 0.0
  %1175 = vmatpush1.msra.mxu0 0.0
  %1176 = vmatprep.subr.mxu0 0.0
  %1177 = vmatpush1.msra.mxu0 0.0
  %1178 = vmatprep.subr.mxu0 0.0
  %1179 = vmatpush1.msra.mxu0 0.0
  %1180 = vmatprep.subr.mxu0 0.0
  %1181 = vmatpush1.msra.mxu0 0.0
  %1182 = vmatprep.subr.mxu0 0.0
  %1183 = vmatpush1.msra.mxu0 0.0
  %1184 = vmatprep.subr.mxu0 0.0
  %1185 = vmatpush1.msra.mxu0 0.0
  %1186 = vmatprep.mubr.f32.mxu0 0.0
  %1187 = vmatmul.mubr.f32.gmra.mrb[0].mxu0 %v1120
  %v1188 = vpop.f32.mrb[0].mxu0
  %v1189 = vadd.f32 0.0, %v1188
  %v1190 = vpop.f32.mrb[0].mxu0
  %1191 = vdwg.mxu0
  %v1193 = vsel %vm41, %v824, 0
  %1195 = vmatprep.subr.mxu0 0.0
  %1196 = vmatpush1.msra.mxu0 %v38
  %1197 = vmatprep.subr.mxu0 0.0
  %1198 = vmatpush1.msra.mxu0 0.0
  %1199 = vmatprep.subr.mxu0 0.0
  %1200 = vmatpush1.msra.mxu0 0.0
  %1201 = vmatprep.subr.mxu0 0.0
  %1202 = vmatpush1.msra.mxu0 0.0
  %1203 = vmatprep.subr.mxu0 0.0
  %1204 = vmatpush1.msra.mxu0 0.0
  %1205 = vmatprep.subr.mxu0 0.0
  %1206 = vmatpush1.msra.mxu0 0.0
  %1207 = vmatprep.subr.mxu0 0.0
  %1208 = vmatpush1.msra.mxu0 0.0
  %1209 = vmatprep.subr.mxu0 0.0
  %1210 = vmatpush1.msra.mxu0 0.0
  %1211 = vmatprep.subr.mxu0 0.0
  %1212 = vmatpush1.msra.mxu0 0.0
  %1213 = vmatprep.subr.mxu0 0.0
  %1214 = vmatpush1.msra.mxu0 0.0
  %1215 = vmatprep.subr.mxu0 0.0
  %1216 = vmatpush1.msra.mxu0 0.0
  %1217 = vmatprep.subr.mxu0 0.0
  %1218 = vmatpush1.msra.mxu0 0.0
  %1219 = vmatprep.subr.mxu0 0.0
  %1220 = vmatpush1.msra.mxu0 0.0
  %1221 = vmatprep.subr.mxu0 0.0
  %1222 = vmatpush1.msra.mxu0 0.0
  %1223 = vmatprep.subr.mxu0 0.0
  %1224 = vmatpush1.msra.mxu0 0.0
  %1225 = vmatprep.subr.mxu0 0.0
  %1226 = vmatpush1.msra.mxu0 0.0
  %1227 = vmatprep.subr.mxu0 0.0
  %1228 = vmatpush1.msra.mxu0 0.0
  %1229 = vmatprep.subr.mxu0 0.0
  %1230 = vmatpush1.msra.mxu0 0.0
  %1231 = vmatprep.subr.mxu0 0.0
  %1232 = vmatpush1.msra.mxu0 0.0
  %1233 = vmatprep.subr.mxu0 0.0
  %1234 = vmatpush1.msra.mxu0 0.0
  %1235 = vmatprep.subr.mxu0 0.0
  %1236 = vmatpush1.msra.mxu0 0.0
  %1237 = vmatprep.subr.mxu0 0.0
  %1238 = vmatpush1.msra.mxu0 0.0
  %1239 = vmatprep.subr.mxu0 0.0
  %1240 = vmatpush1.msra.mxu0 0.0
  %1241 = vmatprep.subr.mxu0 0.0
  %1242 = vmatpush1.msra.mxu0 0.0
  %1243 = vmatprep.subr.mxu0 0.0
  %1244 = vmatpush1.msra.mxu0 0.0
  %1245 = vmatprep.subr.mxu0 0.0
  %1246 = vmatpush1.msra.mxu0 0.0
  %1247 = vmatprep.subr.mxu0 0.0
  %1248 = vmatpush1.msra.mxu0 0.0
  %1249 = vmatprep.subr.mxu0 0.0
  %1250 = vmatpush1.msra.mxu0 0.0
  %1251 = vmatprep.subr.mxu0 0.0
  %1252 = vmatpush1.msra.mxu0 0.0
  %1253 = vmatprep.subr.mxu0 0.0
  %1254 = vmatpush1.msra.mxu0 0.0
  %1255 = vmatprep.subr.mxu0 0.0
  %1256 = vmatpush1.msra.mxu0 0.0
  %1257 = vmatprep.subr.mxu0 0.0
  %1258 = vmatpush1.msra.mxu0 0.0
  %1259 = vmatprep.mubr.f32.mxu0 0.0
  %1260 = vmatmul.mubr.f32.gmra.mrb[0].mxu0 %v1193
  %v1261 = vpop.f32.mrb[0].mxu0
  %v1262 = vadd.f32 0.0, %v1261
  %v1263 = vpop.f32.mrb[0].mxu0
  %1264 = vdwg.mxu0
  %v1266 = vsel %vm41, %v825, 0
  %1268 = vmatprep.subr.mxu0 0.0
  %1269 = vmatpush1.msra.mxu0 %v39
  %1270 = vmatprep.subr.mxu0 0.0
  %1271 = vmatpush1.msra.mxu0 0.0
  %1272 = vmatprep.subr.mxu0 0.0
  %1273 = vmatpush1.msra.mxu0 0.0
  %1274 = vmatprep.subr.mxu0 0.0
  %1275 = vmatpush1.msra.mxu0 0.0
  %1276 = vmatprep.subr.mxu0 0.0
  %1277 = vmatpush1.msra.mxu0 0.0
  %1278 = vmatprep.subr.mxu0 0.0
  %1279 = vmatpush1.msra.mxu0 0.0
  %1280 = vmatprep.subr.mxu0 0.0
  %1281 = vmatpush1.msra.mxu0 0.0
  %1282 = vmatprep.subr.mxu0 0.0
  %1283 = vmatpush1.msra.mxu0 0.0
  %1284 = vmatprep.subr.mxu0 0.0
  %1285 = vmatpush1.msra.mxu0 0.0
  %1286 = vmatprep.subr.mxu0 0.0
  %1287 = vmatpush1.msra.mxu0 0.0
  %1288 = vmatprep.subr.mxu0 0.0
  %1289 = vmatpush1.msra.mxu0 0.0
  %1290 = vmatprep.subr.mxu0 0.0
  %1291 = vmatpush1.msra.mxu0 0.0
  %1292 = vmatprep.subr.mxu0 0.0
  %1293 = vmatpush1.msra.mxu0 0.0
  %1294 = vmatprep.subr.mxu0 0.0
  %1295 = vmatpush1.msra.mxu0 0.0
  %1296 = vmatprep.subr.mxu0 0.0
  %1297 = vmatpush1.msra.mxu0 0.0
  %1298 = vmatprep.subr.mxu0 0.0
  %1299 = vmatpush1.msra.mxu0 0.0
  %1300 = vmatprep.subr.mxu0 0.0
  %1301 = vmatpush1.msra.mxu0 0.0
  %1302 = vmatprep.subr.mxu0 0.0
  %1303 = vmatpush1.msra.mxu0 0.0
  %1304 = vmatprep.subr.mxu0 0.0
  %1305 = vmatpush1.msra.mxu0 0.0
  %1306 = vmatprep.subr.mxu0 0.0
  %1307 = vmatpush1.msra.mxu0 0.0
  %1308 = vmatprep.subr.mxu0 0.0
  %1309 = vmatpush1.msra.mxu0 0.0
  %1310 = vmatprep.subr.mxu0 0.0
  %1311 = vmatpush1.msra.mxu0 0.0
  %1312 = vmatprep.subr.mxu0 0.0
  %1313 = vmatpush1.msra.mxu0 0.0
  %1314 = vmatprep.subr.mxu0 0.0
  %1315 = vmatpush1.msra.mxu0 0.0
  %1316 = vmatprep.subr.mxu0 0.0
  %1317 = vmatpush1.msra.mxu0 0.0
  %1318 = vmatprep.subr.mxu0 0.0
  %1319 = vmatpush1.msra.mxu0 0.0
  %1320 = vmatprep.subr.mxu0 0.0
  %1321 = vmatpush1.msra.mxu0 0.0
  %1322 = vmatprep.subr.mxu0 0.0
  %1323 = vmatpush1.msra.mxu0 0.0
  %1324 = vmatprep.subr.mxu0 0.0
  %1325 = vmatpush1.msra.mxu0 0.0
  %1326 = vmatprep.subr.mxu0 0.0
  %1327 = vmatpush1.msra.mxu0 0.0
  %1328 = vmatprep.subr.mxu0 0.0
  %1329 = vmatpush1.msra.mxu0 0.0
  %1330 = vmatprep.subr.mxu0 0.0
  %1331 = vmatpush1.msra.mxu0 0.0
  %1332 = vmatprep.mubr.f32.mxu0 0.0
  %1333 = vmatmul.mubr.f32.gmra.mrb[0].mxu0 %v1266
  %v1334 = vpop.f32.mrb[0].mxu0
  %v1335 = vadd.f32 0.0, %v1334
  %v1336 = vpop.f32.mrb[0].mxu0
  %1337 = vdwg.mxu0
  %v1339 = vsel %vm41, %v826, 0
  %1341 = vmatprep.subr.mxu0 0.0
  %1342 = vmatpush1.msra.mxu0 %v40
  %1343 = vmatprep.subr.mxu0 0.0
  %1344 = vmatpush1.msra.mxu0 0.0
  %1345 = vmatprep.subr.mxu0 0.0
  %1346 = vmatpush1.msra.mxu0 0.0
  %1347 = vmatprep.subr.mxu0 0.0
  %1348 = vmatpush1.msra.mxu0 0.0
  %1349 = vmatprep.subr.mxu0 0.0
  %1350 = vmatpush1.msra.mxu0 0.0
  %1351 = vmatprep.subr.mxu0 0.0
  %1352 = vmatpush1.msra.mxu0 0.0
  %1353 = vmatprep.subr.mxu0 0.0
  %1354 = vmatpush1.msra.mxu0 0.0
  %1355 = vmatprep.subr.mxu0 0.0
  %1356 = vmatpush1.msra.mxu0 0.0
  %1357 = vmatprep.subr.mxu0 0.0
  %1358 = vmatpush1.msra.mxu0 0.0
  %1359 = vmatprep.subr.mxu0 0.0
  %1360 = vmatpush1.msra.mxu0 0.0
  %1361 = vmatprep.subr.mxu0 0.0
  %1362 = vmatpush1.msra.mxu0 0.0
  %1363 = vmatprep.subr.mxu0 0.0
  %1364 = vmatpush1.msra.mxu0 0.0
  %1365 = vmatprep.subr.mxu0 0.0
  %1366 = vmatpush1.msra.mxu0 0.0
  %1367 = vmatprep.subr.mxu0 0.0
  %1368 = vmatpush1.msra.mxu0 0.0
  %1369 = vmatprep.subr.mxu0 0.0
  %1370 = vmatpush1.msra.mxu0 0.0
  %1371 = vmatprep.subr.mxu0 0.0
  %1372 = vmatpush1.msra.mxu0 0.0
  %1373 = vmatprep.subr.mxu0 0.0
  %1374 = vmatpush1.msra.mxu0 0.0
  %1375 = vmatprep.subr.mxu0 0.0
  %1376 = vmatpush1.msra.mxu0 0.0
  %1377 = vmatprep.subr.mxu0 0.0
  %1378 = vmatpush1.msra.mxu0 0.0
  %1379 = vmatprep.subr.mxu0 0.0
  %1380 = vmatpush1.msra.mxu0 0.0
  %1381 = vmatprep.subr.mxu0 0.0
  %1382 = vmatpush1.msra.mxu0 0.0
  %1383 = vmatprep.subr.mxu0 0.0
  %1384 = vmatpush1.msra.mxu0 0.0
  %1385 = vmatprep.subr.mxu0 0.0
  %1386 = vmatpush1.msra.mxu0 0.0
  %1387 = vmatprep.subr.mxu0 0.0
  %1388 = vmatpush1.msra.mxu0 0.0
  %1389 = vmatprep.subr.mxu0 0.0
  %1390 = vmatpush1.msra.mxu0 0.0
  %1391 = vmatprep.subr.mxu0 0.0
  %1392 = vmatpush1.msra.mxu0 0.0
  %1393 = vmatprep.subr.mxu0 0.0
  %1394 = vmatpush1.msra.mxu0 0.0
  %1395 = vmatprep.subr.mxu0 0.0
  %1396 = vmatpush1.msra.mxu0 0.0
  %1397 = vmatprep.subr.mxu0 0.0
  %1398 = vmatpush1.msra.mxu0 0.0
  %1399 = vmatprep.subr.mxu0 0.0
  %1400 = vmatpush1.msra.mxu0 0.0
  %1401 = vmatprep.subr.mxu0 0.0
  %1402 = vmatpush1.msra.mxu0 0.0
  %1403 = vmatprep.subr.mxu0 0.0
  %1404 = vmatpush1.msra.mxu0 0.0
  %1405 = vmatprep.mubr.f32.mxu0 0.0
  %1406 = vmatmul.mubr.f32.gmra.mrb[0].mxu0 %v1339
  %v1407 = vpop.f32.mrb[0].mxu0
  %v1408 = vadd.f32 0.0, %v1407
  %v1409 = vpop.f32.mrb[0].mxu0
  %1410 = vdwg.mxu0
  %1411 = vst.msk [vmem:[%s4] sm:$0x7f] %vm738, %v897
  %1412 = vst.msk [vmem:[%s4 + $0x8] sm:$0x7f] %vm738, %v970
  %1413 = vst.msk [vmem:[%s4 + $0x10] sm:$0x7f] %vm738, %v1043
  %1414 = vst.msk [vmem:[%s4 + $0x18] sm:$0x7f] %vm738, %v1116
  %1415 = vst.msk [vmem:[%s4 + $0x20] sm:$0x7f] %vm738, %v1189
  %1416 = vst.msk [vmem:[%s4 + $0x28] sm:$0x7f] %vm738, %v1262
  %1417 = vst.msk [vmem:[%s4 + $0x30] sm:$0x7f] %vm738, %v1335
  %1418 = vst.msk [vmem:[%s4 + $0x38] sm:$0x7f] %vm738, %v1408
  // Predicated region
  $region18: #{_seq2seq_core.42} parent=0 // pred_check
    _
  $region19: #{_seq2seq_core.42} parent=0 // pred_check_branch
    %1420 = sbr.rel (0) target = $region21
  $region20: #{_seq2seq_core.42} parent=0 // pred_region
    _
  $region21: #{_seq2seq_core.42} parent=0 // pred_fallthru
    _
  // Predicated region
  $region22: #{_seq2seq_core.42} parent=0 // pred_check
    _
  $region23: #{_seq2seq_core.42} parent=0 // pred_check_branch
    %1422 = sbr.rel (0) target = $region25
  $region24: #{_seq2seq_core.42} parent=0 // pred_region
    _
  $region25: #{_seq2seq_core.42} parent=0 // pred_fallthru
    _

</llo_original>
